<compile_context>
chip_gen: v7x
topology: tpu7x:2x2x1
jax: 0.10.0
libtpu: 0.0.40
codegen_flags: <defaults>
</compile_context>

<pallas_src>
import functools
import math

import jax
import jax.numpy as jnp
from jax import lax
from jax.experimental import pallas as pl
from jax.experimental.pallas import tpu as pltpu


# ----------------------------------------------------------------------------
# Fused Pallas kernel (one batch element per grid step)
# ----------------------------------------------------------------------------
def _pnet_kernel(x_ref, w1_ref, b1_ref, a1_ref, w2_ref, b2_ref, a2_ref,
                 w3_ref, b3_ref, a3_ref, wh_ref, bh_ref, out_ref,
                 pooled_ref, h2_ref, *, wq, lp, l2, l3):
    """conv1+PReLU, maxpool 2x2/2, conv2+PReLU, conv3+PReLU, fused 1x1 heads.

    All activations are (C, cols): channels on sublanes, flattened
    half-resolution spatial index (row stride `wq`) on lanes.  `x_ref` holds
    the four input parity quadrants stacked on the sublane axis: rows
    [3q : 3q+3] are the channels of quadrant q = 2*(row parity)+(col parity).
    Columns past each valid row hold finite garbage that is never read at any
    valid downstream position.
    """

    def conv1_parity(pp, qq):
        # conv1 output at original pixel (2*oh + pp, 2*ow + qq), stored at
        # column oh*wq + ow.  Each 3x3 tap is one (10,3)x(3,lp) MXU matmul
        # against a static lane-offset slice of the right parity quadrant.
        acc = jnp.zeros((10, lp), jnp.float32)
        for kh in range(3):
            for kw in range(3):
                quad = ((pp + kh) % 2) * 2 + ((qq + kw) % 2)
                off = ((pp + kh) // 2) * wq + ((qq + kw) // 2)
                acc = acc + jnp.dot(
                    w1_ref[kh * 3 + kw],
                    x_ref[0, 3 * quad:3 * quad + 3, pl.ds(off, lp)],
                    preferred_element_type=jnp.float32)
        acc = acc + b1_ref[...]
        return jnp.where(acc >= 0.0, acc, a1_ref[...] * acc)    # PReLU

    # MaxPool(2,2)/2 == elementwise max of the four conv1 parity grids.
    pooled = conv1_parity(0, 0)
    pooled = jnp.maximum(pooled, conv1_parity(0, 1))
    pooled = jnp.maximum(pooled, conv1_parity(1, 0))
    pooled = jnp.maximum(pooled, conv1_parity(1, 1))
    pooled_ref[...] = pooled        # stage in VMEM -> conv2 taps slice a ref

    def conv3x3_prelu(src_ref, w_ref, b_ref, a_ref, cols_out):
        cout = w_ref.shape[1]
        acc = jnp.zeros((cout, cols_out), jnp.float32)
        for kh in range(3):
            for kw in range(3):
                acc = acc + jnp.dot(
                    w_ref[kh * 3 + kw],
                    src_ref[:, pl.ds(kh * wq + kw, cols_out)],
                    preferred_element_type=jnp.float32)
        acc = acc + b_ref[...]
        return jnp.where(acc >= 0.0, acc, a_ref[...] * acc)

    h2_ref[...] = conv3x3_prelu(pooled_ref, w2_ref, b2_ref, a2_ref, l2)
    h3 = conv3x3_prelu(h2_ref, w3_ref, b3_ref, a3_ref, l3)       # (32, l3)

    # Fused 1x1 heads: rows = [cls | bbox(4) | landmark(10)].  Sigmoid on the
    # cls row only; one lane-dense (15, l3) store.
    z = jnp.dot(wh_ref[...], h3,
                preferred_element_type=jnp.float32) + bh_ref[...]
    out_ref[0, 1:15, :] = z[1:15, :]
    out_ref[0, 0:1, :] = 1.0 / (1.0 + jnp.exp(-z[0:1, :]))


# ----------------------------------------------------------------------------
# Wrapper
# ----------------------------------------------------------------------------
def _const_spec(shape):
    zeros = (0,) * len(shape)
    return pl.BlockSpec(shape, lambda b, _z=zeros: _z)


@jax.jit
def pnet_forward(x_nchw, p):
    """PNet forward. NCHW input -> (cls, bbox, landmark), all NCHW."""
    n, c0, h0, w0 = x_nchw.shape
    assert c0 == 3
    # An odd trailing row/column can never influence a PNet output (valid
    # convs + floor-mode pooling), so trim to even spatial dims.
    h0t, w0t = (h0 // 2) * 2, (w0 // 2) * 2
    x = x_nchw[:, :, :h0t, :w0t].astype(jnp.float32)
    hq, wq = h0t // 2, w0t // 2              # half-resolution (pool) grid
    h3, w3 = hq - 5, wq - 5                  # final feature-map size
    assert h3 >= 1 and w3 >= 1, "input too small for PNet"

    # Flattened column counts (row stride wq) per stage so every static tap
    # slice downstream stays in bounds.
    l3 = h3 * wq                             # conv3 / heads columns
    l2 = l3 + 2 * wq + 2                     # conv2 output columns
    lp = l2 + 2 * wq + 2                     # pooled columns
    lq = lp + wq + 1                         # quadrant columns (== hq*wq + 5)

    # Parity quadrants, channels stacked on the sublane axis:
    # rows [3q:3q+3] of xq are x[:, :, pp::2, qq::2] with q = 2*pp + qq.
    quads = [x[:, :, pp::2, qq::2].reshape(n, c0, hq * wq)
             for pp in (0, 1) for qq in (0, 1)]
    xq = jnp.concatenate(quads, axis=1)                     # (n, 12, hq*wq)
    xq = jnp.pad(xq, ((0, 0), (0, 0), (0, lq - hq * wq)))   # slice-safety tail

    kernel = functools.partial(_pnet_kernel, wq=wq, lp=lp, l2=l2, l3=l3)
    operands = (xq, p["w1"], p["b1"], p["a1"], p["w2"], p["b2"], p["a2"],
                p["w3"], p["b3"], p["a3"], p["wh"], p["bh"])
    in_specs = [pl.BlockSpec((1, 4 * c0, lq), lambda b: (b, 0, 0))]
    in_specs += [_const_spec(op.shape) for op in operands[1:]]

    # Rough VMEM budget: double-buffered in/out blocks + scratch + value
    # temporaries, clamped to [32 MiB, 64 MiB] so it is valid on v5e/v6e/v7x.
    words = (2 * (12 * lq + 15 * l3) + 10 * lp + 16 * l2
             + 2 * (2 * 10 * lp + 16 * l2 + 32 * l3 + 15 * l3))
    vmem_bytes = int(min(64 << 20, max(32 << 20, 4 * words + (8 << 20))))

    out = pl.pallas_call(
        kernel,
        grid=(n,),
        in_specs=in_specs,
        out_specs=pl.BlockSpec((1, 15, l3), lambda b: (b, 0, 0)),
        out_shape=jax.ShapeDtypeStruct((n, 15, l3), jnp.float32),
        scratch_shapes=[pltpu.VMEM((10, lp), jnp.float32),
                        pltpu.VMEM((16, l2), jnp.float32)],
        compiler_params=pltpu.CompilerParams(
            dimension_semantics=("parallel",),
            vmem_limit_bytes=vmem_bytes),
    )(*operands)

    # Columns are oh*wq + ow; valid ow < w3.  Channel dim is already dim 1,
    # so the result is NCHW without any transpose.
    out = out.reshape(n, 15, h3, wq)[:, :, :, :w3]
    return out[:, 0:1], out[:, 1:5], out[:, 5:15]


# ----------------------------------------------------------------------------
# Parameters (xavier_uniform weights, bias=0.1, shared PReLU slope=0.25)
# ----------------------------------------------------------------------------
def _xavier_conv3x3(key, cout, cin):
    fan_in, fan_out = cin * 9, cout * 9
    limit = math.sqrt(6.0 / (fan_in + fan_out))
    w = jax.random.uniform(key, (cout, cin, 3, 3), jnp.float32, -limit, limit)
    # (cout, cin, kh, kw) -> (kh*3+kw, cout, cin): tap-major, ready for W @ x.
    return jnp.transpose(w, (2, 3, 0, 1)).reshape(9, cout, cin)


def _xavier_1x1(key, cout, cin):
    limit = math.sqrt(6.0 / (cin + cout))
    return jax.random.uniform(key, (cout, cin), jnp.float32, -limit, limit)


def init_pnet_params(key):
    ks = jax.random.split(key, 6)
    wc = _xavier_1x1(ks[3], 1, 32)
    wb = _xavier_1x1(ks[4], 4, 32)
    wl = _xavier_1x1(ks[5], 10, 32)
    return {
        "w1": _xavier_conv3x3(ks[0], 10, 3),
        "b1": jnp.full((10, 1), 0.1, jnp.float32),
        "a1": jnp.full((1, 1), 0.25, jnp.float32),
        "w2": _xavier_conv3x3(ks[1], 16, 10),
        "b2": jnp.full((16, 1), 0.1, jnp.float32),
        "a2": jnp.full((1, 1), 0.25, jnp.float32),
        "w3": _xavier_conv3x3(ks[2], 32, 16),
        "b3": jnp.full((32, 1), 0.1, jnp.float32),
        "a3": jnp.full((1, 1), 0.25, jnp.float32),
        # fused 1x1 heads: rows = [cls | bbox | landmark]
        "wh": jnp.concatenate([wc, wb, wl], axis=0),   # (15, 32)
        "bh": jnp.full((15, 1), 0.1, jnp.float32),
    }


# ----------------------------------------------------------------------------
# Pure-JAX reference for correctness checking
# ----------------------------------------------------------------------------
def _ref_forward(x_nchw, p):
    dn = ("NHWC", "HWIO", "NHWC")

    def conv(x, w_hwio, b):
        y = lax.conv_general_dilated(x, w_hwio, (1, 1), "VALID",
                                     dimension_numbers=dn,
                                     precision=lax.Precision.HIGHEST)
        return y + b.reshape(1, 1, 1, -1)

    def prelu(v, a):
        return jnp.where(v >= 0, v, a[0, 0] * v)

    def taps_to_hwio(w):                       # (9, cout, cin) -> (3,3,cin,cout)
        _, cout, cin = w.shape
        return jnp.transpose(w.reshape(3, 3, cout, cin), (0, 1, 3, 2))

    x = jnp.transpose(x_nchw.astype(jnp.float32), (0, 2, 3, 1))
    x = prelu(conv(x, taps_to_hwio(p["w1"]), p["b1"][:, 0]), p["a1"])
    x = lax.reduce_window(x, -jnp.inf, lax.max,
                          (1, 2, 2, 1), (1, 2, 2, 1), "VALID")
    x = prelu(conv(x, taps_to_hwio(p["w2"]), p["b2"][:, 0]), p["a2"])
    x = prelu(conv(x, taps_to_hwio(p["w3"]), p["b3"][:, 0]), p["a3"])
    wh = jnp.transpose(p["wh"])[None, None]    # (1,1,32,15) HWIO
    z = conv(x, wh, p["bh"][:, 0])
    cls_ = jax.nn.sigmoid(z[..., 0:1])
    bbox_ = z[..., 1:5]
    lm_ = z[..., 5:15]
    t = lambda v: jnp.transpose(v, (0, 3, 1, 2))
    return t(cls_), t(bbox_), t(lm_)


if __name__ == "__main__":
    key = jax.random.PRNGKey(0)
    kp, kx = jax.random.split(key)
    params = init_pnet_params(kp)
    x = jax.random.normal(kx, (2, 3, 16, 16), jnp.float32)   # NCHW, like PyTorch

    cls_, bbox_, lm_ = pnet_forward(x, params)
    jax.block_until_ready((cls_, bbox_, lm_))

    assert cls_.shape == (2, 1, 3, 3)
    assert bbox_.shape == (2, 4, 3, 3)
    assert lm_.shape == (2, 10, 3, 3)

    rc, rb, rl = _ref_forward(x, params)
    for got, want in ((cls_, rc), (bbox_, rb), (lm_, rl)):
        assert float(jnp.max(jnp.abs(got - want))) < 2e-4

    print("KERNEL_OK")
</pallas_src>

<mosaic_0001>
module attributes {stable_mosaic.version = 11 : i64} {
  func.func @_pnet_kernel(%arg0: i32, %arg1: memref<1x12x69xf32, #tpu.memory_space<vmem>>, %arg2: memref<9x10x3xf32, #tpu.memory_space<vmem>>, %arg3: memref<10x1xf32, #tpu.memory_space<vmem>>, %arg4: memref<1x1xf32, #tpu.memory_space<vmem>>, %arg5: memref<9x16x10xf32, #tpu.memory_space<vmem>>, %arg6: memref<16x1xf32, #tpu.memory_space<vmem>>, %arg7: memref<1x1xf32, #tpu.memory_space<vmem>>, %arg8: memref<9x32x16xf32, #tpu.memory_space<vmem>>, %arg9: memref<32x1xf32, #tpu.memory_space<vmem>>, %arg10: memref<1x1xf32, #tpu.memory_space<vmem>>, %arg11: memref<15x32xf32, #tpu.memory_space<vmem>>, %arg12: memref<15x1xf32, #tpu.memory_space<vmem>>, %arg13: memref<1x15x24xf32, #tpu.memory_space<vmem>>, %arg14: memref<10x60xf32, #tpu.memory_space<vmem>>, %arg15: memref<16x42xf32, #tpu.memory_space<vmem>>) attributes {dimension_semantics = [#tpu.dimension_semantics<parallel>], iteration_bounds = array<i64: 2>, scalar_prefetch = 0 : i64, scratch_operands = 2 : i64, tpu.core_type = #tpu.core_type<tc>, window_params = [{transform_indices = @transform_0, window_bounds = array<i64: 1, 12, 69>}, {pipeline_mode = #tpu.pipeline_mode<synchronous>, transform_indices = @transform_1, window_bounds = array<i64: 9, 10, 3>}, {pipeline_mode = #tpu.pipeline_mode<synchronous>, transform_indices = @transform_2, window_bounds = array<i64: 10, 1>}, {pipeline_mode = #tpu.pipeline_mode<synchronous>, transform_indices = @transform_3, window_bounds = array<i64: 1, 1>}, {pipeline_mode = #tpu.pipeline_mode<synchronous>, transform_indices = @transform_4, window_bounds = array<i64: 9, 16, 10>}, {pipeline_mode = #tpu.pipeline_mode<synchronous>, transform_indices = @transform_5, window_bounds = array<i64: 16, 1>}, {pipeline_mode = #tpu.pipeline_mode<synchronous>, transform_indices = @transform_6, window_bounds = array<i64: 1, 1>}, {pipeline_mode = #tpu.pipeline_mode<synchronous>, transform_indices = @transform_7, window_bounds = array<i64: 9, 32, 16>}, {pipeline_mode = #tpu.pipeline_mode<synchronous>, transform_indices = @transform_8, window_bounds = array<i64: 32, 1>}, {pipeline_mode = #tpu.pipeline_mode<synchronous>, transform_indices = @transform_9, window_bounds = array<i64: 1, 1>}, {pipeline_mode = #tpu.pipeline_mode<synchronous>, transform_indices = @transform_10, window_bounds = array<i64: 15, 32>}, {pipeline_mode = #tpu.pipeline_mode<synchronous>, transform_indices = @transform_11, window_bounds = array<i64: 15, 1>}, {transform_indices = @transform_12, window_bounds = array<i64: 1, 15, 24>}]} {
    %cst = arith.constant 0.000000e+00 : f32
    %0 = vector.broadcast %cst : f32 to vector<10x60xf32>
    %c0 = arith.constant 0 : index
    %c0_0 = arith.constant 0 : index
    %c0_1 = arith.constant 0 : index
    %1 = vector.load %arg2[%c0, %c0_0, %c0_1] : memref<9x10x3xf32, #tpu.memory_space<vmem>>, vector<1x10x3xf32>
    %2 = vector.shape_cast %1 : vector<1x10x3xf32> to vector<10x3xf32>
    %c0_2 = arith.constant 0 : index
    %c0_3 = arith.constant 0 : index
    %c0_4 = arith.constant 0 : index
    %3 = vector.load %arg1[%c0_2, %c0_3, %c0_4] : memref<1x12x69xf32, #tpu.memory_space<vmem>>, vector<1x3x60xf32>
    %4 = vector.shape_cast %3 : vector<1x3x60xf32> to vector<3x60xf32>
    %cst_5 = arith.constant dense<0.000000e+00> : vector<10x60xf32>
    %5 = tpu.matmul %2, %4, %cst_5 {dimension_numbers = #tpu.dot_dimension_numbers<[1], [0], [0], [1], [0, 0, 1, 1], [], []>} : vector<10x3xf32>, vector<3x60xf32>, vector<10x60xf32> -> vector<10x60xf32>
    %6 = arith.addf %0, %5 : vector<10x60xf32>
    %c1 = arith.constant 1 : index
    %c0_6 = arith.constant 0 : index
    %c0_7 = arith.constant 0 : index
    %7 = vector.load %arg2[%c1, %c0_6, %c0_7] : memref<9x10x3xf32, #tpu.memory_space<vmem>>, vector<1x10x3xf32>
    %8 = vector.shape_cast %7 : vector<1x10x3xf32> to vector<10x3xf32>
    %c0_8 = arith.constant 0 : index
    %c3 = arith.constant 3 : index
    %c0_9 = arith.constant 0 : index
    %9 = vector.load %arg1[%c0_8, %c3, %c0_9] : memref<1x12x69xf32, #tpu.memory_space<vmem>>, vector<1x3x60xf32>
    %10 = vector.shape_cast %9 : vector<1x3x60xf32> to vector<3x60xf32>
    %cst_10 = arith.constant dense<0.000000e+00> : vector<10x60xf32>
    %11 = tpu.matmul %8, %10, %cst_10 {dimension_numbers = #tpu.dot_dimension_numbers<[1], [0], [0], [1], [0, 0, 1, 1], [], []>} : vector<10x3xf32>, vector<3x60xf32>, vector<10x60xf32> -> vector<10x60xf32>
    %12 = arith.addf %6, %11 : vector<10x60xf32>
    %c2 = arith.constant 2 : index
    %c0_11 = arith.constant 0 : index
    %c0_12 = arith.constant 0 : index
    %13 = vector.load %arg2[%c2, %c0_11, %c0_12] : memref<9x10x3xf32, #tpu.memory_space<vmem>>, vector<1x10x3xf32>
    %14 = vector.shape_cast %13 : vector<1x10x3xf32> to vector<10x3xf32>
    %c0_13 = arith.constant 0 : index
    %c0_14 = arith.constant 0 : index
    %c1_15 = arith.constant 1 : index
    %15 = vector.load %arg1[%c0_13, %c0_14, %c1_15] : memref<1x12x69xf32, #tpu.memory_space<vmem>>, vector<1x3x60xf32>
    %16 = vector.shape_cast %15 : vector<1x3x60xf32> to vector<3x60xf32>
    %cst_16 = arith.constant dense<0.000000e+00> : vector<10x60xf32>
    %17 = tpu.matmul %14, %16, %cst_16 {dimension_numbers = #tpu.dot_dimension_numbers<[1], [0], [0], [1], [0, 0, 1, 1], [], []>} : vector<10x3xf32>, vector<3x60xf32>, vector<10x60xf32> -> vector<10x60xf32>
    %18 = arith.addf %12, %17 : vector<10x60xf32>
    %c3_17 = arith.constant 3 : index
    %c0_18 = arith.constant 0 : index
    %c0_19 = arith.constant 0 : index
    %19 = vector.load %arg2[%c3_17, %c0_18, %c0_19] : memref<9x10x3xf32, #tpu.memory_space<vmem>>, vector<1x10x3xf32>
    %20 = vector.shape_cast %19 : vector<1x10x3xf32> to vector<10x3xf32>
    %c0_20 = arith.constant 0 : index
    %c6 = arith.constant 6 : index
    %c0_21 = arith.constant 0 : index
    %21 = vector.load %arg1[%c0_20, %c6, %c0_21] : memref<1x12x69xf32, #tpu.memory_space<vmem>>, vector<1x3x60xf32>
    %22 = vector.shape_cast %21 : vector<1x3x60xf32> to vector<3x60xf32>
    %cst_22 = arith.constant dense<0.000000e+00> : vector<10x60xf32>
    %23 = tpu.matmul %20, %22, %cst_22 {dimension_numbers = #tpu.dot_dimension_numbers<[1], [0], [0], [1], [0, 0, 1, 1], [], []>} : vector<10x3xf32>, vector<3x60xf32>, vector<10x60xf32> -> vector<10x60xf32>
    %24 = arith.addf %18, %23 : vector<10x60xf32>
    %c4 = arith.constant 4 : index
    %c0_23 = arith.constant 0 : index
    %c0_24 = arith.constant 0 : index
    %25 = vector.load %arg2[%c4, %c0_23, %c0_24] : memref<9x10x3xf32, #tpu.memory_space<vmem>>, vector<1x10x3xf32>
    %26 = vector.shape_cast %25 : vector<1x10x3xf32> to vector<10x3xf32>
    %c0_25 = arith.constant 0 : index
    %c9 = arith.constant 9 : index
    %c0_26 = arith.constant 0 : index
    %27 = vector.load %arg1[%c0_25, %c9, %c0_26] : memref<1x12x69xf32, #tpu.memory_space<vmem>>, vector<1x3x60xf32>
    %28 = vector.shape_cast %27 : vector<1x3x60xf32> to vector<3x60xf32>
    %cst_27 = arith.constant dense<0.000000e+00> : vector<10x60xf32>
    %29 = tpu.matmul %26, %28, %cst_27 {dimension_numbers = #tpu.dot_dimension_numbers<[1], [0], [0], [1], [0, 0, 1, 1], [], []>} : vector<10x3xf32>, vector<3x60xf32>, vector<10x60xf32> -> vector<10x60xf32>
    %30 = arith.addf %24, %29 : vector<10x60xf32>
    %c5 = arith.constant 5 : index
    %c0_28 = arith.constant 0 : index
    %c0_29 = arith.constant 0 : index
    %31 = vector.load %arg2[%c5, %c0_28, %c0_29] : memref<9x10x3xf32, #tpu.memory_space<vmem>>, vector<1x10x3xf32>
    %32 = vector.shape_cast %31 : vector<1x10x3xf32> to vector<10x3xf32>
    %c0_30 = arith.constant 0 : index
    %c6_31 = arith.constant 6 : index
    %c1_32 = arith.constant 1 : index
    %33 = vector.load %arg1[%c0_30, %c6_31, %c1_32] : memref<1x12x69xf32, #tpu.memory_space<vmem>>, vector<1x3x60xf32>
    %34 = vector.shape_cast %33 : vector<1x3x60xf32> to vector<3x60xf32>
    %cst_33 = arith.constant dense<0.000000e+00> : vector<10x60xf32>
    %35 = tpu.matmul %32, %34, %cst_33 {dimension_numbers = #tpu.dot_dimension_numbers<[1], [0], [0], [1], [0, 0, 1, 1], [], []>} : vector<10x3xf32>, vector<3x60xf32>, vector<10x60xf32> -> vector<10x60xf32>
    %36 = arith.addf %30, %35 : vector<10x60xf32>
    %c6_34 = arith.constant 6 : index
    %c0_35 = arith.constant 0 : index
    %c0_36 = arith.constant 0 : index
    %37 = vector.load %arg2[%c6_34, %c0_35, %c0_36] : memref<9x10x3xf32, #tpu.memory_space<vmem>>, vector<1x10x3xf32>
    %38 = vector.shape_cast %37 : vector<1x10x3xf32> to vector<10x3xf32>
    %c0_37 = arith.constant 0 : index
    %c0_38 = arith.constant 0 : index
    %c8 = arith.constant 8 : index
    %39 = vector.load %arg1[%c0_37, %c0_38, %c8] : memref<1x12x69xf32, #tpu.memory_space<vmem>>, vector<1x3x60xf32>
    %40 = vector.shape_cast %39 : vector<1x3x60xf32> to vector<3x60xf32>
    %cst_39 = arith.constant dense<0.000000e+00> : vector<10x60xf32>
    %41 = tpu.matmul %38, %40, %cst_39 {dimension_numbers = #tpu.dot_dimension_numbers<[1], [0], [0], [1], [0, 0, 1, 1], [], []>} : vector<10x3xf32>, vector<3x60xf32>, vector<10x60xf32> -> vector<10x60xf32>
    %42 = arith.addf %36, %41 : vector<10x60xf32>
    %c7 = arith.constant 7 : index
    %c0_40 = arith.constant 0 : index
    %c0_41 = arith.constant 0 : index
    %43 = vector.load %arg2[%c7, %c0_40, %c0_41] : memref<9x10x3xf32, #tpu.memory_space<vmem>>, vector<1x10x3xf32>
    %44 = vector.shape_cast %43 : vector<1x10x3xf32> to vector<10x3xf32>
    %c0_42 = arith.constant 0 : index
    %c3_43 = arith.constant 3 : index
    %c8_44 = arith.constant 8 : index
    %45 = vector.load %arg1[%c0_42, %c3_43, %c8_44] : memref<1x12x69xf32, #tpu.memory_space<vmem>>, vector<1x3x60xf32>
    %46 = vector.shape_cast %45 : vector<1x3x60xf32> to vector<3x60xf32>
    %cst_45 = arith.constant dense<0.000000e+00> : vector<10x60xf32>
    %47 = tpu.matmul %44, %46, %cst_45 {dimension_numbers = #tpu.dot_dimension_numbers<[1], [0], [0], [1], [0, 0, 1, 1], [], []>} : vector<10x3xf32>, vector<3x60xf32>, vector<10x60xf32> -> vector<10x60xf32>
    %48 = arith.addf %42, %47 : vector<10x60xf32>
    %c8_46 = arith.constant 8 : index
    %c0_47 = arith.constant 0 : index
    %c0_48 = arith.constant 0 : index
    %49 = vector.load %arg2[%c8_46, %c0_47, %c0_48] : memref<9x10x3xf32, #tpu.memory_space<vmem>>, vector<1x10x3xf32>
    %50 = vector.shape_cast %49 : vector<1x10x3xf32> to vector<10x3xf32>
    %c0_49 = arith.constant 0 : index
    %c0_50 = arith.constant 0 : index
    %c9_51 = arith.constant 9 : index
    %51 = vector.load %arg1[%c0_49, %c0_50, %c9_51] : memref<1x12x69xf32, #tpu.memory_space<vmem>>, vector<1x3x60xf32>
    %52 = vector.shape_cast %51 : vector<1x3x60xf32> to vector<3x60xf32>
    %cst_52 = arith.constant dense<0.000000e+00> : vector<10x60xf32>
    %53 = tpu.matmul %50, %52, %cst_52 {dimension_numbers = #tpu.dot_dimension_numbers<[1], [0], [0], [1], [0, 0, 1, 1], [], []>} : vector<10x3xf32>, vector<3x60xf32>, vector<10x60xf32> -> vector<10x60xf32>
    %54 = arith.addf %48, %53 : vector<10x60xf32>
    %c0_53 = arith.constant 0 : index
    %c0_54 = arith.constant 0 : index
    %55 = vector.load %arg3[%c0_53, %c0_54] : memref<10x1xf32, #tpu.memory_space<vmem>>, vector<10x1xf32>
    %56 = vector.broadcast %55 : vector<10x1xf32> to vector<10x60xf32>
    %57 = arith.addf %54, %56 : vector<10x60xf32>
    %cst_55 = arith.constant 0.000000e+00 : f32
    %58 = vector.broadcast %cst_55 : f32 to vector<10x60xf32>
    %59 = arith.cmpf oge, %57, %58 : vector<10x60xf32>
    %c0_56 = arith.constant 0 : index
    %c0_57 = arith.constant 0 : index
    %60 = vector.load %arg4[%c0_56, %c0_57] : memref<1x1xf32, #tpu.memory_space<vmem>>, vector<1x1xf32>
    %61 = vector.broadcast %60 : vector<1x1xf32> to vector<10x60xf32>
    %62 = arith.mulf %61, %57 : vector<10x60xf32>
    %63 = arith.select %59, %57, %62 : vector<10x60xi1>, vector<10x60xf32>
    %cst_58 = arith.constant 0.000000e+00 : f32
    %64 = vector.broadcast %cst_58 : f32 to vector<10x60xf32>
    %c0_59 = arith.constant 0 : index
    %c0_60 = arith.constant 0 : index
    %c0_61 = arith.constant 0 : index
    %65 = vector.load %arg2[%c0_59, %c0_60, %c0_61] : memref<9x10x3xf32, #tpu.memory_space<vmem>>, vector<1x10x3xf32>
    %66 = vector.shape_cast %65 : vector<1x10x3xf32> to vector<10x3xf32>
    %c0_62 = arith.constant 0 : index
    %c3_63 = arith.constant 3 : index
    %c0_64 = arith.constant 0 : index
    %67 = vector.load %arg1[%c0_62, %c3_63, %c0_64] : memref<1x12x69xf32, #tpu.memory_space<vmem>>, vector<1x3x60xf32>
    %68 = vector.shape_cast %67 : vector<1x3x60xf32> to vector<3x60xf32>
    %cst_65 = arith.constant dense<0.000000e+00> : vector<10x60xf32>
    %69 = tpu.matmul %66, %68, %cst_65 {dimension_numbers = #tpu.dot_dimension_numbers<[1], [0], [0], [1], [0, 0, 1, 1], [], []>} : vector<10x3xf32>, vector<3x60xf32>, vector<10x60xf32> -> vector<10x60xf32>
    %70 = arith.addf %64, %69 : vector<10x60xf32>
    %c1_66 = arith.constant 1 : index
    %c0_67 = arith.constant 0 : index
    %c0_68 = arith.constant 0 : index
    %71 = vector.load %arg2[%c1_66, %c0_67, %c0_68] : memref<9x10x3xf32, #tpu.memory_space<vmem>>, vector<1x10x3xf32>
    %72 = vector.shape_cast %71 : vector<1x10x3xf32> to vector<10x3xf32>
    %c0_69 = arith.constant 0 : index
    %c0_70 = arith.constant 0 : index
    %c1_71 = arith.constant 1 : index
    %73 = vector.load %arg1[%c0_69, %c0_70, %c1_71] : memref<1x12x69xf32, #tpu.memory_space<vmem>>, vector<1x3x60xf32>
    %74 = vector.shape_cast %73 : vector<1x3x60xf32> to vector<3x60xf32>
    %cst_72 = arith.constant dense<0.000000e+00> : vector<10x60xf32>
    %75 = tpu.matmul %72, %74, %cst_72 {dimension_numbers = #tpu.dot_dimension_numbers<[1], [0], [0], [1], [0, 0, 1, 1], [], []>} : vector<10x3xf32>, vector<3x60xf32>, vector<10x60xf32> -> vector<10x60xf32>
    %76 = arith.addf %70, %75 : vector<10x60xf32>
    %c2_73 = arith.constant 2 : index
    %c0_74 = arith.constant 0 : index
    %c0_75 = arith.constant 0 : index
    %77 = vector.load %arg2[%c2_73, %c0_74, %c0_75] : memref<9x10x3xf32, #tpu.memory_space<vmem>>, vector<1x10x3xf32>
    %78 = vector.shape_cast %77 : vector<1x10x3xf32> to vector<10x3xf32>
    %c0_76 = arith.constant 0 : index
    %c3_77 = arith.constant 3 : index
    %c1_78 = arith.constant 1 : index
    %79 = vector.load %arg1[%c0_76, %c3_77, %c1_78] : memref<1x12x69xf32, #tpu.memory_space<vmem>>, vector<1x3x60xf32>
    %80 = vector.shape_cast %79 : vector<1x3x60xf32> to vector<3x60xf32>
    %cst_79 = arith.constant dense<0.000000e+00> : vector<10x60xf32>
    %81 = tpu.matmul %78, %80, %cst_79 {dimension_numbers = #tpu.dot_dimension_numbers<[1], [0], [0], [1], [0, 0, 1, 1], [], []>} : vector<10x3xf32>, vector<3x60xf32>, vector<10x60xf32> -> vector<10x60xf32>
    %82 = arith.addf %76, %81 : vector<10x60xf32>
    %c3_80 = arith.constant 3 : index
    %c0_81 = arith.constant 0 : index
    %c0_82 = arith.constant 0 : index
    %83 = vector.load %arg2[%c3_80, %c0_81, %c0_82] : memref<9x10x3xf32, #tpu.memory_space<vmem>>, vector<1x10x3xf32>
    %84 = vector.shape_cast %83 : vector<1x10x3xf32> to vector<10x3xf32>
    %c0_83 = arith.constant 0 : index
    %c9_84 = arith.constant 9 : index
    %c0_85 = arith.constant 0 : index
    %85 = vector.load %arg1[%c0_83, %c9_84, %c0_85] : memref<1x12x69xf32, #tpu.memory_space<vmem>>, vector<1x3x60xf32>
    %86 = vector.shape_cast %85 : vector<1x3x60xf32> to vector<3x60xf32>
    %cst_86 = arith.constant dense<0.000000e+00> : vector<10x60xf32>
    %87 = tpu.matmul %84, %86, %cst_86 {dimension_numbers = #tpu.dot_dimension_numbers<[1], [0], [0], [1], [0, 0, 1, 1], [], []>} : vector<10x3xf32>, vector<3x60xf32>, vector<10x60xf32> -> vector<10x60xf32>
    %88 = arith.addf %82, %87 : vector<10x60xf32>
    %c4_87 = arith.constant 4 : index
    %c0_88 = arith.constant 0 : index
    %c0_89 = arith.constant 0 : index
    %89 = vector.load %arg2[%c4_87, %c0_88, %c0_89] : memref<9x10x3xf32, #tpu.memory_space<vmem>>, vector<1x10x3xf32>
    %90 = vector.shape_cast %89 : vector<1x10x3xf32> to vector<10x3xf32>
    %c0_90 = arith.constant 0 : index
    %c6_91 = arith.constant 6 : index
    %c1_92 = arith.constant 1 : index
    %91 = vector.load %arg1[%c0_90, %c6_91, %c1_92] : memref<1x12x69xf32, #tpu.memory_space<vmem>>, vector<1x3x60xf32>
    %92 = vector.shape_cast %91 : vector<1x3x60xf32> to vector<3x60xf32>
    %cst_93 = arith.constant dense<0.000000e+00> : vector<10x60xf32>
    %93 = tpu.matmul %90, %92, %cst_93 {dimension_numbers = #tpu.dot_dimension_numbers<[1], [0], [0], [1], [0, 0, 1, 1], [], []>} : vector<10x3xf32>, vector<3x60xf32>, vector<10x60xf32> -> vector<10x60xf32>
    %94 = arith.addf %88, %93 : vector<10x60xf32>
    %c5_94 = arith.constant 5 : index
    %c0_95 = arith.constant 0 : index
    %c0_96 = arith.constant 0 : index
    %95 = vector.load %arg2[%c5_94, %c0_95, %c0_96] : memref<9x10x3xf32, #tpu.memory_space<vmem>>, vector<1x10x3xf32>
    %96 = vector.shape_cast %95 : vector<1x10x3xf32> to vector<10x3xf32>
    %c0_97 = arith.constant 0 : index
    %c9_98 = arith.constant 9 : index
    %c1_99 = arith.constant 1 : index
    %97 = vector.load %arg1[%c0_97, %c9_98, %c1_99] : memref<1x12x69xf32, #tpu.memory_space<vmem>>, vector<1x3x60xf32>
    %98 = vector.shape_cast %97 : vector<1x3x60xf32> to vector<3x60xf32>
    %cst_100 = arith.constant dense<0.000000e+00> : vector<10x60xf32>
    %99 = tpu.matmul %96, %98, %cst_100 {dimension_numbers = #tpu.dot_dimension_numbers<[1], [0], [0], [1], [0, 0, 1, 1], [], []>} : vector<10x3xf32>, vector<3x60xf32>, vector<10x60xf32> -> vector<10x60xf32>
    %100 = arith.addf %94, %99 : vector<10x60xf32>
    %c6_101 = arith.constant 6 : index
    %c0_102 = arith.constant 0 : index
    %c0_103 = arith.constant 0 : index
    %101 = vector.load %arg2[%c6_101, %c0_102, %c0_103] : memref<9x10x3xf32, #tpu.memory_space<vmem>>, vector<1x10x3xf32>
    %102 = vector.shape_cast %101 : vector<1x10x3xf32> to vector<10x3xf32>
    %c0_104 = arith.constant 0 : index
    %c3_105 = arith.constant 3 : index
    %c8_106 = arith.constant 8 : index
    %103 = vector.load %arg1[%c0_104, %c3_105, %c8_106] : memref<1x12x69xf32, #tpu.memory_space<vmem>>, vector<1x3x60xf32>
    %104 = vector.shape_cast %103 : vector<1x3x60xf32> to vector<3x60xf32>
    %cst_107 = arith.constant dense<0.000000e+00> : vector<10x60xf32>
    %105 = tpu.matmul %102, %104, %cst_107 {dimension_numbers = #tpu.dot_dimension_numbers<[1], [0], [0], [1], [0, 0, 1, 1], [], []>} : vector<10x3xf32>, vector<3x60xf32>, vector<10x60xf32> -> vector<10x60xf32>
    %106 = arith.addf %100, %105 : vector<10x60xf32>
    %c7_108 = arith.constant 7 : index
    %c0_109 = arith.constant 0 : index
    %c0_110 = arith.constant 0 : index
    %107 = vector.load %arg2[%c7_108, %c0_109, %c0_110] : memref<9x10x3xf32, #tpu.memory_space<vmem>>, vector<1x10x3xf32>
    %108 = vector.shape_cast %107 : vector<1x10x3xf32> to vector<10x3xf32>
    %c0_111 = arith.constant 0 : index
    %c0_112 = arith.constant 0 : index
    %c9_113 = arith.constant 9 : index
    %109 = vector.load %arg1[%c0_111, %c0_112, %c9_113] : memref<1x12x69xf32, #tpu.memory_space<vmem>>, vector<1x3x60xf32>
    %110 = vector.shape_cast %109 : vector<1x3x60xf32> to vector<3x60xf32>
    %cst_114 = arith.constant dense<0.000000e+00> : vector<10x60xf32>
    %111 = tpu.matmul %108, %110, %cst_114 {dimension_numbers = #tpu.dot_dimension_numbers<[1], [0], [0], [1], [0, 0, 1, 1], [], []>} : vector<10x3xf32>, vector<3x60xf32>, vector<10x60xf32> -> vector<10x60xf32>
    %112 = arith.addf %106, %111 : vector<10x60xf32>
    %c8_115 = arith.constant 8 : index
    %c0_116 = arith.constant 0 : index
    %c0_117 = arith.constant 0 : index
    %113 = vector.load %arg2[%c8_115, %c0_116, %c0_117] : memref<9x10x3xf32, #tpu.memory_space<vmem>>, vector<1x10x3xf32>
    %114 = vector.shape_cast %113 : vector<1x10x3xf32> to vector<10x3xf32>
    %c0_118 = arith.constant 0 : index
    %c3_119 = arith.constant 3 : index
    %c9_120 = arith.constant 9 : index
    %115 = vector.load %arg1[%c0_118, %c3_119, %c9_120] : memref<1x12x69xf32, #tpu.memory_space<vmem>>, vector<1x3x60xf32>
    %116 = vector.shape_cast %115 : vector<1x3x60xf32> to vector<3x60xf32>
    %cst_121 = arith.constant dense<0.000000e+00> : vector<10x60xf32>
    %117 = tpu.matmul %114, %116, %cst_121 {dimension_numbers = #tpu.dot_dimension_numbers<[1], [0], [0], [1], [0, 0, 1, 1], [], []>} : vector<10x3xf32>, vector<3x60xf32>, vector<10x60xf32> -> vector<10x60xf32>
    %118 = arith.addf %112, %117 : vector<10x60xf32>
    %c0_122 = arith.constant 0 : index
    %c0_123 = arith.constant 0 : index
    %119 = vector.load %arg3[%c0_122, %c0_123] : memref<10x1xf32, #tpu.memory_space<vmem>>, vector<10x1xf32>
    %120 = vector.broadcast %119 : vector<10x1xf32> to vector<10x60xf32>
    %121 = arith.addf %118, %120 : vector<10x60xf32>
    %cst_124 = arith.constant 0.000000e+00 : f32
    %122 = vector.broadcast %cst_124 : f32 to vector<10x60xf32>
    %123 = arith.cmpf oge, %121, %122 : vector<10x60xf32>
    %c0_125 = arith.constant 0 : index
    %c0_126 = arith.constant 0 : index
    %124 = vector.load %arg4[%c0_125, %c0_126] : memref<1x1xf32, #tpu.memory_space<vmem>>, vector<1x1xf32>
    %125 = vector.broadcast %124 : vector<1x1xf32> to vector<10x60xf32>
    %126 = arith.mulf %125, %121 : vector<10x60xf32>
    %127 = arith.select %123, %121, %126 : vector<10x60xi1>, vector<10x60xf32>
    %128 = arith.maximumf %63, %127 : vector<10x60xf32>
    %cst_127 = arith.constant 0.000000e+00 : f32
    %129 = vector.broadcast %cst_127 : f32 to vector<10x60xf32>
    %c0_128 = arith.constant 0 : index
    %c0_129 = arith.constant 0 : index
    %c0_130 = arith.constant 0 : index
    %130 = vector.load %arg2[%c0_128, %c0_129, %c0_130] : memref<9x10x3xf32, #tpu.memory_space<vmem>>, vector<1x10x3xf32>
    %131 = vector.shape_cast %130 : vector<1x10x3xf32> to vector<10x3xf32>
    %c0_131 = arith.constant 0 : index
    %c6_132 = arith.constant 6 : index
    %c0_133 = arith.constant 0 : index
    %132 = vector.load %arg1[%c0_131, %c6_132, %c0_133] : memref<1x12x69xf32, #tpu.memory_space<vmem>>, vector<1x3x60xf32>
    %133 = vector.shape_cast %132 : vector<1x3x60xf32> to vector<3x60xf32>
    %cst_134 = arith.constant dense<0.000000e+00> : vector<10x60xf32>
    %134 = tpu.matmul %131, %133, %cst_134 {dimension_numbers = #tpu.dot_dimension_numbers<[1], [0], [0], [1], [0, 0, 1, 1], [], []>} : vector<10x3xf32>, vector<3x60xf32>, vector<10x60xf32> -> vector<10x60xf32>
    %135 = arith.addf %129, %134 : vector<10x60xf32>
    %c1_135 = arith.constant 1 : index
    %c0_136 = arith.constant 0 : index
    %c0_137 = arith.constant 0 : index
    %136 = vector.load %arg2[%c1_135, %c0_136, %c0_137] : memref<9x10x3xf32, #tpu.memory_space<vmem>>, vector<1x10x3xf32>
    %137 = vector.shape_cast %136 : vector<1x10x3xf32> to vector<10x3xf32>
    %c0_138 = arith.constant 0 : index
    %c9_139 = arith.constant 9 : index
    %c0_140 = arith.constant 0 : index
    %138 = vector.load %arg1[%c0_138, %c9_139, %c0_140] : memref<1x12x69xf32, #tpu.memory_space<vmem>>, vector<1x3x60xf32>
    %139 = vector.shape_cast %138 : vector<1x3x60xf32> to vector<3x60xf32>
    %cst_141 = arith.constant dense<0.000000e+00> : vector<10x60xf32>
    %140 = tpu.matmul %137, %139, %cst_141 {dimension_numbers = #tpu.dot_dimension_numbers<[1], [0], [0], [1], [0, 0, 1, 1], [], []>} : vector<10x3xf32>, vector<3x60xf32>, vector<10x60xf32> -> vector<10x60xf32>
    %141 = arith.addf %135, %140 : vector<10x60xf32>
    %c2_142 = arith.constant 2 : index
    %c0_143 = arith.constant 0 : index
    %c0_144 = arith.constant 0 : index
    %142 = vector.load %arg2[%c2_142, %c0_143, %c0_144] : memref<9x10x3xf32, #tpu.memory_space<vmem>>, vector<1x10x3xf32>
    %143 = vector.shape_cast %142 : vector<1x10x3xf32> to vector<10x3xf32>
    %c0_145 = arith.constant 0 : index
    %c6_146 = arith.constant 6 : index
    %c1_147 = arith.constant 1 : index
    %144 = vector.load %arg1[%c0_145, %c6_146, %c1_147] : memref<1x12x69xf32, #tpu.memory_space<vmem>>, vector<1x3x60xf32>
    %145 = vector.shape_cast %144 : vector<1x3x60xf32> to vector<3x60xf32>
    %cst_148 = arith.constant dense<0.000000e+00> : vector<10x60xf32>
    %146 = tpu.matmul %143, %145, %cst_148 {dimension_numbers = #tpu.dot_dimension_numbers<[1], [0], [0], [1], [0, 0, 1, 1], [], []>} : vector<10x3xf32>, vector<3x60xf32>, vector<10x60xf32> -> vector<10x60xf32>
    %147 = arith.addf %141, %146 : vector<10x60xf32>
    %c3_149 = arith.constant 3 : index
    %c0_150 = arith.constant 0 : index
    %c0_151 = arith.constant 0 : index
    %148 = vector.load %arg2[%c3_149, %c0_150, %c0_151] : memref<9x10x3xf32, #tpu.memory_space<vmem>>, vector<1x10x3xf32>
    %149 = vector.shape_cast %148 : vector<1x10x3xf32> to vector<10x3xf32>
    %c0_152 = arith.constant 0 : index
    %c0_153 = arith.constant 0 : index
    %c8_154 = arith.constant 8 : index
    %150 = vector.load %arg1[%c0_152, %c0_153, %c8_154] : memref<1x12x69xf32, #tpu.memory_space<vmem>>, vector<1x3x60xf32>
    %151 = vector.shape_cast %150 : vector<1x3x60xf32> to vector<3x60xf32>
    %cst_155 = arith.constant dense<0.000000e+00> : vector<10x60xf32>
    %152 = tpu.matmul %149, %151, %cst_155 {dimension_numbers = #tpu.dot_dimension_numbers<[1], [0], [0], [1], [0, 0, 1, 1], [], []>} : vector<10x3xf32>, vector<3x60xf32>, vector<10x60xf32> -> vector<10x60xf32>
    %153 = arith.addf %147, %152 : vector<10x60xf32>
    %c4_156 = arith.constant 4 : index
    %c0_157 = arith.constant 0 : index
    %c0_158 = arith.constant 0 : index
    %154 = vector.load %arg2[%c4_156, %c0_157, %c0_158] : memref<9x10x3xf32, #tpu.memory_space<vmem>>, vector<1x10x3xf32>
    %155 = vector.shape_cast %154 : vector<1x10x3xf32> to vector<10x3xf32>
    %c0_159 = arith.constant 0 : index
    %c3_160 = arith.constant 3 : index
    %c8_161 = arith.constant 8 : index
    %156 = vector.load %arg1[%c0_159, %c3_160, %c8_161] : memref<1x12x69xf32, #tpu.memory_space<vmem>>, vector<1x3x60xf32>
    %157 = vector.shape_cast %156 : vector<1x3x60xf32> to vector<3x60xf32>
    %cst_162 = arith.constant dense<0.000000e+00> : vector<10x60xf32>
    %158 = tpu.matmul %155, %157, %cst_162 {dimension_numbers = #tpu.dot_dimension_numbers<[1], [0], [0], [1], [0, 0, 1, 1], [], []>} : vector<10x3xf32>, vector<3x60xf32>, vector<10x60xf32> -> vector<10x60xf32>
    %159 = arith.addf %153, %158 : vector<10x60xf32>
    %c5_163 = arith.constant 5 : index
    %c0_164 = arith.constant 0 : index
    %c0_165 = arith.constant 0 : index
    %160 = vector.load %arg2[%c5_163, %c0_164, %c0_165] : memref<9x10x3xf32, #tpu.memory_space<vmem>>, vector<1x10x3xf32>
    %161 = vector.shape_cast %160 : vector<1x10x3xf32> to vector<10x3xf32>
    %c0_166 = arith.constant 0 : index
    %c0_167 = arith.constant 0 : index
    %c9_168 = arith.constant 9 : index
    %162 = vector.load %arg1[%c0_166, %c0_167, %c9_168] : memref<1x12x69xf32, #tpu.memory_space<vmem>>, vector<1x3x60xf32>
    %163 = vector.shape_cast %162 : vector<1x3x60xf32> to vector<3x60xf32>
    %cst_169 = arith.constant dense<0.000000e+00> : vector<10x60xf32>
    %164 = tpu.matmul %161, %163, %cst_169 {dimension_numbers = #tpu.dot_dimension_numbers<[1], [0], [0], [1], [0, 0, 1, 1], [], []>} : vector<10x3xf32>, vector<3x60xf32>, vector<10x60xf32> -> vector<10x60xf32>
    %165 = arith.addf %159, %164 : vector<10x60xf32>
    %c6_170 = arith.constant 6 : index
    %c0_171 = arith.constant 0 : index
    %c0_172 = arith.constant 0 : index
    %166 = vector.load %arg2[%c6_170, %c0_171, %c0_172] : memref<9x10x3xf32, #tpu.memory_space<vmem>>, vector<1x10x3xf32>
    %167 = vector.shape_cast %166 : vector<1x10x3xf32> to vector<10x3xf32>
    %c0_173 = arith.constant 0 : index
    %c6_174 = arith.constant 6 : index
    %c8_175 = arith.constant 8 : index
    %168 = vector.load %arg1[%c0_173, %c6_174, %c8_175] : memref<1x12x69xf32, #tpu.memory_space<vmem>>, vector<1x3x60xf32>
    %169 = vector.shape_cast %168 : vector<1x3x60xf32> to vector<3x60xf32>
    %cst_176 = arith.constant dense<0.000000e+00> : vector<10x60xf32>
    %170 = tpu.matmul %167, %169, %cst_176 {dimension_numbers = #tpu.dot_dimension_numbers<[1], [0], [0], [1], [0, 0, 1, 1], [], []>} : vector<10x3xf32>, vector<3x60xf32>, vector<10x60xf32> -> vector<10x60xf32>
    %171 = arith.addf %165, %170 : vector<10x60xf32>
    %c7_177 = arith.constant 7 : index
    %c0_178 = arith.constant 0 : index
    %c0_179 = arith.constant 0 : index
    %172 = vector.load %arg2[%c7_177, %c0_178, %c0_179] : memref<9x10x3xf32, #tpu.memory_space<vmem>>, vector<1x10x3xf32>
    %173 = vector.shape_cast %172 : vector<1x10x3xf32> to vector<10x3xf32>
    %c0_180 = arith.constant 0 : index
    %c9_181 = arith.constant 9 : index
    %c8_182 = arith.constant 8 : index
    %174 = vector.load %arg1[%c0_180, %c9_181, %c8_182] : memref<1x12x69xf32, #tpu.memory_space<vmem>>, vector<1x3x60xf32>
    %175 = vector.shape_cast %174 : vector<1x3x60xf32> to vector<3x60xf32>
    %cst_183 = arith.constant dense<0.000000e+00> : vector<10x60xf32>
    %176 = tpu.matmul %173, %175, %cst_183 {dimension_numbers = #tpu.dot_dimension_numbers<[1], [0], [0], [1], [0, 0, 1, 1], [], []>} : vector<10x3xf32>, vector<3x60xf32>, vector<10x60xf32> -> vector<10x60xf32>
    %177 = arith.addf %171, %176 : vector<10x60xf32>
    %c8_184 = arith.constant 8 : index
    %c0_185 = arith.constant 0 : index
    %c0_186 = arith.constant 0 : index
    %178 = vector.load %arg2[%c8_184, %c0_185, %c0_186] : memref<9x10x3xf32, #tpu.memory_space<vmem>>, vector<1x10x3xf32>
    %179 = vector.shape_cast %178 : vector<1x10x3xf32> to vector<10x3xf32>
    %c0_187 = arith.constant 0 : index
    %c6_188 = arith.constant 6 : index
    %c9_189 = arith.constant 9 : index
    %180 = vector.load %arg1[%c0_187, %c6_188, %c9_189] : memref<1x12x69xf32, #tpu.memory_space<vmem>>, vector<1x3x60xf32>
    %181 = vector.shape_cast %180 : vector<1x3x60xf32> to vector<3x60xf32>
    %cst_190 = arith.constant dense<0.000000e+00> : vector<10x60xf32>
    %182 = tpu.matmul %179, %181, %cst_190 {dimension_numbers = #tpu.dot_dimension_numbers<[1], [0], [0], [1], [0, 0, 1, 1], [], []>} : vector<10x3xf32>, vector<3x60xf32>, vector<10x60xf32> -> vector<10x60xf32>
    %183 = arith.addf %177, %182 : vector<10x60xf32>
    %c0_191 = arith.constant 0 : index
    %c0_192 = arith.constant 0 : index
    %184 = vector.load %arg3[%c0_191, %c0_192] : memref<10x1xf32, #tpu.memory_space<vmem>>, vector<10x1xf32>
    %185 = vector.broadcast %184 : vector<10x1xf32> to vector<10x60xf32>
    %186 = arith.addf %183, %185 : vector<10x60xf32>
    %cst_193 = arith.constant 0.000000e+00 : f32
    %187 = vector.broadcast %cst_193 : f32 to vector<10x60xf32>
    %188 = arith.cmpf oge, %186, %187 : vector<10x60xf32>
    %c0_194 = arith.constant 0 : index
    %c0_195 = arith.constant 0 : index
    %189 = vector.load %arg4[%c0_194, %c0_195] : memref<1x1xf32, #tpu.memory_space<vmem>>, vector<1x1xf32>
    %190 = vector.broadcast %189 : vector<1x1xf32> to vector<10x60xf32>
    %191 = arith.mulf %190, %186 : vector<10x60xf32>
    %192 = arith.select %188, %186, %191 : vector<10x60xi1>, vector<10x60xf32>
    %193 = arith.maximumf %128, %192 : vector<10x60xf32>
    %cst_196 = arith.constant 0.000000e+00 : f32
    %194 = vector.broadcast %cst_196 : f32 to vector<10x60xf32>
    %c0_197 = arith.constant 0 : index
    %c0_198 = arith.constant 0 : index
    %c0_199 = arith.constant 0 : index
    %195 = vector.load %arg2[%c0_197, %c0_198, %c0_199] : memref<9x10x3xf32, #tpu.memory_space<vmem>>, vector<1x10x3xf32>
    %196 = vector.shape_cast %195 : vector<1x10x3xf32> to vector<10x3xf32>
    %c0_200 = arith.constant 0 : index
    %c9_201 = arith.constant 9 : index
    %c0_202 = arith.constant 0 : index
    %197 = vector.load %arg1[%c0_200, %c9_201, %c0_202] : memref<1x12x69xf32, #tpu.memory_space<vmem>>, vector<1x3x60xf32>
    %198 = vector.shape_cast %197 : vector<1x3x60xf32> to vector<3x60xf32>
    %cst_203 = arith.constant dense<0.000000e+00> : vector<10x60xf32>
    %199 = tpu.matmul %196, %198, %cst_203 {dimension_numbers = #tpu.dot_dimension_numbers<[1], [0], [0], [1], [0, 0, 1, 1], [], []>} : vector<10x3xf32>, vector<3x60xf32>, vector<10x60xf32> -> vector<10x60xf32>
    %200 = arith.addf %194, %199 : vector<10x60xf32>
    %c1_204 = arith.constant 1 : index
    %c0_205 = arith.constant 0 : index
    %c0_206 = arith.constant 0 : index
    %201 = vector.load %arg2[%c1_204, %c0_205, %c0_206] : memref<9x10x3xf32, #tpu.memory_space<vmem>>, vector<1x10x3xf32>
    %202 = vector.shape_cast %201 : vector<1x10x3xf32> to vector<10x3xf32>
    %c0_207 = arith.constant 0 : index
    %c6_208 = arith.constant 6 : index
    %c1_209 = arith.constant 1 : index
    %203 = vector.load %arg1[%c0_207, %c6_208, %c1_209] : memref<1x12x69xf32, #tpu.memory_space<vmem>>, vector<1x3x60xf32>
    %204 = vector.shape_cast %203 : vector<1x3x60xf32> to vector<3x60xf32>
    %cst_210 = arith.constant dense<0.000000e+00> : vector<10x60xf32>
    %205 = tpu.matmul %202, %204, %cst_210 {dimension_numbers = #tpu.dot_dimension_numbers<[1], [0], [0], [1], [0, 0, 1, 1], [], []>} : vector<10x3xf32>, vector<3x60xf32>, vector<10x60xf32> -> vector<10x60xf32>
    %206 = arith.addf %200, %205 : vector<10x60xf32>
    %c2_211 = arith.constant 2 : index
    %c0_212 = arith.constant 0 : index
    %c0_213 = arith.constant 0 : index
    %207 = vector.load %arg2[%c2_211, %c0_212, %c0_213] : memref<9x10x3xf32, #tpu.memory_space<vmem>>, vector<1x10x3xf32>
    %208 = vector.shape_cast %207 : vector<1x10x3xf32> to vector<10x3xf32>
    %c0_214 = arith.constant 0 : index
    %c9_215 = arith.constant 9 : index
    %c1_216 = arith.constant 1 : index
    %209 = vector.load %arg1[%c0_214, %c9_215, %c1_216] : memref<1x12x69xf32, #tpu.memory_space<vmem>>, vector<1x3x60xf32>
    %210 = vector.shape_cast %209 : vector<1x3x60xf32> to vector<3x60xf32>
    %cst_217 = arith.constant dense<0.000000e+00> : vector<10x60xf32>
    %211 = tpu.matmul %208, %210, %cst_217 {dimension_numbers = #tpu.dot_dimension_numbers<[1], [0], [0], [1], [0, 0, 1, 1], [], []>} : vector<10x3xf32>, vector<3x60xf32>, vector<10x60xf32> -> vector<10x60xf32>
    %212 = arith.addf %206, %211 : vector<10x60xf32>
    %c3_218 = arith.constant 3 : index
    %c0_219 = arith.constant 0 : index
    %c0_220 = arith.constant 0 : index
    %213 = vector.load %arg2[%c3_218, %c0_219, %c0_220] : memref<9x10x3xf32, #tpu.memory_space<vmem>>, vector<1x10x3xf32>
    %214 = vector.shape_cast %213 : vector<1x10x3xf32> to vector<10x3xf32>
    %c0_221 = arith.constant 0 : index
    %c3_222 = arith.constant 3 : index
    %c8_223 = arith.constant 8 : index
    %215 = vector.load %arg1[%c0_221, %c3_222, %c8_223] : memref<1x12x69xf32, #tpu.memory_space<vmem>>, vector<1x3x60xf32>
    %216 = vector.shape_cast %215 : vector<1x3x60xf32> to vector<3x60xf32>
    %cst_224 = arith.constant dense<0.000000e+00> : vector<10x60xf32>
    %217 = tpu.matmul %214, %216, %cst_224 {dimension_numbers = #tpu.dot_dimension_numbers<[1], [0], [0], [1], [0, 0, 1, 1], [], []>} : vector<10x3xf32>, vector<3x60xf32>, vector<10x60xf32> -> vector<10x60xf32>
    %218 = arith.addf %212, %217 : vector<10x60xf32>
    %c4_225 = arith.constant 4 : index
    %c0_226 = arith.constant 0 : index
    %c0_227 = arith.constant 0 : index
    %219 = vector.load %arg2[%c4_225, %c0_226, %c0_227] : memref<9x10x3xf32, #tpu.memory_space<vmem>>, vector<1x10x3xf32>
    %220 = vector.shape_cast %219 : vector<1x10x3xf32> to vector<10x3xf32>
    %c0_228 = arith.constant 0 : index
    %c0_229 = arith.constant 0 : index
    %c9_230 = arith.constant 9 : index
    %221 = vector.load %arg1[%c0_228, %c0_229, %c9_230] : memref<1x12x69xf32, #tpu.memory_space<vmem>>, vector<1x3x60xf32>
    %222 = vector.shape_cast %221 : vector<1x3x60xf32> to vector<3x60xf32>
    %cst_231 = arith.constant dense<0.000000e+00> : vector<10x60xf32>
    %223 = tpu.matmul %220, %222, %cst_231 {dimension_numbers = #tpu.dot_dimension_numbers<[1], [0], [0], [1], [0, 0, 1, 1], [], []>} : vector<10x3xf32>, vector<3x60xf32>, vector<10x60xf32> -> vector<10x60xf32>
    %224 = arith.addf %218, %223 : vector<10x60xf32>
    %c5_232 = arith.constant 5 : index
    %c0_233 = arith.constant 0 : index
    %c0_234 = arith.constant 0 : index
    %225 = vector.load %arg2[%c5_232, %c0_233, %c0_234] : memref<9x10x3xf32, #tpu.memory_space<vmem>>, vector<1x10x3xf32>
    %226 = vector.shape_cast %225 : vector<1x10x3xf32> to vector<10x3xf32>
    %c0_235 = arith.constant 0 : index
    %c3_236 = arith.constant 3 : index
    %c9_237 = arith.constant 9 : index
    %227 = vector.load %arg1[%c0_235, %c3_236, %c9_237] : memref<1x12x69xf32, #tpu.memory_space<vmem>>, vector<1x3x60xf32>
    %228 = vector.shape_cast %227 : vector<1x3x60xf32> to vector<3x60xf32>
    %cst_238 = arith.constant dense<0.000000e+00> : vector<10x60xf32>
    %229 = tpu.matmul %226, %228, %cst_238 {dimension_numbers = #tpu.dot_dimension_numbers<[1], [0], [0], [1], [0, 0, 1, 1], [], []>} : vector<10x3xf32>, vector<3x60xf32>, vector<10x60xf32> -> vector<10x60xf32>
    %230 = arith.addf %224, %229 : vector<10x60xf32>
    %c6_239 = arith.constant 6 : index
    %c0_240 = arith.constant 0 : index
    %c0_241 = arith.constant 0 : index
    %231 = vector.load %arg2[%c6_239, %c0_240, %c0_241] : memref<9x10x3xf32, #tpu.memory_space<vmem>>, vector<1x10x3xf32>
    %232 = vector.shape_cast %231 : vector<1x10x3xf32> to vector<10x3xf32>
    %c0_242 = arith.constant 0 : index
    %c9_243 = arith.constant 9 : index
    %c8_244 = arith.constant 8 : index
    %233 = vector.load %arg1[%c0_242, %c9_243, %c8_244] : memref<1x12x69xf32, #tpu.memory_space<vmem>>, vector<1x3x60xf32>
    %234 = vector.shape_cast %233 : vector<1x3x60xf32> to vector<3x60xf32>
    %cst_245 = arith.constant dense<0.000000e+00> : vector<10x60xf32>
    %235 = tpu.matmul %232, %234, %cst_245 {dimension_numbers = #tpu.dot_dimension_numbers<[1], [0], [0], [1], [0, 0, 1, 1], [], []>} : vector<10x3xf32>, vector<3x60xf32>, vector<10x60xf32> -> vector<10x60xf32>
    %236 = arith.addf %230, %235 : vector<10x60xf32>
    %c7_246 = arith.constant 7 : index
    %c0_247 = arith.constant 0 : index
    %c0_248 = arith.constant 0 : index
    %237 = vector.load %arg2[%c7_246, %c0_247, %c0_248] : memref<9x10x3xf32, #tpu.memory_space<vmem>>, vector<1x10x3xf32>
    %238 = vector.shape_cast %237 : vector<1x10x3xf32> to vector<10x3xf32>
    %c0_249 = arith.constant 0 : index
    %c6_250 = arith.constant 6 : index
    %c9_251 = arith.constant 9 : index
    %239 = vector.load %arg1[%c0_249, %c6_250, %c9_251] : memref<1x12x69xf32, #tpu.memory_space<vmem>>, vector<1x3x60xf32>
    %240 = vector.shape_cast %239 : vector<1x3x60xf32> to vector<3x60xf32>
    %cst_252 = arith.constant dense<0.000000e+00> : vector<10x60xf32>
    %241 = tpu.matmul %238, %240, %cst_252 {dimension_numbers = #tpu.dot_dimension_numbers<[1], [0], [0], [1], [0, 0, 1, 1], [], []>} : vector<10x3xf32>, vector<3x60xf32>, vector<10x60xf32> -> vector<10x60xf32>
    %242 = arith.addf %236, %241 : vector<10x60xf32>
    %c8_253 = arith.constant 8 : index
    %c0_254 = arith.constant 0 : index
    %c0_255 = arith.constant 0 : index
    %243 = vector.load %arg2[%c8_253, %c0_254, %c0_255] : memref<9x10x3xf32, #tpu.memory_space<vmem>>, vector<1x10x3xf32>
    %244 = vector.shape_cast %243 : vector<1x10x3xf32> to vector<10x3xf32>
    %c0_256 = arith.constant 0 : index
    %c9_257 = arith.constant 9 : index
    %c9_258 = arith.constant 9 : index
    %245 = vector.load %arg1[%c0_256, %c9_257, %c9_258] : memref<1x12x69xf32, #tpu.memory_space<vmem>>, vector<1x3x60xf32>
    %246 = vector.shape_cast %245 : vector<1x3x60xf32> to vector<3x60xf32>
    %cst_259 = arith.constant dense<0.000000e+00> : vector<10x60xf32>
    %247 = tpu.matmul %244, %246, %cst_259 {dimension_numbers = #tpu.dot_dimension_numbers<[1], [0], [0], [1], [0, 0, 1, 1], [], []>} : vector<10x3xf32>, vector<3x60xf32>, vector<10x60xf32> -> vector<10x60xf32>
    %248 = arith.addf %242, %247 : vector<10x60xf32>
    %c0_260 = arith.constant 0 : index
    %c0_261 = arith.constant 0 : index
    %249 = vector.load %arg3[%c0_260, %c0_261] : memref<10x1xf32, #tpu.memory_space<vmem>>, vector<10x1xf32>
    %250 = vector.broadcast %249 : vector<10x1xf32> to vector<10x60xf32>
    %251 = arith.addf %248, %250 : vector<10x60xf32>
    %cst_262 = arith.constant 0.000000e+00 : f32
    %252 = vector.broadcast %cst_262 : f32 to vector<10x60xf32>
    %253 = arith.cmpf oge, %251, %252 : vector<10x60xf32>
    %c0_263 = arith.constant 0 : index
    %c0_264 = arith.constant 0 : index
    %254 = vector.load %arg4[%c0_263, %c0_264] : memref<1x1xf32, #tpu.memory_space<vmem>>, vector<1x1xf32>
    %255 = vector.broadcast %254 : vector<1x1xf32> to vector<10x60xf32>
    %256 = arith.mulf %255, %251 : vector<10x60xf32>
    %257 = arith.select %253, %251, %256 : vector<10x60xi1>, vector<10x60xf32>
    %258 = arith.maximumf %193, %257 : vector<10x60xf32>
    %c0_265 = arith.constant 0 : index
    %c0_266 = arith.constant 0 : index
    %259 = vector.load %arg14[%c0_265, %c0_266] : memref<10x60xf32, #tpu.memory_space<vmem>>, vector<10x60xf32>
    tpu.vector_store %arg14[%c0_265, %c0_266], %258 {strides = array<i32>} : memref<10x60xf32, #tpu.memory_space<vmem>>, vector<10x60xf32>,
    %cst_267 = arith.constant 0.000000e+00 : f32
    %260 = vector.broadcast %cst_267 : f32 to vector<16x42xf32>
    %c0_268 = arith.constant 0 : index
    %c0_269 = arith.constant 0 : index
    %c0_270 = arith.constant 0 : index
    %261 = vector.load %arg5[%c0_268, %c0_269, %c0_270] : memref<9x16x10xf32, #tpu.memory_space<vmem>>, vector<1x16x10xf32>
    %262 = vector.shape_cast %261 : vector<1x16x10xf32> to vector<16x10xf32>
    %c0_271 = arith.constant 0 : index
    %c0_272 = arith.constant 0 : index
    %263 = vector.load %arg14[%c0_271, %c0_272] : memref<10x60xf32, #tpu.memory_space<vmem>>, vector<10x42xf32>
    %cst_273 = arith.constant dense<0.000000e+00> : vector<16x42xf32>
    %264 = tpu.matmul %262, %263, %cst_273 {dimension_numbers = #tpu.dot_dimension_numbers<[1], [0], [0], [1], [0, 0, 1, 1], [], []>} : vector<16x10xf32>, vector<10x42xf32>, vector<16x42xf32> -> vector<16x42xf32>
    %265 = arith.addf %260, %264 : vector<16x42xf32>
    %c1_274 = arith.constant 1 : index
    %c0_275 = arith.constant 0 : index
    %c0_276 = arith.constant 0 : index
    %266 = vector.load %arg5[%c1_274, %c0_275, %c0_276] : memref<9x16x10xf32, #tpu.memory_space<vmem>>, vector<1x16x10xf32>
    %267 = vector.shape_cast %266 : vector<1x16x10xf32> to vector<16x10xf32>
    %c0_277 = arith.constant 0 : index
    %c1_278 = arith.constant 1 : index
    %268 = vector.load %arg14[%c0_277, %c1_278] : memref<10x60xf32, #tpu.memory_space<vmem>>, vector<10x42xf32>
    %cst_279 = arith.constant dense<0.000000e+00> : vector<16x42xf32>
    %269 = tpu.matmul %267, %268, %cst_279 {dimension_numbers = #tpu.dot_dimension_numbers<[1], [0], [0], [1], [0, 0, 1, 1], [], []>} : vector<16x10xf32>, vector<10x42xf32>, vector<16x42xf32> -> vector<16x42xf32>
    %270 = arith.addf %265, %269 : vector<16x42xf32>
    %c2_280 = arith.constant 2 : index
    %c0_281 = arith.constant 0 : index
    %c0_282 = arith.constant 0 : index
    %271 = vector.load %arg5[%c2_280, %c0_281, %c0_282] : memref<9x16x10xf32, #tpu.memory_space<vmem>>, vector<1x16x10xf32>
    %272 = vector.shape_cast %271 : vector<1x16x10xf32> to vector<16x10xf32>
    %c0_283 = arith.constant 0 : index
    %c2_284 = arith.constant 2 : index
    %273 = vector.load %arg14[%c0_283, %c2_284] : memref<10x60xf32, #tpu.memory_space<vmem>>, vector<10x42xf32>
    %cst_285 = arith.constant dense<0.000000e+00> : vector<16x42xf32>
    %274 = tpu.matmul %272, %273, %cst_285 {dimension_numbers = #tpu.dot_dimension_numbers<[1], [0], [0], [1], [0, 0, 1, 1], [], []>} : vector<16x10xf32>, vector<10x42xf32>, vector<16x42xf32> -> vector<16x42xf32>
    %275 = arith.addf %270, %274 : vector<16x42xf32>
    %c3_286 = arith.constant 3 : index
    %c0_287 = arith.constant 0 : index
    %c0_288 = arith.constant 0 : index
    %276 = vector.load %arg5[%c3_286, %c0_287, %c0_288] : memref<9x16x10xf32, #tpu.memory_space<vmem>>, vector<1x16x10xf32>
    %277 = vector.shape_cast %276 : vector<1x16x10xf32> to vector<16x10xf32>
    %c0_289 = arith.constant 0 : index
    %c8_290 = arith.constant 8 : index
    %278 = vector.load %arg14[%c0_289, %c8_290] : memref<10x60xf32, #tpu.memory_space<vmem>>, vector<10x42xf32>
    %cst_291 = arith.constant dense<0.000000e+00> : vector<16x42xf32>
    %279 = tpu.matmul %277, %278, %cst_291 {dimension_numbers = #tpu.dot_dimension_numbers<[1], [0], [0], [1], [0, 0, 1, 1], [], []>} : vector<16x10xf32>, vector<10x42xf32>, vector<16x42xf32> -> vector<16x42xf32>
    %280 = arith.addf %275, %279 : vector<16x42xf32>
    %c4_292 = arith.constant 4 : index
    %c0_293 = arith.constant 0 : index
    %c0_294 = arith.constant 0 : index
    %281 = vector.load %arg5[%c4_292, %c0_293, %c0_294] : memref<9x16x10xf32, #tpu.memory_space<vmem>>, vector<1x16x10xf32>
    %282 = vector.shape_cast %281 : vector<1x16x10xf32> to vector<16x10xf32>
    %c0_295 = arith.constant 0 : index
    %c9_296 = arith.constant 9 : index
    %283 = vector.load %arg14[%c0_295, %c9_296] : memref<10x60xf32, #tpu.memory_space<vmem>>, vector<10x42xf32>
    %cst_297 = arith.constant dense<0.000000e+00> : vector<16x42xf32>
    %284 = tpu.matmul %282, %283, %cst_297 {dimension_numbers = #tpu.dot_dimension_numbers<[1], [0], [0], [1], [0, 0, 1, 1], [], []>} : vector<16x10xf32>, vector<10x42xf32>, vector<16x42xf32> -> vector<16x42xf32>
    %285 = arith.addf %280, %284 : vector<16x42xf32>
    %c5_298 = arith.constant 5 : index
    %c0_299 = arith.constant 0 : index
    %c0_300 = arith.constant 0 : index
    %286 = vector.load %arg5[%c5_298, %c0_299, %c0_300] : memref<9x16x10xf32, #tpu.memory_space<vmem>>, vector<1x16x10xf32>
    %287 = vector.shape_cast %286 : vector<1x16x10xf32> to vector<16x10xf32>
    %c0_301 = arith.constant 0 : index
    %c10 = arith.constant 10 : index
    %288 = vector.load %arg14[%c0_301, %c10] : memref<10x60xf32, #tpu.memory_space<vmem>>, vector<10x42xf32>
    %cst_302 = arith.constant dense<0.000000e+00> : vector<16x42xf32>
    %289 = tpu.matmul %287, %288, %cst_302 {dimension_numbers = #tpu.dot_dimension_numbers<[1], [0], [0], [1], [0, 0, 1, 1], [], []>} : vector<16x10xf32>, vector<10x42xf32>, vector<16x42xf32> -> vector<16x42xf32>
    %290 = arith.addf %285, %289 : vector<16x42xf32>
    %c6_303 = arith.constant 6 : index
    %c0_304 = arith.constant 0 : index
    %c0_305 = arith.constant 0 : index
    %291 = vector.load %arg5[%c6_303, %c0_304, %c0_305] : memref<9x16x10xf32, #tpu.memory_space<vmem>>, vector<1x16x10xf32>
    %292 = vector.shape_cast %291 : vector<1x16x10xf32> to vector<16x10xf32>
    %c0_306 = arith.constant 0 : index
    %c16 = arith.constant 16 : index
    %293 = vector.load %arg14[%c0_306, %c16] : memref<10x60xf32, #tpu.memory_space<vmem>>, vector<10x42xf32>
    %cst_307 = arith.constant dense<0.000000e+00> : vector<16x42xf32>
    %294 = tpu.matmul %292, %293, %cst_307 {dimension_numbers = #tpu.dot_dimension_numbers<[1], [0], [0], [1], [0, 0, 1, 1], [], []>} : vector<16x10xf32>, vector<10x42xf32>, vector<16x42xf32> -> vector<16x42xf32>
    %295 = arith.addf %290, %294 : vector<16x42xf32>
    %c7_308 = arith.constant 7 : index
    %c0_309 = arith.constant 0 : index
    %c0_310 = arith.constant 0 : index
    %296 = vector.load %arg5[%c7_308, %c0_309, %c0_310] : memref<9x16x10xf32, #tpu.memory_space<vmem>>, vector<1x16x10xf32>
    %297 = vector.shape_cast %296 : vector<1x16x10xf32> to vector<16x10xf32>
    %c0_311 = arith.constant 0 : index
    %c17 = arith.constant 17 : index
    %298 = vector.load %arg14[%c0_311, %c17] : memref<10x60xf32, #tpu.memory_space<vmem>>, vector<10x42xf32>
    %cst_312 = arith.constant dense<0.000000e+00> : vector<16x42xf32>
    %299 = tpu.matmul %297, %298, %cst_312 {dimension_numbers = #tpu.dot_dimension_numbers<[1], [0], [0], [1], [0, 0, 1, 1], [], []>} : vector<16x10xf32>, vector<10x42xf32>, vector<16x42xf32> -> vector<16x42xf32>
    %300 = arith.addf %295, %299 : vector<16x42xf32>
    %c8_313 = arith.constant 8 : index
    %c0_314 = arith.constant 0 : index
    %c0_315 = arith.constant 0 : index
    %301 = vector.load %arg5[%c8_313, %c0_314, %c0_315] : memref<9x16x10xf32, #tpu.memory_space<vmem>>, vector<1x16x10xf32>
    %302 = vector.shape_cast %301 : vector<1x16x10xf32> to vector<16x10xf32>
    %c0_316 = arith.constant 0 : index
    %c18 = arith.constant 18 : index
    %303 = vector.load %arg14[%c0_316, %c18] : memref<10x60xf32, #tpu.memory_space<vmem>>, vector<10x42xf32>
    %cst_317 = arith.constant dense<0.000000e+00> : vector<16x42xf32>
    %304 = tpu.matmul %302, %303, %cst_317 {dimension_numbers = #tpu.dot_dimension_numbers<[1], [0], [0], [1], [0, 0, 1, 1], [], []>} : vector<16x10xf32>, vector<10x42xf32>, vector<16x42xf32> -> vector<16x42xf32>
    %305 = arith.addf %300, %304 : vector<16x42xf32>
    %c0_318 = arith.constant 0 : index
    %c0_319 = arith.constant 0 : index
    %306 = vector.load %arg6[%c0_318, %c0_319] : memref<16x1xf32, #tpu.memory_space<vmem>>, vector<16x1xf32>
    %307 = vector.broadcast %306 : vector<16x1xf32> to vector<16x42xf32>
    %308 = arith.addf %305, %307 : vector<16x42xf32>
    %cst_320 = arith.constant 0.000000e+00 : f32
    %309 = vector.broadcast %cst_320 : f32 to vector<16x42xf32>
    %310 = arith.cmpf oge, %308, %309 : vector<16x42xf32>
    %c0_321 = arith.constant 0 : index
    %c0_322 = arith.constant 0 : index
    %311 = vector.load %arg7[%c0_321, %c0_322] : memref<1x1xf32, #tpu.memory_space<vmem>>, vector<1x1xf32>
    %312 = vector.broadcast %311 : vector<1x1xf32> to vector<16x42xf32>
    %313 = arith.mulf %312, %308 : vector<16x42xf32>
    %314 = arith.select %310, %308, %313 : vector<16x42xi1>, vector<16x42xf32>
    %c0_323 = arith.constant 0 : index
    %c0_324 = arith.constant 0 : index
    %315 = vector.load %arg15[%c0_323, %c0_324] : memref<16x42xf32, #tpu.memory_space<vmem>>, vector<16x42xf32>
    tpu.vector_store %arg15[%c0_323, %c0_324], %314 {strides = array<i32>} : memref<16x42xf32, #tpu.memory_space<vmem>>, vector<16x42xf32>,
    %cst_325 = arith.constant 0.000000e+00 : f32
    %316 = vector.broadcast %cst_325 : f32 to vector<32x24xf32>
    %c0_326 = arith.constant 0 : index
    %c0_327 = arith.constant 0 : index
    %c0_328 = arith.constant 0 : index
    %317 = vector.load %arg8[%c0_326, %c0_327, %c0_328] : memref<9x32x16xf32, #tpu.memory_space<vmem>>, vector<1x32x16xf32>
    %318 = vector.shape_cast %317 : vector<1x32x16xf32> to vector<32x16xf32>
    %c0_329 = arith.constant 0 : index
    %c0_330 = arith.constant 0 : index
    %319 = vector.load %arg15[%c0_329, %c0_330] : memref<16x42xf32, #tpu.memory_space<vmem>>, vector<16x24xf32>
    %cst_331 = arith.constant dense<0.000000e+00> : vector<32x24xf32>
    %320 = tpu.matmul %318, %319, %cst_331 {dimension_numbers = #tpu.dot_dimension_numbers<[1], [0], [0], [1], [0, 0, 1, 1], [], []>} : vector<32x16xf32>, vector<16x24xf32>, vector<32x24xf32> -> vector<32x24xf32>
    %321 = arith.addf %316, %320 : vector<32x24xf32>
    %c1_332 = arith.constant 1 : index
    %c0_333 = arith.constant 0 : index
    %c0_334 = arith.constant 0 : index
    %322 = vector.load %arg8[%c1_332, %c0_333, %c0_334] : memref<9x32x16xf32, #tpu.memory_space<vmem>>, vector<1x32x16xf32>
    %323 = vector.shape_cast %322 : vector<1x32x16xf32> to vector<32x16xf32>
    %c0_335 = arith.constant 0 : index
    %c1_336 = arith.constant 1 : index
    %324 = vector.load %arg15[%c0_335, %c1_336] : memref<16x42xf32, #tpu.memory_space<vmem>>, vector<16x24xf32>
    %cst_337 = arith.constant dense<0.000000e+00> : vector<32x24xf32>
    %325 = tpu.matmul %323, %324, %cst_337 {dimension_numbers = #tpu.dot_dimension_numbers<[1], [0], [0], [1], [0, 0, 1, 1], [], []>} : vector<32x16xf32>, vector<16x24xf32>, vector<32x24xf32> -> vector<32x24xf32>
    %326 = arith.addf %321, %325 : vector<32x24xf32>
    %c2_338 = arith.constant 2 : index
    %c0_339 = arith.constant 0 : index
    %c0_340 = arith.constant 0 : index
    %327 = vector.load %arg8[%c2_338, %c0_339, %c0_340] : memref<9x32x16xf32, #tpu.memory_space<vmem>>, vector<1x32x16xf32>
    %328 = vector.shape_cast %327 : vector<1x32x16xf32> to vector<32x16xf32>
    %c0_341 = arith.constant 0 : index
    %c2_342 = arith.constant 2 : index
    %329 = vector.load %arg15[%c0_341, %c2_342] : memref<16x42xf32, #tpu.memory_space<vmem>>, vector<16x24xf32>
    %cst_343 = arith.constant dense<0.000000e+00> : vector<32x24xf32>
    %330 = tpu.matmul %328, %329, %cst_343 {dimension_numbers = #tpu.dot_dimension_numbers<[1], [0], [0], [1], [0, 0, 1, 1], [], []>} : vector<32x16xf32>, vector<16x24xf32>, vector<32x24xf32> -> vector<32x24xf32>
    %331 = arith.addf %326, %330 : vector<32x24xf32>
    %c3_344 = arith.constant 3 : index
    %c0_345 = arith.constant 0 : index
    %c0_346 = arith.constant 0 : index
    %332 = vector.load %arg8[%c3_344, %c0_345, %c0_346] : memref<9x32x16xf32, #tpu.memory_space<vmem>>, vector<1x32x16xf32>
    %333 = vector.shape_cast %332 : vector<1x32x16xf32> to vector<32x16xf32>
    %c0_347 = arith.constant 0 : index
    %c8_348 = arith.constant 8 : index
    %334 = vector.load %arg15[%c0_347, %c8_348] : memref<16x42xf32, #tpu.memory_space<vmem>>, vector<16x24xf32>
    %cst_349 = arith.constant dense<0.000000e+00> : vector<32x24xf32>
    %335 = tpu.matmul %333, %334, %cst_349 {dimension_numbers = #tpu.dot_dimension_numbers<[1], [0], [0], [1], [0, 0, 1, 1], [], []>} : vector<32x16xf32>, vector<16x24xf32>, vector<32x24xf32> -> vector<32x24xf32>
    %336 = arith.addf %331, %335 : vector<32x24xf32>
    %c4_350 = arith.constant 4 : index
    %c0_351 = arith.constant 0 : index
    %c0_352 = arith.constant 0 : index
    %337 = vector.load %arg8[%c4_350, %c0_351, %c0_352] : memref<9x32x16xf32, #tpu.memory_space<vmem>>, vector<1x32x16xf32>
    %338 = vector.shape_cast %337 : vector<1x32x16xf32> to vector<32x16xf32>
    %c0_353 = arith.constant 0 : index
    %c9_354 = arith.constant 9 : index
    %339 = vector.load %arg15[%c0_353, %c9_354] : memref<16x42xf32, #tpu.memory_space<vmem>>, vector<16x24xf32>
    %cst_355 = arith.constant dense<0.000000e+00> : vector<32x24xf32>
    %340 = tpu.matmul %338, %339, %cst_355 {dimension_numbers = #tpu.dot_dimension_numbers<[1], [0], [0], [1], [0, 0, 1, 1], [], []>} : vector<32x16xf32>, vector<16x24xf32>, vector<32x24xf32> -> vector<32x24xf32>
    %341 = arith.addf %336, %340 : vector<32x24xf32>
    %c5_356 = arith.constant 5 : index
    %c0_357 = arith.constant 0 : index
    %c0_358 = arith.constant 0 : index
    %342 = vector.load %arg8[%c5_356, %c0_357, %c0_358] : memref<9x32x16xf32, #tpu.memory_space<vmem>>, vector<1x32x16xf32>
    %343 = vector.shape_cast %342 : vector<1x32x16xf32> to vector<32x16xf32>
    %c0_359 = arith.constant 0 : index
    %c10_360 = arith.constant 10 : index
    %344 = vector.load %arg15[%c0_359, %c10_360] : memref<16x42xf32, #tpu.memory_space<vmem>>, vector<16x24xf32>
    %cst_361 = arith.constant dense<0.000000e+00> : vector<32x24xf32>
    %345 = tpu.matmul %343, %344, %cst_361 {dimension_numbers = #tpu.dot_dimension_numbers<[1], [0], [0], [1], [0, 0, 1, 1], [], []>} : vector<32x16xf32>, vector<16x24xf32>, vector<32x24xf32> -> vector<32x24xf32>
    %346 = arith.addf %341, %345 : vector<32x24xf32>
    %c6_362 = arith.constant 6 : index
    %c0_363 = arith.constant 0 : index
    %c0_364 = arith.constant 0 : index
    %347 = vector.load %arg8[%c6_362, %c0_363, %c0_364] : memref<9x32x16xf32, #tpu.memory_space<vmem>>, vector<1x32x16xf32>
    %348 = vector.shape_cast %347 : vector<1x32x16xf32> to vector<32x16xf32>
    %c0_365 = arith.constant 0 : index
    %c16_366 = arith.constant 16 : index
    %349 = vector.load %arg15[%c0_365, %c16_366] : memref<16x42xf32, #tpu.memory_space<vmem>>, vector<16x24xf32>
    %cst_367 = arith.constant dense<0.000000e+00> : vector<32x24xf32>
    %350 = tpu.matmul %348, %349, %cst_367 {dimension_numbers = #tpu.dot_dimension_numbers<[1], [0], [0], [1], [0, 0, 1, 1], [], []>} : vector<32x16xf32>, vector<16x24xf32>, vector<32x24xf32> -> vector<32x24xf32>
    %351 = arith.addf %346, %350 : vector<32x24xf32>
    %c7_368 = arith.constant 7 : index
    %c0_369 = arith.constant 0 : index
    %c0_370 = arith.constant 0 : index
    %352 = vector.load %arg8[%c7_368, %c0_369, %c0_370] : memref<9x32x16xf32, #tpu.memory_space<vmem>>, vector<1x32x16xf32>
    %353 = vector.shape_cast %352 : vector<1x32x16xf32> to vector<32x16xf32>
    %c0_371 = arith.constant 0 : index
    %c17_372 = arith.constant 17 : index
    %354 = vector.load %arg15[%c0_371, %c17_372] : memref<16x42xf32, #tpu.memory_space<vmem>>, vector<16x24xf32>
    %cst_373 = arith.constant dense<0.000000e+00> : vector<32x24xf32>
    %355 = tpu.matmul %353, %354, %cst_373 {dimension_numbers = #tpu.dot_dimension_numbers<[1], [0], [0], [1], [0, 0, 1, 1], [], []>} : vector<32x16xf32>, vector<16x24xf32>, vector<32x24xf32> -> vector<32x24xf32>
    %356 = arith.addf %351, %355 : vector<32x24xf32>
    %c8_374 = arith.constant 8 : index
    %c0_375 = arith.constant 0 : index
    %c0_376 = arith.constant 0 : index
    %357 = vector.load %arg8[%c8_374, %c0_375, %c0_376] : memref<9x32x16xf32, #tpu.memory_space<vmem>>, vector<1x32x16xf32>
    %358 = vector.shape_cast %357 : vector<1x32x16xf32> to vector<32x16xf32>
    %c0_377 = arith.constant 0 : index
    %c18_378 = arith.constant 18 : index
    %359 = vector.load %arg15[%c0_377, %c18_378] : memref<16x42xf32, #tpu.memory_space<vmem>>, vector<16x24xf32>
    %cst_379 = arith.constant dense<0.000000e+00> : vector<32x24xf32>
    %360 = tpu.matmul %358, %359, %cst_379 {dimension_numbers = #tpu.dot_dimension_numbers<[1], [0], [0], [1], [0, 0, 1, 1], [], []>} : vector<32x16xf32>, vector<16x24xf32>, vector<32x24xf32> -> vector<32x24xf32>
    %361 = arith.addf %356, %360 : vector<32x24xf32>
    %c0_380 = arith.constant 0 : index
    %c0_381 = arith.constant 0 : index
    %362 = vector.load %arg9[%c0_380, %c0_381] : memref<32x1xf32, #tpu.memory_space<vmem>>, vector<32x1xf32>
    %363 = vector.broadcast %362 : vector<32x1xf32> to vector<32x24xf32>
    %364 = arith.addf %361, %363 : vector<32x24xf32>
    %cst_382 = arith.constant 0.000000e+00 : f32
    %365 = vector.broadcast %cst_382 : f32 to vector<32x24xf32>
    %366 = arith.cmpf oge, %364, %365 : vector<32x24xf32>
    %c0_383 = arith.constant 0 : index
    %c0_384 = arith.constant 0 : index
    %367 = vector.load %arg10[%c0_383, %c0_384] : memref<1x1xf32, #tpu.memory_space<vmem>>, vector<1x1xf32>
    %368 = vector.broadcast %367 : vector<1x1xf32> to vector<32x24xf32>
    %369 = arith.mulf %368, %364 : vector<32x24xf32>
    %370 = arith.select %366, %364, %369 : vector<32x24xi1>, vector<32x24xf32>
    %c0_385 = arith.constant 0 : index
    %c0_386 = arith.constant 0 : index
    %371 = vector.load %arg11[%c0_385, %c0_386] : memref<15x32xf32, #tpu.memory_space<vmem>>, vector<15x32xf32>
    %cst_387 = arith.constant dense<0.000000e+00> : vector<15x24xf32>
    %372 = tpu.matmul %371, %370, %cst_387 {dimension_numbers = #tpu.dot_dimension_numbers<[1], [0], [0], [1], [0, 0, 1, 1], [], []>} : vector<15x32xf32>, vector<32x24xf32>, vector<15x24xf32> -> vector<15x24xf32>
    %c0_388 = arith.constant 0 : index
    %c0_389 = arith.constant 0 : index
    %373 = vector.load %arg12[%c0_388, %c0_389] : memref<15x1xf32, #tpu.memory_space<vmem>>, vector<15x1xf32>
    %374 = vector.broadcast %373 : vector<15x1xf32> to vector<15x24xf32>
    %375 = arith.addf %372, %374 : vector<15x24xf32>
    %376 = vector.extract_strided_slice %375 {offsets = [1, 0], sizes = [14, 24], strides = [1, 1]} : vector<15x24xf32> to vector<14x24xf32>
    %c0_390 = arith.constant 0 : index
    %c1_391 = arith.constant 1 : index
    %c0_392 = arith.constant 0 : index
    %377 = vector.load %arg13[%c0_390, %c1_391, %c0_392] : memref<1x15x24xf32, #tpu.memory_space<vmem>>, vector<1x14x24xf32>
    %378 = vector.shape_cast %377 : vector<1x14x24xf32> to vector<14x24xf32>
    %379 = vector.shape_cast %376 : vector<14x24xf32> to vector<1x14x24xf32>
    tpu.vector_store %arg13[%c0_390, %c1_391, %c0_392], %379 {strides = array<i32>} : memref<1x15x24xf32, #tpu.memory_space<vmem>>, vector<1x14x24xf32>,
    %380 = vector.extract_strided_slice %375 {offsets = [0, 0], sizes = [1, 24], strides = [1, 1]} : vector<15x24xf32> to vector<1x24xf32>
    %cst_393 = arith.constant 0.000000e+00 : f32
    %381 = vector.broadcast %cst_393 : f32 to vector<1x24xf32>
    %382 = arith.subf %381, %380 : vector<1x24xf32>
    %383 = math.exp %382 : vector<1x24xf32>
    %cst_394 = arith.constant 1.000000e+00 : f32
    %384 = vector.broadcast %cst_394 : f32 to vector<1x24xf32>
    %385 = arith.addf %384, %383 : vector<1x24xf32>
    %cst_395 = arith.constant 1.000000e+00 : f32
    %386 = vector.broadcast %cst_395 : f32 to vector<1x24xf32>
    %387 = arith.divf %386, %385 : vector<1x24xf32>
    %c0_396 = arith.constant 0 : index
    %c0_397 = arith.constant 0 : index
    %c0_398 = arith.constant 0 : index
    %388 = vector.load %arg13[%c0_396, %c0_397, %c0_398] : memref<1x15x24xf32, #tpu.memory_space<vmem>>, vector<1x1x24xf32>
    %389 = vector.shape_cast %388 : vector<1x1x24xf32> to vector<1x24xf32>
    %390 = vector.shape_cast %387 : vector<1x24xf32> to vector<1x1x24xf32>
    tpu.vector_store %arg13[%c0_396, %c0_397, %c0_398], %390 {strides = array<i32>} : memref<1x15x24xf32, #tpu.memory_space<vmem>>, vector<1x1x24xf32>,
    return
  }
  func.func @transform_0(%arg0: i32) -> (i32, i32, i32) {
    %c0_i32 = arith.constant 0 : i32
    %c0_i32_0 = arith.constant 0 : i32
    %c0_i32_1 = arith.constant 0 : i32
    return %arg0, %c0_i32, %c0_i32_0 : i32, i32, i32
  }
  func.func @transform_1(%arg0: i32) -> (i32, i32, i32) {
    %c0_i32 = arith.constant 0 : i32
    %c0_i32_0 = arith.constant 0 : i32
    %c0_i32_1 = arith.constant 0 : i32
    %c0_i32_2 = arith.constant 0 : i32
    return %c0_i32, %c0_i32_0, %c0_i32_1 : i32, i32, i32
  }
  func.func @transform_2(%arg0: i32) -> (i32, i32) {
    %c0_i32 = arith.constant 0 : i32
    %c0_i32_0 = arith.constant 0 : i32
    %c0_i32_1 = arith.constant 0 : i32
    return %c0_i32, %c0_i32_0 : i32, i32
  }
  func.func @transform_3(%arg0: i32) -> (i32, i32) {
    %c0_i32 = arith.constant 0 : i32
    %c0_i32_0 = arith.constant 0 : i32
    %c0_i32_1 = arith.constant 0 : i32
    return %c0_i32, %c0_i32_0 : i32, i32
  }
  func.func @transform_4(%arg0: i32) -> (i32, i32, i32) {
    %c0_i32 = arith.constant 0 : i32
    %c0_i32_0 = arith.constant 0 : i32
    %c0_i32_1 = arith.constant 0 : i32
    %c0_i32_2 = arith.constant 0 : i32
    return %c0_i32, %c0_i32_0, %c0_i32_1 : i32, i32, i32
  }
  func.func @transform_5(%arg0: i32) -> (i32, i32) {
    %c0_i32 = arith.constant 0 : i32
    %c0_i32_0 = arith.constant 0 : i32
    %c0_i32_1 = arith.constant 0 : i32
    return %c0_i32, %c0_i32_0 : i32, i32
  }
  func.func @transform_6(%arg0: i32) -> (i32, i32) {
    %c0_i32 = arith.constant 0 : i32
    %c0_i32_0 = arith.constant 0 : i32
    %c0_i32_1 = arith.constant 0 : i32
    return %c0_i32, %c0_i32_0 : i32, i32
  }
  func.func @transform_7(%arg0: i32) -> (i32, i32, i32) {
    %c0_i32 = arith.constant 0 : i32
    %c0_i32_0 = arith.constant 0 : i32
    %c0_i32_1 = arith.constant 0 : i32
    %c0_i32_2 = arith.constant 0 : i32
    return %c0_i32, %c0_i32_0, %c0_i32_1 : i32, i32, i32
  }
  func.func @transform_8(%arg0: i32) -> (i32, i32) {
    %c0_i32 = arith.constant 0 : i32
    %c0_i32_0 = arith.constant 0 : i32
    %c0_i32_1 = arith.constant 0 : i32
    return %c0_i32, %c0_i32_0 : i32, i32
  }
  func.func @transform_9(%arg0: i32) -> (i32, i32) {
    %c0_i32 = arith.constant 0 : i32
    %c0_i32_0 = arith.constant 0 : i32
    %c0_i32_1 = arith.constant 0 : i32
    return %c0_i32, %c0_i32_0 : i32, i32
  }
  func.func @transform_10(%arg0: i32) -> (i32, i32) {
    %c0_i32 = arith.constant 0 : i32
    %c0_i32_0 = arith.constant 0 : i32
    %c0_i32_1 = arith.constant 0 : i32
    return %c0_i32, %c0_i32_0 : i32, i32
  }
  func.func @transform_11(%arg0: i32) -> (i32, i32) {
    %c0_i32 = arith.constant 0 : i32
    %c0_i32_0 = arith.constant 0 : i32
    %c0_i32_1 = arith.constant 0 : i32
    return %c0_i32, %c0_i32_0 : i32, i32
  }
  func.func @transform_12(%arg0: i32) -> (i32, i32, i32) {
    %c0_i32 = arith.constant 0 : i32
    %c0_i32_0 = arith.constant 0 : i32
    %c0_i32_1 = arith.constant 0 : i32
    return %arg0, %c0_i32, %c0_i32_0 : i32, i32, i32
  }
}

</mosaic_0001>

<llo_original>
// kernel: pnet_forward.1
$region0: #{pnet_forward.1}
  #allocation0 [shape = 'u32[]', space=smem, size = 0x4, offset = 0x4, fixed_abs, tag = 'smem constant byte address 0x4 - core index']
  #allocation1 [shape = 'u32[144,128]{1,0:T(1,128)}', space=vmem, size = 0x12000, scoped, tag = 'internal scratch']
  #allocation2 [shape = 'f32[10,60]{1,0:T(8,128)}', space=vmem, size = 0x2000, scoped, tag = 'scratch operand']
  #allocation3 [shape = 'f32[16,42]{1,0:T(8,128)}', space=vmem, size = 0x2000, scoped, tag = 'scratch operand']
  #allocation4 [shape = 'f32[1,1]{1,0:T(1,128)S(1)}', space=vmem, size = 0x200, scoped, tag = 'scoped memory for pnet_forward.1']
  #allocation5 [shape = 'f32[1,1]{1,0:T(1,128)S(1)}', space=vmem, size = 0x200, scoped, tag = 'scoped memory for pnet_forward.1']
  #allocation6 [shape = 'f32[1,1]{1,0:T(1,128)S(1)}', space=vmem, size = 0x200, scoped, tag = 'scoped memory for pnet_forward.1']
  %s0 = inlined_call_operand.vmem [shape: f32[2,12,69], index: 0, kind: input, shape index: {}]
  %s1 = inlined_call_operand.vmem [shape: f32[9,10,3], index: 1, kind: input, shape index: {}]
  %s2 = inlined_call_operand.vmem [shape: f32[10,1], index: 2, kind: input, shape index: {}]
  %s3 = inlined_call_operand.<no memory space> [shape: f32[1,1], index: 3, kind: input, shape index: {}]
  %s4 = inlined_call_operand.vmem [shape: f32[9,16,10], index: 4, kind: input, shape index: {}]
  %s5 = inlined_call_operand.vmem [shape: f32[16,1], index: 5, kind: input, shape index: {}]
  %s6 = inlined_call_operand.<no memory space> [shape: f32[1,1], index: 6, kind: input, shape index: {}]
  %s7 = inlined_call_operand.vmem [shape: f32[9,32,16], index: 7, kind: input, shape index: {}]
  %s8 = inlined_call_operand.vmem [shape: f32[32,1], index: 8, kind: input, shape index: {}]
  %s9 = inlined_call_operand.<no memory space> [shape: f32[1,1], index: 9, kind: input, shape index: {}]
  %s10 = inlined_call_operand.vmem [shape: f32[15,32], index: 10, kind: input, shape index: {}]
  %s11 = inlined_call_operand.vmem [shape: f32[15,1], index: 11, kind: input, shape index: {}]
  %s12 = inlined_call_operand.vmem [shape: f32[2,15,24], index: 12, kind: output, shape index: {}]
  %s13 = sld [smem:[#allocation0]]
  $region81: #{pnet_forward.1} parent=0
    _
  %s15 = ssub.s32 1, %s13
  %s16 = scalar_select 0, %s15, %s13
  %v17 = vstv %s3
  %18 = vst [vmem:[#allocation4] sm:$0x1] %v17
  %v19 = vstv %s6
  %20 = vst [vmem:[#allocation5] sm:$0x1] %v19
  %v21 = vstv %s9
  %22 = vst [vmem:[#allocation6] sm:$0x1] %v21
  loop: start=0, step=1, limit=4
  $region2: #{pnet_forward.1} parent=0 // loop_pre_header
    _
  $region3: #{pnet_forward.1} parent=0 // loop_header
    %s24 = sphi 0, %s28
    %p25 = scmp.ge.s32.totalorder %s24, 4
    %s34 = sphi 0, %s36
    %s37 = sphi 0, %s34
    %s38 = sphi 0, %s37
    %s54 = sphi 0, %s38
    %s58 = sphi 0, %s58
    %s60 = sphi 0, %s58
    %s61 = sphi 0, %s60
    %s75 = sphi 0, %s61
    %s79 = sphi 0, %s79
    %s81 = sphi 0, %s79
    %s82 = sphi 0, %s81
    %s96 = sphi 0, %s82
    %s100 = sphi 0, %s100
    %s102 = sphi 0, %s100
    %s103 = sphi 0, %s102
    %s117 = sphi 0, %s103
    %s121 = sphi 0, %s121
    %s123 = sphi 0, %s121
    %s124 = sphi 0, %s123
    %s138 = sphi 0, %s124
    %s142 = sphi 0, %s142
    %s144 = sphi 0, %s142
    %s145 = sphi 0, %s144
    %s159 = sphi 0, %s145
    %s163 = sphi 0, %s163
    %s165 = sphi 0, %s163
    %s166 = sphi 0, %s165
    %s180 = sphi 0, %s166
    %s184 = sphi 0, %s184
    %s186 = sphi 0, %s184
    %s187 = sphi 0, %s186
    %s201 = sphi 0, %s187
    %s205 = sphi 0, %s205
    %s207 = sphi 0, %s205
    %s208 = sphi 0, %s207
    %s222 = sphi 0, %s208
    %s226 = sphi 0, %s226
    %s228 = sphi 0, %s226
    %s229 = sphi 0, %s228
    %s243 = sphi 0, %s229
    %s247 = sphi 0, %s247
    %s249 = sphi 0, %s247
    %s250 = sphi 0, %s249
    %s264 = sphi 0, %s250
    %s268 = sphi 0, %s268
    %s270 = sphi 0, %s268
    %s271 = sphi 0, %s270
    %s285 = sphi 0, %s271
    %s291 = sphi 0, %s293
    %s294 = sphi 0, %s291
    %s295 = sphi 0, %s294
    %s311 = sphi 0, %s295
  $region4: #{pnet_forward.1} parent=0 // loop_header_branch
    %27 = sbr.rel (%p25) target = $region8
  $region5: #{pnet_forward.1} parent=0 // loop_body
    %s29 = ssub.s32 %s24, 1
    %s30 = ssub.s32 %s24, 2
    %s31 = sadd.s32 %s24, 1
    %s32 = ssub.s32 %s24, %s31
    %p33 = scmp.eq.s32.totalorder %s32, 0
    %s35 = sadd.s32 %s34, 1
    %s36 = scalar_select %p33, %s34, %s35
    %p39 = pneg %p33
    %p40 = scmp.eq.s32.totalorder %s24, 1
    %p41 = por %p39, %p40
    %p42 = scmp.ne.s32.totalorder %s34, %s37
    %p43 = scmp.eq.s32.totalorder %s24, 0
    %p44 = por %p42, %p43
    %p45 = scmp.ne.s32.totalorder %s34, %s37
    %p46 = scmp.eq.s32.totalorder %s29, 1
    %p47 = por %p45, %p46
    %p48 = scmp.ne.s32.totalorder %s37, %s38
    %p49 = scmp.eq.s32.totalorder %s29, 0
    %p50 = por %p48, %p49
    %p51 = scmp.ne.s32.totalorder %s37, %s38
    %p52 = scmp.eq.s32.totalorder %s30, 1
    %p53 = por %p51, %p52
    %p55 = scmp.ne.s32.totalorder %s38, %s54
    %p56 = scmp.eq.s32.totalorder %s30, 0
    %p57 = por %p55, %p56
    %s59 = sadd.s32 %s58, 1
    %p62 = scmp.eq.s32.totalorder %s24, 1
    %p63 = scmp.ne.s32.totalorder %s58, %s60
    %p64 = scmp.eq.s32.totalorder %s24, 0
    %p65 = por %p63, %p64
    %p66 = scmp.ne.s32.totalorder %s58, %s60
    %p67 = scmp.eq.s32.totalorder %s29, 1
    %p68 = por %p66, %p67
    %p69 = scmp.ne.s32.totalorder %s60, %s61
    %p70 = scmp.eq.s32.totalorder %s29, 0
    %p71 = por %p69, %p70
    %p72 = scmp.ne.s32.totalorder %s60, %s61
    %p73 = scmp.eq.s32.totalorder %s30, 1
    %p74 = por %p72, %p73
    %p76 = scmp.ne.s32.totalorder %s61, %s75
    %p77 = scmp.eq.s32.totalorder %s30, 0
    %p78 = por %p76, %p77
    %s80 = sadd.s32 %s79, 1
    %p83 = scmp.eq.s32.totalorder %s24, 1
    %p84 = scmp.ne.s32.totalorder %s79, %s81
    %p85 = scmp.eq.s32.totalorder %s24, 0
    %p86 = por %p84, %p85
    %p87 = scmp.ne.s32.totalorder %s79, %s81
    %p88 = scmp.eq.s32.totalorder %s29, 1
    %p89 = por %p87, %p88
    %p90 = scmp.ne.s32.totalorder %s81, %s82
    %p91 = scmp.eq.s32.totalorder %s29, 0
    %p92 = por %p90, %p91
    %p93 = scmp.ne.s32.totalorder %s81, %s82
    %p94 = scmp.eq.s32.totalorder %s30, 1
    %p95 = por %p93, %p94
    %p97 = scmp.ne.s32.totalorder %s82, %s96
    %p98 = scmp.eq.s32.totalorder %s30, 0
    %p99 = por %p97, %p98
    %s101 = sadd.s32 %s100, 1
    %p104 = scmp.eq.s32.totalorder %s24, 1
    %p105 = scmp.ne.s32.totalorder %s100, %s102
    %p106 = scmp.eq.s32.totalorder %s24, 0
    %p107 = por %p105, %p106
    %p108 = scmp.ne.s32.totalorder %s100, %s102
    %p109 = scmp.eq.s32.totalorder %s29, 1
    %p110 = por %p108, %p109
    %p111 = scmp.ne.s32.totalorder %s102, %s103
    %p112 = scmp.eq.s32.totalorder %s29, 0
    %p113 = por %p111, %p112
    %p114 = scmp.ne.s32.totalorder %s102, %s103
    %p115 = scmp.eq.s32.totalorder %s30, 1
    %p116 = por %p114, %p115
    %p118 = scmp.ne.s32.totalorder %s103, %s117
    %p119 = scmp.eq.s32.totalorder %s30, 0
    %p120 = por %p118, %p119
    %s122 = sadd.s32 %s121, 1
    %p125 = scmp.eq.s32.totalorder %s24, 1
    %p126 = scmp.ne.s32.totalorder %s121, %s123
    %p127 = scmp.eq.s32.totalorder %s24, 0
    %p128 = por %p126, %p127
    %p129 = scmp.ne.s32.totalorder %s121, %s123
    %p130 = scmp.eq.s32.totalorder %s29, 1
    %p131 = por %p129, %p130
    %p132 = scmp.ne.s32.totalorder %s123, %s124
    %p133 = scmp.eq.s32.totalorder %s29, 0
    %p134 = por %p132, %p133
    %p135 = scmp.ne.s32.totalorder %s123, %s124
    %p136 = scmp.eq.s32.totalorder %s30, 1
    %p137 = por %p135, %p136
    %p139 = scmp.ne.s32.totalorder %s124, %s138
    %p140 = scmp.eq.s32.totalorder %s30, 0
    %p141 = por %p139, %p140
    %s143 = sadd.s32 %s142, 1
    %p146 = scmp.eq.s32.totalorder %s24, 1
    %p147 = scmp.ne.s32.totalorder %s142, %s144
    %p148 = scmp.eq.s32.totalorder %s24, 0
    %p149 = por %p147, %p148
    %p150 = scmp.ne.s32.totalorder %s142, %s144
    %p151 = scmp.eq.s32.totalorder %s29, 1
    %p152 = por %p150, %p151
    %p153 = scmp.ne.s32.totalorder %s144, %s145
    %p154 = scmp.eq.s32.totalorder %s29, 0
    %p155 = por %p153, %p154
    %p156 = scmp.ne.s32.totalorder %s144, %s145
    %p157 = scmp.eq.s32.totalorder %s30, 1
    %p158 = por %p156, %p157
    %p160 = scmp.ne.s32.totalorder %s145, %s159
    %p161 = scmp.eq.s32.totalorder %s30, 0
    %p162 = por %p160, %p161
    %s164 = sadd.s32 %s163, 1
    %p167 = scmp.eq.s32.totalorder %s24, 1
    %p168 = scmp.ne.s32.totalorder %s163, %s165
    %p169 = scmp.eq.s32.totalorder %s24, 0
    %p170 = por %p168, %p169
    %p171 = scmp.ne.s32.totalorder %s163, %s165
    %p172 = scmp.eq.s32.totalorder %s29, 1
    %p173 = por %p171, %p172
    %p174 = scmp.ne.s32.totalorder %s165, %s166
    %p175 = scmp.eq.s32.totalorder %s29, 0
    %p176 = por %p174, %p175
    %p177 = scmp.ne.s32.totalorder %s165, %s166
    %p178 = scmp.eq.s32.totalorder %s30, 1
    %p179 = por %p177, %p178
    %p181 = scmp.ne.s32.totalorder %s166, %s180
    %p182 = scmp.eq.s32.totalorder %s30, 0
    %p183 = por %p181, %p182
    %s185 = sadd.s32 %s184, 1
    %p188 = scmp.eq.s32.totalorder %s24, 1
    %p189 = scmp.ne.s32.totalorder %s184, %s186
    %p190 = scmp.eq.s32.totalorder %s24, 0
    %p191 = por %p189, %p190
    %p192 = scmp.ne.s32.totalorder %s184, %s186
    %p193 = scmp.eq.s32.totalorder %s29, 1
    %p194 = por %p192, %p193
    %p195 = scmp.ne.s32.totalorder %s186, %s187
    %p196 = scmp.eq.s32.totalorder %s29, 0
    %p197 = por %p195, %p196
    %p198 = scmp.ne.s32.totalorder %s186, %s187
    %p199 = scmp.eq.s32.totalorder %s30, 1
    %p200 = por %p198, %p199
    %p202 = scmp.ne.s32.totalorder %s187, %s201
    %p203 = scmp.eq.s32.totalorder %s30, 0
    %p204 = por %p202, %p203
    %s206 = sadd.s32 %s205, 1
    %p209 = scmp.eq.s32.totalorder %s24, 1
    %p210 = scmp.ne.s32.totalorder %s205, %s207
    %p211 = scmp.eq.s32.totalorder %s24, 0
    %p212 = por %p210, %p211
    %p213 = scmp.ne.s32.totalorder %s205, %s207
    %p214 = scmp.eq.s32.totalorder %s29, 1
    %p215 = por %p213, %p214
    %p216 = scmp.ne.s32.totalorder %s207, %s208
    %p217 = scmp.eq.s32.totalorder %s29, 0
    %p218 = por %p216, %p217
    %p219 = scmp.ne.s32.totalorder %s207, %s208
    %p220 = scmp.eq.s32.totalorder %s30, 1
    %p221 = por %p219, %p220
    %p223 = scmp.ne.s32.totalorder %s208, %s222
    %p224 = scmp.eq.s32.totalorder %s30, 0
    %p225 = por %p223, %p224
    %s227 = sadd.s32 %s226, 1
    %p230 = scmp.eq.s32.totalorder %s24, 1
    %p231 = scmp.ne.s32.totalorder %s226, %s228
    %p232 = scmp.eq.s32.totalorder %s24, 0
    %p233 = por %p231, %p232
    %p234 = scmp.ne.s32.totalorder %s226, %s228
    %p235 = scmp.eq.s32.totalorder %s29, 1
    %p236 = por %p234, %p235
    %p237 = scmp.ne.s32.totalorder %s228, %s229
    %p238 = scmp.eq.s32.totalorder %s29, 0
    %p239 = por %p237, %p238
    %p240 = scmp.ne.s32.totalorder %s228, %s229
    %p241 = scmp.eq.s32.totalorder %s30, 1
    %p242 = por %p240, %p241
    %p244 = scmp.ne.s32.totalorder %s229, %s243
    %p245 = scmp.eq.s32.totalorder %s30, 0
    %p246 = por %p244, %p245
    %s248 = sadd.s32 %s247, 1
    %p251 = scmp.eq.s32.totalorder %s24, 1
    %p252 = scmp.ne.s32.totalorder %s247, %s249
    %p253 = scmp.eq.s32.totalorder %s24, 0
    %p254 = por %p252, %p253
    %p255 = scmp.ne.s32.totalorder %s247, %s249
    %p256 = scmp.eq.s32.totalorder %s29, 1
    %p257 = por %p255, %p256
    %p258 = scmp.ne.s32.totalorder %s249, %s250
    %p259 = scmp.eq.s32.totalorder %s29, 0
    %p260 = por %p258, %p259
    %p261 = scmp.ne.s32.totalorder %s249, %s250
    %p262 = scmp.eq.s32.totalorder %s30, 1
    %p263 = por %p261, %p262
    %p265 = scmp.ne.s32.totalorder %s250, %s264
    %p266 = scmp.eq.s32.totalorder %s30, 0
    %p267 = por %p265, %p266
    %s269 = sadd.s32 %s268, 1
    %p272 = scmp.eq.s32.totalorder %s24, 1
    %p273 = scmp.ne.s32.totalorder %s268, %s270
    %p274 = scmp.eq.s32.totalorder %s24, 0
    %p275 = por %p273, %p274
    %p276 = scmp.ne.s32.totalorder %s268, %s270
    %p277 = scmp.eq.s32.totalorder %s29, 1
    %p278 = por %p276, %p277
    %p279 = scmp.ne.s32.totalorder %s270, %s271
    %p280 = scmp.eq.s32.totalorder %s29, 0
    %p281 = por %p279, %p280
    %p282 = scmp.ne.s32.totalorder %s270, %s271
    %p283 = scmp.eq.s32.totalorder %s30, 1
    %p284 = por %p282, %p283
    %p286 = scmp.ne.s32.totalorder %s271, %s285
    %p287 = scmp.eq.s32.totalorder %s30, 0
    %p288 = por %p286, %p287
    %s289 = ssub.s32 %s24, %s31
    %p290 = scmp.eq.s32.totalorder %s289, 0
    %s292 = sadd.s32 %s291, 1
    %s293 = scalar_select %p290, %s291, %s292
    %p296 = pneg %p290
    %p297 = scmp.eq.s32.totalorder %s24, 1
    %p298 = por %p296, %p297
    %p299 = scmp.ne.s32.totalorder %s291, %s294
    %p300 = scmp.eq.s32.totalorder %s24, 0
    %p301 = por %p299, %p300
    %p302 = scmp.ne.s32.totalorder %s291, %s294
    %p303 = scmp.eq.s32.totalorder %s29, 1
    %p304 = por %p302, %p303
    %p305 = scmp.ne.s32.totalorder %s294, %s295
    %p306 = scmp.eq.s32.totalorder %s29, 0
    %p307 = por %p305, %p306
    %p308 = scmp.ne.s32.totalorder %s294, %s295
    %p309 = scmp.eq.s32.totalorder %s30, 1
    %p310 = por %p308, %p309
    %p312 = scmp.ne.s32.totalorder %s295, %s311
    %p313 = scmp.eq.s32.totalorder %s30, 0
    %p314 = por %p312, %p313
    %p315 = scmp.le.s32.totalorder 1, %s24
    %p316 = scmp.lt.s32.totalorder %s24, 3
    %p317 = pnand %p315, %p316
    %p318 = pneg %p317
    // Predicated region
    $region9: #{pnet_forward.1} parent=5 // pred_check
      _
    $region10: #{pnet_forward.1} parent=5 // pred_check_branch
      %320 = sbr.rel (%p317) target = $region12
    $region11: #{pnet_forward.1} parent=5 // pred_region
      %s321 = ssub.s32 %s24, 1
      // Predicated region
      $region13: #{pnet_forward.1} parent=11 // pred_check
        %p322 = pneg %p71
      $region14: #{pnet_forward.1} parent=11 // pred_check_branch
        %324 = sbr.rel (%p322) target = $region16
      $region15: #{pnet_forward.1} parent=11 // pred_region
        _
      $region16: #{pnet_forward.1} parent=11 // pred_fallthru
        _
      // Predicated region
      $region17: #{pnet_forward.1} parent=11 // pred_check
        %p325 = pneg %p92
      $region18: #{pnet_forward.1} parent=11 // pred_check_branch
        %327 = sbr.rel (%p325) target = $region20
      $region19: #{pnet_forward.1} parent=11 // pred_region
        _
      $region20: #{pnet_forward.1} parent=11 // pred_fallthru
        _
      // Predicated region
      $region21: #{pnet_forward.1} parent=11 // pred_check
        %p328 = pneg %p113
      $region22: #{pnet_forward.1} parent=11 // pred_check_branch
        %330 = sbr.rel (%p328) target = $region24
      $region23: #{pnet_forward.1} parent=11 // pred_region
        _
      $region24: #{pnet_forward.1} parent=11 // pred_fallthru
        _
      // Predicated region
      $region25: #{pnet_forward.1} parent=11 // pred_check
        %p331 = pneg %p134
      $region26: #{pnet_forward.1} parent=11 // pred_check_branch
        %333 = sbr.rel (%p331) target = $region28
      $region27: #{pnet_forward.1} parent=11 // pred_region
        _
      $region28: #{pnet_forward.1} parent=11 // pred_fallthru
        _
      // Predicated region
      $region29: #{pnet_forward.1} parent=11 // pred_check
        %p334 = pneg %p155
      $region30: #{pnet_forward.1} parent=11 // pred_check_branch
        %336 = sbr.rel (%p334) target = $region32
      $region31: #{pnet_forward.1} parent=11 // pred_region
        _
      $region32: #{pnet_forward.1} parent=11 // pred_fallthru
        _
      // Predicated region
      $region33: #{pnet_forward.1} parent=11 // pred_check
        %p337 = pneg %p176
      $region34: #{pnet_forward.1} parent=11 // pred_check_branch
        %339 = sbr.rel (%p337) target = $region36
      $region35: #{pnet_forward.1} parent=11 // pred_region
        _
      $region36: #{pnet_forward.1} parent=11 // pred_fallthru
        _
      // Predicated region
      $region37: #{pnet_forward.1} parent=11 // pred_check
        %p340 = pneg %p197
      $region38: #{pnet_forward.1} parent=11 // pred_check_branch
        %342 = sbr.rel (%p340) target = $region40
      $region39: #{pnet_forward.1} parent=11 // pred_region
        _
      $region40: #{pnet_forward.1} parent=11 // pred_fallthru
        _
      // Predicated region
      $region41: #{pnet_forward.1} parent=11 // pred_check
        %p343 = pneg %p218
      $region42: #{pnet_forward.1} parent=11 // pred_check_branch
        %345 = sbr.rel (%p343) target = $region44
      $region43: #{pnet_forward.1} parent=11 // pred_region
        _
      $region44: #{pnet_forward.1} parent=11 // pred_fallthru
        _
      // Predicated region
      $region45: #{pnet_forward.1} parent=11 // pred_check
        %p346 = pneg %p239
      $region46: #{pnet_forward.1} parent=11 // pred_check_branch
        %348 = sbr.rel (%p346) target = $region48
      $region47: #{pnet_forward.1} parent=11 // pred_region
        _
      $region48: #{pnet_forward.1} parent=11 // pred_fallthru
        _
      // Predicated region
      $region49: #{pnet_forward.1} parent=11 // pred_check
        %p349 = pneg %p260
      $region50: #{pnet_forward.1} parent=11 // pred_check_branch
        %351 = sbr.rel (%p349) target = $region52
      $region51: #{pnet_forward.1} parent=11 // pred_region
        _
      $region52: #{pnet_forward.1} parent=11 // pred_fallthru
        _
      // Predicated region
      $region53: #{pnet_forward.1} parent=11 // pred_check
        %p352 = pneg %p281
      $region54: #{pnet_forward.1} parent=11 // pred_check_branch
        %354 = sbr.rel (%p352) target = $region56
      $region55: #{pnet_forward.1} parent=11 // pred_region
        _
      $region56: #{pnet_forward.1} parent=11 // pred_fallthru
        _
    $region12: #{pnet_forward.1} parent=5 // pred_fallthru
      _
    %p355 = scmp.lt.s32.totalorder %s24, 2
    // Predicated region
    $region57: #{pnet_forward.1} parent=5 // pred_check
      %p356 = pneg %p355
    $region58: #{pnet_forward.1} parent=5 // pred_check_branch
      %358 = sbr.rel (%p356) target = $region60
    $region59: #{pnet_forward.1} parent=5 // pred_region
      // Predicated region
      $region61: #{pnet_forward.1} parent=59 // pred_check
        %p359 = pneg %p44
      $region62: #{pnet_forward.1} parent=59 // pred_check_branch
        %361 = sbr.rel (%p359) target = $region64
      $region63: #{pnet_forward.1} parent=59 // pred_region
        %p362 = scmp.lt.s32.totalorder %s24, 1
        %s363 = scalar_select %p362, %s24, 1
        %s364 = smul.addr %s363, 2
        %s365 = smul.addr %s364, 8
        %s366 = scalar_lea.vmem %s0, %s365
      $region64: #{pnet_forward.1} parent=59 // pred_fallthru
        _
    $region60: #{pnet_forward.1} parent=5 // pred_fallthru
      _
    %p367 = scmp.le.s32.totalorder 1, %s24
    %p368 = scmp.lt.s32.totalorder %s24, 3
    %p369 = pnand %p367, %p368
    %p370 = pneg %p369
    // Predicated region
    $region65: #{pnet_forward.1} parent=5 // pred_check
      _
    $region66: #{pnet_forward.1} parent=5 // pred_check_branch
      %372 = sbr.rel (%p369) target = $region68
    $region67: #{pnet_forward.1} parent=5 // pred_region
      %s373 = ssub.s32 %s24, 1
      %p374 = scmp.lt.s32.totalorder %s29, 1
      %s375 = scalar_select %p374, %s29, 1
      %s376 = smul.addr %s375, 2
      %s377 = smul.addr %s376, 8
      %s378 = scalar_lea.vmem %s0, %s377
      %p379 = pneg %p50
      %p380 = pneg %p47
      %p381 = pneg %p71
      %p382 = pneg %p68
      %p383 = pneg %p92
      %p384 = pneg %p89
      %p385 = pneg %p113
      %p386 = pneg %p110
      %p387 = pneg %p134
      %p388 = pneg %p131
      %p389 = pneg %p155
      %p390 = pneg %p152
      %p391 = pneg %p176
      %p392 = pneg %p173
      %p393 = pneg %p197
      %p394 = pneg %p194
      %p395 = pneg %p218
      %p396 = pneg %p215
      %p397 = pneg %p239
      %p398 = pneg %p236
      %p399 = pneg %p260
      %p400 = pneg %p257
      %p401 = pneg %p281
      %p402 = pneg %p278
      %p403 = pneg %p307
      %p404 = pneg %p304
      %p405 = scmp.lt.s32.totalorder %s29, 1
      %s406 = scalar_select %p405, %s29, 1
      %s407 = smul.addr %s406, 2
      %s408 = smul.addr %s407, 8
      %s409 = scalar_lea.vmem %s12, %s408
      %p410 = scmp.lt.s32.totalorder %s29, 1
      %s411 = scalar_select %p410, %s29, 1
      %s412 = smul.addr %s411, 2
      %s413 = smul.addr %s412, 8
      %s414 = scalar_lea.vmem %s0, %s413
      %p415 = scmp.lt.s32.totalorder %s29, 1
      %s416 = scalar_select %p415, %s29, 1
      %s417 = smul.addr %s416, 2
      %s418 = smul.addr %s417, 8
      %s419 = scalar_lea.vmem %s12, %s418
      %v420 = vld [vmem:[%s1] sm:$0xff]
      %v421 = vld [vmem:[%s1 + $0x8] sm:$0x3]
      %v422 = vld [vmem:[%s414] sm:$0x7]
      %s423 = scalar_lea.vmem %s1, 16
      %v424 = vld [vmem:[%s423] sm:$0xff]
      %v425 = vld [vmem:[%s423 + $0x8] sm:$0x3]
      %v426 = vld [vmem:[%s414 + $0x3] sm:$0x7]
      %vm427 = vcmask 23552
      %v429 = vsel %vm427, %v424, 0
      %v432 = vsel %vm427, %v425, 0
      %vm434 = vcmask 1042432
      %v436 = vsel %vm434, %v426, 0
      %438 = vmatprep.subr.mxu0 0.0
      %439 = vmatpush1.msra.mxu0 %v436
      %440 = vmatprep.subr.mxu0 0.0
      %441 = vmatpush1.msra.mxu0 0.0
      %442 = vmatprep.subr.mxu0 0.0
      %443 = vmatpush1.msra.mxu0 0.0
      %444 = vmatprep.subr.mxu0 0.0
      %445 = vmatpush1.msra.mxu0 0.0
      %446 = vmatprep.subr.mxu0 0.0
      %447 = vmatpush1.msra.mxu0 0.0
      %448 = vmatprep.subr.mxu0 0.0
      %449 = vmatpush1.msra.mxu0 0.0
      %450 = vmatprep.subr.mxu0 0.0
      %451 = vmatpush1.msra.mxu0 0.0
      %452 = vmatprep.subr.mxu0 0.0
      %453 = vmatpush1.msra.mxu0 0.0
      %454 = vmatprep.subr.mxu0 0.0
      %455 = vmatpush1.msra.mxu0 0.0
      %456 = vmatprep.subr.mxu0 0.0
      %457 = vmatpush1.msra.mxu0 0.0
      %458 = vmatprep.subr.mxu0 0.0
      %459 = vmatpush1.msra.mxu0 0.0
      %460 = vmatprep.subr.mxu0 0.0
      %461 = vmatpush1.msra.mxu0 0.0
      %462 = vmatprep.subr.mxu0 0.0
      %463 = vmatpush1.msra.mxu0 0.0
      %464 = vmatprep.subr.mxu0 0.0
      %465 = vmatpush1.msra.mxu0 0.0
      %466 = vmatprep.subr.mxu0 0.0
      %467 = vmatpush1.msra.mxu0 0.0
      %468 = vmatprep.subr.mxu0 0.0
      %469 = vmatpush1.msra.mxu0 0.0
      %470 = vmatprep.subr.mxu0 0.0
      %471 = vmatpush1.msra.mxu0 0.0
      %472 = vmatprep.subr.mxu0 0.0
      %473 = vmatpush1.msra.mxu0 0.0
      %474 = vmatprep.subr.mxu0 0.0
      %475 = vmatpush1.msra.mxu0 0.0
      %476 = vmatprep.subr.mxu0 0.0
      %477 = vmatpush1.msra.mxu0 0.0
      %478 = vmatprep.subr.mxu0 0.0
      %479 = vmatpush1.msra.mxu0 0.0
      %480 = vmatprep.subr.mxu0 0.0
      %481 = vmatpush1.msra.mxu0 0.0
      %482 = vmatprep.subr.mxu0 0.0
      %483 = vmatpush1.msra.mxu0 0.0
      %484 = vmatprep.subr.mxu0 0.0
      %485 = vmatpush1.msra.mxu0 0.0
      %486 = vmatprep.subr.mxu0 0.0
      %487 = vmatpush1.msra.mxu0 0.0
      %488 = vmatprep.subr.mxu0 0.0
      %489 = vmatpush1.msra.mxu0 0.0
      %490 = vmatprep.subr.mxu0 0.0
      %491 = vmatpush1.msra.mxu0 0.0
      %492 = vmatprep.subr.mxu0 0.0
      %493 = vmatpush1.msra.mxu0 0.0
      %494 = vmatprep.subr.mxu0 0.0
      %495 = vmatpush1.msra.mxu0 0.0
      %496 = vmatprep.subr.mxu0 0.0
      %497 = vmatpush1.msra.mxu0 0.0
      %498 = vmatprep.subr.mxu0 0.0
      %499 = vmatpush1.msra.mxu0 0.0
      %500 = vmatprep.subr.mxu0 0.0
      %501 = vmatpush1.msra.mxu0 0.0
      %502 = vmatprep.mubr.f32.mxu0 0.0
      %503 = vmatmul.mubr.f32.gmra.mrb[0].mxu0 %v429
      %v504 = vpop.f32.mrb[0].mxu0
      %v505 = vadd.f32 0.0, %v504
      %v506 = vpop.f32.mrb[0].mxu0
      %507 = vmatprep.mubr.f32.mxu0 0.0
      %508 = vmatmul.mubr.f32.gmra.mrb[0].mxu0 %v432
      %v509 = vpop.f32.mrb[0].mxu0
      %v510 = vadd.f32 0.0, %v509
      %v511 = vpop.f32.mrb[0].mxu0
      %512 = vdwg.mxu0
      %v514 = vsel %vm427, %v420, 0
      %v517 = vsel %vm427, %v421, 0
      %v520 = vsel %vm434, %v422, 0
      %522 = vmatprep.subr.mxu0 0.0
      %523 = vmatpush1.msra.mxu0 %v520
      %524 = vmatprep.subr.mxu0 0.0
      %525 = vmatpush1.msra.mxu0 0.0
      %526 = vmatprep.subr.mxu0 0.0
      %527 = vmatpush1.msra.mxu0 0.0
      %528 = vmatprep.subr.mxu0 0.0
      %529 = vmatpush1.msra.mxu0 0.0
      %530 = vmatprep.subr.mxu0 0.0
      %531 = vmatpush1.msra.mxu0 0.0
      %532 = vmatprep.subr.mxu0 0.0
      %533 = vmatpush1.msra.mxu0 0.0
      %534 = vmatprep.subr.mxu0 0.0
      %535 = vmatpush1.msra.mxu0 0.0
      %536 = vmatprep.subr.mxu0 0.0
      %537 = vmatpush1.msra.mxu0 0.0
      %538 = vmatprep.subr.mxu0 0.0
      %539 = vmatpush1.msra.mxu0 0.0
      %540 = vmatprep.subr.mxu0 0.0
      %541 = vmatpush1.msra.mxu0 0.0
      %542 = vmatprep.subr.mxu0 0.0
      %543 = vmatpush1.msra.mxu0 0.0
      %544 = vmatprep.subr.mxu0 0.0
      %545 = vmatpush1.msra.mxu0 0.0
      %546 = vmatprep.subr.mxu0 0.0
      %547 = vmatpush1.msra.mxu0 0.0
      %548 = vmatprep.subr.mxu0 0.0
      %549 = vmatpush1.msra.mxu0 0.0
      %550 = vmatprep.subr.mxu0 0.0
      %551 = vmatpush1.msra.mxu0 0.0
      %552 = vmatprep.subr.mxu0 0.0
      %553 = vmatpush1.msra.mxu0 0.0
      %554 = vmatprep.subr.mxu0 0.0
      %555 = vmatpush1.msra.mxu0 0.0
      %556 = vmatprep.subr.mxu0 0.0
      %557 = vmatpush1.msra.mxu0 0.0
      %558 = vmatprep.subr.mxu0 0.0
      %559 = vmatpush1.msra.mxu0 0.0
      %560 = vmatprep.subr.mxu0 0.0
      %561 = vmatpush1.msra.mxu0 0.0
      %562 = vmatprep.subr.mxu0 0.0
      %563 = vmatpush1.msra.mxu0 0.0
      %564 = vmatprep.subr.mxu0 0.0
      %565 = vmatpush1.msra.mxu0 0.0
      %566 = vmatprep.subr.mxu0 0.0
      %567 = vmatpush1.msra.mxu0 0.0
      %568 = vmatprep.subr.mxu0 0.0
      %569 = vmatpush1.msra.mxu0 0.0
      %570 = vmatprep.subr.mxu0 0.0
      %571 = vmatpush1.msra.mxu0 0.0
      %572 = vmatprep.subr.mxu0 0.0
      %573 = vmatpush1.msra.mxu0 0.0
      %574 = vmatprep.subr.mxu0 0.0
      %575 = vmatpush1.msra.mxu0 0.0
      %576 = vmatprep.subr.mxu0 0.0
      %577 = vmatpush1.msra.mxu0 0.0
      %578 = vmatprep.subr.mxu0 0.0
      %579 = vmatpush1.msra.mxu0 0.0
      %580 = vmatprep.subr.mxu0 0.0
      %581 = vmatpush1.msra.mxu0 0.0
      %582 = vmatprep.subr.mxu0 0.0
      %583 = vmatpush1.msra.mxu0 0.0
      %584 = vmatprep.subr.mxu0 0.0
      %585 = vmatpush1.msra.mxu0 0.0
      %586 = vmatprep.mubr.f32.mxu0 0.0
      %587 = vmatmul.mubr.f32.gmra.mrb[0].mxu0 %v514
      %v588 = vpop.f32.mrb[0].mxu0
      %v589 = vadd.f32 %v505, %v588
      %v590 = vpop.f32.mrb[0].mxu0
      %591 = vmatprep.mubr.f32.mxu0 0.0
      %592 = vmatmul.mubr.f32.gmra.mrb[0].mxu0 %v517
      %v593 = vpop.f32.mrb[0].mxu0
      %v594 = vadd.f32 %v510, %v593
      %v595 = vpop.f32.mrb[0].mxu0
      %596 = vdwg.mxu0
      %s597 = scalar_lea.vmem %s1, 32
      %v598 = vld [vmem:[%s597] sm:$0xff]
      %v599 = vld [vmem:[%s597 + $0x8] sm:$0x3]
      %600 = vrot.lane.b32.xlu0 %v422, 127
      %v601 = vpop.permute.xlu0 %600
      %v603 = vsel %vm427, %v598, 0
      %v606 = vsel %vm427, %v599, 0
      %v608 = vsel %vm434, %v601, 0
      %610 = vmatprep.subr.mxu0 0.0
      %611 = vmatpush1.msra.mxu0 %v608
      %612 = vmatprep.subr.mxu0 0.0
      %613 = vmatpush1.msra.mxu0 0.0
      %614 = vmatprep.subr.mxu0 0.0
      %615 = vmatpush1.msra.mxu0 0.0
      %616 = vmatprep.subr.mxu0 0.0
      %617 = vmatpush1.msra.mxu0 0.0
      %618 = vmatprep.subr.mxu0 0.0
      %619 = vmatpush1.msra.mxu0 0.0
      %620 = vmatprep.subr.mxu0 0.0
      %621 = vmatpush1.msra.mxu0 0.0
      %622 = vmatprep.subr.mxu0 0.0
      %623 = vmatpush1.msra.mxu0 0.0
      %624 = vmatprep.subr.mxu0 0.0
      %625 = vmatpush1.msra.mxu0 0.0
      %626 = vmatprep.subr.mxu0 0.0
      %627 = vmatpush1.msra.mxu0 0.0
      %628 = vmatprep.subr.mxu0 0.0
      %629 = vmatpush1.msra.mxu0 0.0
      %630 = vmatprep.subr.mxu0 0.0
      %631 = vmatpush1.msra.mxu0 0.0
      %632 = vmatprep.subr.mxu0 0.0
      %633 = vmatpush1.msra.mxu0 0.0
      %634 = vmatprep.subr.mxu0 0.0
      %635 = vmatpush1.msra.mxu0 0.0
      %636 = vmatprep.subr.mxu0 0.0
      %637 = vmatpush1.msra.mxu0 0.0
      %638 = vmatprep.subr.mxu0 0.0
      %639 = vmatpush1.msra.mxu0 0.0
      %640 = vmatprep.subr.mxu0 0.0
      %641 = vmatpush1.msra.mxu0 0.0
      %642 = vmatprep.subr.mxu0 0.0
      %643 = vmatpush1.msra.mxu0 0.0
      %644 = vmatprep.subr.mxu0 0.0
      %645 = vmatpush1.msra.mxu0 0.0
      %646 = vmatprep.subr.mxu0 0.0
      %647 = vmatpush1.msra.mxu0 0.0
      %648 = vmatprep.subr.mxu0 0.0
      %649 = vmatpush1.msra.mxu0 0.0
      %650 = vmatprep.subr.mxu0 0.0
      %651 = vmatpush1.msra.mxu0 0.0
      %652 = vmatprep.subr.mxu0 0.0
      %653 = vmatpush1.msra.mxu0 0.0
      %654 = vmatprep.subr.mxu0 0.0
      %655 = vmatpush1.msra.mxu0 0.0
      %656 = vmatprep.subr.mxu0 0.0
      %657 = vmatpush1.msra.mxu0 0.0
      %658 = vmatprep.subr.mxu0 0.0
      %659 = vmatpush1.msra.mxu0 0.0
      %660 = vmatprep.subr.mxu0 0.0
      %661 = vmatpush1.msra.mxu0 0.0
      %662 = vmatprep.subr.mxu0 0.0
      %663 = vmatpush1.msra.mxu0 0.0
      %664 = vmatprep.subr.mxu0 0.0
      %665 = vmatpush1.msra.mxu0 0.0
      %666 = vmatprep.subr.mxu0 0.0
      %667 = vmatpush1.msra.mxu0 0.0
      %668 = vmatprep.subr.mxu0 0.0
      %669 = vmatpush1.msra.mxu0 0.0
      %670 = vmatprep.subr.mxu0 0.0
      %671 = vmatpush1.msra.mxu0 0.0
      %672 = vmatprep.subr.mxu0 0.0
      %673 = vmatpush1.msra.mxu0 0.0
      %674 = vmatprep.mubr.f32.mxu0 0.0
      %675 = vmatmul.mubr.f32.gmra.mrb[0].mxu0 %v603
      %v676 = vpop.f32.mrb[0].mxu0
      %v677 = vadd.f32 0.0, %v676
      %v678 = vpop.f32.mrb[0].mxu0
      %679 = vmatprep.mubr.f32.mxu0 0.0
      %680 = vmatmul.mubr.f32.gmra.mrb[0].mxu0 %v606
      %v681 = vpop.f32.mrb[0].mxu0
      %v682 = vadd.f32 0.0, %v681
      %v683 = vpop.f32.mrb[0].mxu0
      %684 = vdwg.mxu0
      %v685 = vadd.f32 %v589, %v677
      %v686 = vadd.f32 %v594, %v682
      %s687 = scalar_lea.vmem %s1, 48
      %v688 = vld [vmem:[%s687] sm:$0xff]
      %v689 = vld [vmem:[%s687 + $0x8] sm:$0x3]
      %v690 = vld [vmem:[%s414 + $0x6] sm:$0x7]
      %v692 = vsel %vm427, %v688, 0
      %v695 = vsel %vm427, %v689, 0
      %v698 = vsel %vm434, %v690, 0
      %700 = vmatprep.subr.mxu0 0.0
      %701 = vmatpush1.msra.mxu0 %v698
      %702 = vmatprep.subr.mxu0 0.0
      %703 = vmatpush1.msra.mxu0 0.0
      %704 = vmatprep.subr.mxu0 0.0
      %705 = vmatpush1.msra.mxu0 0.0
      %706 = vmatprep.subr.mxu0 0.0
      %707 = vmatpush1.msra.mxu0 0.0
      %708 = vmatprep.subr.mxu0 0.0
      %709 = vmatpush1.msra.mxu0 0.0
      %710 = vmatprep.subr.mxu0 0.0
      %711 = vmatpush1.msra.mxu0 0.0
      %712 = vmatprep.subr.mxu0 0.0
      %713 = vmatpush1.msra.mxu0 0.0
      %714 = vmatprep.subr.mxu0 0.0
      %715 = vmatpush1.msra.mxu0 0.0
      %716 = vmatprep.subr.mxu0 0.0
      %717 = vmatpush1.msra.mxu0 0.0
      %718 = vmatprep.subr.mxu0 0.0
      %719 = vmatpush1.msra.mxu0 0.0
      %720 = vmatprep.subr.mxu0 0.0
      %721 = vmatpush1.msra.mxu0 0.0
      %722 = vmatprep.subr.mxu0 0.0
      %723 = vmatpush1.msra.mxu0 0.0
      %724 = vmatprep.subr.mxu0 0.0
      %725 = vmatpush1.msra.mxu0 0.0
      %726 = vmatprep.subr.mxu0 0.0
      %727 = vmatpush1.msra.mxu0 0.0
      %728 = vmatprep.subr.mxu0 0.0
      %729 = vmatpush1.msra.mxu0 0.0
      %730 = vmatprep.subr.mxu0 0.0
      %731 = vmatpush1.msra.mxu0 0.0
      %732 = vmatprep.subr.mxu0 0.0
      %733 = vmatpush1.msra.mxu0 0.0
      %734 = vmatprep.subr.mxu0 0.0
      %735 = vmatpush1.msra.mxu0 0.0
      %736 = vmatprep.subr.mxu0 0.0
      %737 = vmatpush1.msra.mxu0 0.0
      %738 = vmatprep.subr.mxu0 0.0
      %739 = vmatpush1.msra.mxu0 0.0
      %740 = vmatprep.subr.mxu0 0.0
      %741 = vmatpush1.msra.mxu0 0.0
      %742 = vmatprep.subr.mxu0 0.0
      %743 = vmatpush1.msra.mxu0 0.0
      %744 = vmatprep.subr.mxu0 0.0
      %745 = vmatpush1.msra.mxu0 0.0
      %746 = vmatprep.subr.mxu0 0.0
      %747 = vmatpush1.msra.mxu0 0.0
      %748 = vmatprep.subr.mxu0 0.0
      %749 = vmatpush1.msra.mxu0 0.0
      %750 = vmatprep.subr.mxu0 0.0
      %751 = vmatpush1.msra.mxu0 0.0
      %752 = vmatprep.subr.mxu0 0.0
      %753 = vmatpush1.msra.mxu0 0.0
      %754 = vmatprep.subr.mxu0 0.0
      %755 = vmatpush1.msra.mxu0 0.0
      %756 = vmatprep.subr.mxu0 0.0
      %757 = vmatpush1.msra.mxu0 0.0
      %758 = vmatprep.subr.mxu0 0.0
      %759 = vmatpush1.msra.mxu0 0.0
      %760 = vmatprep.subr.mxu0 0.0
      %761 = vmatpush1.msra.mxu0 0.0
      %762 = vmatprep.subr.mxu0 0.0
      %763 = vmatpush1.msra.mxu0 0.0
      %764 = vmatprep.mubr.f32.mxu0 0.0
      %765 = vmatmul.mubr.f32.gmra.mrb[0].mxu0 %v692
      %v766 = vpop.f32.mrb[0].mxu0
      %v767 = vadd.f32 0.0, %v766
      %v768 = vpop.f32.mrb[0].mxu0
      %769 = vmatprep.mubr.f32.mxu0 0.0
      %770 = vmatmul.mubr.f32.gmra.mrb[0].mxu0 %v695
      %v771 = vpop.f32.mrb[0].mxu0
      %v772 = vadd.f32 0.0, %v771
      %v773 = vpop.f32.mrb[0].mxu0
      %774 = vdwg.mxu0
      %v775 = vadd.f32 %v685, %v767
      %v776 = vadd.f32 %v686, %v772
      %s777 = scalar_lea.vmem %s1, 64
      %v778 = vld [vmem:[%s777] sm:$0xff]
      %v779 = vld [vmem:[%s777 + $0x8] sm:$0x3]
      %v780 = vld [vmem:[%s414 + $0x9] sm:$0x7]
      %v782 = vsel %vm427, %v778, 0
      %v785 = vsel %vm427, %v779, 0
      %v788 = vsel %vm434, %v780, 0
      %790 = vmatprep.subr.mxu0 0.0
      %791 = vmatpush1.msra.mxu0 %v788
      %792 = vmatprep.subr.mxu0 0.0
      %793 = vmatpush1.msra.mxu0 0.0
      %794 = vmatprep.subr.mxu0 0.0
      %795 = vmatpush1.msra.mxu0 0.0
      %796 = vmatprep.subr.mxu0 0.0
      %797 = vmatpush1.msra.mxu0 0.0
      %798 = vmatprep.subr.mxu0 0.0
      %799 = vmatpush1.msra.mxu0 0.0
      %800 = vmatprep.subr.mxu0 0.0
      %801 = vmatpush1.msra.mxu0 0.0
      %802 = vmatprep.subr.mxu0 0.0
      %803 = vmatpush1.msra.mxu0 0.0
      %804 = vmatprep.subr.mxu0 0.0
      %805 = vmatpush1.msra.mxu0 0.0
      %806 = vmatprep.subr.mxu0 0.0
      %807 = vmatpush1.msra.mxu0 0.0
      %808 = vmatprep.subr.mxu0 0.0
      %809 = vmatpush1.msra.mxu0 0.0
      %810 = vmatprep.subr.mxu0 0.0
      %811 = vmatpush1.msra.mxu0 0.0
      %812 = vmatprep.subr.mxu0 0.0
      %813 = vmatpush1.msra.mxu0 0.0
      %814 = vmatprep.subr.mxu0 0.0
      %815 = vmatpush1.msra.mxu0 0.0
      %816 = vmatprep.subr.mxu0 0.0
      %817 = vmatpush1.msra.mxu0 0.0
      %818 = vmatprep.subr.mxu0 0.0
      %819 = vmatpush1.msra.mxu0 0.0
      %820 = vmatprep.subr.mxu0 0.0
      %821 = vmatpush1.msra.mxu0 0.0
      %822 = vmatprep.subr.mxu0 0.0
      %823 = vmatpush1.msra.mxu0 0.0
      %824 = vmatprep.subr.mxu0 0.0
      %825 = vmatpush1.msra.mxu0 0.0
      %826 = vmatprep.subr.mxu0 0.0
      %827 = vmatpush1.msra.mxu0 0.0
      %828 = vmatprep.subr.mxu0 0.0
      %829 = vmatpush1.msra.mxu0 0.0
      %830 = vmatprep.subr.mxu0 0.0
      %831 = vmatpush1.msra.mxu0 0.0
      %832 = vmatprep.subr.mxu0 0.0
      %833 = vmatpush1.msra.mxu0 0.0
      %834 = vmatprep.subr.mxu0 0.0
      %835 = vmatpush1.msra.mxu0 0.0
      %836 = vmatprep.subr.mxu0 0.0
      %837 = vmatpush1.msra.mxu0 0.0
      %838 = vmatprep.subr.mxu0 0.0
      %839 = vmatpush1.msra.mxu0 0.0
      %840 = vmatprep.subr.mxu0 0.0
      %841 = vmatpush1.msra.mxu0 0.0
      %842 = vmatprep.subr.mxu0 0.0
      %843 = vmatpush1.msra.mxu0 0.0
      %844 = vmatprep.subr.mxu0 0.0
      %845 = vmatpush1.msra.mxu0 0.0
      %846 = vmatprep.subr.mxu0 0.0
      %847 = vmatpush1.msra.mxu0 0.0
      %848 = vmatprep.subr.mxu0 0.0
      %849 = vmatpush1.msra.mxu0 0.0
      %850 = vmatprep.subr.mxu0 0.0
      %851 = vmatpush1.msra.mxu0 0.0
      %852 = vmatprep.subr.mxu0 0.0
      %853 = vmatpush1.msra.mxu0 0.0
      %854 = vmatprep.mubr.f32.mxu0 0.0
      %855 = vmatmul.mubr.f32.gmra.mrb[0].mxu0 %v782
      %v856 = vpop.f32.mrb[0].mxu0
      %v857 = vadd.f32 0.0, %v856
      %v858 = vpop.f32.mrb[0].mxu0
      %859 = vmatprep.mubr.f32.mxu0 0.0
      %860 = vmatmul.mubr.f32.gmra.mrb[0].mxu0 %v785
      %v861 = vpop.f32.mrb[0].mxu0
      %v862 = vadd.f32 0.0, %v861
      %v863 = vpop.f32.mrb[0].mxu0
      %864 = vdwg.mxu0
      %v865 = vadd.f32 %v775, %v857
      %v866 = vadd.f32 %v776, %v862
      %s867 = scalar_lea.vmem %s1, 80
      %v868 = vld [vmem:[%s867] sm:$0xff]
      %v869 = vld [vmem:[%s867 + $0x8] sm:$0x3]
      %870 = vrot.lane.b32.xlu0 %v690, 127
      %v871 = vpop.permute.xlu0 %870
      %v873 = vsel %vm427, %v868, 0
      %v876 = vsel %vm427, %v869, 0
      %v878 = vsel %vm434, %v871, 0
      %880 = vmatprep.subr.mxu0 0.0
      %881 = vmatpush1.msra.mxu0 %v878
      %882 = vmatprep.subr.mxu0 0.0
      %883 = vmatpush1.msra.mxu0 0.0
      %884 = vmatprep.subr.mxu0 0.0
      %885 = vmatpush1.msra.mxu0 0.0
      %886 = vmatprep.subr.mxu0 0.0
      %887 = vmatpush1.msra.mxu0 0.0
      %888 = vmatprep.subr.mxu0 0.0
      %889 = vmatpush1.msra.mxu0 0.0
      %890 = vmatprep.subr.mxu0 0.0
      %891 = vmatpush1.msra.mxu0 0.0
      %892 = vmatprep.subr.mxu0 0.0
      %893 = vmatpush1.msra.mxu0 0.0
      %894 = vmatprep.subr.mxu0 0.0
      %895 = vmatpush1.msra.mxu0 0.0
      %896 = vmatprep.subr.mxu0 0.0
      %897 = vmatpush1.msra.mxu0 0.0
      %898 = vmatprep.subr.mxu0 0.0
      %899 = vmatpush1.msra.mxu0 0.0
      %900 = vmatprep.subr.mxu0 0.0
      %901 = vmatpush1.msra.mxu0 0.0
      %902 = vmatprep.subr.mxu0 0.0
      %903 = vmatpush1.msra.mxu0 0.0
      %904 = vmatprep.subr.mxu0 0.0
      %905 = vmatpush1.msra.mxu0 0.0
      %906 = vmatprep.subr.mxu0 0.0
      %907 = vmatpush1.msra.mxu0 0.0
      %908 = vmatprep.subr.mxu0 0.0
      %909 = vmatpush1.msra.mxu0 0.0
      %910 = vmatprep.subr.mxu0 0.0
      %911 = vmatpush1.msra.mxu0 0.0
      %912 = vmatprep.subr.mxu0 0.0
      %913 = vmatpush1.msra.mxu0 0.0
      %914 = vmatprep.subr.mxu0 0.0
      %915 = vmatpush1.msra.mxu0 0.0
      %916 = vmatprep.subr.mxu0 0.0
      %917 = vmatpush1.msra.mxu0 0.0
      %918 = vmatprep.subr.mxu0 0.0
      %919 = vmatpush1.msra.mxu0 0.0
      %920 = vmatprep.subr.mxu0 0.0
      %921 = vmatpush1.msra.mxu0 0.0
      %922 = vmatprep.subr.mxu0 0.0
      %923 = vmatpush1.msra.mxu0 0.0
      %924 = vmatprep.subr.mxu0 0.0
      %925 = vmatpush1.msra.mxu0 0.0
      %926 = vmatprep.subr.mxu0 0.0
      %927 = vmatpush1.msra.mxu0 0.0
      %928 = vmatprep.subr.mxu0 0.0
      %929 = vmatpush1.msra.mxu0 0.0
      %930 = vmatprep.subr.mxu0 0.0
      %931 = vmatpush1.msra.mxu0 0.0
      %932 = vmatprep.subr.mxu0 0.0
      %933 = vmatpush1.msra.mxu0 0.0
      %934 = vmatprep.subr.mxu0 0.0
      %935 = vmatpush1.msra.mxu0 0.0
      %936 = vmatprep.subr.mxu0 0.0
      %937 = vmatpush1.msra.mxu0 0.0
      %938 = vmatprep.subr.mxu0 0.0
      %939 = vmatpush1.msra.mxu0 0.0
      %940 = vmatprep.subr.mxu0 0.0
      %941 = vmatpush1.msra.mxu0 0.0
      %942 = vmatprep.subr.mxu0 0.0
      %943 = vmatpush1.msra.mxu0 0.0
      %944 = vmatprep.mubr.f32.mxu0 0.0
      %945 = vmatmul.mubr.f32.gmra.mrb[0].mxu0 %v873
      %v946 = vpop.f32.mrb[0].mxu0
      %v947 = vadd.f32 0.0, %v946
      %v948 = vpop.f32.mrb[0].mxu0
      %949 = vmatprep.mubr.f32.mxu0 0.0
      %950 = vmatmul.mubr.f32.gmra.mrb[0].mxu0 %v876
      %v951 = vpop.f32.mrb[0].mxu0
      %v952 = vadd.f32 0.0, %v951
      %v953 = vpop.f32.mrb[0].mxu0
      %954 = vdwg.mxu0
      %v955 = vadd.f32 %v865, %v947
      %v956 = vadd.f32 %v866, %v952
      %s957 = scalar_lea.vmem %s1, 96
      %v958 = vld [vmem:[%s957] sm:$0xff]
      %v959 = vld [vmem:[%s957 + $0x8] sm:$0x3]
      %960 = vrot.lane.b32.xlu0 %v422, 120
      %v961 = vpop.permute.xlu0 %960
      %v963 = vsel %vm427, %v958, 0
      %v966 = vsel %vm427, %v959, 0
      %v968 = vsel %vm434, %v961, 0
      %970 = vmatprep.subr.mxu0 0.0
      %971 = vmatpush1.msra.mxu0 %v968
      %972 = vmatprep.subr.mxu0 0.0
      %973 = vmatpush1.msra.mxu0 0.0
      %974 = vmatprep.subr.mxu0 0.0
      %975 = vmatpush1.msra.mxu0 0.0
      %976 = vmatprep.subr.mxu0 0.0
      %977 = vmatpush1.msra.mxu0 0.0
      %978 = vmatprep.subr.mxu0 0.0
      %979 = vmatpush1.msra.mxu0 0.0
      %980 = vmatprep.subr.mxu0 0.0
      %981 = vmatpush1.msra.mxu0 0.0
      %982 = vmatprep.subr.mxu0 0.0
      %983 = vmatpush1.msra.mxu0 0.0
      %984 = vmatprep.subr.mxu0 0.0
      %985 = vmatpush1.msra.mxu0 0.0
      %986 = vmatprep.subr.mxu0 0.0
      %987 = vmatpush1.msra.mxu0 0.0
      %988 = vmatprep.subr.mxu0 0.0
      %989 = vmatpush1.msra.mxu0 0.0
      %990 = vmatprep.subr.mxu0 0.0
      %991 = vmatpush1.msra.mxu0 0.0
      %992 = vmatprep.subr.mxu0 0.0
      %993 = vmatpush1.msra.mxu0 0.0
      %994 = vmatprep.subr.mxu0 0.0
      %995 = vmatpush1.msra.mxu0 0.0
      %996 = vmatprep.subr.mxu0 0.0
      %997 = vmatpush1.msra.mxu0 0.0
      %998 = vmatprep.subr.mxu0 0.0
      %999 = vmatpush1.msra.mxu0 0.0
      %1000 = vmatprep.subr.mxu0 0.0
      %1001 = vmatpush1.msra.mxu0 0.0
      %1002 = vmatprep.subr.mxu0 0.0
      %1003 = vmatpush1.msra.mxu0 0.0
      %1004 = vmatprep.subr.mxu0 0.0
      %1005 = vmatpush1.msra.mxu0 0.0
      %1006 = vmatprep.subr.mxu0 0.0
      %1007 = vmatpush1.msra.mxu0 0.0
      %1008 = vmatprep.subr.mxu0 0.0
      %1009 = vmatpush1.msra.mxu0 0.0
      %1010 = vmatprep.subr.mxu0 0.0
      %1011 = vmatpush1.msra.mxu0 0.0
      %1012 = vmatprep.subr.mxu0 0.0
      %1013 = vmatpush1.msra.mxu0 0.0
      %1014 = vmatprep.subr.mxu0 0.0
      %1015 = vmatpush1.msra.mxu0 0.0
      %1016 = vmatprep.subr.mxu0 0.0
      %1017 = vmatpush1.msra.mxu0 0.0
      %1018 = vmatprep.subr.mxu0 0.0
      %1019 = vmatpush1.msra.mxu0 0.0
      %1020 = vmatprep.subr.mxu0 0.0
      %1021 = vmatpush1.msra.mxu0 0.0
      %1022 = vmatprep.subr.mxu0 0.0
      %1023 = vmatpush1.msra.mxu0 0.0
      %1024 = vmatprep.subr.mxu0 0.0
      %1025 = vmatpush1.msra.mxu0 0.0
      %1026 = vmatprep.subr.mxu0 0.0
      %1027 = vmatpush1.msra.mxu0 0.0
      %1028 = vmatprep.subr.mxu0 0.0
      %1029 = vmatpush1.msra.mxu0 0.0
      %1030 = vmatprep.subr.mxu0 0.0
      %1031 = vmatpush1.msra.mxu0 0.0
      %1032 = vmatprep.subr.mxu0 0.0
      %1033 = vmatpush1.msra.mxu0 0.0
      %1034 = vmatprep.mubr.f32.mxu0 0.0
      %1035 = vmatmul.mubr.f32.gmra.mrb[0].mxu0 %v963
      %v1036 = vpop.f32.mrb[0].mxu0
      %v1037 = vadd.f32 0.0, %v1036
      %v1038 = vpop.f32.mrb[0].mxu0
      %1039 = vmatprep.mubr.f32.mxu0 0.0
      %1040 = vmatmul.mubr.f32.gmra.mrb[0].mxu0 %v966
      %v1041 = vpop.f32.mrb[0].mxu0
      %v1042 = vadd.f32 0.0, %v1041
      %v1043 = vpop.f32.mrb[0].mxu0
      %1044 = vdwg.mxu0
      %v1045 = vadd.f32 %v955, %v1037
      %v1046 = vadd.f32 %v956, %v1042
      %s1047 = scalar_lea.vmem %s1, 112
      %v1048 = vld [vmem:[%s1047] sm:$0xff]
      %v1049 = vld [vmem:[%s1047 + $0x8] sm:$0x3]
      %1050 = vrot.lane.b32.xlu0 %v426, 120
      %v1051 = vpop.permute.xlu0 %1050
      %v1053 = vsel %vm427, %v1048, 0
      %v1056 = vsel %vm427, %v1049, 0
      %v1058 = vsel %vm434, %v1051, 0
      %1060 = vmatprep.subr.mxu0 0.0
      %1061 = vmatpush1.msra.mxu0 %v1058
      %1062 = vmatprep.subr.mxu0 0.0
      %1063 = vmatpush1.msra.mxu0 0.0
      %1064 = vmatprep.subr.mxu0 0.0
      %1065 = vmatpush1.msra.mxu0 0.0
      %1066 = vmatprep.subr.mxu0 0.0
      %1067 = vmatpush1.msra.mxu0 0.0
      %1068 = vmatprep.subr.mxu0 0.0
      %1069 = vmatpush1.msra.mxu0 0.0
      %1070 = vmatprep.subr.mxu0 0.0
      %1071 = vmatpush1.msra.mxu0 0.0
      %1072 = vmatprep.subr.mxu0 0.0
      %1073 = vmatpush1.msra.mxu0 0.0
      %1074 = vmatprep.subr.mxu0 0.0
      %1075 = vmatpush1.msra.mxu0 0.0
      %1076 = vmatprep.subr.mxu0 0.0
      %1077 = vmatpush1.msra.mxu0 0.0
      %1078 = vmatprep.subr.mxu0 0.0
      %1079 = vmatpush1.msra.mxu0 0.0
      %1080 = vmatprep.subr.mxu0 0.0
      %1081 = vmatpush1.msra.mxu0 0.0
      %1082 = vmatprep.subr.mxu0 0.0
      %1083 = vmatpush1.msra.mxu0 0.0
      %1084 = vmatprep.subr.mxu0 0.0
      %1085 = vmatpush1.msra.mxu0 0.0
      %1086 = vmatprep.subr.mxu0 0.0
      %1087 = vmatpush1.msra.mxu0 0.0
      %1088 = vmatprep.subr.mxu0 0.0
      %1089 = vmatpush1.msra.mxu0 0.0
      %1090 = vmatprep.subr.mxu0 0.0
      %1091 = vmatpush1.msra.mxu0 0.0
      %1092 = vmatprep.subr.mxu0 0.0
      %1093 = vmatpush1.msra.mxu0 0.0
      %1094 = vmatprep.subr.mxu0 0.0
      %1095 = vmatpush1.msra.mxu0 0.0
      %1096 = vmatprep.subr.mxu0 0.0
      %1097 = vmatpush1.msra.mxu0 0.0
      %1098 = vmatprep.subr.mxu0 0.0
      %1099 = vmatpush1.msra.mxu0 0.0
      %1100 = vmatprep.subr.mxu0 0.0
      %1101 = vmatpush1.msra.mxu0 0.0
      %1102 = vmatprep.subr.mxu0 0.0
      %1103 = vmatpush1.msra.mxu0 0.0
      %1104 = vmatprep.subr.mxu0 0.0
      %1105 = vmatpush1.msra.mxu0 0.0
      %1106 = vmatprep.subr.mxu0 0.0
      %1107 = vmatpush1.msra.mxu0 0.0
      %1108 = vmatprep.subr.mxu0 0.0
      %1109 = vmatpush1.msra.mxu0 0.0
      %1110 = vmatprep.subr.mxu0 0.0
      %1111 = vmatpush1.msra.mxu0 0.0
      %1112 = vmatprep.subr.mxu0 0.0
      %1113 = vmatpush1.msra.mxu0 0.0
      %1114 = vmatprep.subr.mxu0 0.0
      %1115 = vmatpush1.msra.mxu0 0.0
      %1116 = vmatprep.subr.mxu0 0.0
      %1117 = vmatpush1.msra.mxu0 0.0
      %1118 = vmatprep.subr.mxu0 0.0
      %1119 = vmatpush1.msra.mxu0 0.0
      %1120 = vmatprep.subr.mxu0 0.0
      %1121 = vmatpush1.msra.mxu0 0.0
      %1122 = vmatprep.subr.mxu0 0.0
      %1123 = vmatpush1.msra.mxu0 0.0
      %1124 = vmatprep.mubr.f32.mxu0 0.0
      %1125 = vmatmul.mubr.f32.gmra.mrb[0].mxu0 %v1053
      %v1126 = vpop.f32.mrb[0].mxu0
      %v1127 = vadd.f32 0.0, %v1126
      %v1128 = vpop.f32.mrb[0].mxu0
      %1129 = vmatprep.mubr.f32.mxu0 0.0
      %1130 = vmatmul.mubr.f32.gmra.mrb[0].mxu0 %v1056
      %v1131 = vpop.f32.mrb[0].mxu0
      %v1132 = vadd.f32 0.0, %v1131
      %v1133 = vpop.f32.mrb[0].mxu0
      %1134 = vdwg.mxu0
      %v1135 = vadd.f32 %v1045, %v1127
      %v1136 = vadd.f32 %v1046, %v1132
      %s1137 = scalar_lea.vmem %s1, 128
      %v1138 = vld [vmem:[%s1137] sm:$0xff]
      %v1139 = vld [vmem:[%s1137 + $0x8] sm:$0x3]
      %1140 = vrot.lane.b32.xlu0 %v422, 119
      %v1141 = vpop.permute.xlu0 %1140
      %v1143 = vsel %vm427, %v1138, 0
      %v1146 = vsel %vm427, %v1139, 0
      %v1148 = vsel %vm434, %v1141, 0
      %1150 = vmatprep.subr.mxu0 0.0
      %1151 = vmatpush1.msra.mxu0 %v1148
      %1152 = vmatprep.subr.mxu0 0.0
      %1153 = vmatpush1.msra.mxu0 0.0
      %1154 = vmatprep.subr.mxu0 0.0
      %1155 = vmatpush1.msra.mxu0 0.0
      %1156 = vmatprep.subr.mxu0 0.0
      %1157 = vmatpush1.msra.mxu0 0.0
      %1158 = vmatprep.subr.mxu0 0.0
      %1159 = vmatpush1.msra.mxu0 0.0
      %1160 = vmatprep.subr.mxu0 0.0
      %1161 = vmatpush1.msra.mxu0 0.0
      %1162 = vmatprep.subr.mxu0 0.0
      %1163 = vmatpush1.msra.mxu0 0.0
      %1164 = vmatprep.subr.mxu0 0.0
      %1165 = vmatpush1.msra.mxu0 0.0
      %1166 = vmatprep.subr.mxu0 0.0
      %1167 = vmatpush1.msra.mxu0 0.0
      %1168 = vmatprep.subr.mxu0 0.0
      %1169 = vmatpush1.msra.mxu0 0.0
      %1170 = vmatprep.subr.mxu0 0.0
      %1171 = vmatpush1.msra.mxu0 0.0
      %1172 = vmatprep.subr.mxu0 0.0
      %1173 = vmatpush1.msra.mxu0 0.0
      %1174 = vmatprep.subr.mxu0 0.0
      %1175 = vmatpush1.msra.mxu0 0.0
      %1176 = vmatprep.subr.mxu0 0.0
      %1177 = vmatpush1.msra.mxu0 0.0
      %1178 = vmatprep.subr.mxu0 0.0
      %1179 = vmatpush1.msra.mxu0 0.0
      %1180 = vmatprep.subr.mxu0 0.0
      %1181 = vmatpush1.msra.mxu0 0.0
      %1182 = vmatprep.subr.mxu0 0.0
      %1183 = vmatpush1.msra.mxu0 0.0
      %1184 = vmatprep.subr.mxu0 0.0
      %1185 = vmatpush1.msra.mxu0 0.0
      %1186 = vmatprep.subr.mxu0 0.0
      %1187 = vmatpush1.msra.mxu0 0.0
      %1188 = vmatprep.subr.mxu0 0.0
      %1189 = vmatpush1.msra.mxu0 0.0
      %1190 = vmatprep.subr.mxu0 0.0
      %1191 = vmatpush1.msra.mxu0 0.0
      %1192 = vmatprep.subr.mxu0 0.0
      %1193 = vmatpush1.msra.mxu0 0.0
      %1194 = vmatprep.subr.mxu0 0.0
      %1195 = vmatpush1.msra.mxu0 0.0
      %1196 = vmatprep.subr.mxu0 0.0
      %1197 = vmatpush1.msra.mxu0 0.0
      %1198 = vmatprep.subr.mxu0 0.0
      %1199 = vmatpush1.msra.mxu0 0.0
      %1200 = vmatprep.subr.mxu0 0.0
      %1201 = vmatpush1.msra.mxu0 0.0
      %1202 = vmatprep.subr.mxu0 0.0
      %1203 = vmatpush1.msra.mxu0 0.0
      %1204 = vmatprep.subr.mxu0 0.0
      %1205 = vmatpush1.msra.mxu0 0.0
      %1206 = vmatprep.subr.mxu0 0.0
      %1207 = vmatpush1.msra.mxu0 0.0
      %1208 = vmatprep.subr.mxu0 0.0
      %1209 = vmatpush1.msra.mxu0 0.0
      %1210 = vmatprep.subr.mxu0 0.0
      %1211 = vmatpush1.msra.mxu0 0.0
      %1212 = vmatprep.subr.mxu0 0.0
      %1213 = vmatpush1.msra.mxu0 0.0
      %1214 = vmatprep.mubr.f32.mxu0 0.0
      %1215 = vmatmul.mubr.f32.gmra.mrb[0].mxu0 %v1143
      %v1216 = vpop.f32.mrb[0].mxu0
      %v1217 = vadd.f32 0.0, %v1216
      %v1218 = vpop.f32.mrb[0].mxu0
      %1219 = vmatprep.mubr.f32.mxu0 0.0
      %1220 = vmatmul.mubr.f32.gmra.mrb[0].mxu0 %v1146
      %v1221 = vpop.f32.mrb[0].mxu0
      %v1222 = vadd.f32 0.0, %v1221
      %v1223 = vpop.f32.mrb[0].mxu0
      %1224 = vdwg.mxu0
      %v1225 = vadd.f32 %v1135, %v1217
      %v1226 = vadd.f32 %v1136, %v1222
      %v1227 = vld [vmem:[%s2] sm:$0xff]
      %v1228 = vld [vmem:[%s2 + $0x8] sm:$0x3]
      %1230 = vset.pattern.permute.xlu0 0
      %1231 = vperm.xlu0 %1230, %v1227
      %v1232 = vpop.permute.xlu0 %1231
      %1235 = vset.pattern.permute.xlu0 0
      %1236 = vperm.xlu0 %1235, %v1228
      %v1237 = vpop.permute.xlu0 %1236
      %v1239 = vadd.f32 %v1225, %v1232
      %v1240 = vadd.f32 %v1226, %v1237
      %vm1241 = vcmp.ge.f32.partialorder %v1239, 0.0
      %vm1242 = vcmp.ge.f32.partialorder %v1240, 0.0
      %v1243 = vld [vmem:[#allocation4] sm:$0x1]
      %v1245 = vlaneseq
      %v1246 = vshrl.u32 %v1245, 7
      %v1247 = vsub.s32 0, %v1246
      %v1248 = vrot.slane %v1243, %v1247
      %1249 = vset.pattern.permute.xlu0 0
      %1250 = vperm.xlu0 %1249, %v1248
      %v1251 = vpop.permute.xlu0 %1250
      %v1253 = vmul.f32 %v1251, %v1239
      %v1254 = vmul.f32 %v1251, %v1240
      %v1255 = vsel %vm1241, %v1239, %v1253
      %v1256 = vsel %vm1242, %v1240, %v1254
      %1257 = vmatprep.subr.mxu0 0.0
      %1258 = vmatpush1.msra.mxu0 %v608
      %1259 = vmatprep.subr.mxu0 0.0
      %1260 = vmatpush1.msra.mxu0 0.0
      %1261 = vmatprep.subr.mxu0 0.0
      %1262 = vmatpush1.msra.mxu0 0.0
      %1263 = vmatprep.subr.mxu0 0.0
      %1264 = vmatpush1.msra.mxu0 0.0
      %1265 = vmatprep.subr.mxu0 0.0
      %1266 = vmatpush1.msra.mxu0 0.0
      %1267 = vmatprep.subr.mxu0 0.0
      %1268 = vmatpush1.msra.mxu0 0.0
      %1269 = vmatprep.subr.mxu0 0.0
      %1270 = vmatpush1.msra.mxu0 0.0
      %1271 = vmatprep.subr.mxu0 0.0
      %1272 = vmatpush1.msra.mxu0 0.0
      %1273 = vmatprep.subr.mxu0 0.0
      %1274 = vmatpush1.msra.mxu0 0.0
      %1275 = vmatprep.subr.mxu0 0.0
      %1276 = vmatpush1.msra.mxu0 0.0
      %1277 = vmatprep.subr.mxu0 0.0
      %1278 = vmatpush1.msra.mxu0 0.0
      %1279 = vmatprep.subr.mxu0 0.0
      %1280 = vmatpush1.msra.mxu0 0.0
      %1281 = vmatprep.subr.mxu0 0.0
      %1282 = vmatpush1.msra.mxu0 0.0
      %1283 = vmatprep.subr.mxu0 0.0
      %1284 = vmatpush1.msra.mxu0 0.0
      %1285 = vmatprep.subr.mxu0 0.0
      %1286 = vmatpush1.msra.mxu0 0.0
      %1287 = vmatprep.subr.mxu0 0.0
      %1288 = vmatpush1.msra.mxu0 0.0
      %1289 = vmatprep.subr.mxu0 0.0
      %1290 = vmatpush1.msra.mxu0 0.0
      %1291 = vmatprep.subr.mxu0 0.0
      %1292 = vmatpush1.msra.mxu0 0.0
      %1293 = vmatprep.subr.mxu0 0.0
      %1294 = vmatpush1.msra.mxu0 0.0
      %1295 = vmatprep.subr.mxu0 0.0
      %1296 = vmatpush1.msra.mxu0 0.0
      %1297 = vmatprep.subr.mxu0 0.0
      %1298 = vmatpush1.msra.mxu0 0.0
      %1299 = vmatprep.subr.mxu0 0.0
      %1300 = vmatpush1.msra.mxu0 0.0
      %1301 = vmatprep.subr.mxu0 0.0
      %1302 = vmatpush1.msra.mxu0 0.0
      %1303 = vmatprep.subr.mxu0 0.0
      %1304 = vmatpush1.msra.mxu0 0.0
      %1305 = vmatprep.subr.mxu0 0.0
      %1306 = vmatpush1.msra.mxu0 0.0
      %1307 = vmatprep.subr.mxu0 0.0
      %1308 = vmatpush1.msra.mxu0 0.0
      %1309 = vmatprep.subr.mxu0 0.0
      %1310 = vmatpush1.msra.mxu0 0.0
      %1311 = vmatprep.subr.mxu0 0.0
      %1312 = vmatpush1.msra.mxu0 0.0
      %1313 = vmatprep.subr.mxu0 0.0
      %1314 = vmatpush1.msra.mxu0 0.0
      %1315 = vmatprep.subr.mxu0 0.0
      %1316 = vmatpush1.msra.mxu0 0.0
      %1317 = vmatprep.subr.mxu0 0.0
      %1318 = vmatpush1.msra.mxu0 0.0
      %1319 = vmatprep.subr.mxu0 0.0
      %1320 = vmatpush1.msra.mxu0 0.0
      %1321 = vmatprep.mubr.f32.mxu0 0.0
      %1322 = vmatmul.mubr.f32.gmra.mrb[0].mxu0 %v429
      %v1323 = vpop.f32.mrb[0].mxu0
      %v1324 = vadd.f32 0.0, %v1323
      %v1325 = vpop.f32.mrb[0].mxu0
      %1326 = vmatprep.mubr.f32.mxu0 0.0
      %1327 = vmatmul.mubr.f32.gmra.mrb[0].mxu0 %v432
      %v1328 = vpop.f32.mrb[0].mxu0
      %v1329 = vadd.f32 0.0, %v1328
      %v1330 = vpop.f32.mrb[0].mxu0
      %1331 = vdwg.mxu0
      %1332 = vmatprep.subr.mxu0 0.0
      %1333 = vmatpush1.msra.mxu0 %v436
      %1334 = vmatprep.subr.mxu0 0.0
      %1335 = vmatpush1.msra.mxu0 0.0
      %1336 = vmatprep.subr.mxu0 0.0
      %1337 = vmatpush1.msra.mxu0 0.0
      %1338 = vmatprep.subr.mxu0 0.0
      %1339 = vmatpush1.msra.mxu0 0.0
      %1340 = vmatprep.subr.mxu0 0.0
      %1341 = vmatpush1.msra.mxu0 0.0
      %1342 = vmatprep.subr.mxu0 0.0
      %1343 = vmatpush1.msra.mxu0 0.0
      %1344 = vmatprep.subr.mxu0 0.0
      %1345 = vmatpush1.msra.mxu0 0.0
      %1346 = vmatprep.subr.mxu0 0.0
      %1347 = vmatpush1.msra.mxu0 0.0
      %1348 = vmatprep.subr.mxu0 0.0
      %1349 = vmatpush1.msra.mxu0 0.0
      %1350 = vmatprep.subr.mxu0 0.0
      %1351 = vmatpush1.msra.mxu0 0.0
      %1352 = vmatprep.subr.mxu0 0.0
      %1353 = vmatpush1.msra.mxu0 0.0
      %1354 = vmatprep.subr.mxu0 0.0
      %1355 = vmatpush1.msra.mxu0 0.0
      %1356 = vmatprep.subr.mxu0 0.0
      %1357 = vmatpush1.msra.mxu0 0.0
      %1358 = vmatprep.subr.mxu0 0.0
      %1359 = vmatpush1.msra.mxu0 0.0
      %1360 = vmatprep.subr.mxu0 0.0
      %1361 = vmatpush1.msra.mxu0 0.0
      %1362 = vmatprep.subr.mxu0 0.0
      %1363 = vmatpush1.msra.mxu0 0.0
      %1364 = vmatprep.subr.mxu0 0.0
      %1365 = vmatpush1.msra.mxu0 0.0
      %1366 = vmatprep.subr.mxu0 0.0
      %1367 = vmatpush1.msra.mxu0 0.0
      %1368 = vmatprep.subr.mxu0 0.0
      %1369 = vmatpush1.msra.mxu0 0.0
      %1370 = vmatprep.subr.mxu0 0.0
      %1371 = vmatpush1.msra.mxu0 0.0
      %1372 = vmatprep.subr.mxu0 0.0
      %1373 = vmatpush1.msra.mxu0 0.0
      %1374 = vmatprep.subr.mxu0 0.0
      %1375 = vmatpush1.msra.mxu0 0.0
      %1376 = vmatprep.subr.mxu0 0.0
      %1377 = vmatpush1.msra.mxu0 0.0
      %1378 = vmatprep.subr.mxu0 0.0
      %1379 = vmatpush1.msra.mxu0 0.0
      %1380 = vmatprep.subr.mxu0 0.0
      %1381 = vmatpush1.msra.mxu0 0.0
      %1382 = vmatprep.subr.mxu0 0.0
      %1383 = vmatpush1.msra.mxu0 0.0
      %1384 = vmatprep.subr.mxu0 0.0
      %1385 = vmatpush1.msra.mxu0 0.0
      %1386 = vmatprep.subr.mxu0 0.0
      %1387 = vmatpush1.msra.mxu0 0.0
      %1388 = vmatprep.subr.mxu0 0.0
      %1389 = vmatpush1.msra.mxu0 0.0
      %1390 = vmatprep.subr.mxu0 0.0
      %1391 = vmatpush1.msra.mxu0 0.0
      %1392 = vmatprep.subr.mxu0 0.0
      %1393 = vmatpush1.msra.mxu0 0.0
      %1394 = vmatprep.subr.mxu0 0.0
      %1395 = vmatpush1.msra.mxu0 0.0
      %1396 = vmatprep.mubr.f32.mxu0 0.0
      %1397 = vmatmul.mubr.f32.gmra.mrb[0].mxu0 %v514
      %v1398 = vpop.f32.mrb[0].mxu0
      %v1399 = vadd.f32 %v1324, %v1398
      %v1400 = vpop.f32.mrb[0].mxu0
      %1401 = vmatprep.mubr.f32.mxu0 0.0
      %1402 = vmatmul.mubr.f32.gmra.mrb[0].mxu0 %v517
      %v1403 = vpop.f32.mrb[0].mxu0
      %v1404 = vadd.f32 %v1329, %v1403
      %v1405 = vpop.f32.mrb[0].mxu0
      %1406 = vdwg.mxu0
      %1407 = vrot.lane.b32.xlu0 %v426, 127
      %v1408 = vpop.permute.xlu0 %1407
      %v1409 = vsel %vm434, %v1408, 0
      %1411 = vmatprep.subr.mxu0 0.0
      %1412 = vmatpush1.msra.mxu0 %v1409
      %1413 = vmatprep.subr.mxu0 0.0
      %1414 = vmatpush1.msra.mxu0 0.0
      %1415 = vmatprep.subr.mxu0 0.0
      %1416 = vmatpush1.msra.mxu0 0.0
      %1417 = vmatprep.subr.mxu0 0.0
      %1418 = vmatpush1.msra.mxu0 0.0
      %1419 = vmatprep.subr.mxu0 0.0
      %1420 = vmatpush1.msra.mxu0 0.0
      %1421 = vmatprep.subr.mxu0 0.0
      %1422 = vmatpush1.msra.mxu0 0.0
      %1423 = vmatprep.subr.mxu0 0.0
      %1424 = vmatpush1.msra.mxu0 0.0
      %1425 = vmatprep.subr.mxu0 0.0
      %1426 = vmatpush1.msra.mxu0 0.0
      %1427 = vmatprep.subr.mxu0 0.0
      %1428 = vmatpush1.msra.mxu0 0.0
      %1429 = vmatprep.subr.mxu0 0.0
      %1430 = vmatpush1.msra.mxu0 0.0
      %1431 = vmatprep.subr.mxu0 0.0
      %1432 = vmatpush1.msra.mxu0 0.0
      %1433 = vmatprep.subr.mxu0 0.0
      %1434 = vmatpush1.msra.mxu0 0.0
      %1435 = vmatprep.subr.mxu0 0.0
      %1436 = vmatpush1.msra.mxu0 0.0
      %1437 = vmatprep.subr.mxu0 0.0
      %1438 = vmatpush1.msra.mxu0 0.0
      %1439 = vmatprep.subr.mxu0 0.0
      %1440 = vmatpush1.msra.mxu0 0.0
      %1441 = vmatprep.subr.mxu0 0.0
      %1442 = vmatpush1.msra.mxu0 0.0
      %1443 = vmatprep.subr.mxu0 0.0
      %1444 = vmatpush1.msra.mxu0 0.0
      %1445 = vmatprep.subr.mxu0 0.0
      %1446 = vmatpush1.msra.mxu0 0.0
      %1447 = vmatprep.subr.mxu0 0.0
      %1448 = vmatpush1.msra.mxu0 0.0
      %1449 = vmatprep.subr.mxu0 0.0
      %1450 = vmatpush1.msra.mxu0 0.0
      %1451 = vmatprep.subr.mxu0 0.0
      %1452 = vmatpush1.msra.mxu0 0.0
      %1453 = vmatprep.subr.mxu0 0.0
      %1454 = vmatpush1.msra.mxu0 0.0
      %1455 = vmatprep.subr.mxu0 0.0
      %1456 = vmatpush1.msra.mxu0 0.0
      %1457 = vmatprep.subr.mxu0 0.0
      %1458 = vmatpush1.msra.mxu0 0.0
      %1459 = vmatprep.subr.mxu0 0.0
      %1460 = vmatpush1.msra.mxu0 0.0
      %1461 = vmatprep.subr.mxu0 0.0
      %1462 = vmatpush1.msra.mxu0 0.0
      %1463 = vmatprep.subr.mxu0 0.0
      %1464 = vmatpush1.msra.mxu0 0.0
      %1465 = vmatprep.subr.mxu0 0.0
      %1466 = vmatpush1.msra.mxu0 0.0
      %1467 = vmatprep.subr.mxu0 0.0
      %1468 = vmatpush1.msra.mxu0 0.0
      %1469 = vmatprep.subr.mxu0 0.0
      %1470 = vmatpush1.msra.mxu0 0.0
      %1471 = vmatprep.subr.mxu0 0.0
      %1472 = vmatpush1.msra.mxu0 0.0
      %1473 = vmatprep.subr.mxu0 0.0
      %1474 = vmatpush1.msra.mxu0 0.0
      %1475 = vmatprep.mubr.f32.mxu0 0.0
      %1476 = vmatmul.mubr.f32.gmra.mrb[0].mxu0 %v603
      %v1477 = vpop.f32.mrb[0].mxu0
      %v1478 = vadd.f32 0.0, %v1477
      %v1479 = vpop.f32.mrb[0].mxu0
      %1480 = vmatprep.mubr.f32.mxu0 0.0
      %1481 = vmatmul.mubr.f32.gmra.mrb[0].mxu0 %v606
      %v1482 = vpop.f32.mrb[0].mxu0
      %v1483 = vadd.f32 0.0, %v1482
      %v1484 = vpop.f32.mrb[0].mxu0
      %1485 = vdwg.mxu0
      %v1486 = vadd.f32 %v1399, %v1478
      %v1487 = vadd.f32 %v1404, %v1483
      %1488 = vmatprep.subr.mxu0 0.0
      %1489 = vmatpush1.msra.mxu0 %v788
      %1490 = vmatprep.subr.mxu0 0.0
      %1491 = vmatpush1.msra.mxu0 0.0
      %1492 = vmatprep.subr.mxu0 0.0
      %1493 = vmatpush1.msra.mxu0 0.0
      %1494 = vmatprep.subr.mxu0 0.0
      %1495 = vmatpush1.msra.mxu0 0.0
      %1496 = vmatprep.subr.mxu0 0.0
      %1497 = vmatpush1.msra.mxu0 0.0
      %1498 = vmatprep.subr.mxu0 0.0
      %1499 = vmatpush1.msra.mxu0 0.0
      %1500 = vmatprep.subr.mxu0 0.0
      %1501 = vmatpush1.msra.mxu0 0.0
      %1502 = vmatprep.subr.mxu0 0.0
      %1503 = vmatpush1.msra.mxu0 0.0
      %1504 = vmatprep.subr.mxu0 0.0
      %1505 = vmatpush1.msra.mxu0 0.0
      %1506 = vmatprep.subr.mxu0 0.0
      %1507 = vmatpush1.msra.mxu0 0.0
      %1508 = vmatprep.subr.mxu0 0.0
      %1509 = vmatpush1.msra.mxu0 0.0
      %1510 = vmatprep.subr.mxu0 0.0
      %1511 = vmatpush1.msra.mxu0 0.0
      %1512 = vmatprep.subr.mxu0 0.0
      %1513 = vmatpush1.msra.mxu0 0.0
      %1514 = vmatprep.subr.mxu0 0.0
      %1515 = vmatpush1.msra.mxu0 0.0
      %1516 = vmatprep.subr.mxu0 0.0
      %1517 = vmatpush1.msra.mxu0 0.0
      %1518 = vmatprep.subr.mxu0 0.0
      %1519 = vmatpush1.msra.mxu0 0.0
      %1520 = vmatprep.subr.mxu0 0.0
      %1521 = vmatpush1.msra.mxu0 0.0
      %1522 = vmatprep.subr.mxu0 0.0
      %1523 = vmatpush1.msra.mxu0 0.0
      %1524 = vmatprep.subr.mxu0 0.0
      %1525 = vmatpush1.msra.mxu0 0.0
      %1526 = vmatprep.subr.mxu0 0.0
      %1527 = vmatpush1.msra.mxu0 0.0
      %1528 = vmatprep.subr.mxu0 0.0
      %1529 = vmatpush1.msra.mxu0 0.0
      %1530 = vmatprep.subr.mxu0 0.0
      %1531 = vmatpush1.msra.mxu0 0.0
      %1532 = vmatprep.subr.mxu0 0.0
      %1533 = vmatpush1.msra.mxu0 0.0
      %1534 = vmatprep.subr.mxu0 0.0
      %1535 = vmatpush1.msra.mxu0 0.0
      %1536 = vmatprep.subr.mxu0 0.0
      %1537 = vmatpush1.msra.mxu0 0.0
      %1538 = vmatprep.subr.mxu0 0.0
      %1539 = vmatpush1.msra.mxu0 0.0
      %1540 = vmatprep.subr.mxu0 0.0
      %1541 = vmatpush1.msra.mxu0 0.0
      %1542 = vmatprep.subr.mxu0 0.0
      %1543 = vmatpush1.msra.mxu0 0.0
      %1544 = vmatprep.subr.mxu0 0.0
      %1545 = vmatpush1.msra.mxu0 0.0
      %1546 = vmatprep.subr.mxu0 0.0
      %1547 = vmatpush1.msra.mxu0 0.0
      %1548 = vmatprep.subr.mxu0 0.0
      %1549 = vmatpush1.msra.mxu0 0.0
      %1550 = vmatprep.subr.mxu0 0.0
      %1551 = vmatpush1.msra.mxu0 0.0
      %1552 = vmatprep.mubr.f32.mxu0 0.0
      %1553 = vmatmul.mubr.f32.gmra.mrb[0].mxu0 %v692
      %v1554 = vpop.f32.mrb[0].mxu0
      %v1555 = vadd.f32 0.0, %v1554
      %v1556 = vpop.f32.mrb[0].mxu0
      %1557 = vmatprep.mubr.f32.mxu0 0.0
      %1558 = vmatmul.mubr.f32.gmra.mrb[0].mxu0 %v695
      %v1559 = vpop.f32.mrb[0].mxu0
      %v1560 = vadd.f32 0.0, %v1559
      %v1561 = vpop.f32.mrb[0].mxu0
      %1562 = vdwg.mxu0
      %v1563 = vadd.f32 %v1486, %v1555
      %v1564 = vadd.f32 %v1487, %v1560
      %1565 = vmatprep.subr.mxu0 0.0
      %1566 = vmatpush1.msra.mxu0 %v878
      %1567 = vmatprep.subr.mxu0 0.0
      %1568 = vmatpush1.msra.mxu0 0.0
      %1569 = vmatprep.subr.mxu0 0.0
      %1570 = vmatpush1.msra.mxu0 0.0
      %1571 = vmatprep.subr.mxu0 0.0
      %1572 = vmatpush1.msra.mxu0 0.0
      %1573 = vmatprep.subr.mxu0 0.0
      %1574 = vmatpush1.msra.mxu0 0.0
      %1575 = vmatprep.subr.mxu0 0.0
      %1576 = vmatpush1.msra.mxu0 0.0
      %1577 = vmatprep.subr.mxu0 0.0
      %1578 = vmatpush1.msra.mxu0 0.0
      %1579 = vmatprep.subr.mxu0 0.0
      %1580 = vmatpush1.msra.mxu0 0.0
      %1581 = vmatprep.subr.mxu0 0.0
      %1582 = vmatpush1.msra.mxu0 0.0
      %1583 = vmatprep.subr.mxu0 0.0
      %1584 = vmatpush1.msra.mxu0 0.0
      %1585 = vmatprep.subr.mxu0 0.0
      %1586 = vmatpush1.msra.mxu0 0.0
      %1587 = vmatprep.subr.mxu0 0.0
      %1588 = vmatpush1.msra.mxu0 0.0
      %1589 = vmatprep.subr.mxu0 0.0
      %1590 = vmatpush1.msra.mxu0 0.0
      %1591 = vmatprep.subr.mxu0 0.0
      %1592 = vmatpush1.msra.mxu0 0.0
      %1593 = vmatprep.subr.mxu0 0.0
      %1594 = vmatpush1.msra.mxu0 0.0
      %1595 = vmatprep.subr.mxu0 0.0
      %1596 = vmatpush1.msra.mxu0 0.0
      %1597 = vmatprep.subr.mxu0 0.0
      %1598 = vmatpush1.msra.mxu0 0.0
      %1599 = vmatprep.subr.mxu0 0.0
      %1600 = vmatpush1.msra.mxu0 0.0
      %1601 = vmatprep.subr.mxu0 0.0
      %1602 = vmatpush1.msra.mxu0 0.0
      %1603 = vmatprep.subr.mxu0 0.0
      %1604 = vmatpush1.msra.mxu0 0.0
      %1605 = vmatprep.subr.mxu0 0.0
      %1606 = vmatpush1.msra.mxu0 0.0
      %1607 = vmatprep.subr.mxu0 0.0
      %1608 = vmatpush1.msra.mxu0 0.0
      %1609 = vmatprep.subr.mxu0 0.0
      %1610 = vmatpush1.msra.mxu0 0.0
      %1611 = vmatprep.subr.mxu0 0.0
      %1612 = vmatpush1.msra.mxu0 0.0
      %1613 = vmatprep.subr.mxu0 0.0
      %1614 = vmatpush1.msra.mxu0 0.0
      %1615 = vmatprep.subr.mxu0 0.0
      %1616 = vmatpush1.msra.mxu0 0.0
      %1617 = vmatprep.subr.mxu0 0.0
      %1618 = vmatpush1.msra.mxu0 0.0
      %1619 = vmatprep.subr.mxu0 0.0
      %1620 = vmatpush1.msra.mxu0 0.0
      %1621 = vmatprep.subr.mxu0 0.0
      %1622 = vmatpush1.msra.mxu0 0.0
      %1623 = vmatprep.subr.mxu0 0.0
      %1624 = vmatpush1.msra.mxu0 0.0
      %1625 = vmatprep.subr.mxu0 0.0
      %1626 = vmatpush1.msra.mxu0 0.0
      %1627 = vmatprep.subr.mxu0 0.0
      %1628 = vmatpush1.msra.mxu0 0.0
      %1629 = vmatprep.mubr.f32.mxu0 0.0
      %1630 = vmatmul.mubr.f32.gmra.mrb[0].mxu0 %v782
      %v1631 = vpop.f32.mrb[0].mxu0
      %v1632 = vadd.f32 0.0, %v1631
      %v1633 = vpop.f32.mrb[0].mxu0
      %1634 = vmatprep.mubr.f32.mxu0 0.0
      %1635 = vmatmul.mubr.f32.gmra.mrb[0].mxu0 %v785
      %v1636 = vpop.f32.mrb[0].mxu0
      %v1637 = vadd.f32 0.0, %v1636
      %v1638 = vpop.f32.mrb[0].mxu0
      %1639 = vdwg.mxu0
      %v1640 = vadd.f32 %v1563, %v1632
      %v1641 = vadd.f32 %v1564, %v1637
      %1642 = vrot.lane.b32.xlu0 %v780, 127
      %v1643 = vpop.permute.xlu0 %1642
      %v1644 = vsel %vm434, %v1643, 0
      %1646 = vmatprep.subr.mxu0 0.0
      %1647 = vmatpush1.msra.mxu0 %v1644
      %1648 = vmatprep.subr.mxu0 0.0
      %1649 = vmatpush1.msra.mxu0 0.0
      %1650 = vmatprep.subr.mxu0 0.0
      %1651 = vmatpush1.msra.mxu0 0.0
      %1652 = vmatprep.subr.mxu0 0.0
      %1653 = vmatpush1.msra.mxu0 0.0
      %1654 = vmatprep.subr.mxu0 0.0
      %1655 = vmatpush1.msra.mxu0 0.0
      %1656 = vmatprep.subr.mxu0 0.0
      %1657 = vmatpush1.msra.mxu0 0.0
      %1658 = vmatprep.subr.mxu0 0.0
      %1659 = vmatpush1.msra.mxu0 0.0
      %1660 = vmatprep.subr.mxu0 0.0
      %1661 = vmatpush1.msra.mxu0 0.0
      %1662 = vmatprep.subr.mxu0 0.0
      %1663 = vmatpush1.msra.mxu0 0.0
      %1664 = vmatprep.subr.mxu0 0.0
      %1665 = vmatpush1.msra.mxu0 0.0
      %1666 = vmatprep.subr.mxu0 0.0
      %1667 = vmatpush1.msra.mxu0 0.0
      %1668 = vmatprep.subr.mxu0 0.0
      %1669 = vmatpush1.msra.mxu0 0.0
      %1670 = vmatprep.subr.mxu0 0.0
      %1671 = vmatpush1.msra.mxu0 0.0
      %1672 = vmatprep.subr.mxu0 0.0
      %1673 = vmatpush1.msra.mxu0 0.0
      %1674 = vmatprep.subr.mxu0 0.0
      %1675 = vmatpush1.msra.mxu0 0.0
      %1676 = vmatprep.subr.mxu0 0.0
      %1677 = vmatpush1.msra.mxu0 0.0
      %1678 = vmatprep.subr.mxu0 0.0
      %1679 = vmatpush1.msra.mxu0 0.0
      %1680 = vmatprep.subr.mxu0 0.0
      %1681 = vmatpush1.msra.mxu0 0.0
      %1682 = vmatprep.subr.mxu0 0.0
      %1683 = vmatpush1.msra.mxu0 0.0
      %1684 = vmatprep.subr.mxu0 0.0
      %1685 = vmatpush1.msra.mxu0 0.0
      %1686 = vmatprep.subr.mxu0 0.0
      %1687 = vmatpush1.msra.mxu0 0.0
      %1688 = vmatprep.subr.mxu0 0.0
      %1689 = vmatpush1.msra.mxu0 0.0
      %1690 = vmatprep.subr.mxu0 0.0
      %1691 = vmatpush1.msra.mxu0 0.0
      %1692 = vmatprep.subr.mxu0 0.0
      %1693 = vmatpush1.msra.mxu0 0.0
      %1694 = vmatprep.subr.mxu0 0.0
      %1695 = vmatpush1.msra.mxu0 0.0
      %1696 = vmatprep.subr.mxu0 0.0
      %1697 = vmatpush1.msra.mxu0 0.0
      %1698 = vmatprep.subr.mxu0 0.0
      %1699 = vmatpush1.msra.mxu0 0.0
      %1700 = vmatprep.subr.mxu0 0.0
      %1701 = vmatpush1.msra.mxu0 0.0
      %1702 = vmatprep.subr.mxu0 0.0
      %1703 = vmatpush1.msra.mxu0 0.0
      %1704 = vmatprep.subr.mxu0 0.0
      %1705 = vmatpush1.msra.mxu0 0.0
      %1706 = vmatprep.subr.mxu0 0.0
      %1707 = vmatpush1.msra.mxu0 0.0
      %1708 = vmatprep.subr.mxu0 0.0
      %1709 = vmatpush1.msra.mxu0 0.0
      %1710 = vmatprep.mubr.f32.mxu0 0.0
      %1711 = vmatmul.mubr.f32.gmra.mrb[0].mxu0 %v873
      %v1712 = vpop.f32.mrb[0].mxu0
      %v1713 = vadd.f32 0.0, %v1712
      %v1714 = vpop.f32.mrb[0].mxu0
      %1715 = vmatprep.mubr.f32.mxu0 0.0
      %1716 = vmatmul.mubr.f32.gmra.mrb[0].mxu0 %v876
      %v1717 = vpop.f32.mrb[0].mxu0
      %v1718 = vadd.f32 0.0, %v1717
      %v1719 = vpop.f32.mrb[0].mxu0
      %1720 = vdwg.mxu0
      %v1721 = vadd.f32 %v1640, %v1713
      %v1722 = vadd.f32 %v1641, %v1718
      %1723 = vmatprep.subr.mxu0 0.0
      %1724 = vmatpush1.msra.mxu0 %v1058
      %1725 = vmatprep.subr.mxu0 0.0
      %1726 = vmatpush1.msra.mxu0 0.0
      %1727 = vmatprep.subr.mxu0 0.0
      %1728 = vmatpush1.msra.mxu0 0.0
      %1729 = vmatprep.subr.mxu0 0.0
      %1730 = vmatpush1.msra.mxu0 0.0
      %1731 = vmatprep.subr.mxu0 0.0
      %1732 = vmatpush1.msra.mxu0 0.0
      %1733 = vmatprep.subr.mxu0 0.0
      %1734 = vmatpush1.msra.mxu0 0.0
      %1735 = vmatprep.subr.mxu0 0.0
      %1736 = vmatpush1.msra.mxu0 0.0
      %1737 = vmatprep.subr.mxu0 0.0
      %1738 = vmatpush1.msra.mxu0 0.0
      %1739 = vmatprep.subr.mxu0 0.0
      %1740 = vmatpush1.msra.mxu0 0.0
      %1741 = vmatprep.subr.mxu0 0.0
      %1742 = vmatpush1.msra.mxu0 0.0
      %1743 = vmatprep.subr.mxu0 0.0
      %1744 = vmatpush1.msra.mxu0 0.0
      %1745 = vmatprep.subr.mxu0 0.0
      %1746 = vmatpush1.msra.mxu0 0.0
      %1747 = vmatprep.subr.mxu0 0.0
      %1748 = vmatpush1.msra.mxu0 0.0
      %1749 = vmatprep.subr.mxu0 0.0
      %1750 = vmatpush1.msra.mxu0 0.0
      %1751 = vmatprep.subr.mxu0 0.0
      %1752 = vmatpush1.msra.mxu0 0.0
      %1753 = vmatprep.subr.mxu0 0.0
      %1754 = vmatpush1.msra.mxu0 0.0
      %1755 = vmatprep.subr.mxu0 0.0
      %1756 = vmatpush1.msra.mxu0 0.0
      %1757 = vmatprep.subr.mxu0 0.0
      %1758 = vmatpush1.msra.mxu0 0.0
      %1759 = vmatprep.subr.mxu0 0.0
      %1760 = vmatpush1.msra.mxu0 0.0
      %1761 = vmatprep.subr.mxu0 0.0
      %1762 = vmatpush1.msra.mxu0 0.0
      %1763 = vmatprep.subr.mxu0 0.0
      %1764 = vmatpush1.msra.mxu0 0.0
      %1765 = vmatprep.subr.mxu0 0.0
      %1766 = vmatpush1.msra.mxu0 0.0
      %1767 = vmatprep.subr.mxu0 0.0
      %1768 = vmatpush1.msra.mxu0 0.0
      %1769 = vmatprep.subr.mxu0 0.0
      %1770 = vmatpush1.msra.mxu0 0.0
      %1771 = vmatprep.subr.mxu0 0.0
      %1772 = vmatpush1.msra.mxu0 0.0
      %1773 = vmatprep.subr.mxu0 0.0
      %1774 = vmatpush1.msra.mxu0 0.0
      %1775 = vmatprep.subr.mxu0 0.0
      %1776 = vmatpush1.msra.mxu0 0.0
      %1777 = vmatprep.subr.mxu0 0.0
      %1778 = vmatpush1.msra.mxu0 0.0
      %1779 = vmatprep.subr.mxu0 0.0
      %1780 = vmatpush1.msra.mxu0 0.0
      %1781 = vmatprep.subr.mxu0 0.0
      %1782 = vmatpush1.msra.mxu0 0.0
      %1783 = vmatprep.subr.mxu0 0.0
      %1784 = vmatpush1.msra.mxu0 0.0
      %1785 = vmatprep.subr.mxu0 0.0
      %1786 = vmatpush1.msra.mxu0 0.0
      %1787 = vmatprep.mubr.f32.mxu0 0.0
      %1788 = vmatmul.mubr.f32.gmra.mrb[0].mxu0 %v963
      %v1789 = vpop.f32.mrb[0].mxu0
      %v1790 = vadd.f32 0.0, %v1789
      %v1791 = vpop.f32.mrb[0].mxu0
      %1792 = vmatprep.mubr.f32.mxu0 0.0
      %1793 = vmatmul.mubr.f32.gmra.mrb[0].mxu0 %v966
      %v1794 = vpop.f32.mrb[0].mxu0
      %v1795 = vadd.f32 0.0, %v1794
      %v1796 = vpop.f32.mrb[0].mxu0
      %1797 = vdwg.mxu0
      %v1798 = vadd.f32 %v1721, %v1790
      %v1799 = vadd.f32 %v1722, %v1795
      %1800 = vmatprep.subr.mxu0 0.0
      %1801 = vmatpush1.msra.mxu0 %v1148
      %1802 = vmatprep.subr.mxu0 0.0
      %1803 = vmatpush1.msra.mxu0 0.0
      %1804 = vmatprep.subr.mxu0 0.0
      %1805 = vmatpush1.msra.mxu0 0.0
      %1806 = vmatprep.subr.mxu0 0.0
      %1807 = vmatpush1.msra.mxu0 0.0
      %1808 = vmatprep.subr.mxu0 0.0
      %1809 = vmatpush1.msra.mxu0 0.0
      %1810 = vmatprep.subr.mxu0 0.0
      %1811 = vmatpush1.msra.mxu0 0.0
      %1812 = vmatprep.subr.mxu0 0.0
      %1813 = vmatpush1.msra.mxu0 0.0
      %1814 = vmatprep.subr.mxu0 0.0
      %1815 = vmatpush1.msra.mxu0 0.0
      %1816 = vmatprep.subr.mxu0 0.0
      %1817 = vmatpush1.msra.mxu0 0.0
      %1818 = vmatprep.subr.mxu0 0.0
      %1819 = vmatpush1.msra.mxu0 0.0
      %1820 = vmatprep.subr.mxu0 0.0
      %1821 = vmatpush1.msra.mxu0 0.0
      %1822 = vmatprep.subr.mxu0 0.0
      %1823 = vmatpush1.msra.mxu0 0.0
      %1824 = vmatprep.subr.mxu0 0.0
      %1825 = vmatpush1.msra.mxu0 0.0
      %1826 = vmatprep.subr.mxu0 0.0
      %1827 = vmatpush1.msra.mxu0 0.0
      %1828 = vmatprep.subr.mxu0 0.0
      %1829 = vmatpush1.msra.mxu0 0.0
      %1830 = vmatprep.subr.mxu0 0.0
      %1831 = vmatpush1.msra.mxu0 0.0
      %1832 = vmatprep.subr.mxu0 0.0
      %1833 = vmatpush1.msra.mxu0 0.0
      %1834 = vmatprep.subr.mxu0 0.0
      %1835 = vmatpush1.msra.mxu0 0.0
      %1836 = vmatprep.subr.mxu0 0.0
      %1837 = vmatpush1.msra.mxu0 0.0
      %1838 = vmatprep.subr.mxu0 0.0
      %1839 = vmatpush1.msra.mxu0 0.0
      %1840 = vmatprep.subr.mxu0 0.0
      %1841 = vmatpush1.msra.mxu0 0.0
      %1842 = vmatprep.subr.mxu0 0.0
      %1843 = vmatpush1.msra.mxu0 0.0
      %1844 = vmatprep.subr.mxu0 0.0
      %1845 = vmatpush1.msra.mxu0 0.0
      %1846 = vmatprep.subr.mxu0 0.0
      %1847 = vmatpush1.msra.mxu0 0.0
      %1848 = vmatprep.subr.mxu0 0.0
      %1849 = vmatpush1.msra.mxu0 0.0
      %1850 = vmatprep.subr.mxu0 0.0
      %1851 = vmatpush1.msra.mxu0 0.0
      %1852 = vmatprep.subr.mxu0 0.0
      %1853 = vmatpush1.msra.mxu0 0.0
      %1854 = vmatprep.subr.mxu0 0.0
      %1855 = vmatpush1.msra.mxu0 0.0
      %1856 = vmatprep.subr.mxu0 0.0
      %1857 = vmatpush1.msra.mxu0 0.0
      %1858 = vmatprep.subr.mxu0 0.0
      %1859 = vmatpush1.msra.mxu0 0.0
      %1860 = vmatprep.subr.mxu0 0.0
      %1861 = vmatpush1.msra.mxu0 0.0
      %1862 = vmatprep.subr.mxu0 0.0
      %1863 = vmatpush1.msra.mxu0 0.0
      %1864 = vmatprep.mubr.f32.mxu0 0.0
      %1865 = vmatmul.mubr.f32.gmra.mrb[0].mxu0 %v1053
      %v1866 = vpop.f32.mrb[0].mxu0
      %v1867 = vadd.f32 0.0, %v1866
      %v1868 = vpop.f32.mrb[0].mxu0
      %1869 = vmatprep.mubr.f32.mxu0 0.0
      %1870 = vmatmul.mubr.f32.gmra.mrb[0].mxu0 %v1056
      %v1871 = vpop.f32.mrb[0].mxu0
      %v1872 = vadd.f32 0.0, %v1871
      %v1873 = vpop.f32.mrb[0].mxu0
      %1874 = vdwg.mxu0
      %v1875 = vadd.f32 %v1798, %v1867
      %v1876 = vadd.f32 %v1799, %v1872
      %1877 = vrot.lane.b32.xlu0 %v426, 119
      %v1878 = vpop.permute.xlu0 %1877
      %v1879 = vsel %vm434, %v1878, 0
      %1881 = vmatprep.subr.mxu0 0.0
      %1882 = vmatpush1.msra.mxu0 %v1879
      %1883 = vmatprep.subr.mxu0 0.0
      %1884 = vmatpush1.msra.mxu0 0.0
      %1885 = vmatprep.subr.mxu0 0.0
      %1886 = vmatpush1.msra.mxu0 0.0
      %1887 = vmatprep.subr.mxu0 0.0
      %1888 = vmatpush1.msra.mxu0 0.0
      %1889 = vmatprep.subr.mxu0 0.0
      %1890 = vmatpush1.msra.mxu0 0.0
      %1891 = vmatprep.subr.mxu0 0.0
      %1892 = vmatpush1.msra.mxu0 0.0
      %1893 = vmatprep.subr.mxu0 0.0
      %1894 = vmatpush1.msra.mxu0 0.0
      %1895 = vmatprep.subr.mxu0 0.0
      %1896 = vmatpush1.msra.mxu0 0.0
      %1897 = vmatprep.subr.mxu0 0.0
      %1898 = vmatpush1.msra.mxu0 0.0
      %1899 = vmatprep.subr.mxu0 0.0
      %1900 = vmatpush1.msra.mxu0 0.0
      %1901 = vmatprep.subr.mxu0 0.0
      %1902 = vmatpush1.msra.mxu0 0.0
      %1903 = vmatprep.subr.mxu0 0.0
      %1904 = vmatpush1.msra.mxu0 0.0
      %1905 = vmatprep.subr.mxu0 0.0
      %1906 = vmatpush1.msra.mxu0 0.0
      %1907 = vmatprep.subr.mxu0 0.0
      %1908 = vmatpush1.msra.mxu0 0.0
      %1909 = vmatprep.subr.mxu0 0.0
      %1910 = vmatpush1.msra.mxu0 0.0
      %1911 = vmatprep.subr.mxu0 0.0
      %1912 = vmatpush1.msra.mxu0 0.0
      %1913 = vmatprep.subr.mxu0 0.0
      %1914 = vmatpush1.msra.mxu0 0.0
      %1915 = vmatprep.subr.mxu0 0.0
      %1916 = vmatpush1.msra.mxu0 0.0
      %1917 = vmatprep.subr.mxu0 0.0
      %1918 = vmatpush1.msra.mxu0 0.0
      %1919 = vmatprep.subr.mxu0 0.0
      %1920 = vmatpush1.msra.mxu0 0.0
      %1921 = vmatprep.subr.mxu0 0.0
      %1922 = vmatpush1.msra.mxu0 0.0
      %1923 = vmatprep.subr.mxu0 0.0
      %1924 = vmatpush1.msra.mxu0 0.0
      %1925 = vmatprep.subr.mxu0 0.0
      %1926 = vmatpush1.msra.mxu0 0.0
      %1927 = vmatprep.subr.mxu0 0.0
      %1928 = vmatpush1.msra.mxu0 0.0
      %1929 = vmatprep.subr.mxu0 0.0
      %1930 = vmatpush1.msra.mxu0 0.0
      %1931 = vmatprep.subr.mxu0 0.0
      %1932 = vmatpush1.msra.mxu0 0.0
      %1933 = vmatprep.subr.mxu0 0.0
      %1934 = vmatpush1.msra.mxu0 0.0
      %1935 = vmatprep.subr.mxu0 0.0
      %1936 = vmatpush1.msra.mxu0 0.0
      %1937 = vmatprep.subr.mxu0 0.0
      %1938 = vmatpush1.msra.mxu0 0.0
      %1939 = vmatprep.subr.mxu0 0.0
      %1940 = vmatpush1.msra.mxu0 0.0
      %1941 = vmatprep.subr.mxu0 0.0
      %1942 = vmatpush1.msra.mxu0 0.0
      %1943 = vmatprep.subr.mxu0 0.0
      %1944 = vmatpush1.msra.mxu0 0.0
      %1945 = vmatprep.mubr.f32.mxu0 0.0
      %1946 = vmatmul.mubr.f32.gmra.mrb[0].mxu0 %v1143
      %v1947 = vpop.f32.mrb[0].mxu0
      %v1948 = vadd.f32 0.0, %v1947
      %v1949 = vpop.f32.mrb[0].mxu0
      %1950 = vmatprep.mubr.f32.mxu0 0.0
      %1951 = vmatmul.mubr.f32.gmra.mrb[0].mxu0 %v1146
      %v1952 = vpop.f32.mrb[0].mxu0
      %v1953 = vadd.f32 0.0, %v1952
      %v1954 = vpop.f32.mrb[0].mxu0
      %1955 = vdwg.mxu0
      %v1956 = vadd.f32 %v1875, %v1948
      %v1957 = vadd.f32 %v1876, %v1953
      %v1958 = vadd.f32 %v1956, %v1232
      %v1959 = vadd.f32 %v1957, %v1237
      %vm1960 = vcmp.ge.f32.partialorder %v1958, 0.0
      %vm1961 = vcmp.ge.f32.partialorder %v1959, 0.0
      %v1962 = vmul.f32 %v1251, %v1958
      %v1963 = vmul.f32 %v1251, %v1959
      %v1964 = vsel %vm1960, %v1958, %v1962
      %v1965 = vsel %vm1961, %v1959, %v1963
      %v1966 = vmax.f32 %v1255, %v1964
      %v1967 = vmax.f32 %v1256, %v1965
      %1968 = vmatprep.subr.mxu0 0.0
      %1969 = vmatpush1.msra.mxu0 %v788
      %1970 = vmatprep.subr.mxu0 0.0
      %1971 = vmatpush1.msra.mxu0 0.0
      %1972 = vmatprep.subr.mxu0 0.0
      %1973 = vmatpush1.msra.mxu0 0.0
      %1974 = vmatprep.subr.mxu0 0.0
      %1975 = vmatpush1.msra.mxu0 0.0
      %1976 = vmatprep.subr.mxu0 0.0
      %1977 = vmatpush1.msra.mxu0 0.0
      %1978 = vmatprep.subr.mxu0 0.0
      %1979 = vmatpush1.msra.mxu0 0.0
      %1980 = vmatprep.subr.mxu0 0.0
      %1981 = vmatpush1.msra.mxu0 0.0
      %1982 = vmatprep.subr.mxu0 0.0
      %1983 = vmatpush1.msra.mxu0 0.0
      %1984 = vmatprep.subr.mxu0 0.0
      %1985 = vmatpush1.msra.mxu0 0.0
      %1986 = vmatprep.subr.mxu0 0.0
      %1987 = vmatpush1.msra.mxu0 0.0
      %1988 = vmatprep.subr.mxu0 0.0
      %1989 = vmatpush1.msra.mxu0 0.0
      %1990 = vmatprep.subr.mxu0 0.0
      %1991 = vmatpush1.msra.mxu0 0.0
      %1992 = vmatprep.subr.mxu0 0.0
      %1993 = vmatpush1.msra.mxu0 0.0
      %1994 = vmatprep.subr.mxu0 0.0
      %1995 = vmatpush1.msra.mxu0 0.0
      %1996 = vmatprep.subr.mxu0 0.0
      %1997 = vmatpush1.msra.mxu0 0.0
      %1998 = vmatprep.subr.mxu0 0.0
      %1999 = vmatpush1.msra.mxu0 0.0
      %2000 = vmatprep.subr.mxu0 0.0
      %2001 = vmatpush1.msra.mxu0 0.0
      %2002 = vmatprep.subr.mxu0 0.0
      %2003 = vmatpush1.msra.mxu0 0.0
      %2004 = vmatprep.subr.mxu0 0.0
      %2005 = vmatpush1.msra.mxu0 0.0
      %2006 = vmatprep.subr.mxu0 0.0
      %2007 = vmatpush1.msra.mxu0 0.0
      %2008 = vmatprep.subr.mxu0 0.0
      %2009 = vmatpush1.msra.mxu0 0.0
      %2010 = vmatprep.subr.mxu0 0.0
      %2011 = vmatpush1.msra.mxu0 0.0
      %2012 = vmatprep.subr.mxu0 0.0
      %2013 = vmatpush1.msra.mxu0 0.0
      %2014 = vmatprep.subr.mxu0 0.0
      %2015 = vmatpush1.msra.mxu0 0.0
      %2016 = vmatprep.subr.mxu0 0.0
      %2017 = vmatpush1.msra.mxu0 0.0
      %2018 = vmatprep.subr.mxu0 0.0
      %2019 = vmatpush1.msra.mxu0 0.0
      %2020 = vmatprep.subr.mxu0 0.0
      %2021 = vmatpush1.msra.mxu0 0.0
      %2022 = vmatprep.subr.mxu0 0.0
      %2023 = vmatpush1.msra.mxu0 0.0
      %2024 = vmatprep.subr.mxu0 0.0
      %2025 = vmatpush1.msra.mxu0 0.0
      %2026 = vmatprep.subr.mxu0 0.0
      %2027 = vmatpush1.msra.mxu0 0.0
      %2028 = vmatprep.subr.mxu0 0.0
      %2029 = vmatpush1.msra.mxu0 0.0
      %2030 = vmatprep.subr.mxu0 0.0
      %2031 = vmatpush1.msra.mxu0 0.0
      %2032 = vmatprep.mubr.f32.mxu0 0.0
      %2033 = vmatmul.mubr.f32.gmra.mrb[0].mxu0 %v429
      %v2034 = vpop.f32.mrb[0].mxu0
      %v2035 = vadd.f32 0.0, %v2034
      %v2036 = vpop.f32.mrb[0].mxu0
      %2037 = vmatprep.mubr.f32.mxu0 0.0
      %2038 = vmatmul.mubr.f32.gmra.mrb[0].mxu0 %v432
      %v2039 = vpop.f32.mrb[0].mxu0
      %v2040 = vadd.f32 0.0, %v2039
      %v2041 = vpop.f32.mrb[0].mxu0
      %2042 = vdwg.mxu0
      %2043 = vmatprep.subr.mxu0 0.0
      %2044 = vmatpush1.msra.mxu0 %v698
      %2045 = vmatprep.subr.mxu0 0.0
      %2046 = vmatpush1.msra.mxu0 0.0
      %2047 = vmatprep.subr.mxu0 0.0
      %2048 = vmatpush1.msra.mxu0 0.0
      %2049 = vmatprep.subr.mxu0 0.0
      %2050 = vmatpush1.msra.mxu0 0.0
      %2051 = vmatprep.subr.mxu0 0.0
      %2052 = vmatpush1.msra.mxu0 0.0
      %2053 = vmatprep.subr.mxu0 0.0
      %2054 = vmatpush1.msra.mxu0 0.0
      %2055 = vmatprep.subr.mxu0 0.0
      %2056 = vmatpush1.msra.mxu0 0.0
      %2057 = vmatprep.subr.mxu0 0.0
      %2058 = vmatpush1.msra.mxu0 0.0
      %2059 = vmatprep.subr.mxu0 0.0
      %2060 = vmatpush1.msra.mxu0 0.0
      %2061 = vmatprep.subr.mxu0 0.0
      %2062 = vmatpush1.msra.mxu0 0.0
      %2063 = vmatprep.subr.mxu0 0.0
      %2064 = vmatpush1.msra.mxu0 0.0
      %2065 = vmatprep.subr.mxu0 0.0
      %2066 = vmatpush1.msra.mxu0 0.0
      %2067 = vmatprep.subr.mxu0 0.0
      %2068 = vmatpush1.msra.mxu0 0.0
      %2069 = vmatprep.subr.mxu0 0.0
      %2070 = vmatpush1.msra.mxu0 0.0
      %2071 = vmatprep.subr.mxu0 0.0
      %2072 = vmatpush1.msra.mxu0 0.0
      %2073 = vmatprep.subr.mxu0 0.0
      %2074 = vmatpush1.msra.mxu0 0.0
      %2075 = vmatprep.subr.mxu0 0.0
      %2076 = vmatpush1.msra.mxu0 0.0
      %2077 = vmatprep.subr.mxu0 0.0
      %2078 = vmatpush1.msra.mxu0 0.0
      %2079 = vmatprep.subr.mxu0 0.0
      %2080 = vmatpush1.msra.mxu0 0.0
      %2081 = vmatprep.subr.mxu0 0.0
      %2082 = vmatpush1.msra.mxu0 0.0
      %2083 = vmatprep.subr.mxu0 0.0
      %2084 = vmatpush1.msra.mxu0 0.0
      %2085 = vmatprep.subr.mxu0 0.0
      %2086 = vmatpush1.msra.mxu0 0.0
      %2087 = vmatprep.subr.mxu0 0.0
      %2088 = vmatpush1.msra.mxu0 0.0
      %2089 = vmatprep.subr.mxu0 0.0
      %2090 = vmatpush1.msra.mxu0 0.0
      %2091 = vmatprep.subr.mxu0 0.0
      %2092 = vmatpush1.msra.mxu0 0.0
      %2093 = vmatprep.subr.mxu0 0.0
      %2094 = vmatpush1.msra.mxu0 0.0
      %2095 = vmatprep.subr.mxu0 0.0
      %2096 = vmatpush1.msra.mxu0 0.0
      %2097 = vmatprep.subr.mxu0 0.0
      %2098 = vmatpush1.msra.mxu0 0.0
      %2099 = vmatprep.subr.mxu0 0.0
      %2100 = vmatpush1.msra.mxu0 0.0
      %2101 = vmatprep.subr.mxu0 0.0
      %2102 = vmatpush1.msra.mxu0 0.0
      %2103 = vmatprep.subr.mxu0 0.0
      %2104 = vmatpush1.msra.mxu0 0.0
      %2105 = vmatprep.subr.mxu0 0.0
      %2106 = vmatpush1.msra.mxu0 0.0
      %2107 = vmatprep.mubr.f32.mxu0 0.0
      %2108 = vmatmul.mubr.f32.gmra.mrb[0].mxu0 %v514
      %v2109 = vpop.f32.mrb[0].mxu0
      %v2110 = vadd.f32 %v2035, %v2109
      %v2111 = vpop.f32.mrb[0].mxu0
      %2112 = vmatprep.mubr.f32.mxu0 0.0
      %2113 = vmatmul.mubr.f32.gmra.mrb[0].mxu0 %v517
      %v2114 = vpop.f32.mrb[0].mxu0
      %v2115 = vadd.f32 %v2040, %v2114
      %v2116 = vpop.f32.mrb[0].mxu0
      %2117 = vdwg.mxu0
      %2118 = vmatprep.subr.mxu0 0.0
      %2119 = vmatpush1.msra.mxu0 %v878
      %2120 = vmatprep.subr.mxu0 0.0
      %2121 = vmatpush1.msra.mxu0 0.0
      %2122 = vmatprep.subr.mxu0 0.0
      %2123 = vmatpush1.msra.mxu0 0.0
      %2124 = vmatprep.subr.mxu0 0.0
      %2125 = vmatpush1.msra.mxu0 0.0
      %2126 = vmatprep.subr.mxu0 0.0
      %2127 = vmatpush1.msra.mxu0 0.0
      %2128 = vmatprep.subr.mxu0 0.0
      %2129 = vmatpush1.msra.mxu0 0.0
      %2130 = vmatprep.subr.mxu0 0.0
      %2131 = vmatpush1.msra.mxu0 0.0
      %2132 = vmatprep.subr.mxu0 0.0
      %2133 = vmatpush1.msra.mxu0 0.0
      %2134 = vmatprep.subr.mxu0 0.0
      %2135 = vmatpush1.msra.mxu0 0.0
      %2136 = vmatprep.subr.mxu0 0.0
      %2137 = vmatpush1.msra.mxu0 0.0
      %2138 = vmatprep.subr.mxu0 0.0
      %2139 = vmatpush1.msra.mxu0 0.0
      %2140 = vmatprep.subr.mxu0 0.0
      %2141 = vmatpush1.msra.mxu0 0.0
      %2142 = vmatprep.subr.mxu0 0.0
      %2143 = vmatpush1.msra.mxu0 0.0
      %2144 = vmatprep.subr.mxu0 0.0
      %2145 = vmatpush1.msra.mxu0 0.0
      %2146 = vmatprep.subr.mxu0 0.0
      %2147 = vmatpush1.msra.mxu0 0.0
      %2148 = vmatprep.subr.mxu0 0.0
      %2149 = vmatpush1.msra.mxu0 0.0
      %2150 = vmatprep.subr.mxu0 0.0
      %2151 = vmatpush1.msra.mxu0 0.0
      %2152 = vmatprep.subr.mxu0 0.0
      %2153 = vmatpush1.msra.mxu0 0.0
      %2154 = vmatprep.subr.mxu0 0.0
      %2155 = vmatpush1.msra.mxu0 0.0
      %2156 = vmatprep.subr.mxu0 0.0
      %2157 = vmatpush1.msra.mxu0 0.0
      %2158 = vmatprep.subr.mxu0 0.0
      %2159 = vmatpush1.msra.mxu0 0.0
      %2160 = vmatprep.subr.mxu0 0.0
      %2161 = vmatpush1.msra.mxu0 0.0
      %2162 = vmatprep.subr.mxu0 0.0
      %2163 = vmatpush1.msra.mxu0 0.0
      %2164 = vmatprep.subr.mxu0 0.0
      %2165 = vmatpush1.msra.mxu0 0.0
      %2166 = vmatprep.subr.mxu0 0.0
      %2167 = vmatpush1.msra.mxu0 0.0
      %2168 = vmatprep.subr.mxu0 0.0
      %2169 = vmatpush1.msra.mxu0 0.0
      %2170 = vmatprep.subr.mxu0 0.0
      %2171 = vmatpush1.msra.mxu0 0.0
      %2172 = vmatprep.subr.mxu0 0.0
      %2173 = vmatpush1.msra.mxu0 0.0
      %2174 = vmatprep.subr.mxu0 0.0
      %2175 = vmatpush1.msra.mxu0 0.0
      %2176 = vmatprep.subr.mxu0 0.0
      %2177 = vmatpush1.msra.mxu0 0.0
      %2178 = vmatprep.subr.mxu0 0.0
      %2179 = vmatpush1.msra.mxu0 0.0
      %2180 = vmatprep.subr.mxu0 0.0
      %2181 = vmatpush1.msra.mxu0 0.0
      %2182 = vmatprep.mubr.f32.mxu0 0.0
      %2183 = vmatmul.mubr.f32.gmra.mrb[0].mxu0 %v603
      %v2184 = vpop.f32.mrb[0].mxu0
      %v2185 = vadd.f32 0.0, %v2184
      %v2186 = vpop.f32.mrb[0].mxu0
      %2187 = vmatprep.mubr.f32.mxu0 0.0
      %2188 = vmatmul.mubr.f32.gmra.mrb[0].mxu0 %v606
      %v2189 = vpop.f32.mrb[0].mxu0
      %v2190 = vadd.f32 0.0, %v2189
      %v2191 = vpop.f32.mrb[0].mxu0
      %2192 = vdwg.mxu0
      %v2193 = vadd.f32 %v2110, %v2185
      %v2194 = vadd.f32 %v2115, %v2190
      %2195 = vmatprep.subr.mxu0 0.0
      %2196 = vmatpush1.msra.mxu0 %v968
      %2197 = vmatprep.subr.mxu0 0.0
      %2198 = vmatpush1.msra.mxu0 0.0
      %2199 = vmatprep.subr.mxu0 0.0
      %2200 = vmatpush1.msra.mxu0 0.0
      %2201 = vmatprep.subr.mxu0 0.0
      %2202 = vmatpush1.msra.mxu0 0.0
      %2203 = vmatprep.subr.mxu0 0.0
      %2204 = vmatpush1.msra.mxu0 0.0
      %2205 = vmatprep.subr.mxu0 0.0
      %2206 = vmatpush1.msra.mxu0 0.0
      %2207 = vmatprep.subr.mxu0 0.0
      %2208 = vmatpush1.msra.mxu0 0.0
      %2209 = vmatprep.subr.mxu0 0.0
      %2210 = vmatpush1.msra.mxu0 0.0
      %2211 = vmatprep.subr.mxu0 0.0
      %2212 = vmatpush1.msra.mxu0 0.0
      %2213 = vmatprep.subr.mxu0 0.0
      %2214 = vmatpush1.msra.mxu0 0.0
      %2215 = vmatprep.subr.mxu0 0.0
      %2216 = vmatpush1.msra.mxu0 0.0
      %2217 = vmatprep.subr.mxu0 0.0
      %2218 = vmatpush1.msra.mxu0 0.0
      %2219 = vmatprep.subr.mxu0 0.0
      %2220 = vmatpush1.msra.mxu0 0.0
      %2221 = vmatprep.subr.mxu0 0.0
      %2222 = vmatpush1.msra.mxu0 0.0
      %2223 = vmatprep.subr.mxu0 0.0
      %2224 = vmatpush1.msra.mxu0 0.0
      %2225 = vmatprep.subr.mxu0 0.0
      %2226 = vmatpush1.msra.mxu0 0.0
      %2227 = vmatprep.subr.mxu0 0.0
      %2228 = vmatpush1.msra.mxu0 0.0
      %2229 = vmatprep.subr.mxu0 0.0
      %2230 = vmatpush1.msra.mxu0 0.0
      %2231 = vmatprep.subr.mxu0 0.0
      %2232 = vmatpush1.msra.mxu0 0.0
      %2233 = vmatprep.subr.mxu0 0.0
      %2234 = vmatpush1.msra.mxu0 0.0
      %2235 = vmatprep.subr.mxu0 0.0
      %2236 = vmatpush1.msra.mxu0 0.0
      %2237 = vmatprep.subr.mxu0 0.0
      %2238 = vmatpush1.msra.mxu0 0.0
      %2239 = vmatprep.subr.mxu0 0.0
      %2240 = vmatpush1.msra.mxu0 0.0
      %2241 = vmatprep.subr.mxu0 0.0
      %2242 = vmatpush1.msra.mxu0 0.0
      %2243 = vmatprep.subr.mxu0 0.0
      %2244 = vmatpush1.msra.mxu0 0.0
      %2245 = vmatprep.subr.mxu0 0.0
      %2246 = vmatpush1.msra.mxu0 0.0
      %2247 = vmatprep.subr.mxu0 0.0
      %2248 = vmatpush1.msra.mxu0 0.0
      %2249 = vmatprep.subr.mxu0 0.0
      %2250 = vmatpush1.msra.mxu0 0.0
      %2251 = vmatprep.subr.mxu0 0.0
      %2252 = vmatpush1.msra.mxu0 0.0
      %2253 = vmatprep.subr.mxu0 0.0
      %2254 = vmatpush1.msra.mxu0 0.0
      %2255 = vmatprep.subr.mxu0 0.0
      %2256 = vmatpush1.msra.mxu0 0.0
      %2257 = vmatprep.subr.mxu0 0.0
      %2258 = vmatpush1.msra.mxu0 0.0
      %2259 = vmatprep.mubr.f32.mxu0 0.0
      %2260 = vmatmul.mubr.f32.gmra.mrb[0].mxu0 %v692
      %v2261 = vpop.f32.mrb[0].mxu0
      %v2262 = vadd.f32 0.0, %v2261
      %v2263 = vpop.f32.mrb[0].mxu0
      %2264 = vmatprep.mubr.f32.mxu0 0.0
      %2265 = vmatmul.mubr.f32.gmra.mrb[0].mxu0 %v695
      %v2266 = vpop.f32.mrb[0].mxu0
      %v2267 = vadd.f32 0.0, %v2266
      %v2268 = vpop.f32.mrb[0].mxu0
      %2269 = vdwg.mxu0
      %v2270 = vadd.f32 %v2193, %v2262
      %v2271 = vadd.f32 %v2194, %v2267
      %2272 = vmatprep.subr.mxu0 0.0
      %2273 = vmatpush1.msra.mxu0 %v1058
      %2274 = vmatprep.subr.mxu0 0.0
      %2275 = vmatpush1.msra.mxu0 0.0
      %2276 = vmatprep.subr.mxu0 0.0
      %2277 = vmatpush1.msra.mxu0 0.0
      %2278 = vmatprep.subr.mxu0 0.0
      %2279 = vmatpush1.msra.mxu0 0.0
      %2280 = vmatprep.subr.mxu0 0.0
      %2281 = vmatpush1.msra.mxu0 0.0
      %2282 = vmatprep.subr.mxu0 0.0
      %2283 = vmatpush1.msra.mxu0 0.0
      %2284 = vmatprep.subr.mxu0 0.0
      %2285 = vmatpush1.msra.mxu0 0.0
      %2286 = vmatprep.subr.mxu0 0.0
      %2287 = vmatpush1.msra.mxu0 0.0
      %2288 = vmatprep.subr.mxu0 0.0
      %2289 = vmatpush1.msra.mxu0 0.0
      %2290 = vmatprep.subr.mxu0 0.0
      %2291 = vmatpush1.msra.mxu0 0.0
      %2292 = vmatprep.subr.mxu0 0.0
      %2293 = vmatpush1.msra.mxu0 0.0
      %2294 = vmatprep.subr.mxu0 0.0
      %2295 = vmatpush1.msra.mxu0 0.0
      %2296 = vmatprep.subr.mxu0 0.0
      %2297 = vmatpush1.msra.mxu0 0.0
      %2298 = vmatprep.subr.mxu0 0.0
      %2299 = vmatpush1.msra.mxu0 0.0
      %2300 = vmatprep.subr.mxu0 0.0
      %2301 = vmatpush1.msra.mxu0 0.0
      %2302 = vmatprep.subr.mxu0 0.0
      %2303 = vmatpush1.msra.mxu0 0.0
      %2304 = vmatprep.subr.mxu0 0.0
      %2305 = vmatpush1.msra.mxu0 0.0
      %2306 = vmatprep.subr.mxu0 0.0
      %2307 = vmatpush1.msra.mxu0 0.0
      %2308 = vmatprep.subr.mxu0 0.0
      %2309 = vmatpush1.msra.mxu0 0.0
      %2310 = vmatprep.subr.mxu0 0.0
      %2311 = vmatpush1.msra.mxu0 0.0
      %2312 = vmatprep.subr.mxu0 0.0
      %2313 = vmatpush1.msra.mxu0 0.0
      %2314 = vmatprep.subr.mxu0 0.0
      %2315 = vmatpush1.msra.mxu0 0.0
      %2316 = vmatprep.subr.mxu0 0.0
      %2317 = vmatpush1.msra.mxu0 0.0
      %2318 = vmatprep.subr.mxu0 0.0
      %2319 = vmatpush1.msra.mxu0 0.0
      %2320 = vmatprep.subr.mxu0 0.0
      %2321 = vmatpush1.msra.mxu0 0.0
      %2322 = vmatprep.subr.mxu0 0.0
      %2323 = vmatpush1.msra.mxu0 0.0
      %2324 = vmatprep.subr.mxu0 0.0
      %2325 = vmatpush1.msra.mxu0 0.0
      %2326 = vmatprep.subr.mxu0 0.0
      %2327 = vmatpush1.msra.mxu0 0.0
      %2328 = vmatprep.subr.mxu0 0.0
      %2329 = vmatpush1.msra.mxu0 0.0
      %2330 = vmatprep.subr.mxu0 0.0
      %2331 = vmatpush1.msra.mxu0 0.0
      %2332 = vmatprep.subr.mxu0 0.0
      %2333 = vmatpush1.msra.mxu0 0.0
      %2334 = vmatprep.subr.mxu0 0.0
      %2335 = vmatpush1.msra.mxu0 0.0
      %2336 = vmatprep.mubr.f32.mxu0 0.0
      %2337 = vmatmul.mubr.f32.gmra.mrb[0].mxu0 %v782
      %v2338 = vpop.f32.mrb[0].mxu0
      %v2339 = vadd.f32 0.0, %v2338
      %v2340 = vpop.f32.mrb[0].mxu0
      %2341 = vmatprep.mubr.f32.mxu0 0.0
      %2342 = vmatmul.mubr.f32.gmra.mrb[0].mxu0 %v785
      %v2343 = vpop.f32.mrb[0].mxu0
      %v2344 = vadd.f32 0.0, %v2343
      %v2345 = vpop.f32.mrb[0].mxu0
      %2346 = vdwg.mxu0
      %v2347 = vadd.f32 %v2270, %v2339
      %v2348 = vadd.f32 %v2271, %v2344
      %2349 = vmatprep.subr.mxu0 0.0
      %2350 = vmatpush1.msra.mxu0 %v1148
      %2351 = vmatprep.subr.mxu0 0.0
      %2352 = vmatpush1.msra.mxu0 0.0
      %2353 = vmatprep.subr.mxu0 0.0
      %2354 = vmatpush1.msra.mxu0 0.0
      %2355 = vmatprep.subr.mxu0 0.0
      %2356 = vmatpush1.msra.mxu0 0.0
      %2357 = vmatprep.subr.mxu0 0.0
      %2358 = vmatpush1.msra.mxu0 0.0
      %2359 = vmatprep.subr.mxu0 0.0
      %2360 = vmatpush1.msra.mxu0 0.0
      %2361 = vmatprep.subr.mxu0 0.0
      %2362 = vmatpush1.msra.mxu0 0.0
      %2363 = vmatprep.subr.mxu0 0.0
      %2364 = vmatpush1.msra.mxu0 0.0
      %2365 = vmatprep.subr.mxu0 0.0
      %2366 = vmatpush1.msra.mxu0 0.0
      %2367 = vmatprep.subr.mxu0 0.0
      %2368 = vmatpush1.msra.mxu0 0.0
      %2369 = vmatprep.subr.mxu0 0.0
      %2370 = vmatpush1.msra.mxu0 0.0
      %2371 = vmatprep.subr.mxu0 0.0
      %2372 = vmatpush1.msra.mxu0 0.0
      %2373 = vmatprep.subr.mxu0 0.0
      %2374 = vmatpush1.msra.mxu0 0.0
      %2375 = vmatprep.subr.mxu0 0.0
      %2376 = vmatpush1.msra.mxu0 0.0
      %2377 = vmatprep.subr.mxu0 0.0
      %2378 = vmatpush1.msra.mxu0 0.0
      %2379 = vmatprep.subr.mxu0 0.0
      %2380 = vmatpush1.msra.mxu0 0.0
      %2381 = vmatprep.subr.mxu0 0.0
      %2382 = vmatpush1.msra.mxu0 0.0
      %2383 = vmatprep.subr.mxu0 0.0
      %2384 = vmatpush1.msra.mxu0 0.0
      %2385 = vmatprep.subr.mxu0 0.0
      %2386 = vmatpush1.msra.mxu0 0.0
      %2387 = vmatprep.subr.mxu0 0.0
      %2388 = vmatpush1.msra.mxu0 0.0
      %2389 = vmatprep.subr.mxu0 0.0
      %2390 = vmatpush1.msra.mxu0 0.0
      %2391 = vmatprep.subr.mxu0 0.0
      %2392 = vmatpush1.msra.mxu0 0.0
      %2393 = vmatprep.subr.mxu0 0.0
      %2394 = vmatpush1.msra.mxu0 0.0
      %2395 = vmatprep.subr.mxu0 0.0
      %2396 = vmatpush1.msra.mxu0 0.0
      %2397 = vmatprep.subr.mxu0 0.0
      %2398 = vmatpush1.msra.mxu0 0.0
      %2399 = vmatprep.subr.mxu0 0.0
      %2400 = vmatpush1.msra.mxu0 0.0
      %2401 = vmatprep.subr.mxu0 0.0
      %2402 = vmatpush1.msra.mxu0 0.0
      %2403 = vmatprep.subr.mxu0 0.0
      %2404 = vmatpush1.msra.mxu0 0.0
      %2405 = vmatprep.subr.mxu0 0.0
      %2406 = vmatpush1.msra.mxu0 0.0
      %2407 = vmatprep.subr.mxu0 0.0
      %2408 = vmatpush1.msra.mxu0 0.0
      %2409 = vmatprep.subr.mxu0 0.0
      %2410 = vmatpush1.msra.mxu0 0.0
      %2411 = vmatprep.subr.mxu0 0.0
      %2412 = vmatpush1.msra.mxu0 0.0
      %2413 = vmatprep.mubr.f32.mxu0 0.0
      %2414 = vmatmul.mubr.f32.gmra.mrb[0].mxu0 %v873
      %v2415 = vpop.f32.mrb[0].mxu0
      %v2416 = vadd.f32 0.0, %v2415
      %v2417 = vpop.f32.mrb[0].mxu0
      %2418 = vmatprep.mubr.f32.mxu0 0.0
      %2419 = vmatmul.mubr.f32.gmra.mrb[0].mxu0 %v876
      %v2420 = vpop.f32.mrb[0].mxu0
      %v2421 = vadd.f32 0.0, %v2420
      %v2422 = vpop.f32.mrb[0].mxu0
      %2423 = vdwg.mxu0
      %v2424 = vadd.f32 %v2347, %v2416
      %v2425 = vadd.f32 %v2348, %v2421
      %2426 = vrot.lane.b32.xlu0 %v690, 120
      %v2427 = vpop.permute.xlu0 %2426
      %v2428 = vsel %vm434, %v2427, 0
      %2430 = vmatprep.subr.mxu0 0.0
      %2431 = vmatpush1.msra.mxu0 %v2428
      %2432 = vmatprep.subr.mxu0 0.0
      %2433 = vmatpush1.msra.mxu0 0.0
      %2434 = vmatprep.subr.mxu0 0.0
      %2435 = vmatpush1.msra.mxu0 0.0
      %2436 = vmatprep.subr.mxu0 0.0
      %2437 = vmatpush1.msra.mxu0 0.0
      %2438 = vmatprep.subr.mxu0 0.0
      %2439 = vmatpush1.msra.mxu0 0.0
      %2440 = vmatprep.subr.mxu0 0.0
      %2441 = vmatpush1.msra.mxu0 0.0
      %2442 = vmatprep.subr.mxu0 0.0
      %2443 = vmatpush1.msra.mxu0 0.0
      %2444 = vmatprep.subr.mxu0 0.0
      %2445 = vmatpush1.msra.mxu0 0.0
      %2446 = vmatprep.subr.mxu0 0.0
      %2447 = vmatpush1.msra.mxu0 0.0
      %2448 = vmatprep.subr.mxu0 0.0
      %2449 = vmatpush1.msra.mxu0 0.0
      %2450 = vmatprep.subr.mxu0 0.0
      %2451 = vmatpush1.msra.mxu0 0.0
      %2452 = vmatprep.subr.mxu0 0.0
      %2453 = vmatpush1.msra.mxu0 0.0
      %2454 = vmatprep.subr.mxu0 0.0
      %2455 = vmatpush1.msra.mxu0 0.0
      %2456 = vmatprep.subr.mxu0 0.0
      %2457 = vmatpush1.msra.mxu0 0.0
      %2458 = vmatprep.subr.mxu0 0.0
      %2459 = vmatpush1.msra.mxu0 0.0
      %2460 = vmatprep.subr.mxu0 0.0
      %2461 = vmatpush1.msra.mxu0 0.0
      %2462 = vmatprep.subr.mxu0 0.0
      %2463 = vmatpush1.msra.mxu0 0.0
      %2464 = vmatprep.subr.mxu0 0.0
      %2465 = vmatpush1.msra.mxu0 0.0
      %2466 = vmatprep.subr.mxu0 0.0
      %2467 = vmatpush1.msra.mxu0 0.0
      %2468 = vmatprep.subr.mxu0 0.0
      %2469 = vmatpush1.msra.mxu0 0.0
      %2470 = vmatprep.subr.mxu0 0.0
      %2471 = vmatpush1.msra.mxu0 0.0
      %2472 = vmatprep.subr.mxu0 0.0
      %2473 = vmatpush1.msra.mxu0 0.0
      %2474 = vmatprep.subr.mxu0 0.0
      %2475 = vmatpush1.msra.mxu0 0.0
      %2476 = vmatprep.subr.mxu0 0.0
      %2477 = vmatpush1.msra.mxu0 0.0
      %2478 = vmatprep.subr.mxu0 0.0
      %2479 = vmatpush1.msra.mxu0 0.0
      %2480 = vmatprep.subr.mxu0 0.0
      %2481 = vmatpush1.msra.mxu0 0.0
      %2482 = vmatprep.subr.mxu0 0.0
      %2483 = vmatpush1.msra.mxu0 0.0
      %2484 = vmatprep.subr.mxu0 0.0
      %2485 = vmatpush1.msra.mxu0 0.0
      %2486 = vmatprep.subr.mxu0 0.0
      %2487 = vmatpush1.msra.mxu0 0.0
      %2488 = vmatprep.subr.mxu0 0.0
      %2489 = vmatpush1.msra.mxu0 0.0
      %2490 = vmatprep.subr.mxu0 0.0
      %2491 = vmatpush1.msra.mxu0 0.0
      %2492 = vmatprep.subr.mxu0 0.0
      %2493 = vmatpush1.msra.mxu0 0.0
      %2494 = vmatprep.mubr.f32.mxu0 0.0
      %2495 = vmatmul.mubr.f32.gmra.mrb[0].mxu0 %v963
      %v2496 = vpop.f32.mrb[0].mxu0
      %v2497 = vadd.f32 0.0, %v2496
      %v2498 = vpop.f32.mrb[0].mxu0
      %2499 = vmatprep.mubr.f32.mxu0 0.0
      %2500 = vmatmul.mubr.f32.gmra.mrb[0].mxu0 %v966
      %v2501 = vpop.f32.mrb[0].mxu0
      %v2502 = vadd.f32 0.0, %v2501
      %v2503 = vpop.f32.mrb[0].mxu0
      %2504 = vdwg.mxu0
      %v2505 = vadd.f32 %v2424, %v2497
      %v2506 = vadd.f32 %v2425, %v2502
      %2507 = vrot.lane.b32.xlu0 %v780, 120
      %v2508 = vpop.permute.xlu0 %2507
      %v2509 = vsel %vm434, %v2508, 0
      %2511 = vmatprep.subr.mxu0 0.0
      %2512 = vmatpush1.msra.mxu0 %v2509
      %2513 = vmatprep.subr.mxu0 0.0
      %2514 = vmatpush1.msra.mxu0 0.0
      %2515 = vmatprep.subr.mxu0 0.0
      %2516 = vmatpush1.msra.mxu0 0.0
      %2517 = vmatprep.subr.mxu0 0.0
      %2518 = vmatpush1.msra.mxu0 0.0
      %2519 = vmatprep.subr.mxu0 0.0
      %2520 = vmatpush1.msra.mxu0 0.0
      %2521 = vmatprep.subr.mxu0 0.0
      %2522 = vmatpush1.msra.mxu0 0.0
      %2523 = vmatprep.subr.mxu0 0.0
      %2524 = vmatpush1.msra.mxu0 0.0
      %2525 = vmatprep.subr.mxu0 0.0
      %2526 = vmatpush1.msra.mxu0 0.0
      %2527 = vmatprep.subr.mxu0 0.0
      %2528 = vmatpush1.msra.mxu0 0.0
      %2529 = vmatprep.subr.mxu0 0.0
      %2530 = vmatpush1.msra.mxu0 0.0
      %2531 = vmatprep.subr.mxu0 0.0
      %2532 = vmatpush1.msra.mxu0 0.0
      %2533 = vmatprep.subr.mxu0 0.0
      %2534 = vmatpush1.msra.mxu0 0.0
      %2535 = vmatprep.subr.mxu0 0.0
      %2536 = vmatpush1.msra.mxu0 0.0
      %2537 = vmatprep.subr.mxu0 0.0
      %2538 = vmatpush1.msra.mxu0 0.0
      %2539 = vmatprep.subr.mxu0 0.0
      %2540 = vmatpush1.msra.mxu0 0.0
      %2541 = vmatprep.subr.mxu0 0.0
      %2542 = vmatpush1.msra.mxu0 0.0
      %2543 = vmatprep.subr.mxu0 0.0
      %2544 = vmatpush1.msra.mxu0 0.0
      %2545 = vmatprep.subr.mxu0 0.0
      %2546 = vmatpush1.msra.mxu0 0.0
      %2547 = vmatprep.subr.mxu0 0.0
      %2548 = vmatpush1.msra.mxu0 0.0
      %2549 = vmatprep.subr.mxu0 0.0
      %2550 = vmatpush1.msra.mxu0 0.0
      %2551 = vmatprep.subr.mxu0 0.0
      %2552 = vmatpush1.msra.mxu0 0.0
      %2553 = vmatprep.subr.mxu0 0.0
      %2554 = vmatpush1.msra.mxu0 0.0
      %2555 = vmatprep.subr.mxu0 0.0
      %2556 = vmatpush1.msra.mxu0 0.0
      %2557 = vmatprep.subr.mxu0 0.0
      %2558 = vmatpush1.msra.mxu0 0.0
      %2559 = vmatprep.subr.mxu0 0.0
      %2560 = vmatpush1.msra.mxu0 0.0
      %2561 = vmatprep.subr.mxu0 0.0
      %2562 = vmatpush1.msra.mxu0 0.0
      %2563 = vmatprep.subr.mxu0 0.0
      %2564 = vmatpush1.msra.mxu0 0.0
      %2565 = vmatprep.subr.mxu0 0.0
      %2566 = vmatpush1.msra.mxu0 0.0
      %2567 = vmatprep.subr.mxu0 0.0
      %2568 = vmatpush1.msra.mxu0 0.0
      %2569 = vmatprep.subr.mxu0 0.0
      %2570 = vmatpush1.msra.mxu0 0.0
      %2571 = vmatprep.subr.mxu0 0.0
      %2572 = vmatpush1.msra.mxu0 0.0
      %2573 = vmatprep.subr.mxu0 0.0
      %2574 = vmatpush1.msra.mxu0 0.0
      %2575 = vmatprep.mubr.f32.mxu0 0.0
      %2576 = vmatmul.mubr.f32.gmra.mrb[0].mxu0 %v1053
      %v2577 = vpop.f32.mrb[0].mxu0
      %v2578 = vadd.f32 0.0, %v2577
      %v2579 = vpop.f32.mrb[0].mxu0
      %2580 = vmatprep.mubr.f32.mxu0 0.0
      %2581 = vmatmul.mubr.f32.gmra.mrb[0].mxu0 %v1056
      %v2582 = vpop.f32.mrb[0].mxu0
      %v2583 = vadd.f32 0.0, %v2582
      %v2584 = vpop.f32.mrb[0].mxu0
      %2585 = vdwg.mxu0
      %v2586 = vadd.f32 %v2505, %v2578
      %v2587 = vadd.f32 %v2506, %v2583
      %2588 = vrot.lane.b32.xlu0 %v690, 119
      %v2589 = vpop.permute.xlu0 %2588
      %v2590 = vsel %vm434, %v2589, 0
      %2592 = vmatprep.subr.mxu0 0.0
      %2593 = vmatpush1.msra.mxu0 %v2590
      %2594 = vmatprep.subr.mxu0 0.0
      %2595 = vmatpush1.msra.mxu0 0.0
      %2596 = vmatprep.subr.mxu0 0.0
      %2597 = vmatpush1.msra.mxu0 0.0
      %2598 = vmatprep.subr.mxu0 0.0
      %2599 = vmatpush1.msra.mxu0 0.0
      %2600 = vmatprep.subr.mxu0 0.0
      %2601 = vmatpush1.msra.mxu0 0.0
      %2602 = vmatprep.subr.mxu0 0.0
      %2603 = vmatpush1.msra.mxu0 0.0
      %2604 = vmatprep.subr.mxu0 0.0
      %2605 = vmatpush1.msra.mxu0 0.0
      %2606 = vmatprep.subr.mxu0 0.0
      %2607 = vmatpush1.msra.mxu0 0.0
      %2608 = vmatprep.subr.mxu0 0.0
      %2609 = vmatpush1.msra.mxu0 0.0
      %2610 = vmatprep.subr.mxu0 0.0
      %2611 = vmatpush1.msra.mxu0 0.0
      %2612 = vmatprep.subr.mxu0 0.0
      %2613 = vmatpush1.msra.mxu0 0.0
      %2614 = vmatprep.subr.mxu0 0.0
      %2615 = vmatpush1.msra.mxu0 0.0
      %2616 = vmatprep.subr.mxu0 0.0
      %2617 = vmatpush1.msra.mxu0 0.0
      %2618 = vmatprep.subr.mxu0 0.0
      %2619 = vmatpush1.msra.mxu0 0.0
      %2620 = vmatprep.subr.mxu0 0.0
      %2621 = vmatpush1.msra.mxu0 0.0
      %2622 = vmatprep.subr.mxu0 0.0
      %2623 = vmatpush1.msra.mxu0 0.0
      %2624 = vmatprep.subr.mxu0 0.0
      %2625 = vmatpush1.msra.mxu0 0.0
      %2626 = vmatprep.subr.mxu0 0.0
      %2627 = vmatpush1.msra.mxu0 0.0
      %2628 = vmatprep.subr.mxu0 0.0
      %2629 = vmatpush1.msra.mxu0 0.0
      %2630 = vmatprep.subr.mxu0 0.0
      %2631 = vmatpush1.msra.mxu0 0.0
      %2632 = vmatprep.subr.mxu0 0.0
      %2633 = vmatpush1.msra.mxu0 0.0
      %2634 = vmatprep.subr.mxu0 0.0
      %2635 = vmatpush1.msra.mxu0 0.0
      %2636 = vmatprep.subr.mxu0 0.0
      %2637 = vmatpush1.msra.mxu0 0.0
      %2638 = vmatprep.subr.mxu0 0.0
      %2639 = vmatpush1.msra.mxu0 0.0
      %2640 = vmatprep.subr.mxu0 0.0
      %2641 = vmatpush1.msra.mxu0 0.0
      %2642 = vmatprep.subr.mxu0 0.0
      %2643 = vmatpush1.msra.mxu0 0.0
      %2644 = vmatprep.subr.mxu0 0.0
      %2645 = vmatpush1.msra.mxu0 0.0
      %2646 = vmatprep.subr.mxu0 0.0
      %2647 = vmatpush1.msra.mxu0 0.0
      %2648 = vmatprep.subr.mxu0 0.0
      %2649 = vmatpush1.msra.mxu0 0.0
      %2650 = vmatprep.subr.mxu0 0.0
      %2651 = vmatpush1.msra.mxu0 0.0
      %2652 = vmatprep.subr.mxu0 0.0
      %2653 = vmatpush1.msra.mxu0 0.0
      %2654 = vmatprep.subr.mxu0 0.0
      %2655 = vmatpush1.msra.mxu0 0.0
      %2656 = vmatprep.mubr.f32.mxu0 0.0
      %2657 = vmatmul.mubr.f32.gmra.mrb[0].mxu0 %v1143
      %v2658 = vpop.f32.mrb[0].mxu0
      %v2659 = vadd.f32 0.0, %v2658
      %v2660 = vpop.f32.mrb[0].mxu0
      %2661 = vmatprep.mubr.f32.mxu0 0.0
      %2662 = vmatmul.mubr.f32.gmra.mrb[0].mxu0 %v1146
      %v2663 = vpop.f32.mrb[0].mxu0
      %v2664 = vadd.f32 0.0, %v2663
      %v2665 = vpop.f32.mrb[0].mxu0
      %2666 = vdwg.mxu0
      %v2667 = vadd.f32 %v2586, %v2659
      %v2668 = vadd.f32 %v2587, %v2664
      %v2669 = vadd.f32 %v2667, %v1232
      %v2670 = vadd.f32 %v2668, %v1237
      %vm2671 = vcmp.ge.f32.partialorder %v2669, 0.0
      %vm2672 = vcmp.ge.f32.partialorder %v2670, 0.0
      %v2673 = vmul.f32 %v1251, %v2669
      %v2674 = vmul.f32 %v1251, %v2670
      %v2675 = vsel %vm2671, %v2669, %v2673
      %v2676 = vsel %vm2672, %v2670, %v2674
      %v2677 = vmax.f32 %v1966, %v2675
      %v2678 = vmax.f32 %v1967, %v2676
      %2679 = vmatprep.subr.mxu0 0.0
      %2680 = vmatpush1.msra.mxu0 %v878
      %2681 = vmatprep.subr.mxu0 0.0
      %2682 = vmatpush1.msra.mxu0 0.0
      %2683 = vmatprep.subr.mxu0 0.0
      %2684 = vmatpush1.msra.mxu0 0.0
      %2685 = vmatprep.subr.mxu0 0.0
      %2686 = vmatpush1.msra.mxu0 0.0
      %2687 = vmatprep.subr.mxu0 0.0
      %2688 = vmatpush1.msra.mxu0 0.0
      %2689 = vmatprep.subr.mxu0 0.0
      %2690 = vmatpush1.msra.mxu0 0.0
      %2691 = vmatprep.subr.mxu0 0.0
      %2692 = vmatpush1.msra.mxu0 0.0
      %2693 = vmatprep.subr.mxu0 0.0
      %2694 = vmatpush1.msra.mxu0 0.0
      %2695 = vmatprep.subr.mxu0 0.0
      %2696 = vmatpush1.msra.mxu0 0.0
      %2697 = vmatprep.subr.mxu0 0.0
      %2698 = vmatpush1.msra.mxu0 0.0
      %2699 = vmatprep.subr.mxu0 0.0
      %2700 = vmatpush1.msra.mxu0 0.0
      %2701 = vmatprep.subr.mxu0 0.0
      %2702 = vmatpush1.msra.mxu0 0.0
      %2703 = vmatprep.subr.mxu0 0.0
      %2704 = vmatpush1.msra.mxu0 0.0
      %2705 = vmatprep.subr.mxu0 0.0
      %2706 = vmatpush1.msra.mxu0 0.0
      %2707 = vmatprep.subr.mxu0 0.0
      %2708 = vmatpush1.msra.mxu0 0.0
      %2709 = vmatprep.subr.mxu0 0.0
      %2710 = vmatpush1.msra.mxu0 0.0
      %2711 = vmatprep.subr.mxu0 0.0
      %2712 = vmatpush1.msra.mxu0 0.0
      %2713 = vmatprep.subr.mxu0 0.0
      %2714 = vmatpush1.msra.mxu0 0.0
      %2715 = vmatprep.subr.mxu0 0.0
      %2716 = vmatpush1.msra.mxu0 0.0
      %2717 = vmatprep.subr.mxu0 0.0
      %2718 = vmatpush1.msra.mxu0 0.0
      %2719 = vmatprep.subr.mxu0 0.0
      %2720 = vmatpush1.msra.mxu0 0.0
      %2721 = vmatprep.subr.mxu0 0.0
      %2722 = vmatpush1.msra.mxu0 0.0
      %2723 = vmatprep.subr.mxu0 0.0
      %2724 = vmatpush1.msra.mxu0 0.0
      %2725 = vmatprep.subr.mxu0 0.0
      %2726 = vmatpush1.msra.mxu0 0.0
      %2727 = vmatprep.subr.mxu0 0.0
      %2728 = vmatpush1.msra.mxu0 0.0
      %2729 = vmatprep.subr.mxu0 0.0
      %2730 = vmatpush1.msra.mxu0 0.0
      %2731 = vmatprep.subr.mxu0 0.0
      %2732 = vmatpush1.msra.mxu0 0.0
      %2733 = vmatprep.subr.mxu0 0.0
      %2734 = vmatpush1.msra.mxu0 0.0
      %2735 = vmatprep.subr.mxu0 0.0
      %2736 = vmatpush1.msra.mxu0 0.0
      %2737 = vmatprep.subr.mxu0 0.0
      %2738 = vmatpush1.msra.mxu0 0.0
      %2739 = vmatprep.subr.mxu0 0.0
      %2740 = vmatpush1.msra.mxu0 0.0
      %2741 = vmatprep.subr.mxu0 0.0
      %2742 = vmatpush1.msra.mxu0 0.0
      %2743 = vmatprep.mubr.f32.mxu0 0.0
      %2744 = vmatmul.mubr.f32.gmra.mrb[0].mxu0 %v429
      %v2745 = vpop.f32.mrb[0].mxu0
      %v2746 = vadd.f32 0.0, %v2745
      %v2747 = vpop.f32.mrb[0].mxu0
      %2748 = vmatprep.mubr.f32.mxu0 0.0
      %2749 = vmatmul.mubr.f32.gmra.mrb[0].mxu0 %v432
      %v2750 = vpop.f32.mrb[0].mxu0
      %v2751 = vadd.f32 0.0, %v2750
      %v2752 = vpop.f32.mrb[0].mxu0
      %2753 = vdwg.mxu0
      %2754 = vmatprep.subr.mxu0 0.0
      %2755 = vmatpush1.msra.mxu0 %v788
      %2756 = vmatprep.subr.mxu0 0.0
      %2757 = vmatpush1.msra.mxu0 0.0
      %2758 = vmatprep.subr.mxu0 0.0
      %2759 = vmatpush1.msra.mxu0 0.0
      %2760 = vmatprep.subr.mxu0 0.0
      %2761 = vmatpush1.msra.mxu0 0.0
      %2762 = vmatprep.subr.mxu0 0.0
      %2763 = vmatpush1.msra.mxu0 0.0
      %2764 = vmatprep.subr.mxu0 0.0
      %2765 = vmatpush1.msra.mxu0 0.0
      %2766 = vmatprep.subr.mxu0 0.0
      %2767 = vmatpush1.msra.mxu0 0.0
      %2768 = vmatprep.subr.mxu0 0.0
      %2769 = vmatpush1.msra.mxu0 0.0
      %2770 = vmatprep.subr.mxu0 0.0
      %2771 = vmatpush1.msra.mxu0 0.0
      %2772 = vmatprep.subr.mxu0 0.0
      %2773 = vmatpush1.msra.mxu0 0.0
      %2774 = vmatprep.subr.mxu0 0.0
      %2775 = vmatpush1.msra.mxu0 0.0
      %2776 = vmatprep.subr.mxu0 0.0
      %2777 = vmatpush1.msra.mxu0 0.0
      %2778 = vmatprep.subr.mxu0 0.0
      %2779 = vmatpush1.msra.mxu0 0.0
      %2780 = vmatprep.subr.mxu0 0.0
      %2781 = vmatpush1.msra.mxu0 0.0
      %2782 = vmatprep.subr.mxu0 0.0
      %2783 = vmatpush1.msra.mxu0 0.0
      %2784 = vmatprep.subr.mxu0 0.0
      %2785 = vmatpush1.msra.mxu0 0.0
      %2786 = vmatprep.subr.mxu0 0.0
      %2787 = vmatpush1.msra.mxu0 0.0
      %2788 = vmatprep.subr.mxu0 0.0
      %2789 = vmatpush1.msra.mxu0 0.0
      %2790 = vmatprep.subr.mxu0 0.0
      %2791 = vmatpush1.msra.mxu0 0.0
      %2792 = vmatprep.subr.mxu0 0.0
      %2793 = vmatpush1.msra.mxu0 0.0
      %2794 = vmatprep.subr.mxu0 0.0
      %2795 = vmatpush1.msra.mxu0 0.0
      %2796 = vmatprep.subr.mxu0 0.0
      %2797 = vmatpush1.msra.mxu0 0.0
      %2798 = vmatprep.subr.mxu0 0.0
      %2799 = vmatpush1.msra.mxu0 0.0
      %2800 = vmatprep.subr.mxu0 0.0
      %2801 = vmatpush1.msra.mxu0 0.0
      %2802 = vmatprep.subr.mxu0 0.0
      %2803 = vmatpush1.msra.mxu0 0.0
      %2804 = vmatprep.subr.mxu0 0.0
      %2805 = vmatpush1.msra.mxu0 0.0
      %2806 = vmatprep.subr.mxu0 0.0
      %2807 = vmatpush1.msra.mxu0 0.0
      %2808 = vmatprep.subr.mxu0 0.0
      %2809 = vmatpush1.msra.mxu0 0.0
      %2810 = vmatprep.subr.mxu0 0.0
      %2811 = vmatpush1.msra.mxu0 0.0
      %2812 = vmatprep.subr.mxu0 0.0
      %2813 = vmatpush1.msra.mxu0 0.0
      %2814 = vmatprep.subr.mxu0 0.0
      %2815 = vmatpush1.msra.mxu0 0.0
      %2816 = vmatprep.subr.mxu0 0.0
      %2817 = vmatpush1.msra.mxu0 0.0
      %2818 = vmatprep.mubr.f32.mxu0 0.0
      %2819 = vmatmul.mubr.f32.gmra.mrb[0].mxu0 %v514
      %v2820 = vpop.f32.mrb[0].mxu0
      %v2821 = vadd.f32 %v2746, %v2820
      %v2822 = vpop.f32.mrb[0].mxu0
      %2823 = vmatprep.mubr.f32.mxu0 0.0
      %2824 = vmatmul.mubr.f32.gmra.mrb[0].mxu0 %v517
      %v2825 = vpop.f32.mrb[0].mxu0
      %v2826 = vadd.f32 %v2751, %v2825
      %v2827 = vpop.f32.mrb[0].mxu0
      %2828 = vdwg.mxu0
      %2829 = vmatprep.subr.mxu0 0.0
      %2830 = vmatpush1.msra.mxu0 %v1644
      %2831 = vmatprep.subr.mxu0 0.0
      %2832 = vmatpush1.msra.mxu0 0.0
      %2833 = vmatprep.subr.mxu0 0.0
      %2834 = vmatpush1.msra.mxu0 0.0
      %2835 = vmatprep.subr.mxu0 0.0
      %2836 = vmatpush1.msra.mxu0 0.0
      %2837 = vmatprep.subr.mxu0 0.0
      %2838 = vmatpush1.msra.mxu0 0.0
      %2839 = vmatprep.subr.mxu0 0.0
      %2840 = vmatpush1.msra.mxu0 0.0
      %2841 = vmatprep.subr.mxu0 0.0
      %2842 = vmatpush1.msra.mxu0 0.0
      %2843 = vmatprep.subr.mxu0 0.0
      %2844 = vmatpush1.msra.mxu0 0.0
      %2845 = vmatprep.subr.mxu0 0.0
      %2846 = vmatpush1.msra.mxu0 0.0
      %2847 = vmatprep.subr.mxu0 0.0
      %2848 = vmatpush1.msra.mxu0 0.0
      %2849 = vmatprep.subr.mxu0 0.0
      %2850 = vmatpush1.msra.mxu0 0.0
      %2851 = vmatprep.subr.mxu0 0.0
      %2852 = vmatpush1.msra.mxu0 0.0
      %2853 = vmatprep.subr.mxu0 0.0
      %2854 = vmatpush1.msra.mxu0 0.0
      %2855 = vmatprep.subr.mxu0 0.0
      %2856 = vmatpush1.msra.mxu0 0.0
      %2857 = vmatprep.subr.mxu0 0.0
      %2858 = vmatpush1.msra.mxu0 0.0
      %2859 = vmatprep.subr.mxu0 0.0
      %2860 = vmatpush1.msra.mxu0 0.0
      %2861 = vmatprep.subr.mxu0 0.0
      %2862 = vmatpush1.msra.mxu0 0.0
      %2863 = vmatprep.subr.mxu0 0.0
      %2864 = vmatpush1.msra.mxu0 0.0
      %2865 = vmatprep.subr.mxu0 0.0
      %2866 = vmatpush1.msra.mxu0 0.0
      %2867 = vmatprep.subr.mxu0 0.0
      %2868 = vmatpush1.msra.mxu0 0.0
      %2869 = vmatprep.subr.mxu0 0.0
      %2870 = vmatpush1.msra.mxu0 0.0
      %2871 = vmatprep.subr.mxu0 0.0
      %2872 = vmatpush1.msra.mxu0 0.0
      %2873 = vmatprep.subr.mxu0 0.0
      %2874 = vmatpush1.msra.mxu0 0.0
      %2875 = vmatprep.subr.mxu0 0.0
      %2876 = vmatpush1.msra.mxu0 0.0
      %2877 = vmatprep.subr.mxu0 0.0
      %2878 = vmatpush1.msra.mxu0 0.0
      %2879 = vmatprep.subr.mxu0 0.0
      %2880 = vmatpush1.msra.mxu0 0.0
      %2881 = vmatprep.subr.mxu0 0.0
      %2882 = vmatpush1.msra.mxu0 0.0
      %2883 = vmatprep.subr.mxu0 0.0
      %2884 = vmatpush1.msra.mxu0 0.0
      %2885 = vmatprep.subr.mxu0 0.0
      %2886 = vmatpush1.msra.mxu0 0.0
      %2887 = vmatprep.subr.mxu0 0.0
      %2888 = vmatpush1.msra.mxu0 0.0
      %2889 = vmatprep.subr.mxu0 0.0
      %2890 = vmatpush1.msra.mxu0 0.0
      %2891 = vmatprep.subr.mxu0 0.0
      %2892 = vmatpush1.msra.mxu0 0.0
      %2893 = vmatprep.mubr.f32.mxu0 0.0
      %2894 = vmatmul.mubr.f32.gmra.mrb[0].mxu0 %v603
      %v2895 = vpop.f32.mrb[0].mxu0
      %v2896 = vadd.f32 0.0, %v2895
      %v2897 = vpop.f32.mrb[0].mxu0
      %2898 = vmatprep.mubr.f32.mxu0 0.0
      %2899 = vmatmul.mubr.f32.gmra.mrb[0].mxu0 %v606
      %v2900 = vpop.f32.mrb[0].mxu0
      %v2901 = vadd.f32 0.0, %v2900
      %v2902 = vpop.f32.mrb[0].mxu0
      %2903 = vdwg.mxu0
      %v2904 = vadd.f32 %v2821, %v2896
      %v2905 = vadd.f32 %v2826, %v2901
      %2906 = vmatprep.subr.mxu0 0.0
      %2907 = vmatpush1.msra.mxu0 %v1058
      %2908 = vmatprep.subr.mxu0 0.0
      %2909 = vmatpush1.msra.mxu0 0.0
      %2910 = vmatprep.subr.mxu0 0.0
      %2911 = vmatpush1.msra.mxu0 0.0
      %2912 = vmatprep.subr.mxu0 0.0
      %2913 = vmatpush1.msra.mxu0 0.0
      %2914 = vmatprep.subr.mxu0 0.0
      %2915 = vmatpush1.msra.mxu0 0.0
      %2916 = vmatprep.subr.mxu0 0.0
      %2917 = vmatpush1.msra.mxu0 0.0
      %2918 = vmatprep.subr.mxu0 0.0
      %2919 = vmatpush1.msra.mxu0 0.0
      %2920 = vmatprep.subr.mxu0 0.0
      %2921 = vmatpush1.msra.mxu0 0.0
      %2922 = vmatprep.subr.mxu0 0.0
      %2923 = vmatpush1.msra.mxu0 0.0
      %2924 = vmatprep.subr.mxu0 0.0
      %2925 = vmatpush1.msra.mxu0 0.0
      %2926 = vmatprep.subr.mxu0 0.0
      %2927 = vmatpush1.msra.mxu0 0.0
      %2928 = vmatprep.subr.mxu0 0.0
      %2929 = vmatpush1.msra.mxu0 0.0
      %2930 = vmatprep.subr.mxu0 0.0
      %2931 = vmatpush1.msra.mxu0 0.0
      %2932 = vmatprep.subr.mxu0 0.0
      %2933 = vmatpush1.msra.mxu0 0.0
      %2934 = vmatprep.subr.mxu0 0.0
      %2935 = vmatpush1.msra.mxu0 0.0
      %2936 = vmatprep.subr.mxu0 0.0
      %2937 = vmatpush1.msra.mxu0 0.0
      %2938 = vmatprep.subr.mxu0 0.0
      %2939 = vmatpush1.msra.mxu0 0.0
      %2940 = vmatprep.subr.mxu0 0.0
      %2941 = vmatpush1.msra.mxu0 0.0
      %2942 = vmatprep.subr.mxu0 0.0
      %2943 = vmatpush1.msra.mxu0 0.0
      %2944 = vmatprep.subr.mxu0 0.0
      %2945 = vmatpush1.msra.mxu0 0.0
      %2946 = vmatprep.subr.mxu0 0.0
      %2947 = vmatpush1.msra.mxu0 0.0
      %2948 = vmatprep.subr.mxu0 0.0
      %2949 = vmatpush1.msra.mxu0 0.0
      %2950 = vmatprep.subr.mxu0 0.0
      %2951 = vmatpush1.msra.mxu0 0.0
      %2952 = vmatprep.subr.mxu0 0.0
      %2953 = vmatpush1.msra.mxu0 0.0
      %2954 = vmatprep.subr.mxu0 0.0
      %2955 = vmatpush1.msra.mxu0 0.0
      %2956 = vmatprep.subr.mxu0 0.0
      %2957 = vmatpush1.msra.mxu0 0.0
      %2958 = vmatprep.subr.mxu0 0.0
      %2959 = vmatpush1.msra.mxu0 0.0
      %2960 = vmatprep.subr.mxu0 0.0
      %2961 = vmatpush1.msra.mxu0 0.0
      %2962 = vmatprep.subr.mxu0 0.0
      %2963 = vmatpush1.msra.mxu0 0.0
      %2964 = vmatprep.subr.mxu0 0.0
      %2965 = vmatpush1.msra.mxu0 0.0
      %2966 = vmatprep.subr.mxu0 0.0
      %2967 = vmatpush1.msra.mxu0 0.0
      %2968 = vmatprep.subr.mxu0 0.0
      %2969 = vmatpush1.msra.mxu0 0.0
      %2970 = vmatprep.mubr.f32.mxu0 0.0
      %2971 = vmatmul.mubr.f32.gmra.mrb[0].mxu0 %v692
      %v2972 = vpop.f32.mrb[0].mxu0
      %v2973 = vadd.f32 0.0, %v2972
      %v2974 = vpop.f32.mrb[0].mxu0
      %2975 = vmatprep.mubr.f32.mxu0 0.0
      %2976 = vmatmul.mubr.f32.gmra.mrb[0].mxu0 %v695
      %v2977 = vpop.f32.mrb[0].mxu0
      %v2978 = vadd.f32 0.0, %v2977
      %v2979 = vpop.f32.mrb[0].mxu0
      %2980 = vdwg.mxu0
      %v2981 = vadd.f32 %v2904, %v2973
      %v2982 = vadd.f32 %v2905, %v2978
      %2983 = vmatprep.subr.mxu0 0.0
      %2984 = vmatpush1.msra.mxu0 %v1148
      %2985 = vmatprep.subr.mxu0 0.0
      %2986 = vmatpush1.msra.mxu0 0.0
      %2987 = vmatprep.subr.mxu0 0.0
      %2988 = vmatpush1.msra.mxu0 0.0
      %2989 = vmatprep.subr.mxu0 0.0
      %2990 = vmatpush1.msra.mxu0 0.0
      %2991 = vmatprep.subr.mxu0 0.0
      %2992 = vmatpush1.msra.mxu0 0.0
      %2993 = vmatprep.subr.mxu0 0.0
      %2994 = vmatpush1.msra.mxu0 0.0
      %2995 = vmatprep.subr.mxu0 0.0
      %2996 = vmatpush1.msra.mxu0 0.0
      %2997 = vmatprep.subr.mxu0 0.0
      %2998 = vmatpush1.msra.mxu0 0.0
      %2999 = vmatprep.subr.mxu0 0.0
      %3000 = vmatpush1.msra.mxu0 0.0
      %3001 = vmatprep.subr.mxu0 0.0
      %3002 = vmatpush1.msra.mxu0 0.0
      %3003 = vmatprep.subr.mxu0 0.0
      %3004 = vmatpush1.msra.mxu0 0.0
      %3005 = vmatprep.subr.mxu0 0.0
      %3006 = vmatpush1.msra.mxu0 0.0
      %3007 = vmatprep.subr.mxu0 0.0
      %3008 = vmatpush1.msra.mxu0 0.0
      %3009 = vmatprep.subr.mxu0 0.0
      %3010 = vmatpush1.msra.mxu0 0.0
      %3011 = vmatprep.subr.mxu0 0.0
      %3012 = vmatpush1.msra.mxu0 0.0
      %3013 = vmatprep.subr.mxu0 0.0
      %3014 = vmatpush1.msra.mxu0 0.0
      %3015 = vmatprep.subr.mxu0 0.0
      %3016 = vmatpush1.msra.mxu0 0.0
      %3017 = vmatprep.subr.mxu0 0.0
      %3018 = vmatpush1.msra.mxu0 0.0
      %3019 = vmatprep.subr.mxu0 0.0
      %3020 = vmatpush1.msra.mxu0 0.0
      %3021 = vmatprep.subr.mxu0 0.0
      %3022 = vmatpush1.msra.mxu0 0.0
      %3023 = vmatprep.subr.mxu0 0.0
      %3024 = vmatpush1.msra.mxu0 0.0
      %3025 = vmatprep.subr.mxu0 0.0
      %3026 = vmatpush1.msra.mxu0 0.0
      %3027 = vmatprep.subr.mxu0 0.0
      %3028 = vmatpush1.msra.mxu0 0.0
      %3029 = vmatprep.subr.mxu0 0.0
      %3030 = vmatpush1.msra.mxu0 0.0
      %3031 = vmatprep.subr.mxu0 0.0
      %3032 = vmatpush1.msra.mxu0 0.0
      %3033 = vmatprep.subr.mxu0 0.0
      %3034 = vmatpush1.msra.mxu0 0.0
      %3035 = vmatprep.subr.mxu0 0.0
      %3036 = vmatpush1.msra.mxu0 0.0
      %3037 = vmatprep.subr.mxu0 0.0
      %3038 = vmatpush1.msra.mxu0 0.0
      %3039 = vmatprep.subr.mxu0 0.0
      %3040 = vmatpush1.msra.mxu0 0.0
      %3041 = vmatprep.subr.mxu0 0.0
      %3042 = vmatpush1.msra.mxu0 0.0
      %3043 = vmatprep.subr.mxu0 0.0
      %3044 = vmatpush1.msra.mxu0 0.0
      %3045 = vmatprep.subr.mxu0 0.0
      %3046 = vmatpush1.msra.mxu0 0.0
      %3047 = vmatprep.mubr.f32.mxu0 0.0
      %3048 = vmatmul.mubr.f32.gmra.mrb[0].mxu0 %v782
      %v3049 = vpop.f32.mrb[0].mxu0
      %v3050 = vadd.f32 0.0, %v3049
      %v3051 = vpop.f32.mrb[0].mxu0
      %3052 = vmatprep.mubr.f32.mxu0 0.0
      %3053 = vmatmul.mubr.f32.gmra.mrb[0].mxu0 %v785
      %v3054 = vpop.f32.mrb[0].mxu0
      %v3055 = vadd.f32 0.0, %v3054
      %v3056 = vpop.f32.mrb[0].mxu0
      %3057 = vdwg.mxu0
      %v3058 = vadd.f32 %v2981, %v3050
      %v3059 = vadd.f32 %v2982, %v3055
      %3060 = vmatprep.subr.mxu0 0.0
      %3061 = vmatpush1.msra.mxu0 %v1879
      %3062 = vmatprep.subr.mxu0 0.0
      %3063 = vmatpush1.msra.mxu0 0.0
      %3064 = vmatprep.subr.mxu0 0.0
      %3065 = vmatpush1.msra.mxu0 0.0
      %3066 = vmatprep.subr.mxu0 0.0
      %3067 = vmatpush1.msra.mxu0 0.0
      %3068 = vmatprep.subr.mxu0 0.0
      %3069 = vmatpush1.msra.mxu0 0.0
      %3070 = vmatprep.subr.mxu0 0.0
      %3071 = vmatpush1.msra.mxu0 0.0
      %3072 = vmatprep.subr.mxu0 0.0
      %3073 = vmatpush1.msra.mxu0 0.0
      %3074 = vmatprep.subr.mxu0 0.0
      %3075 = vmatpush1.msra.mxu0 0.0
      %3076 = vmatprep.subr.mxu0 0.0
      %3077 = vmatpush1.msra.mxu0 0.0
      %3078 = vmatprep.subr.mxu0 0.0
      %3079 = vmatpush1.msra.mxu0 0.0
      %3080 = vmatprep.subr.mxu0 0.0
      %3081 = vmatpush1.msra.mxu0 0.0
      %3082 = vmatprep.subr.mxu0 0.0
      %3083 = vmatpush1.msra.mxu0 0.0
      %3084 = vmatprep.subr.mxu0 0.0
      %3085 = vmatpush1.msra.mxu0 0.0
      %3086 = vmatprep.subr.mxu0 0.0
      %3087 = vmatpush1.msra.mxu0 0.0
      %3088 = vmatprep.subr.mxu0 0.0
      %3089 = vmatpush1.msra.mxu0 0.0
      %3090 = vmatprep.subr.mxu0 0.0
      %3091 = vmatpush1.msra.mxu0 0.0
      %3092 = vmatprep.subr.mxu0 0.0
      %3093 = vmatpush1.msra.mxu0 0.0
      %3094 = vmatprep.subr.mxu0 0.0
      %3095 = vmatpush1.msra.mxu0 0.0
      %3096 = vmatprep.subr.mxu0 0.0
      %3097 = vmatpush1.msra.mxu0 0.0
      %3098 = vmatprep.subr.mxu0 0.0
      %3099 = vmatpush1.msra.mxu0 0.0
      %3100 = vmatprep.subr.mxu0 0.0
      %3101 = vmatpush1.msra.mxu0 0.0
      %3102 = vmatprep.subr.mxu0 0.0
      %3103 = vmatpush1.msra.mxu0 0.0
      %3104 = vmatprep.subr.mxu0 0.0
      %3105 = vmatpush1.msra.mxu0 0.0
      %3106 = vmatprep.subr.mxu0 0.0
      %3107 = vmatpush1.msra.mxu0 0.0
      %3108 = vmatprep.subr.mxu0 0.0
      %3109 = vmatpush1.msra.mxu0 0.0
      %3110 = vmatprep.subr.mxu0 0.0
      %3111 = vmatpush1.msra.mxu0 0.0
      %3112 = vmatprep.subr.mxu0 0.0
      %3113 = vmatpush1.msra.mxu0 0.0
      %3114 = vmatprep.subr.mxu0 0.0
      %3115 = vmatpush1.msra.mxu0 0.0
      %3116 = vmatprep.subr.mxu0 0.0
      %3117 = vmatpush1.msra.mxu0 0.0
      %3118 = vmatprep.subr.mxu0 0.0
      %3119 = vmatpush1.msra.mxu0 0.0
      %3120 = vmatprep.subr.mxu0 0.0
      %3121 = vmatpush1.msra.mxu0 0.0
      %3122 = vmatprep.subr.mxu0 0.0
      %3123 = vmatpush1.msra.mxu0 0.0
      %3124 = vmatprep.mubr.f32.mxu0 0.0
      %3125 = vmatmul.mubr.f32.gmra.mrb[0].mxu0 %v873
      %v3126 = vpop.f32.mrb[0].mxu0
      %v3127 = vadd.f32 0.0, %v3126
      %v3128 = vpop.f32.mrb[0].mxu0
      %3129 = vmatprep.mubr.f32.mxu0 0.0
      %3130 = vmatmul.mubr.f32.gmra.mrb[0].mxu0 %v876
      %v3131 = vpop.f32.mrb[0].mxu0
      %v3132 = vadd.f32 0.0, %v3131
      %v3133 = vpop.f32.mrb[0].mxu0
      %3134 = vdwg.mxu0
      %v3135 = vadd.f32 %v3058, %v3127
      %v3136 = vadd.f32 %v3059, %v3132
      %3137 = vmatprep.subr.mxu0 0.0
      %3138 = vmatpush1.msra.mxu0 %v2509
      %3139 = vmatprep.subr.mxu0 0.0
      %3140 = vmatpush1.msra.mxu0 0.0
      %3141 = vmatprep.subr.mxu0 0.0
      %3142 = vmatpush1.msra.mxu0 0.0
      %3143 = vmatprep.subr.mxu0 0.0
      %3144 = vmatpush1.msra.mxu0 0.0
      %3145 = vmatprep.subr.mxu0 0.0
      %3146 = vmatpush1.msra.mxu0 0.0
      %3147 = vmatprep.subr.mxu0 0.0
      %3148 = vmatpush1.msra.mxu0 0.0
      %3149 = vmatprep.subr.mxu0 0.0
      %3150 = vmatpush1.msra.mxu0 0.0
      %3151 = vmatprep.subr.mxu0 0.0
      %3152 = vmatpush1.msra.mxu0 0.0
      %3153 = vmatprep.subr.mxu0 0.0
      %3154 = vmatpush1.msra.mxu0 0.0
      %3155 = vmatprep.subr.mxu0 0.0
      %3156 = vmatpush1.msra.mxu0 0.0
      %3157 = vmatprep.subr.mxu0 0.0
      %3158 = vmatpush1.msra.mxu0 0.0
      %3159 = vmatprep.subr.mxu0 0.0
      %3160 = vmatpush1.msra.mxu0 0.0
      %3161 = vmatprep.subr.mxu0 0.0
      %3162 = vmatpush1.msra.mxu0 0.0
      %3163 = vmatprep.subr.mxu0 0.0
      %3164 = vmatpush1.msra.mxu0 0.0
      %3165 = vmatprep.subr.mxu0 0.0
      %3166 = vmatpush1.msra.mxu0 0.0
      %3167 = vmatprep.subr.mxu0 0.0
      %3168 = vmatpush1.msra.mxu0 0.0
      %3169 = vmatprep.subr.mxu0 0.0
      %3170 = vmatpush1.msra.mxu0 0.0
      %3171 = vmatprep.subr.mxu0 0.0
      %3172 = vmatpush1.msra.mxu0 0.0
      %3173 = vmatprep.subr.mxu0 0.0
      %3174 = vmatpush1.msra.mxu0 0.0
      %3175 = vmatprep.subr.mxu0 0.0
      %3176 = vmatpush1.msra.mxu0 0.0
      %3177 = vmatprep.subr.mxu0 0.0
      %3178 = vmatpush1.msra.mxu0 0.0
      %3179 = vmatprep.subr.mxu0 0.0
      %3180 = vmatpush1.msra.mxu0 0.0
      %3181 = vmatprep.subr.mxu0 0.0
      %3182 = vmatpush1.msra.mxu0 0.0
      %3183 = vmatprep.subr.mxu0 0.0
      %3184 = vmatpush1.msra.mxu0 0.0
      %3185 = vmatprep.subr.mxu0 0.0
      %3186 = vmatpush1.msra.mxu0 0.0
      %3187 = vmatprep.subr.mxu0 0.0
      %3188 = vmatpush1.msra.mxu0 0.0
      %3189 = vmatprep.subr.mxu0 0.0
      %3190 = vmatpush1.msra.mxu0 0.0
      %3191 = vmatprep.subr.mxu0 0.0
      %3192 = vmatpush1.msra.mxu0 0.0
      %3193 = vmatprep.subr.mxu0 0.0
      %3194 = vmatpush1.msra.mxu0 0.0
      %3195 = vmatprep.subr.mxu0 0.0
      %3196 = vmatpush1.msra.mxu0 0.0
      %3197 = vmatprep.subr.mxu0 0.0
      %3198 = vmatpush1.msra.mxu0 0.0
      %3199 = vmatprep.subr.mxu0 0.0
      %3200 = vmatpush1.msra.mxu0 0.0
      %3201 = vmatprep.mubr.f32.mxu0 0.0
      %3202 = vmatmul.mubr.f32.gmra.mrb[0].mxu0 %v963
      %v3203 = vpop.f32.mrb[0].mxu0
      %v3204 = vadd.f32 0.0, %v3203
      %v3205 = vpop.f32.mrb[0].mxu0
      %3206 = vmatprep.mubr.f32.mxu0 0.0
      %3207 = vmatmul.mubr.f32.gmra.mrb[0].mxu0 %v966
      %v3208 = vpop.f32.mrb[0].mxu0
      %v3209 = vadd.f32 0.0, %v3208
      %v3210 = vpop.f32.mrb[0].mxu0
      %3211 = vdwg.mxu0
      %v3212 = vadd.f32 %v3135, %v3204
      %v3213 = vadd.f32 %v3136, %v3209
      %3214 = vmatprep.subr.mxu0 0.0
      %3215 = vmatpush1.msra.mxu0 %v2590
      %3216 = vmatprep.subr.mxu0 0.0
      %3217 = vmatpush1.msra.mxu0 0.0
      %3218 = vmatprep.subr.mxu0 0.0
      %3219 = vmatpush1.msra.mxu0 0.0
      %3220 = vmatprep.subr.mxu0 0.0
      %3221 = vmatpush1.msra.mxu0 0.0
      %3222 = vmatprep.subr.mxu0 0.0
      %3223 = vmatpush1.msra.mxu0 0.0
      %3224 = vmatprep.subr.mxu0 0.0
      %3225 = vmatpush1.msra.mxu0 0.0
      %3226 = vmatprep.subr.mxu0 0.0
      %3227 = vmatpush1.msra.mxu0 0.0
      %3228 = vmatprep.subr.mxu0 0.0
      %3229 = vmatpush1.msra.mxu0 0.0
      %3230 = vmatprep.subr.mxu0 0.0
      %3231 = vmatpush1.msra.mxu0 0.0
      %3232 = vmatprep.subr.mxu0 0.0
      %3233 = vmatpush1.msra.mxu0 0.0
      %3234 = vmatprep.subr.mxu0 0.0
      %3235 = vmatpush1.msra.mxu0 0.0
      %3236 = vmatprep.subr.mxu0 0.0
      %3237 = vmatpush1.msra.mxu0 0.0
      %3238 = vmatprep.subr.mxu0 0.0
      %3239 = vmatpush1.msra.mxu0 0.0
      %3240 = vmatprep.subr.mxu0 0.0
      %3241 = vmatpush1.msra.mxu0 0.0
      %3242 = vmatprep.subr.mxu0 0.0
      %3243 = vmatpush1.msra.mxu0 0.0
      %3244 = vmatprep.subr.mxu0 0.0
      %3245 = vmatpush1.msra.mxu0 0.0
      %3246 = vmatprep.subr.mxu0 0.0
      %3247 = vmatpush1.msra.mxu0 0.0
      %3248 = vmatprep.subr.mxu0 0.0
      %3249 = vmatpush1.msra.mxu0 0.0
      %3250 = vmatprep.subr.mxu0 0.0
      %3251 = vmatpush1.msra.mxu0 0.0
      %3252 = vmatprep.subr.mxu0 0.0
      %3253 = vmatpush1.msra.mxu0 0.0
      %3254 = vmatprep.subr.mxu0 0.0
      %3255 = vmatpush1.msra.mxu0 0.0
      %3256 = vmatprep.subr.mxu0 0.0
      %3257 = vmatpush1.msra.mxu0 0.0
      %3258 = vmatprep.subr.mxu0 0.0
      %3259 = vmatpush1.msra.mxu0 0.0
      %3260 = vmatprep.subr.mxu0 0.0
      %3261 = vmatpush1.msra.mxu0 0.0
      %3262 = vmatprep.subr.mxu0 0.0
      %3263 = vmatpush1.msra.mxu0 0.0
      %3264 = vmatprep.subr.mxu0 0.0
      %3265 = vmatpush1.msra.mxu0 0.0
      %3266 = vmatprep.subr.mxu0 0.0
      %3267 = vmatpush1.msra.mxu0 0.0
      %3268 = vmatprep.subr.mxu0 0.0
      %3269 = vmatpush1.msra.mxu0 0.0
      %3270 = vmatprep.subr.mxu0 0.0
      %3271 = vmatpush1.msra.mxu0 0.0
      %3272 = vmatprep.subr.mxu0 0.0
      %3273 = vmatpush1.msra.mxu0 0.0
      %3274 = vmatprep.subr.mxu0 0.0
      %3275 = vmatpush1.msra.mxu0 0.0
      %3276 = vmatprep.subr.mxu0 0.0
      %3277 = vmatpush1.msra.mxu0 0.0
      %3278 = vmatprep.mubr.f32.mxu0 0.0
      %3279 = vmatmul.mubr.f32.gmra.mrb[0].mxu0 %v1053
      %v3280 = vpop.f32.mrb[0].mxu0
      %v3281 = vadd.f32 0.0, %v3280
      %v3282 = vpop.f32.mrb[0].mxu0
      %3283 = vmatprep.mubr.f32.mxu0 0.0
      %3284 = vmatmul.mubr.f32.gmra.mrb[0].mxu0 %v1056
      %v3285 = vpop.f32.mrb[0].mxu0
      %v3286 = vadd.f32 0.0, %v3285
      %v3287 = vpop.f32.mrb[0].mxu0
      %3288 = vdwg.mxu0
      %v3289 = vadd.f32 %v3212, %v3281
      %v3290 = vadd.f32 %v3213, %v3286
      %3291 = vrot.lane.b32.xlu0 %v780, 119
      %v3292 = vpop.permute.xlu0 %3291
      %v3293 = vsel %vm434, %v3292, 0
      %3295 = vmatprep.subr.mxu0 0.0
      %3296 = vmatpush1.msra.mxu0 %v3293
      %3297 = vmatprep.subr.mxu0 0.0
      %3298 = vmatpush1.msra.mxu0 0.0
      %3299 = vmatprep.subr.mxu0 0.0
      %3300 = vmatpush1.msra.mxu0 0.0
      %3301 = vmatprep.subr.mxu0 0.0
      %3302 = vmatpush1.msra.mxu0 0.0
      %3303 = vmatprep.subr.mxu0 0.0
      %3304 = vmatpush1.msra.mxu0 0.0
      %3305 = vmatprep.subr.mxu0 0.0
      %3306 = vmatpush1.msra.mxu0 0.0
      %3307 = vmatprep.subr.mxu0 0.0
      %3308 = vmatpush1.msra.mxu0 0.0
      %3309 = vmatprep.subr.mxu0 0.0
      %3310 = vmatpush1.msra.mxu0 0.0
      %3311 = vmatprep.subr.mxu0 0.0
      %3312 = vmatpush1.msra.mxu0 0.0
      %3313 = vmatprep.subr.mxu0 0.0
      %3314 = vmatpush1.msra.mxu0 0.0
      %3315 = vmatprep.subr.mxu0 0.0
      %3316 = vmatpush1.msra.mxu0 0.0
      %3317 = vmatprep.subr.mxu0 0.0
      %3318 = vmatpush1.msra.mxu0 0.0
      %3319 = vmatprep.subr.mxu0 0.0
      %3320 = vmatpush1.msra.mxu0 0.0
      %3321 = vmatprep.subr.mxu0 0.0
      %3322 = vmatpush1.msra.mxu0 0.0
      %3323 = vmatprep.subr.mxu0 0.0
      %3324 = vmatpush1.msra.mxu0 0.0
      %3325 = vmatprep.subr.mxu0 0.0
      %3326 = vmatpush1.msra.mxu0 0.0
      %3327 = vmatprep.subr.mxu0 0.0
      %3328 = vmatpush1.msra.mxu0 0.0
      %3329 = vmatprep.subr.mxu0 0.0
      %3330 = vmatpush1.msra.mxu0 0.0
      %3331 = vmatprep.subr.mxu0 0.0
      %3332 = vmatpush1.msra.mxu0 0.0
      %3333 = vmatprep.subr.mxu0 0.0
      %3334 = vmatpush1.msra.mxu0 0.0
      %3335 = vmatprep.subr.mxu0 0.0
      %3336 = vmatpush1.msra.mxu0 0.0
      %3337 = vmatprep.subr.mxu0 0.0
      %3338 = vmatpush1.msra.mxu0 0.0
      %3339 = vmatprep.subr.mxu0 0.0
      %3340 = vmatpush1.msra.mxu0 0.0
      %3341 = vmatprep.subr.mxu0 0.0
      %3342 = vmatpush1.msra.mxu0 0.0
      %3343 = vmatprep.subr.mxu0 0.0
      %3344 = vmatpush1.msra.mxu0 0.0
      %3345 = vmatprep.subr.mxu0 0.0
      %3346 = vmatpush1.msra.mxu0 0.0
      %3347 = vmatprep.subr.mxu0 0.0
      %3348 = vmatpush1.msra.mxu0 0.0
      %3349 = vmatprep.subr.mxu0 0.0
      %3350 = vmatpush1.msra.mxu0 0.0
      %3351 = vmatprep.subr.mxu0 0.0
      %3352 = vmatpush1.msra.mxu0 0.0
      %3353 = vmatprep.subr.mxu0 0.0
      %3354 = vmatpush1.msra.mxu0 0.0
      %3355 = vmatprep.subr.mxu0 0.0
      %3356 = vmatpush1.msra.mxu0 0.0
      %3357 = vmatprep.subr.mxu0 0.0
      %3358 = vmatpush1.msra.mxu0 0.0
      %3359 = vmatprep.mubr.f32.mxu0 0.0
      %3360 = vmatmul.mubr.f32.gmra.mrb[0].mxu0 %v1143
      %v3361 = vpop.f32.mrb[0].mxu0
      %v3362 = vadd.f32 0.0, %v3361
      %v3363 = vpop.f32.mrb[0].mxu0
      %3364 = vmatprep.mubr.f32.mxu0 0.0
      %3365 = vmatmul.mubr.f32.gmra.mrb[0].mxu0 %v1146
      %v3366 = vpop.f32.mrb[0].mxu0
      %v3367 = vadd.f32 0.0, %v3366
      %v3368 = vpop.f32.mrb[0].mxu0
      %3369 = vdwg.mxu0
      %v3370 = vadd.f32 %v3289, %v3362
      %v3371 = vadd.f32 %v3290, %v3367
      %v3372 = vadd.f32 %v3370, %v1232
      %v3373 = vadd.f32 %v3371, %v1237
      %vm3374 = vcmp.ge.f32.partialorder %v3372, 0.0
      %vm3375 = vcmp.ge.f32.partialorder %v3373, 0.0
      %v3376 = vmul.f32 %v1251, %v3372
      %v3377 = vmul.f32 %v1251, %v3373
      %v3378 = vsel %vm3374, %v3372, %v3376
      %v3379 = vsel %vm3375, %v3373, %v3377
      %v3380 = vmax.f32 %v2677, %v3378
      %v3381 = vmax.f32 %v2678, %v3379
      %vm3382 = vcmask 490496
      %3383 = vst.msk [vmem:[#allocation2] sm:$0xff] %vm3382, %v3380
      %vm3384 = vcmask 484352
      %3385 = vst.msk [vmem:[#allocation2 + $0x8] sm:$0x3] %vm3384, %v3381
      %v3386 = vld [vmem:[%s4] sm:$0xff]
      %v3387 = vld [vmem:[%s4 + $0x8] sm:$0xff]
      %v3388 = vld [vmem:[#allocation2] sm:$0xff]
      %v3389 = vld [vmem:[#allocation2 + $0x8] sm:$0x3]
      %s3390 = scalar_lea.vmem %s4, 16
      %v3391 = vld [vmem:[%s3390] sm:$0xff]
      %v3392 = vld [vmem:[%s3390 + $0x8] sm:$0xff]
      %3395 = vrot.lane.b32.xlu0 %v3388, 127
      %v3396 = vpop.permute.xlu0 %3395
      %3397 = vrot.lane.b32.xlu0 %v3389, 127
      %v3398 = vpop.permute.xlu0 %3397
      %vm3400 = vcmask 80896
      %v3402 = vsel %vm3400, %v3391, 0
      %v3405 = vsel %vm3400, %v3392, 0
      %vm3407 = vcmask 1041408
      %v3408 = vsel %vm3407, %v3398, 0
      %3410 = vmatprep.subr.mxu0 0.0
      %3411 = vmatpush1.msra.mxu0 %v3396
      %3412 = vmatprep.subr.mxu0 0.0
      %3413 = vmatpush1.msra.mxu0 %v3408
      %3414 = vmatprep.subr.mxu0 0.0
      %3415 = vmatpush1.msra.mxu0 0.0
      %3416 = vmatprep.subr.mxu0 0.0
      %3417 = vmatpush1.msra.mxu0 0.0
      %3418 = vmatprep.subr.mxu0 0.0
      %3419 = vmatpush1.msra.mxu0 0.0
      %3420 = vmatprep.subr.mxu0 0.0
      %3421 = vmatpush1.msra.mxu0 0.0
      %3422 = vmatprep.subr.mxu0 0.0
      %3423 = vmatpush1.msra.mxu0 0.0
      %3424 = vmatprep.subr.mxu0 0.0
      %3425 = vmatpush1.msra.mxu0 0.0
      %3426 = vmatprep.subr.mxu0 0.0
      %3427 = vmatpush1.msra.mxu0 0.0
      %3428 = vmatprep.subr.mxu0 0.0
      %3429 = vmatpush1.msra.mxu0 0.0
      %3430 = vmatprep.subr.mxu0 0.0
      %3431 = vmatpush1.msra.mxu0 0.0
      %3432 = vmatprep.subr.mxu0 0.0
      %3433 = vmatpush1.msra.mxu0 0.0
      %3434 = vmatprep.subr.mxu0 0.0
      %3435 = vmatpush1.msra.mxu0 0.0
      %3436 = vmatprep.subr.mxu0 0.0
      %3437 = vmatpush1.msra.mxu0 0.0
      %3438 = vmatprep.subr.mxu0 0.0
      %3439 = vmatpush1.msra.mxu0 0.0
      %3440 = vmatprep.subr.mxu0 0.0
      %3441 = vmatpush1.msra.mxu0 0.0
      %3442 = vmatprep.subr.mxu0 0.0
      %3443 = vmatpush1.msra.mxu0 0.0
      %3444 = vmatprep.subr.mxu0 0.0
      %3445 = vmatpush1.msra.mxu0 0.0
      %3446 = vmatprep.subr.mxu0 0.0
      %3447 = vmatpush1.msra.mxu0 0.0
      %3448 = vmatprep.subr.mxu0 0.0
      %3449 = vmatpush1.msra.mxu0 0.0
      %3450 = vmatprep.subr.mxu0 0.0
      %3451 = vmatpush1.msra.mxu0 0.0
      %3452 = vmatprep.subr.mxu0 0.0
      %3453 = vmatpush1.msra.mxu0 0.0
      %3454 = vmatprep.subr.mxu0 0.0
      %3455 = vmatpush1.msra.mxu0 0.0
      %3456 = vmatprep.subr.mxu0 0.0
      %3457 = vmatpush1.msra.mxu0 0.0
      %3458 = vmatprep.subr.mxu0 0.0
      %3459 = vmatpush1.msra.mxu0 0.0
      %3460 = vmatprep.subr.mxu0 0.0
      %3461 = vmatpush1.msra.mxu0 0.0
      %3462 = vmatprep.subr.mxu0 0.0
      %3463 = vmatpush1.msra.mxu0 0.0
      %3464 = vmatprep.subr.mxu0 0.0
      %3465 = vmatpush1.msra.mxu0 0.0
      %3466 = vmatprep.subr.mxu0 0.0
      %3467 = vmatpush1.msra.mxu0 0.0
      %3468 = vmatprep.subr.mxu0 0.0
      %3469 = vmatpush1.msra.mxu0 0.0
      %3470 = vmatprep.subr.mxu0 0.0
      %3471 = vmatpush1.msra.mxu0 0.0
      %3472 = vmatprep.subr.mxu0 0.0
      %3473 = vmatpush1.msra.mxu0 0.0
      %3474 = vmatprep.mubr.f32.mxu0 0.0
      %3475 = vmatmul.mubr.f32.gmra.mrb[0].mxu0 %v3402
      %v3476 = vpop.f32.mrb[0].mxu0
      %v3477 = vadd.f32 0.0, %v3476
      %v3478 = vpop.f32.mrb[0].mxu0
      %3479 = vmatprep.mubr.f32.mxu0 0.0
      %3480 = vmatmul.mubr.f32.gmra.mrb[0].mxu0 %v3405
      %v3481 = vpop.f32.mrb[0].mxu0
      %v3482 = vadd.f32 0.0, %v3481
      %v3483 = vpop.f32.mrb[0].mxu0
      %3484 = vdwg.mxu0
      %v3486 = vsel %vm3400, %v3386, 0
      %v3489 = vsel %vm3400, %v3387, 0
      %v3491 = vsel %vm3407, %v3389, 0
      %3493 = vmatprep.subr.mxu0 0.0
      %3494 = vmatpush1.msra.mxu0 %v3388
      %3495 = vmatprep.subr.mxu0 0.0
      %3496 = vmatpush1.msra.mxu0 %v3491
      %3497 = vmatprep.subr.mxu0 0.0
      %3498 = vmatpush1.msra.mxu0 0.0
      %3499 = vmatprep.subr.mxu0 0.0
      %3500 = vmatpush1.msra.mxu0 0.0
      %3501 = vmatprep.subr.mxu0 0.0
      %3502 = vmatpush1.msra.mxu0 0.0
      %3503 = vmatprep.subr.mxu0 0.0
      %3504 = vmatpush1.msra.mxu0 0.0
      %3505 = vmatprep.subr.mxu0 0.0
      %3506 = vmatpush1.msra.mxu0 0.0
      %3507 = vmatprep.subr.mxu0 0.0
      %3508 = vmatpush1.msra.mxu0 0.0
      %3509 = vmatprep.subr.mxu0 0.0
      %3510 = vmatpush1.msra.mxu0 0.0
      %3511 = vmatprep.subr.mxu0 0.0
      %3512 = vmatpush1.msra.mxu0 0.0
      %3513 = vmatprep.subr.mxu0 0.0
      %3514 = vmatpush1.msra.mxu0 0.0
      %3515 = vmatprep.subr.mxu0 0.0
      %3516 = vmatpush1.msra.mxu0 0.0
      %3517 = vmatprep.subr.mxu0 0.0
      %3518 = vmatpush1.msra.mxu0 0.0
      %3519 = vmatprep.subr.mxu0 0.0
      %3520 = vmatpush1.msra.mxu0 0.0
      %3521 = vmatprep.subr.mxu0 0.0
      %3522 = vmatpush1.msra.mxu0 0.0
      %3523 = vmatprep.subr.mxu0 0.0
      %3524 = vmatpush1.msra.mxu0 0.0
      %3525 = vmatprep.subr.mxu0 0.0
      %3526 = vmatpush1.msra.mxu0 0.0
      %3527 = vmatprep.subr.mxu0 0.0
      %3528 = vmatpush1.msra.mxu0 0.0
      %3529 = vmatprep.subr.mxu0 0.0
      %3530 = vmatpush1.msra.mxu0 0.0
      %3531 = vmatprep.subr.mxu0 0.0
      %3532 = vmatpush1.msra.mxu0 0.0
      %3533 = vmatprep.subr.mxu0 0.0
      %3534 = vmatpush1.msra.mxu0 0.0
      %3535 = vmatprep.subr.mxu0 0.0
      %3536 = vmatpush1.msra.mxu0 0.0
      %3537 = vmatprep.subr.mxu0 0.0
      %3538 = vmatpush1.msra.mxu0 0.0
      %3539 = vmatprep.subr.mxu0 0.0
      %3540 = vmatpush1.msra.mxu0 0.0
      %3541 = vmatprep.subr.mxu0 0.0
      %3542 = vmatpush1.msra.mxu0 0.0
      %3543 = vmatprep.subr.mxu0 0.0
      %3544 = vmatpush1.msra.mxu0 0.0
      %3545 = vmatprep.subr.mxu0 0.0
      %3546 = vmatpush1.msra.mxu0 0.0
      %3547 = vmatprep.subr.mxu0 0.0
      %3548 = vmatpush1.msra.mxu0 0.0
      %3549 = vmatprep.subr.mxu0 0.0
      %3550 = vmatpush1.msra.mxu0 0.0
      %3551 = vmatprep.subr.mxu0 0.0
      %3552 = vmatpush1.msra.mxu0 0.0
      %3553 = vmatprep.subr.mxu0 0.0
      %3554 = vmatpush1.msra.mxu0 0.0
      %3555 = vmatprep.subr.mxu0 0.0
      %3556 = vmatpush1.msra.mxu0 0.0
      %3557 = vmatprep.mubr.f32.mxu0 0.0
      %3558 = vmatmul.mubr.f32.gmra.mrb[0].mxu0 %v3486
      %v3559 = vpop.f32.mrb[0].mxu0
      %v3560 = vadd.f32 %v3477, %v3559
      %v3561 = vpop.f32.mrb[0].mxu0
      %3562 = vmatprep.mubr.f32.mxu0 0.0
      %3563 = vmatmul.mubr.f32.gmra.mrb[0].mxu0 %v3489
      %v3564 = vpop.f32.mrb[0].mxu0
      %v3565 = vadd.f32 %v3482, %v3564
      %v3566 = vpop.f32.mrb[0].mxu0
      %3567 = vdwg.mxu0
      %s3568 = scalar_lea.vmem %s4, 32
      %v3569 = vld [vmem:[%s3568] sm:$0xff]
      %v3570 = vld [vmem:[%s3568 + $0x8] sm:$0xff]
      %3571 = vrot.lane.b32.xlu0 %v3388, 126
      %v3572 = vpop.permute.xlu0 %3571
      %3573 = vrot.lane.b32.xlu0 %v3389, 126
      %v3574 = vpop.permute.xlu0 %3573
      %v3577 = vsel %vm3400, %v3569, 0
      %v3580 = vsel %vm3400, %v3570, 0
      %v3582 = vsel %vm3407, %v3574, 0
      %3584 = vmatprep.subr.mxu0 0.0
      %3585 = vmatpush1.msra.mxu0 %v3572
      %3586 = vmatprep.subr.mxu0 0.0
      %3587 = vmatpush1.msra.mxu0 %v3582
      %3588 = vmatprep.subr.mxu0 0.0
      %3589 = vmatpush1.msra.mxu0 0.0
      %3590 = vmatprep.subr.mxu0 0.0
      %3591 = vmatpush1.msra.mxu0 0.0
      %3592 = vmatprep.subr.mxu0 0.0
      %3593 = vmatpush1.msra.mxu0 0.0
      %3594 = vmatprep.subr.mxu0 0.0
      %3595 = vmatpush1.msra.mxu0 0.0
      %3596 = vmatprep.subr.mxu0 0.0
      %3597 = vmatpush1.msra.mxu0 0.0
      %3598 = vmatprep.subr.mxu0 0.0
      %3599 = vmatpush1.msra.mxu0 0.0
      %3600 = vmatprep.subr.mxu0 0.0
      %3601 = vmatpush1.msra.mxu0 0.0
      %3602 = vmatprep.subr.mxu0 0.0
      %3603 = vmatpush1.msra.mxu0 0.0
      %3604 = vmatprep.subr.mxu0 0.0
      %3605 = vmatpush1.msra.mxu0 0.0
      %3606 = vmatprep.subr.mxu0 0.0
      %3607 = vmatpush1.msra.mxu0 0.0
      %3608 = vmatprep.subr.mxu0 0.0
      %3609 = vmatpush1.msra.mxu0 0.0
      %3610 = vmatprep.subr.mxu0 0.0
      %3611 = vmatpush1.msra.mxu0 0.0
      %3612 = vmatprep.subr.mxu0 0.0
      %3613 = vmatpush1.msra.mxu0 0.0
      %3614 = vmatprep.subr.mxu0 0.0
      %3615 = vmatpush1.msra.mxu0 0.0
      %3616 = vmatprep.subr.mxu0 0.0
      %3617 = vmatpush1.msra.mxu0 0.0
      %3618 = vmatprep.subr.mxu0 0.0
      %3619 = vmatpush1.msra.mxu0 0.0
      %3620 = vmatprep.subr.mxu0 0.0
      %3621 = vmatpush1.msra.mxu0 0.0
      %3622 = vmatprep.subr.mxu0 0.0
      %3623 = vmatpush1.msra.mxu0 0.0
      %3624 = vmatprep.subr.mxu0 0.0
      %3625 = vmatpush1.msra.mxu0 0.0
      %3626 = vmatprep.subr.mxu0 0.0
      %3627 = vmatpush1.msra.mxu0 0.0
      %3628 = vmatprep.subr.mxu0 0.0
      %3629 = vmatpush1.msra.mxu0 0.0
      %3630 = vmatprep.subr.mxu0 0.0
      %3631 = vmatpush1.msra.mxu0 0.0
      %3632 = vmatprep.subr.mxu0 0.0
      %3633 = vmatpush1.msra.mxu0 0.0
      %3634 = vmatprep.subr.mxu0 0.0
      %3635 = vmatpush1.msra.mxu0 0.0
      %3636 = vmatprep.subr.mxu0 0.0
      %3637 = vmatpush1.msra.mxu0 0.0
      %3638 = vmatprep.subr.mxu0 0.0
      %3639 = vmatpush1.msra.mxu0 0.0
      %3640 = vmatprep.subr.mxu0 0.0
      %3641 = vmatpush1.msra.mxu0 0.0
      %3642 = vmatprep.subr.mxu0 0.0
      %3643 = vmatpush1.msra.mxu0 0.0
      %3644 = vmatprep.subr.mxu0 0.0
      %3645 = vmatpush1.msra.mxu0 0.0
      %3646 = vmatprep.subr.mxu0 0.0
      %3647 = vmatpush1.msra.mxu0 0.0
      %3648 = vmatprep.mubr.f32.mxu0 0.0
      %3649 = vmatmul.mubr.f32.gmra.mrb[0].mxu0 %v3577
      %v3650 = vpop.f32.mrb[0].mxu0
      %v3651 = vadd.f32 0.0, %v3650
      %v3652 = vpop.f32.mrb[0].mxu0
      %3653 = vmatprep.mubr.f32.mxu0 0.0
      %3654 = vmatmul.mubr.f32.gmra.mrb[0].mxu0 %v3580
      %v3655 = vpop.f32.mrb[0].mxu0
      %v3656 = vadd.f32 0.0, %v3655
      %v3657 = vpop.f32.mrb[0].mxu0
      %3658 = vdwg.mxu0
      %v3659 = vadd.f32 %v3560, %v3651
      %v3660 = vadd.f32 %v3565, %v3656
      %s3661 = scalar_lea.vmem %s4, 48
      %v3662 = vld [vmem:[%s3661] sm:$0xff]
      %v3663 = vld [vmem:[%s3661 + $0x8] sm:$0xff]
      %3664 = vrot.lane.b32.xlu0 %v3388, 120
      %v3665 = vpop.permute.xlu0 %3664
      %3666 = vrot.lane.b32.xlu0 %v3389, 120
      %v3667 = vpop.permute.xlu0 %3666
      %v3670 = vsel %vm3400, %v3662, 0
      %v3673 = vsel %vm3400, %v3663, 0
      %v3675 = vsel %vm3407, %v3667, 0
      %3677 = vmatprep.subr.mxu0 0.0
      %3678 = vmatpush1.msra.mxu0 %v3665
      %3679 = vmatprep.subr.mxu0 0.0
      %3680 = vmatpush1.msra.mxu0 %v3675
      %3681 = vmatprep.subr.mxu0 0.0
      %3682 = vmatpush1.msra.mxu0 0.0
      %3683 = vmatprep.subr.mxu0 0.0
      %3684 = vmatpush1.msra.mxu0 0.0
      %3685 = vmatprep.subr.mxu0 0.0
      %3686 = vmatpush1.msra.mxu0 0.0
      %3687 = vmatprep.subr.mxu0 0.0
      %3688 = vmatpush1.msra.mxu0 0.0
      %3689 = vmatprep.subr.mxu0 0.0
      %3690 = vmatpush1.msra.mxu0 0.0
      %3691 = vmatprep.subr.mxu0 0.0
      %3692 = vmatpush1.msra.mxu0 0.0
      %3693 = vmatprep.subr.mxu0 0.0
      %3694 = vmatpush1.msra.mxu0 0.0
      %3695 = vmatprep.subr.mxu0 0.0
      %3696 = vmatpush1.msra.mxu0 0.0
      %3697 = vmatprep.subr.mxu0 0.0
      %3698 = vmatpush1.msra.mxu0 0.0
      %3699 = vmatprep.subr.mxu0 0.0
      %3700 = vmatpush1.msra.mxu0 0.0
      %3701 = vmatprep.subr.mxu0 0.0
      %3702 = vmatpush1.msra.mxu0 0.0
      %3703 = vmatprep.subr.mxu0 0.0
      %3704 = vmatpush1.msra.mxu0 0.0
      %3705 = vmatprep.subr.mxu0 0.0
      %3706 = vmatpush1.msra.mxu0 0.0
      %3707 = vmatprep.subr.mxu0 0.0
      %3708 = vmatpush1.msra.mxu0 0.0
      %3709 = vmatprep.subr.mxu0 0.0
      %3710 = vmatpush1.msra.mxu0 0.0
      %3711 = vmatprep.subr.mxu0 0.0
      %3712 = vmatpush1.msra.mxu0 0.0
      %3713 = vmatprep.subr.mxu0 0.0
      %3714 = vmatpush1.msra.mxu0 0.0
      %3715 = vmatprep.subr.mxu0 0.0
      %3716 = vmatpush1.msra.mxu0 0.0
      %3717 = vmatprep.subr.mxu0 0.0
      %3718 = vmatpush1.msra.mxu0 0.0
      %3719 = vmatprep.subr.mxu0 0.0
      %3720 = vmatpush1.msra.mxu0 0.0
      %3721 = vmatprep.subr.mxu0 0.0
      %3722 = vmatpush1.msra.mxu0 0.0
      %3723 = vmatprep.subr.mxu0 0.0
      %3724 = vmatpush1.msra.mxu0 0.0
      %3725 = vmatprep.subr.mxu0 0.0
      %3726 = vmatpush1.msra.mxu0 0.0
      %3727 = vmatprep.subr.mxu0 0.0
      %3728 = vmatpush1.msra.mxu0 0.0
      %3729 = vmatprep.subr.mxu0 0.0
      %3730 = vmatpush1.msra.mxu0 0.0
      %3731 = vmatprep.subr.mxu0 0.0
      %3732 = vmatpush1.msra.mxu0 0.0
      %3733 = vmatprep.subr.mxu0 0.0
      %3734 = vmatpush1.msra.mxu0 0.0
      %3735 = vmatprep.subr.mxu0 0.0
      %3736 = vmatpush1.msra.mxu0 0.0
      %3737 = vmatprep.subr.mxu0 0.0
      %3738 = vmatpush1.msra.mxu0 0.0
      %3739 = vmatprep.subr.mxu0 0.0
      %3740 = vmatpush1.msra.mxu0 0.0
      %3741 = vmatprep.mubr.f32.mxu0 0.0
      %3742 = vmatmul.mubr.f32.gmra.mrb[0].mxu0 %v3670
      %v3743 = vpop.f32.mrb[0].mxu0
      %v3744 = vadd.f32 0.0, %v3743
      %v3745 = vpop.f32.mrb[0].mxu0
      %3746 = vmatprep.mubr.f32.mxu0 0.0
      %3747 = vmatmul.mubr.f32.gmra.mrb[0].mxu0 %v3673
      %v3748 = vpop.f32.mrb[0].mxu0
      %v3749 = vadd.f32 0.0, %v3748
      %v3750 = vpop.f32.mrb[0].mxu0
      %3751 = vdwg.mxu0
      %v3752 = vadd.f32 %v3659, %v3744
      %v3753 = vadd.f32 %v3660, %v3749
      %s3754 = scalar_lea.vmem %s4, 64
      %v3755 = vld [vmem:[%s3754] sm:$0xff]
      %v3756 = vld [vmem:[%s3754 + $0x8] sm:$0xff]
      %3757 = vrot.lane.b32.xlu0 %v3388, 119
      %v3758 = vpop.permute.xlu0 %3757
      %3759 = vrot.lane.b32.xlu0 %v3389, 119
      %v3760 = vpop.permute.xlu0 %3759
      %v3763 = vsel %vm3400, %v3755, 0
      %v3766 = vsel %vm3400, %v3756, 0
      %v3768 = vsel %vm3407, %v3760, 0
      %3770 = vmatprep.subr.mxu0 0.0
      %3771 = vmatpush1.msra.mxu0 %v3758
      %3772 = vmatprep.subr.mxu0 0.0
      %3773 = vmatpush1.msra.mxu0 %v3768
      %3774 = vmatprep.subr.mxu0 0.0
      %3775 = vmatpush1.msra.mxu0 0.0
      %3776 = vmatprep.subr.mxu0 0.0
      %3777 = vmatpush1.msra.mxu0 0.0
      %3778 = vmatprep.subr.mxu0 0.0
      %3779 = vmatpush1.msra.mxu0 0.0
      %3780 = vmatprep.subr.mxu0 0.0
      %3781 = vmatpush1.msra.mxu0 0.0
      %3782 = vmatprep.subr.mxu0 0.0
      %3783 = vmatpush1.msra.mxu0 0.0
      %3784 = vmatprep.subr.mxu0 0.0
      %3785 = vmatpush1.msra.mxu0 0.0
      %3786 = vmatprep.subr.mxu0 0.0
      %3787 = vmatpush1.msra.mxu0 0.0
      %3788 = vmatprep.subr.mxu0 0.0
      %3789 = vmatpush1.msra.mxu0 0.0
      %3790 = vmatprep.subr.mxu0 0.0
      %3791 = vmatpush1.msra.mxu0 0.0
      %3792 = vmatprep.subr.mxu0 0.0
      %3793 = vmatpush1.msra.mxu0 0.0
      %3794 = vmatprep.subr.mxu0 0.0
      %3795 = vmatpush1.msra.mxu0 0.0
      %3796 = vmatprep.subr.mxu0 0.0
      %3797 = vmatpush1.msra.mxu0 0.0
      %3798 = vmatprep.subr.mxu0 0.0
      %3799 = vmatpush1.msra.mxu0 0.0
      %3800 = vmatprep.subr.mxu0 0.0
      %3801 = vmatpush1.msra.mxu0 0.0
      %3802 = vmatprep.subr.mxu0 0.0
      %3803 = vmatpush1.msra.mxu0 0.0
      %3804 = vmatprep.subr.mxu0 0.0
      %3805 = vmatpush1.msra.mxu0 0.0
      %3806 = vmatprep.subr.mxu0 0.0
      %3807 = vmatpush1.msra.mxu0 0.0
      %3808 = vmatprep.subr.mxu0 0.0
      %3809 = vmatpush1.msra.mxu0 0.0
      %3810 = vmatprep.subr.mxu0 0.0
      %3811 = vmatpush1.msra.mxu0 0.0
      %3812 = vmatprep.subr.mxu0 0.0
      %3813 = vmatpush1.msra.mxu0 0.0
      %3814 = vmatprep.subr.mxu0 0.0
      %3815 = vmatpush1.msra.mxu0 0.0
      %3816 = vmatprep.subr.mxu0 0.0
      %3817 = vmatpush1.msra.mxu0 0.0
      %3818 = vmatprep.subr.mxu0 0.0
      %3819 = vmatpush1.msra.mxu0 0.0
      %3820 = vmatprep.subr.mxu0 0.0
      %3821 = vmatpush1.msra.mxu0 0.0
      %3822 = vmatprep.subr.mxu0 0.0
      %3823 = vmatpush1.msra.mxu0 0.0
      %3824 = vmatprep.subr.mxu0 0.0
      %3825 = vmatpush1.msra.mxu0 0.0
      %3826 = vmatprep.subr.mxu0 0.0
      %3827 = vmatpush1.msra.mxu0 0.0
      %3828 = vmatprep.subr.mxu0 0.0
      %3829 = vmatpush1.msra.mxu0 0.0
      %3830 = vmatprep.subr.mxu0 0.0
      %3831 = vmatpush1.msra.mxu0 0.0
      %3832 = vmatprep.subr.mxu0 0.0
      %3833 = vmatpush1.msra.mxu0 0.0
      %3834 = vmatprep.mubr.f32.mxu0 0.0
      %3835 = vmatmul.mubr.f32.gmra.mrb[0].mxu0 %v3763
      %v3836 = vpop.f32.mrb[0].mxu0
      %v3837 = vadd.f32 0.0, %v3836
      %v3838 = vpop.f32.mrb[0].mxu0
      %3839 = vmatprep.mubr.f32.mxu0 0.0
      %3840 = vmatmul.mubr.f32.gmra.mrb[0].mxu0 %v3766
      %v3841 = vpop.f32.mrb[0].mxu0
      %v3842 = vadd.f32 0.0, %v3841
      %v3843 = vpop.f32.mrb[0].mxu0
      %3844 = vdwg.mxu0
      %v3845 = vadd.f32 %v3752, %v3837
      %v3846 = vadd.f32 %v3753, %v3842
      %s3847 = scalar_lea.vmem %s4, 80
      %v3848 = vld [vmem:[%s3847] sm:$0xff]
      %v3849 = vld [vmem:[%s3847 + $0x8] sm:$0xff]
      %3850 = vrot.lane.b32.xlu0 %v3388, 118
      %v3851 = vpop.permute.xlu0 %3850
      %3852 = vrot.lane.b32.xlu0 %v3389, 118
      %v3853 = vpop.permute.xlu0 %3852
      %v3856 = vsel %vm3400, %v3848, 0
      %v3859 = vsel %vm3400, %v3849, 0
      %v3861 = vsel %vm3407, %v3853, 0
      %3863 = vmatprep.subr.mxu0 0.0
      %3864 = vmatpush1.msra.mxu0 %v3851
      %3865 = vmatprep.subr.mxu0 0.0
      %3866 = vmatpush1.msra.mxu0 %v3861
      %3867 = vmatprep.subr.mxu0 0.0
      %3868 = vmatpush1.msra.mxu0 0.0
      %3869 = vmatprep.subr.mxu0 0.0
      %3870 = vmatpush1.msra.mxu0 0.0
      %3871 = vmatprep.subr.mxu0 0.0
      %3872 = vmatpush1.msra.mxu0 0.0
      %3873 = vmatprep.subr.mxu0 0.0
      %3874 = vmatpush1.msra.mxu0 0.0
      %3875 = vmatprep.subr.mxu0 0.0
      %3876 = vmatpush1.msra.mxu0 0.0
      %3877 = vmatprep.subr.mxu0 0.0
      %3878 = vmatpush1.msra.mxu0 0.0
      %3879 = vmatprep.subr.mxu0 0.0
      %3880 = vmatpush1.msra.mxu0 0.0
      %3881 = vmatprep.subr.mxu0 0.0
      %3882 = vmatpush1.msra.mxu0 0.0
      %3883 = vmatprep.subr.mxu0 0.0
      %3884 = vmatpush1.msra.mxu0 0.0
      %3885 = vmatprep.subr.mxu0 0.0
      %3886 = vmatpush1.msra.mxu0 0.0
      %3887 = vmatprep.subr.mxu0 0.0
      %3888 = vmatpush1.msra.mxu0 0.0
      %3889 = vmatprep.subr.mxu0 0.0
      %3890 = vmatpush1.msra.mxu0 0.0
      %3891 = vmatprep.subr.mxu0 0.0
      %3892 = vmatpush1.msra.mxu0 0.0
      %3893 = vmatprep.subr.mxu0 0.0
      %3894 = vmatpush1.msra.mxu0 0.0
      %3895 = vmatprep.subr.mxu0 0.0
      %3896 = vmatpush1.msra.mxu0 0.0
      %3897 = vmatprep.subr.mxu0 0.0
      %3898 = vmatpush1.msra.mxu0 0.0
      %3899 = vmatprep.subr.mxu0 0.0
      %3900 = vmatpush1.msra.mxu0 0.0
      %3901 = vmatprep.subr.mxu0 0.0
      %3902 = vmatpush1.msra.mxu0 0.0
      %3903 = vmatprep.subr.mxu0 0.0
      %3904 = vmatpush1.msra.mxu0 0.0
      %3905 = vmatprep.subr.mxu0 0.0
      %3906 = vmatpush1.msra.mxu0 0.0
      %3907 = vmatprep.subr.mxu0 0.0
      %3908 = vmatpush1.msra.mxu0 0.0
      %3909 = vmatprep.subr.mxu0 0.0
      %3910 = vmatpush1.msra.mxu0 0.0
      %3911 = vmatprep.subr.mxu0 0.0
      %3912 = vmatpush1.msra.mxu0 0.0
      %3913 = vmatprep.subr.mxu0 0.0
      %3914 = vmatpush1.msra.mxu0 0.0
      %3915 = vmatprep.subr.mxu0 0.0
      %3916 = vmatpush1.msra.mxu0 0.0
      %3917 = vmatprep.subr.mxu0 0.0
      %3918 = vmatpush1.msra.mxu0 0.0
      %3919 = vmatprep.subr.mxu0 0.0
      %3920 = vmatpush1.msra.mxu0 0.0
      %3921 = vmatprep.subr.mxu0 0.0
      %3922 = vmatpush1.msra.mxu0 0.0
      %3923 = vmatprep.subr.mxu0 0.0
      %3924 = vmatpush1.msra.mxu0 0.0
      %3925 = vmatprep.subr.mxu0 0.0
      %3926 = vmatpush1.msra.mxu0 0.0
      %3927 = vmatprep.mubr.f32.mxu0 0.0
      %3928 = vmatmul.mubr.f32.gmra.mrb[0].mxu0 %v3856
      %v3929 = vpop.f32.mrb[0].mxu0
      %v3930 = vadd.f32 0.0, %v3929
      %v3931 = vpop.f32.mrb[0].mxu0
      %3932 = vmatprep.mubr.f32.mxu0 0.0
      %3933 = vmatmul.mubr.f32.gmra.mrb[0].mxu0 %v3859
      %v3934 = vpop.f32.mrb[0].mxu0
      %v3935 = vadd.f32 0.0, %v3934
      %v3936 = vpop.f32.mrb[0].mxu0
      %3937 = vdwg.mxu0
      %v3938 = vadd.f32 %v3845, %v3930
      %v3939 = vadd.f32 %v3846, %v3935
      %s3940 = scalar_lea.vmem %s4, 96
      %v3941 = vld [vmem:[%s3940] sm:$0xff]
      %v3942 = vld [vmem:[%s3940 + $0x8] sm:$0xff]
      %3943 = vrot.lane.b32.xlu0 %v3388, 112
      %v3944 = vpop.permute.xlu0 %3943
      %3945 = vrot.lane.b32.xlu0 %v3389, 112
      %v3946 = vpop.permute.xlu0 %3945
      %v3949 = vsel %vm3400, %v3941, 0
      %v3952 = vsel %vm3400, %v3942, 0
      %v3954 = vsel %vm3407, %v3946, 0
      %3956 = vmatprep.subr.mxu0 0.0
      %3957 = vmatpush1.msra.mxu0 %v3944
      %3958 = vmatprep.subr.mxu0 0.0
      %3959 = vmatpush1.msra.mxu0 %v3954
      %3960 = vmatprep.subr.mxu0 0.0
      %3961 = vmatpush1.msra.mxu0 0.0
      %3962 = vmatprep.subr.mxu0 0.0
      %3963 = vmatpush1.msra.mxu0 0.0
      %3964 = vmatprep.subr.mxu0 0.0
      %3965 = vmatpush1.msra.mxu0 0.0
      %3966 = vmatprep.subr.mxu0 0.0
      %3967 = vmatpush1.msra.mxu0 0.0
      %3968 = vmatprep.subr.mxu0 0.0
      %3969 = vmatpush1.msra.mxu0 0.0
      %3970 = vmatprep.subr.mxu0 0.0
      %3971 = vmatpush1.msra.mxu0 0.0
      %3972 = vmatprep.subr.mxu0 0.0
      %3973 = vmatpush1.msra.mxu0 0.0
      %3974 = vmatprep.subr.mxu0 0.0
      %3975 = vmatpush1.msra.mxu0 0.0
      %3976 = vmatprep.subr.mxu0 0.0
      %3977 = vmatpush1.msra.mxu0 0.0
      %3978 = vmatprep.subr.mxu0 0.0
      %3979 = vmatpush1.msra.mxu0 0.0
      %3980 = vmatprep.subr.mxu0 0.0
      %3981 = vmatpush1.msra.mxu0 0.0
      %3982 = vmatprep.subr.mxu0 0.0
      %3983 = vmatpush1.msra.mxu0 0.0
      %3984 = vmatprep.subr.mxu0 0.0
      %3985 = vmatpush1.msra.mxu0 0.0
      %3986 = vmatprep.subr.mxu0 0.0
      %3987 = vmatpush1.msra.mxu0 0.0
      %3988 = vmatprep.subr.mxu0 0.0
      %3989 = vmatpush1.msra.mxu0 0.0
      %3990 = vmatprep.subr.mxu0 0.0
      %3991 = vmatpush1.msra.mxu0 0.0
      %3992 = vmatprep.subr.mxu0 0.0
      %3993 = vmatpush1.msra.mxu0 0.0
      %3994 = vmatprep.subr.mxu0 0.0
      %3995 = vmatpush1.msra.mxu0 0.0
      %3996 = vmatprep.subr.mxu0 0.0
      %3997 = vmatpush1.msra.mxu0 0.0
      %3998 = vmatprep.subr.mxu0 0.0
      %3999 = vmatpush1.msra.mxu0 0.0
      %4000 = vmatprep.subr.mxu0 0.0
      %4001 = vmatpush1.msra.mxu0 0.0
      %4002 = vmatprep.subr.mxu0 0.0
      %4003 = vmatpush1.msra.mxu0 0.0
      %4004 = vmatprep.subr.mxu0 0.0
      %4005 = vmatpush1.msra.mxu0 0.0
      %4006 = vmatprep.subr.mxu0 0.0
      %4007 = vmatpush1.msra.mxu0 0.0
      %4008 = vmatprep.subr.mxu0 0.0
      %4009 = vmatpush1.msra.mxu0 0.0
      %4010 = vmatprep.subr.mxu0 0.0
      %4011 = vmatpush1.msra.mxu0 0.0
      %4012 = vmatprep.subr.mxu0 0.0
      %4013 = vmatpush1.msra.mxu0 0.0
      %4014 = vmatprep.subr.mxu0 0.0
      %4015 = vmatpush1.msra.mxu0 0.0
      %4016 = vmatprep.subr.mxu0 0.0
      %4017 = vmatpush1.msra.mxu0 0.0
      %4018 = vmatprep.subr.mxu0 0.0
      %4019 = vmatpush1.msra.mxu0 0.0
      %4020 = vmatprep.mubr.f32.mxu0 0.0
      %4021 = vmatmul.mubr.f32.gmra.mrb[0].mxu0 %v3949
      %v4022 = vpop.f32.mrb[0].mxu0
      %v4023 = vadd.f32 0.0, %v4022
      %v4024 = vpop.f32.mrb[0].mxu0
      %4025 = vmatprep.mubr.f32.mxu0 0.0
      %4026 = vmatmul.mubr.f32.gmra.mrb[0].mxu0 %v3952
      %v4027 = vpop.f32.mrb[0].mxu0
      %v4028 = vadd.f32 0.0, %v4027
      %v4029 = vpop.f32.mrb[0].mxu0
      %4030 = vdwg.mxu0
      %v4031 = vadd.f32 %v3938, %v4023
      %v4032 = vadd.f32 %v3939, %v4028
      %s4033 = scalar_lea.vmem %s4, 112
      %v4034 = vld [vmem:[%s4033] sm:$0xff]
      %v4035 = vld [vmem:[%s4033 + $0x8] sm:$0xff]
      %4036 = vrot.lane.b32.xlu0 %v3388, 111
      %v4037 = vpop.permute.xlu0 %4036
      %4038 = vrot.lane.b32.xlu0 %v3389, 111
      %v4039 = vpop.permute.xlu0 %4038
      %v4042 = vsel %vm3400, %v4034, 0
      %v4045 = vsel %vm3400, %v4035, 0
      %v4047 = vsel %vm3407, %v4039, 0
      %4049 = vmatprep.subr.mxu0 0.0
      %4050 = vmatpush1.msra.mxu0 %v4037
      %4051 = vmatprep.subr.mxu0 0.0
      %4052 = vmatpush1.msra.mxu0 %v4047
      %4053 = vmatprep.subr.mxu0 0.0
      %4054 = vmatpush1.msra.mxu0 0.0
      %4055 = vmatprep.subr.mxu0 0.0
      %4056 = vmatpush1.msra.mxu0 0.0
      %4057 = vmatprep.subr.mxu0 0.0
      %4058 = vmatpush1.msra.mxu0 0.0
      %4059 = vmatprep.subr.mxu0 0.0
      %4060 = vmatpush1.msra.mxu0 0.0
      %4061 = vmatprep.subr.mxu0 0.0
      %4062 = vmatpush1.msra.mxu0 0.0
      %4063 = vmatprep.subr.mxu0 0.0
      %4064 = vmatpush1.msra.mxu0 0.0
      %4065 = vmatprep.subr.mxu0 0.0
      %4066 = vmatpush1.msra.mxu0 0.0
      %4067 = vmatprep.subr.mxu0 0.0
      %4068 = vmatpush1.msra.mxu0 0.0
      %4069 = vmatprep.subr.mxu0 0.0
      %4070 = vmatpush1.msra.mxu0 0.0
      %4071 = vmatprep.subr.mxu0 0.0
      %4072 = vmatpush1.msra.mxu0 0.0
      %4073 = vmatprep.subr.mxu0 0.0
      %4074 = vmatpush1.msra.mxu0 0.0
      %4075 = vmatprep.subr.mxu0 0.0
      %4076 = vmatpush1.msra.mxu0 0.0
      %4077 = vmatprep.subr.mxu0 0.0
      %4078 = vmatpush1.msra.mxu0 0.0
      %4079 = vmatprep.subr.mxu0 0.0
      %4080 = vmatpush1.msra.mxu0 0.0
      %4081 = vmatprep.subr.mxu0 0.0
      %4082 = vmatpush1.msra.mxu0 0.0
      %4083 = vmatprep.subr.mxu0 0.0
      %4084 = vmatpush1.msra.mxu0 0.0
      %4085 = vmatprep.subr.mxu0 0.0
      %4086 = vmatpush1.msra.mxu0 0.0
      %4087 = vmatprep.subr.mxu0 0.0
      %4088 = vmatpush1.msra.mxu0 0.0
      %4089 = vmatprep.subr.mxu0 0.0
      %4090 = vmatpush1.msra.mxu0 0.0
      %4091 = vmatprep.subr.mxu0 0.0
      %4092 = vmatpush1.msra.mxu0 0.0
      %4093 = vmatprep.subr.mxu0 0.0
      %4094 = vmatpush1.msra.mxu0 0.0
      %4095 = vmatprep.subr.mxu0 0.0
      %4096 = vmatpush1.msra.mxu0 0.0
      %4097 = vmatprep.subr.mxu0 0.0
      %4098 = vmatpush1.msra.mxu0 0.0
      %4099 = vmatprep.subr.mxu0 0.0
      %4100 = vmatpush1.msra.mxu0 0.0
      %4101 = vmatprep.subr.mxu0 0.0
      %4102 = vmatpush1.msra.mxu0 0.0
      %4103 = vmatprep.subr.mxu0 0.0
      %4104 = vmatpush1.msra.mxu0 0.0
      %4105 = vmatprep.subr.mxu0 0.0
      %4106 = vmatpush1.msra.mxu0 0.0
      %4107 = vmatprep.subr.mxu0 0.0
      %4108 = vmatpush1.msra.mxu0 0.0
      %4109 = vmatprep.subr.mxu0 0.0
      %4110 = vmatpush1.msra.mxu0 0.0
      %4111 = vmatprep.subr.mxu0 0.0
      %4112 = vmatpush1.msra.mxu0 0.0
      %4113 = vmatprep.mubr.f32.mxu0 0.0
      %4114 = vmatmul.mubr.f32.gmra.mrb[0].mxu0 %v4042
      %v4115 = vpop.f32.mrb[0].mxu0
      %v4116 = vadd.f32 0.0, %v4115
      %v4117 = vpop.f32.mrb[0].mxu0
      %4118 = vmatprep.mubr.f32.mxu0 0.0
      %4119 = vmatmul.mubr.f32.gmra.mrb[0].mxu0 %v4045
      %v4120 = vpop.f32.mrb[0].mxu0
      %v4121 = vadd.f32 0.0, %v4120
      %v4122 = vpop.f32.mrb[0].mxu0
      %4123 = vdwg.mxu0
      %v4124 = vadd.f32 %v4031, %v4116
      %v4125 = vadd.f32 %v4032, %v4121
      %s4126 = scalar_lea.vmem %s4, 128
      %v4127 = vld [vmem:[%s4126] sm:$0xff]
      %v4128 = vld [vmem:[%s4126 + $0x8] sm:$0xff]
      %4129 = vrot.lane.b32.xlu0 %v3388, 110
      %v4130 = vpop.permute.xlu0 %4129
      %4131 = vrot.lane.b32.xlu0 %v3389, 110
      %v4132 = vpop.permute.xlu0 %4131
      %v4135 = vsel %vm3400, %v4127, 0
      %v4138 = vsel %vm3400, %v4128, 0
      %v4140 = vsel %vm3407, %v4132, 0
      %4142 = vmatprep.subr.mxu0 0.0
      %4143 = vmatpush1.msra.mxu0 %v4130
      %4144 = vmatprep.subr.mxu0 0.0
      %4145 = vmatpush1.msra.mxu0 %v4140
      %4146 = vmatprep.subr.mxu0 0.0
      %4147 = vmatpush1.msra.mxu0 0.0
      %4148 = vmatprep.subr.mxu0 0.0
      %4149 = vmatpush1.msra.mxu0 0.0
      %4150 = vmatprep.subr.mxu0 0.0
      %4151 = vmatpush1.msra.mxu0 0.0
      %4152 = vmatprep.subr.mxu0 0.0
      %4153 = vmatpush1.msra.mxu0 0.0
      %4154 = vmatprep.subr.mxu0 0.0
      %4155 = vmatpush1.msra.mxu0 0.0
      %4156 = vmatprep.subr.mxu0 0.0
      %4157 = vmatpush1.msra.mxu0 0.0
      %4158 = vmatprep.subr.mxu0 0.0
      %4159 = vmatpush1.msra.mxu0 0.0
      %4160 = vmatprep.subr.mxu0 0.0
      %4161 = vmatpush1.msra.mxu0 0.0
      %4162 = vmatprep.subr.mxu0 0.0
      %4163 = vmatpush1.msra.mxu0 0.0
      %4164 = vmatprep.subr.mxu0 0.0
      %4165 = vmatpush1.msra.mxu0 0.0
      %4166 = vmatprep.subr.mxu0 0.0
      %4167 = vmatpush1.msra.mxu0 0.0
      %4168 = vmatprep.subr.mxu0 0.0
      %4169 = vmatpush1.msra.mxu0 0.0
      %4170 = vmatprep.subr.mxu0 0.0
      %4171 = vmatpush1.msra.mxu0 0.0
      %4172 = vmatprep.subr.mxu0 0.0
      %4173 = vmatpush1.msra.mxu0 0.0
      %4174 = vmatprep.subr.mxu0 0.0
      %4175 = vmatpush1.msra.mxu0 0.0
      %4176 = vmatprep.subr.mxu0 0.0
      %4177 = vmatpush1.msra.mxu0 0.0
      %4178 = vmatprep.subr.mxu0 0.0
      %4179 = vmatpush1.msra.mxu0 0.0
      %4180 = vmatprep.subr.mxu0 0.0
      %4181 = vmatpush1.msra.mxu0 0.0
      %4182 = vmatprep.subr.mxu0 0.0
      %4183 = vmatpush1.msra.mxu0 0.0
      %4184 = vmatprep.subr.mxu0 0.0
      %4185 = vmatpush1.msra.mxu0 0.0
      %4186 = vmatprep.subr.mxu0 0.0
      %4187 = vmatpush1.msra.mxu0 0.0
      %4188 = vmatprep.subr.mxu0 0.0
      %4189 = vmatpush1.msra.mxu0 0.0
      %4190 = vmatprep.subr.mxu0 0.0
      %4191 = vmatpush1.msra.mxu0 0.0
      %4192 = vmatprep.subr.mxu0 0.0
      %4193 = vmatpush1.msra.mxu0 0.0
      %4194 = vmatprep.subr.mxu0 0.0
      %4195 = vmatpush1.msra.mxu0 0.0
      %4196 = vmatprep.subr.mxu0 0.0
      %4197 = vmatpush1.msra.mxu0 0.0
      %4198 = vmatprep.subr.mxu0 0.0
      %4199 = vmatpush1.msra.mxu0 0.0
      %4200 = vmatprep.subr.mxu0 0.0
      %4201 = vmatpush1.msra.mxu0 0.0
      %4202 = vmatprep.subr.mxu0 0.0
      %4203 = vmatpush1.msra.mxu0 0.0
      %4204 = vmatprep.subr.mxu0 0.0
      %4205 = vmatpush1.msra.mxu0 0.0
      %4206 = vmatprep.mubr.f32.mxu0 0.0
      %4207 = vmatmul.mubr.f32.gmra.mrb[0].mxu0 %v4135
      %v4208 = vpop.f32.mrb[0].mxu0
      %v4209 = vadd.f32 0.0, %v4208
      %v4210 = vpop.f32.mrb[0].mxu0
      %4211 = vmatprep.mubr.f32.mxu0 0.0
      %4212 = vmatmul.mubr.f32.gmra.mrb[0].mxu0 %v4138
      %v4213 = vpop.f32.mrb[0].mxu0
      %v4214 = vadd.f32 0.0, %v4213
      %v4215 = vpop.f32.mrb[0].mxu0
      %4216 = vdwg.mxu0
      %v4217 = vadd.f32 %v4124, %v4209
      %v4218 = vadd.f32 %v4125, %v4214
      %v4219 = vld [vmem:[%s5] sm:$0xff]
      %v4220 = vld [vmem:[%s5 + $0x8] sm:$0xff]
      %4222 = vset.pattern.permute.xlu0 0
      %4223 = vperm.xlu0 %4222, %v4219
      %v4224 = vpop.permute.xlu0 %4223
      %4227 = vset.pattern.permute.xlu0 0
      %4228 = vperm.xlu0 %4227, %v4220
      %v4229 = vpop.permute.xlu0 %4228
      %v4231 = vadd.f32 %v4217, %v4224
      %v4232 = vadd.f32 %v4218, %v4229
      %vm4233 = vcmp.ge.f32.partialorder %v4231, 0.0
      %vm4234 = vcmp.ge.f32.partialorder %v4232, 0.0
      %v4235 = vld [vmem:[#allocation5] sm:$0x1]
      %v4237 = vlaneseq
      %v4238 = vshrl.u32 %v4237, 7
      %v4239 = vsub.s32 0, %v4238
      %v4240 = vrot.slane %v4235, %v4239
      %4241 = vset.pattern.permute.xlu0 0
      %4242 = vperm.xlu0 %4241, %v4240
      %v4243 = vpop.permute.xlu0 %4242
      %v4245 = vmul.f32 %v4243, %v4231
      %v4246 = vmul.f32 %v4243, %v4232
      %v4247 = vsel %vm4233, %v4231, %v4245
      %v4248 = vsel %vm4234, %v4232, %v4246
      %vm4249 = vcmask 343040
      %4250 = vst.msk [vmem:[#allocation3] sm:$0xff] %vm4249, %v4247
      %4251 = vst.msk [vmem:[#allocation3 + $0x8] sm:$0xff] %vm4249, %v4248
      %v4252 = vld [vmem:[%s7] sm:$0xff]
      %v4253 = vld [vmem:[%s7 + $0x8] sm:$0xff]
      %v4254 = vld [vmem:[%s7 + $0x10] sm:$0xff]
      %v4255 = vld [vmem:[%s7 + $0x18] sm:$0xff]
      %v4256 = vld [vmem:[#allocation3] sm:$0xff]
      %v4257 = vld [vmem:[#allocation3 + $0x8] sm:$0xff]
      %s4258 = scalar_lea.vmem %s7, 32
      %v4259 = vld [vmem:[%s4258] sm:$0xff]
      %v4260 = vld [vmem:[%s4258 + $0x8] sm:$0xff]
      %v4261 = vld [vmem:[%s4258 + $0x10] sm:$0xff]
      %v4262 = vld [vmem:[%s4258 + $0x18] sm:$0xff]
      %4265 = vrot.lane.b32.xlu0 %v4256, 127
      %v4266 = vpop.permute.xlu0 %4265
      %4267 = vrot.lane.b32.xlu0 %v4257, 127
      %v4268 = vpop.permute.xlu0 %4267
      %vm4271 = vcmask 130048
      %v4273 = vsel %vm4271, %v4259, 0
      %v4276 = vsel %vm4271, %v4260, 0
      %v4279 = vsel %vm4271, %v4261, 0
      %v4282 = vsel %vm4271, %v4262, 0
      %4284 = vmatprep.subr.mxu0 0.0
      %4285 = vmatpush1.msra.mxu0 %v4266
      %4286 = vmatprep.subr.mxu0 0.0
      %4287 = vmatpush1.msra.mxu0 %v4268
      %4288 = vmatprep.subr.mxu0 0.0
      %4289 = vmatpush1.msra.mxu0 0.0
      %4290 = vmatprep.subr.mxu0 0.0
      %4291 = vmatpush1.msra.mxu0 0.0
      %4292 = vmatprep.subr.mxu0 0.0
      %4293 = vmatpush1.msra.mxu0 0.0
      %4294 = vmatprep.subr.mxu0 0.0
      %4295 = vmatpush1.msra.mxu0 0.0
      %4296 = vmatprep.subr.mxu0 0.0
      %4297 = vmatpush1.msra.mxu0 0.0
      %4298 = vmatprep.subr.mxu0 0.0
      %4299 = vmatpush1.msra.mxu0 0.0
      %4300 = vmatprep.subr.mxu0 0.0
      %4301 = vmatpush1.msra.mxu0 0.0
      %4302 = vmatprep.subr.mxu0 0.0
      %4303 = vmatpush1.msra.mxu0 0.0
      %4304 = vmatprep.subr.mxu0 0.0
      %4305 = vmatpush1.msra.mxu0 0.0
      %4306 = vmatprep.subr.mxu0 0.0
      %4307 = vmatpush1.msra.mxu0 0.0
      %4308 = vmatprep.subr.mxu0 0.0
      %4309 = vmatpush1.msra.mxu0 0.0
      %4310 = vmatprep.subr.mxu0 0.0
      %4311 = vmatpush1.msra.mxu0 0.0
      %4312 = vmatprep.subr.mxu0 0.0
      %4313 = vmatpush1.msra.mxu0 0.0
      %4314 = vmatprep.subr.mxu0 0.0
      %4315 = vmatpush1.msra.mxu0 0.0
      %4316 = vmatprep.subr.mxu0 0.0
      %4317 = vmatpush1.msra.mxu0 0.0
      %4318 = vmatprep.subr.mxu0 0.0
      %4319 = vmatpush1.msra.mxu0 0.0
      %4320 = vmatprep.subr.mxu0 0.0
      %4321 = vmatpush1.msra.mxu0 0.0
      %4322 = vmatprep.subr.mxu0 0.0
      %4323 = vmatpush1.msra.mxu0 0.0
      %4324 = vmatprep.subr.mxu0 0.0
      %4325 = vmatpush1.msra.mxu0 0.0
      %4326 = vmatprep.subr.mxu0 0.0
      %4327 = vmatpush1.msra.mxu0 0.0
      %4328 = vmatprep.subr.mxu0 0.0
      %4329 = vmatpush1.msra.mxu0 0.0
      %4330 = vmatprep.subr.mxu0 0.0
      %4331 = vmatpush1.msra.mxu0 0.0
      %4332 = vmatprep.subr.mxu0 0.0
      %4333 = vmatpush1.msra.mxu0 0.0
      %4334 = vmatprep.subr.mxu0 0.0
      %4335 = vmatpush1.msra.mxu0 0.0
      %4336 = vmatprep.subr.mxu0 0.0
      %4337 = vmatpush1.msra.mxu0 0.0
      %4338 = vmatprep.subr.mxu0 0.0
      %4339 = vmatpush1.msra.mxu0 0.0
      %4340 = vmatprep.subr.mxu0 0.0
      %4341 = vmatpush1.msra.mxu0 0.0
      %4342 = vmatprep.subr.mxu0 0.0
      %4343 = vmatpush1.msra.mxu0 0.0
      %4344 = vmatprep.subr.mxu0 0.0
      %4345 = vmatpush1.msra.mxu0 0.0
      %4346 = vmatprep.subr.mxu0 0.0
      %4347 = vmatpush1.msra.mxu0 0.0
      %4348 = vmatprep.mubr.f32.mxu0 0.0
      %4349 = vmatmul.mubr.f32.gmra.mrb[0].mxu0 %v4273
      %v4350 = vpop.f32.mrb[0].mxu0
      %v4351 = vadd.f32 0.0, %v4350
      %v4352 = vpop.f32.mrb[0].mxu0
      %4353 = vmatprep.mubr.f32.mxu0 0.0
      %4354 = vmatmul.mubr.f32.gmra.mrb[0].mxu0 %v4276
      %v4355 = vpop.f32.mrb[0].mxu0
      %v4356 = vadd.f32 0.0, %v4355
      %v4357 = vpop.f32.mrb[0].mxu0
      %4358 = vmatprep.mubr.f32.mxu0 0.0
      %4359 = vmatmul.mubr.f32.gmra.mrb[0].mxu0 %v4279
      %v4360 = vpop.f32.mrb[0].mxu0
      %v4361 = vadd.f32 0.0, %v4360
      %v4362 = vpop.f32.mrb[0].mxu0
      %4363 = vmatprep.mubr.f32.mxu0 0.0
      %4364 = vmatmul.mubr.f32.gmra.mrb[0].mxu0 %v4282
      %v4365 = vpop.f32.mrb[0].mxu0
      %v4366 = vadd.f32 0.0, %v4365
      %v4367 = vpop.f32.mrb[0].mxu0
      %4368 = vdwg.mxu0
      %v4370 = vsel %vm4271, %v4252, 0
      %v4373 = vsel %vm4271, %v4253, 0
      %v4376 = vsel %vm4271, %v4254, 0
      %v4379 = vsel %vm4271, %v4255, 0
      %4381 = vmatprep.subr.mxu0 0.0
      %4382 = vmatpush1.msra.mxu0 %v4256
      %4383 = vmatprep.subr.mxu0 0.0
      %4384 = vmatpush1.msra.mxu0 %v4257
      %4385 = vmatprep.subr.mxu0 0.0
      %4386 = vmatpush1.msra.mxu0 0.0
      %4387 = vmatprep.subr.mxu0 0.0
      %4388 = vmatpush1.msra.mxu0 0.0
      %4389 = vmatprep.subr.mxu0 0.0
      %4390 = vmatpush1.msra.mxu0 0.0
      %4391 = vmatprep.subr.mxu0 0.0
      %4392 = vmatpush1.msra.mxu0 0.0
      %4393 = vmatprep.subr.mxu0 0.0
      %4394 = vmatpush1.msra.mxu0 0.0
      %4395 = vmatprep.subr.mxu0 0.0
      %4396 = vmatpush1.msra.mxu0 0.0
      %4397 = vmatprep.subr.mxu0 0.0
      %4398 = vmatpush1.msra.mxu0 0.0
      %4399 = vmatprep.subr.mxu0 0.0
      %4400 = vmatpush1.msra.mxu0 0.0
      %4401 = vmatprep.subr.mxu0 0.0
      %4402 = vmatpush1.msra.mxu0 0.0
      %4403 = vmatprep.subr.mxu0 0.0
      %4404 = vmatpush1.msra.mxu0 0.0
      %4405 = vmatprep.subr.mxu0 0.0
      %4406 = vmatpush1.msra.mxu0 0.0
      %4407 = vmatprep.subr.mxu0 0.0
      %4408 = vmatpush1.msra.mxu0 0.0
      %4409 = vmatprep.subr.mxu0 0.0
      %4410 = vmatpush1.msra.mxu0 0.0
      %4411 = vmatprep.subr.mxu0 0.0
      %4412 = vmatpush1.msra.mxu0 0.0
      %4413 = vmatprep.subr.mxu0 0.0
      %4414 = vmatpush1.msra.mxu0 0.0
      %4415 = vmatprep.subr.mxu0 0.0
      %4416 = vmatpush1.msra.mxu0 0.0
      %4417 = vmatprep.subr.mxu0 0.0
      %4418 = vmatpush1.msra.mxu0 0.0
      %4419 = vmatprep.subr.mxu0 0.0
      %4420 = vmatpush1.msra.mxu0 0.0
      %4421 = vmatprep.subr.mxu0 0.0
      %4422 = vmatpush1.msra.mxu0 0.0
      %4423 = vmatprep.subr.mxu0 0.0
      %4424 = vmatpush1.msra.mxu0 0.0
      %4425 = vmatprep.subr.mxu0 0.0
      %4426 = vmatpush1.msra.mxu0 0.0
      %4427 = vmatprep.subr.mxu0 0.0
      %4428 = vmatpush1.msra.mxu0 0.0
      %4429 = vmatprep.subr.mxu0 0.0
      %4430 = vmatpush1.msra.mxu0 0.0
      %4431 = vmatprep.subr.mxu0 0.0
      %4432 = vmatpush1.msra.mxu0 0.0
      %4433 = vmatprep.subr.mxu0 0.0
      %4434 = vmatpush1.msra.mxu0 0.0
      %4435 = vmatprep.subr.mxu0 0.0
      %4436 = vmatpush1.msra.mxu0 0.0
      %4437 = vmatprep.subr.mxu0 0.0
      %4438 = vmatpush1.msra.mxu0 0.0
      %4439 = vmatprep.subr.mxu0 0.0
      %4440 = vmatpush1.msra.mxu0 0.0
      %4441 = vmatprep.subr.mxu0 0.0
      %4442 = vmatpush1.msra.mxu0 0.0
      %4443 = vmatprep.subr.mxu0 0.0
      %4444 = vmatpush1.msra.mxu0 0.0
      %4445 = vmatprep.mubr.f32.mxu0 0.0
      %4446 = vmatmul.mubr.f32.gmra.mrb[0].mxu0 %v4370
      %v4447 = vpop.f32.mrb[0].mxu0
      %v4448 = vadd.f32 %v4351, %v4447
      %v4449 = vpop.f32.mrb[0].mxu0
      %4450 = vmatprep.mubr.f32.mxu0 0.0
      %4451 = vmatmul.mubr.f32.gmra.mrb[0].mxu0 %v4373
      %v4452 = vpop.f32.mrb[0].mxu0
      %v4453 = vadd.f32 %v4356, %v4452
      %v4454 = vpop.f32.mrb[0].mxu0
      %4455 = vmatprep.mubr.f32.mxu0 0.0
      %4456 = vmatmul.mubr.f32.gmra.mrb[0].mxu0 %v4376
      %v4457 = vpop.f32.mrb[0].mxu0
      %v4458 = vadd.f32 %v4361, %v4457
      %v4459 = vpop.f32.mrb[0].mxu0
      %4460 = vmatprep.mubr.f32.mxu0 0.0
      %4461 = vmatmul.mubr.f32.gmra.mrb[0].mxu0 %v4379
      %v4462 = vpop.f32.mrb[0].mxu0
      %v4463 = vadd.f32 %v4366, %v4462
      %v4464 = vpop.f32.mrb[0].mxu0
      %4465 = vdwg.mxu0
      %s4466 = scalar_lea.vmem %s7, 64
      %v4467 = vld [vmem:[%s4466] sm:$0xff]
      %v4468 = vld [vmem:[%s4466 + $0x8] sm:$0xff]
      %v4469 = vld [vmem:[%s4466 + $0x10] sm:$0xff]
      %v4470 = vld [vmem:[%s4466 + $0x18] sm:$0xff]
      %4471 = vrot.lane.b32.xlu0 %v4256, 126
      %v4472 = vpop.permute.xlu0 %4471
      %4473 = vrot.lane.b32.xlu0 %v4257, 126
      %v4474 = vpop.permute.xlu0 %4473
      %v4478 = vsel %vm4271, %v4467, 0
      %v4481 = vsel %vm4271, %v4468, 0
      %v4484 = vsel %vm4271, %v4469, 0
      %v4487 = vsel %vm4271, %v4470, 0
      %4489 = vmatprep.subr.mxu0 0.0
      %4490 = vmatpush1.msra.mxu0 %v4472
      %4491 = vmatprep.subr.mxu0 0.0
      %4492 = vmatpush1.msra.mxu0 %v4474
      %4493 = vmatprep.subr.mxu0 0.0
      %4494 = vmatpush1.msra.mxu0 0.0
      %4495 = vmatprep.subr.mxu0 0.0
      %4496 = vmatpush1.msra.mxu0 0.0
      %4497 = vmatprep.subr.mxu0 0.0
      %4498 = vmatpush1.msra.mxu0 0.0
      %4499 = vmatprep.subr.mxu0 0.0
      %4500 = vmatpush1.msra.mxu0 0.0
      %4501 = vmatprep.subr.mxu0 0.0
      %4502 = vmatpush1.msra.mxu0 0.0
      %4503 = vmatprep.subr.mxu0 0.0
      %4504 = vmatpush1.msra.mxu0 0.0
      %4505 = vmatprep.subr.mxu0 0.0
      %4506 = vmatpush1.msra.mxu0 0.0
      %4507 = vmatprep.subr.mxu0 0.0
      %4508 = vmatpush1.msra.mxu0 0.0
      %4509 = vmatprep.subr.mxu0 0.0
      %4510 = vmatpush1.msra.mxu0 0.0
      %4511 = vmatprep.subr.mxu0 0.0
      %4512 = vmatpush1.msra.mxu0 0.0
      %4513 = vmatprep.subr.mxu0 0.0
      %4514 = vmatpush1.msra.mxu0 0.0
      %4515 = vmatprep.subr.mxu0 0.0
      %4516 = vmatpush1.msra.mxu0 0.0
      %4517 = vmatprep.subr.mxu0 0.0
      %4518 = vmatpush1.msra.mxu0 0.0
      %4519 = vmatprep.subr.mxu0 0.0
      %4520 = vmatpush1.msra.mxu0 0.0
      %4521 = vmatprep.subr.mxu0 0.0
      %4522 = vmatpush1.msra.mxu0 0.0
      %4523 = vmatprep.subr.mxu0 0.0
      %4524 = vmatpush1.msra.mxu0 0.0
      %4525 = vmatprep.subr.mxu0 0.0
      %4526 = vmatpush1.msra.mxu0 0.0
      %4527 = vmatprep.subr.mxu0 0.0
      %4528 = vmatpush1.msra.mxu0 0.0
      %4529 = vmatprep.subr.mxu0 0.0
      %4530 = vmatpush1.msra.mxu0 0.0
      %4531 = vmatprep.subr.mxu0 0.0
      %4532 = vmatpush1.msra.mxu0 0.0
      %4533 = vmatprep.subr.mxu0 0.0
      %4534 = vmatpush1.msra.mxu0 0.0
      %4535 = vmatprep.subr.mxu0 0.0
      %4536 = vmatpush1.msra.mxu0 0.0
      %4537 = vmatprep.subr.mxu0 0.0
      %4538 = vmatpush1.msra.mxu0 0.0
      %4539 = vmatprep.subr.mxu0 0.0
      %4540 = vmatpush1.msra.mxu0 0.0
      %4541 = vmatprep.subr.mxu0 0.0
      %4542 = vmatpush1.msra.mxu0 0.0
      %4543 = vmatprep.subr.mxu0 0.0
      %4544 = vmatpush1.msra.mxu0 0.0
      %4545 = vmatprep.subr.mxu0 0.0
      %4546 = vmatpush1.msra.mxu0 0.0
      %4547 = vmatprep.subr.mxu0 0.0
      %4548 = vmatpush1.msra.mxu0 0.0
      %4549 = vmatprep.subr.mxu0 0.0
      %4550 = vmatpush1.msra.mxu0 0.0
      %4551 = vmatprep.subr.mxu0 0.0
      %4552 = vmatpush1.msra.mxu0 0.0
      %4553 = vmatprep.mubr.f32.mxu0 0.0
      %4554 = vmatmul.mubr.f32.gmra.mrb[0].mxu0 %v4478
      %v4555 = vpop.f32.mrb[0].mxu0
      %v4556 = vadd.f32 0.0, %v4555
      %v4557 = vpop.f32.mrb[0].mxu0
      %4558 = vmatprep.mubr.f32.mxu0 0.0
      %4559 = vmatmul.mubr.f32.gmra.mrb[0].mxu0 %v4481
      %v4560 = vpop.f32.mrb[0].mxu0
      %v4561 = vadd.f32 0.0, %v4560
      %v4562 = vpop.f32.mrb[0].mxu0
      %4563 = vmatprep.mubr.f32.mxu0 0.0
      %4564 = vmatmul.mubr.f32.gmra.mrb[0].mxu0 %v4484
      %v4565 = vpop.f32.mrb[0].mxu0
      %v4566 = vadd.f32 0.0, %v4565
      %v4567 = vpop.f32.mrb[0].mxu0
      %4568 = vmatprep.mubr.f32.mxu0 0.0
      %4569 = vmatmul.mubr.f32.gmra.mrb[0].mxu0 %v4487
      %v4570 = vpop.f32.mrb[0].mxu0
      %v4571 = vadd.f32 0.0, %v4570
      %v4572 = vpop.f32.mrb[0].mxu0
      %4573 = vdwg.mxu0
      %v4574 = vadd.f32 %v4448, %v4556
      %v4575 = vadd.f32 %v4453, %v4561
      %v4576 = vadd.f32 %v4458, %v4566
      %v4577 = vadd.f32 %v4463, %v4571
      %s4578 = scalar_lea.vmem %s7, 96
      %v4579 = vld [vmem:[%s4578] sm:$0xff]
      %v4580 = vld [vmem:[%s4578 + $0x8] sm:$0xff]
      %v4581 = vld [vmem:[%s4578 + $0x10] sm:$0xff]
      %v4582 = vld [vmem:[%s4578 + $0x18] sm:$0xff]
      %4583 = vrot.lane.b32.xlu0 %v4256, 120
      %v4584 = vpop.permute.xlu0 %4583
      %4585 = vrot.lane.b32.xlu0 %v4257, 120
      %v4586 = vpop.permute.xlu0 %4585
      %v4590 = vsel %vm4271, %v4579, 0
      %v4593 = vsel %vm4271, %v4580, 0
      %v4596 = vsel %vm4271, %v4581, 0
      %v4599 = vsel %vm4271, %v4582, 0
      %4601 = vmatprep.subr.mxu0 0.0
      %4602 = vmatpush1.msra.mxu0 %v4584
      %4603 = vmatprep.subr.mxu0 0.0
      %4604 = vmatpush1.msra.mxu0 %v4586
      %4605 = vmatprep.subr.mxu0 0.0
      %4606 = vmatpush1.msra.mxu0 0.0
      %4607 = vmatprep.subr.mxu0 0.0
      %4608 = vmatpush1.msra.mxu0 0.0
      %4609 = vmatprep.subr.mxu0 0.0
      %4610 = vmatpush1.msra.mxu0 0.0
      %4611 = vmatprep.subr.mxu0 0.0
      %4612 = vmatpush1.msra.mxu0 0.0
      %4613 = vmatprep.subr.mxu0 0.0
      %4614 = vmatpush1.msra.mxu0 0.0
      %4615 = vmatprep.subr.mxu0 0.0
      %4616 = vmatpush1.msra.mxu0 0.0
      %4617 = vmatprep.subr.mxu0 0.0
      %4618 = vmatpush1.msra.mxu0 0.0
      %4619 = vmatprep.subr.mxu0 0.0
      %4620 = vmatpush1.msra.mxu0 0.0
      %4621 = vmatprep.subr.mxu0 0.0
      %4622 = vmatpush1.msra.mxu0 0.0
      %4623 = vmatprep.subr.mxu0 0.0
      %4624 = vmatpush1.msra.mxu0 0.0
      %4625 = vmatprep.subr.mxu0 0.0
      %4626 = vmatpush1.msra.mxu0 0.0
      %4627 = vmatprep.subr.mxu0 0.0
      %4628 = vmatpush1.msra.mxu0 0.0
      %4629 = vmatprep.subr.mxu0 0.0
      %4630 = vmatpush1.msra.mxu0 0.0
      %4631 = vmatprep.subr.mxu0 0.0
      %4632 = vmatpush1.msra.mxu0 0.0
      %4633 = vmatprep.subr.mxu0 0.0
      %4634 = vmatpush1.msra.mxu0 0.0
      %4635 = vmatprep.subr.mxu0 0.0
      %4636 = vmatpush1.msra.mxu0 0.0
      %4637 = vmatprep.subr.mxu0 0.0
      %4638 = vmatpush1.msra.mxu0 0.0
      %4639 = vmatprep.subr.mxu0 0.0
      %4640 = vmatpush1.msra.mxu0 0.0
      %4641 = vmatprep.subr.mxu0 0.0
      %4642 = vmatpush1.msra.mxu0 0.0
      %4643 = vmatprep.subr.mxu0 0.0
      %4644 = vmatpush1.msra.mxu0 0.0
      %4645 = vmatprep.subr.mxu0 0.0
      %4646 = vmatpush1.msra.mxu0 0.0
      %4647 = vmatprep.subr.mxu0 0.0
      %4648 = vmatpush1.msra.mxu0 0.0
      %4649 = vmatprep.subr.mxu0 0.0
      %4650 = vmatpush1.msra.mxu0 0.0
      %4651 = vmatprep.subr.mxu0 0.0
      %4652 = vmatpush1.msra.mxu0 0.0
      %4653 = vmatprep.subr.mxu0 0.0
      %4654 = vmatpush1.msra.mxu0 0.0
      %4655 = vmatprep.subr.mxu0 0.0
      %4656 = vmatpush1.msra.mxu0 0.0
      %4657 = vmatprep.subr.mxu0 0.0
      %4658 = vmatpush1.msra.mxu0 0.0
      %4659 = vmatprep.subr.mxu0 0.0
      %4660 = vmatpush1.msra.mxu0 0.0
      %4661 = vmatprep.subr.mxu0 0.0
      %4662 = vmatpush1.msra.mxu0 0.0
      %4663 = vmatprep.subr.mxu0 0.0
      %4664 = vmatpush1.msra.mxu0 0.0
      %4665 = vmatprep.mubr.f32.mxu0 0.0
      %4666 = vmatmul.mubr.f32.gmra.mrb[0].mxu0 %v4590
      %v4667 = vpop.f32.mrb[0].mxu0
      %v4668 = vadd.f32 0.0, %v4667
      %v4669 = vpop.f32.mrb[0].mxu0
      %4670 = vmatprep.mubr.f32.mxu0 0.0
      %4671 = vmatmul.mubr.f32.gmra.mrb[0].mxu0 %v4593
      %v4672 = vpop.f32.mrb[0].mxu0
      %v4673 = vadd.f32 0.0, %v4672
      %v4674 = vpop.f32.mrb[0].mxu0
      %4675 = vmatprep.mubr.f32.mxu0 0.0
      %4676 = vmatmul.mubr.f32.gmra.mrb[0].mxu0 %v4596
      %v4677 = vpop.f32.mrb[0].mxu0
      %v4678 = vadd.f32 0.0, %v4677
      %v4679 = vpop.f32.mrb[0].mxu0
      %4680 = vmatprep.mubr.f32.mxu0 0.0
      %4681 = vmatmul.mubr.f32.gmra.mrb[0].mxu0 %v4599
      %v4682 = vpop.f32.mrb[0].mxu0
      %v4683 = vadd.f32 0.0, %v4682
      %v4684 = vpop.f32.mrb[0].mxu0
      %4685 = vdwg.mxu0
      %v4686 = vadd.f32 %v4574, %v4668
      %v4687 = vadd.f32 %v4575, %v4673
      %v4688 = vadd.f32 %v4576, %v4678
      %v4689 = vadd.f32 %v4577, %v4683
      %s4690 = scalar_lea.vmem %s7, 128
      %v4691 = vld [vmem:[%s4690] sm:$0xff]
      %v4692 = vld [vmem:[%s4690 + $0x8] sm:$0xff]
      %v4693 = vld [vmem:[%s4690 + $0x10] sm:$0xff]
      %v4694 = vld [vmem:[%s4690 + $0x18] sm:$0xff]
      %4695 = vrot.lane.b32.xlu0 %v4256, 119
      %v4696 = vpop.permute.xlu0 %4695
      %4697 = vrot.lane.b32.xlu0 %v4257, 119
      %v4698 = vpop.permute.xlu0 %4697
      %v4702 = vsel %vm4271, %v4691, 0
      %v4705 = vsel %vm4271, %v4692, 0
      %v4708 = vsel %vm4271, %v4693, 0
      %v4711 = vsel %vm4271, %v4694, 0
      %4713 = vmatprep.subr.mxu0 0.0
      %4714 = vmatpush1.msra.mxu0 %v4696
      %4715 = vmatprep.subr.mxu0 0.0
      %4716 = vmatpush1.msra.mxu0 %v4698
      %4717 = vmatprep.subr.mxu0 0.0
      %4718 = vmatpush1.msra.mxu0 0.0
      %4719 = vmatprep.subr.mxu0 0.0
      %4720 = vmatpush1.msra.mxu0 0.0
      %4721 = vmatprep.subr.mxu0 0.0
      %4722 = vmatpush1.msra.mxu0 0.0
      %4723 = vmatprep.subr.mxu0 0.0
      %4724 = vmatpush1.msra.mxu0 0.0
      %4725 = vmatprep.subr.mxu0 0.0
      %4726 = vmatpush1.msra.mxu0 0.0
      %4727 = vmatprep.subr.mxu0 0.0
      %4728 = vmatpush1.msra.mxu0 0.0
      %4729 = vmatprep.subr.mxu0 0.0
      %4730 = vmatpush1.msra.mxu0 0.0
      %4731 = vmatprep.subr.mxu0 0.0
      %4732 = vmatpush1.msra.mxu0 0.0
      %4733 = vmatprep.subr.mxu0 0.0
      %4734 = vmatpush1.msra.mxu0 0.0
      %4735 = vmatprep.subr.mxu0 0.0
      %4736 = vmatpush1.msra.mxu0 0.0
      %4737 = vmatprep.subr.mxu0 0.0
      %4738 = vmatpush1.msra.mxu0 0.0
      %4739 = vmatprep.subr.mxu0 0.0
      %4740 = vmatpush1.msra.mxu0 0.0
      %4741 = vmatprep.subr.mxu0 0.0
      %4742 = vmatpush1.msra.mxu0 0.0
      %4743 = vmatprep.subr.mxu0 0.0
      %4744 = vmatpush1.msra.mxu0 0.0
      %4745 = vmatprep.subr.mxu0 0.0
      %4746 = vmatpush1.msra.mxu0 0.0
      %4747 = vmatprep.subr.mxu0 0.0
      %4748 = vmatpush1.msra.mxu0 0.0
      %4749 = vmatprep.subr.mxu0 0.0
      %4750 = vmatpush1.msra.mxu0 0.0
      %4751 = vmatprep.subr.mxu0 0.0
      %4752 = vmatpush1.msra.mxu0 0.0
      %4753 = vmatprep.subr.mxu0 0.0
      %4754 = vmatpush1.msra.mxu0 0.0
      %4755 = vmatprep.subr.mxu0 0.0
      %4756 = vmatpush1.msra.mxu0 0.0
      %4757 = vmatprep.subr.mxu0 0.0
      %4758 = vmatpush1.msra.mxu0 0.0
      %4759 = vmatprep.subr.mxu0 0.0
      %4760 = vmatpush1.msra.mxu0 0.0
      %4761 = vmatprep.subr.mxu0 0.0
      %4762 = vmatpush1.msra.mxu0 0.0
      %4763 = vmatprep.subr.mxu0 0.0
      %4764 = vmatpush1.msra.mxu0 0.0
      %4765 = vmatprep.subr.mxu0 0.0
      %4766 = vmatpush1.msra.mxu0 0.0
      %4767 = vmatprep.subr.mxu0 0.0
      %4768 = vmatpush1.msra.mxu0 0.0
      %4769 = vmatprep.subr.mxu0 0.0
      %4770 = vmatpush1.msra.mxu0 0.0
      %4771 = vmatprep.subr.mxu0 0.0
      %4772 = vmatpush1.msra.mxu0 0.0
      %4773 = vmatprep.subr.mxu0 0.0
      %4774 = vmatpush1.msra.mxu0 0.0
      %4775 = vmatprep.subr.mxu0 0.0
      %4776 = vmatpush1.msra.mxu0 0.0
      %4777 = vmatprep.mubr.f32.mxu0 0.0
      %4778 = vmatmul.mubr.f32.gmra.mrb[0].mxu0 %v4702
      %v4779 = vpop.f32.mrb[0].mxu0
      %v4780 = vadd.f32 0.0, %v4779
      %v4781 = vpop.f32.mrb[0].mxu0
      %4782 = vmatprep.mubr.f32.mxu0 0.0
      %4783 = vmatmul.mubr.f32.gmra.mrb[0].mxu0 %v4705
      %v4784 = vpop.f32.mrb[0].mxu0
      %v4785 = vadd.f32 0.0, %v4784
      %v4786 = vpop.f32.mrb[0].mxu0
      %4787 = vmatprep.mubr.f32.mxu0 0.0
      %4788 = vmatmul.mubr.f32.gmra.mrb[0].mxu0 %v4708
      %v4789 = vpop.f32.mrb[0].mxu0
      %v4790 = vadd.f32 0.0, %v4789
      %v4791 = vpop.f32.mrb[0].mxu0
      %4792 = vmatprep.mubr.f32.mxu0 0.0
      %4793 = vmatmul.mubr.f32.gmra.mrb[0].mxu0 %v4711
      %v4794 = vpop.f32.mrb[0].mxu0
      %v4795 = vadd.f32 0.0, %v4794
      %v4796 = vpop.f32.mrb[0].mxu0
      %4797 = vdwg.mxu0
      %v4798 = vadd.f32 %v4686, %v4780
      %v4799 = vadd.f32 %v4687, %v4785
      %v4800 = vadd.f32 %v4688, %v4790
      %v4801 = vadd.f32 %v4689, %v4795
      %s4802 = scalar_lea.vmem %s7, 160
      %v4803 = vld [vmem:[%s4802] sm:$0xff]
      %v4804 = vld [vmem:[%s4802 + $0x8] sm:$0xff]
      %v4805 = vld [vmem:[%s4802 + $0x10] sm:$0xff]
      %v4806 = vld [vmem:[%s4802 + $0x18] sm:$0xff]
      %4807 = vrot.lane.b32.xlu0 %v4256, 118
      %v4808 = vpop.permute.xlu0 %4807
      %4809 = vrot.lane.b32.xlu0 %v4257, 118
      %v4810 = vpop.permute.xlu0 %4809
      %v4814 = vsel %vm4271, %v4803, 0
      %v4817 = vsel %vm4271, %v4804, 0
      %v4820 = vsel %vm4271, %v4805, 0
      %v4823 = vsel %vm4271, %v4806, 0
      %4825 = vmatprep.subr.mxu0 0.0
      %4826 = vmatpush1.msra.mxu0 %v4808
      %4827 = vmatprep.subr.mxu0 0.0
      %4828 = vmatpush1.msra.mxu0 %v4810
      %4829 = vmatprep.subr.mxu0 0.0
      %4830 = vmatpush1.msra.mxu0 0.0
      %4831 = vmatprep.subr.mxu0 0.0
      %4832 = vmatpush1.msra.mxu0 0.0
      %4833 = vmatprep.subr.mxu0 0.0
      %4834 = vmatpush1.msra.mxu0 0.0
      %4835 = vmatprep.subr.mxu0 0.0
      %4836 = vmatpush1.msra.mxu0 0.0
      %4837 = vmatprep.subr.mxu0 0.0
      %4838 = vmatpush1.msra.mxu0 0.0
      %4839 = vmatprep.subr.mxu0 0.0
      %4840 = vmatpush1.msra.mxu0 0.0
      %4841 = vmatprep.subr.mxu0 0.0
      %4842 = vmatpush1.msra.mxu0 0.0
      %4843 = vmatprep.subr.mxu0 0.0
      %4844 = vmatpush1.msra.mxu0 0.0
      %4845 = vmatprep.subr.mxu0 0.0
      %4846 = vmatpush1.msra.mxu0 0.0
      %4847 = vmatprep.subr.mxu0 0.0
      %4848 = vmatpush1.msra.mxu0 0.0
      %4849 = vmatprep.subr.mxu0 0.0
      %4850 = vmatpush1.msra.mxu0 0.0
      %4851 = vmatprep.subr.mxu0 0.0
      %4852 = vmatpush1.msra.mxu0 0.0
      %4853 = vmatprep.subr.mxu0 0.0
      %4854 = vmatpush1.msra.mxu0 0.0
      %4855 = vmatprep.subr.mxu0 0.0
      %4856 = vmatpush1.msra.mxu0 0.0
      %4857 = vmatprep.subr.mxu0 0.0
      %4858 = vmatpush1.msra.mxu0 0.0
      %4859 = vmatprep.subr.mxu0 0.0
      %4860 = vmatpush1.msra.mxu0 0.0
      %4861 = vmatprep.subr.mxu0 0.0
      %4862 = vmatpush1.msra.mxu0 0.0
      %4863 = vmatprep.subr.mxu0 0.0
      %4864 = vmatpush1.msra.mxu0 0.0
      %4865 = vmatprep.subr.mxu0 0.0
      %4866 = vmatpush1.msra.mxu0 0.0
      %4867 = vmatprep.subr.mxu0 0.0
      %4868 = vmatpush1.msra.mxu0 0.0
      %4869 = vmatprep.subr.mxu0 0.0
      %4870 = vmatpush1.msra.mxu0 0.0
      %4871 = vmatprep.subr.mxu0 0.0
      %4872 = vmatpush1.msra.mxu0 0.0
      %4873 = vmatprep.subr.mxu0 0.0
      %4874 = vmatpush1.msra.mxu0 0.0
      %4875 = vmatprep.subr.mxu0 0.0
      %4876 = vmatpush1.msra.mxu0 0.0
      %4877 = vmatprep.subr.mxu0 0.0
      %4878 = vmatpush1.msra.mxu0 0.0
      %4879 = vmatprep.subr.mxu0 0.0
      %4880 = vmatpush1.msra.mxu0 0.0
      %4881 = vmatprep.subr.mxu0 0.0
      %4882 = vmatpush1.msra.mxu0 0.0
      %4883 = vmatprep.subr.mxu0 0.0
      %4884 = vmatpush1.msra.mxu0 0.0
      %4885 = vmatprep.subr.mxu0 0.0
      %4886 = vmatpush1.msra.mxu0 0.0
      %4887 = vmatprep.subr.mxu0 0.0
      %4888 = vmatpush1.msra.mxu0 0.0
      %4889 = vmatprep.mubr.f32.mxu0 0.0
      %4890 = vmatmul.mubr.f32.gmra.mrb[0].mxu0 %v4814
      %v4891 = vpop.f32.mrb[0].mxu0
      %v4892 = vadd.f32 0.0, %v4891
      %v4893 = vpop.f32.mrb[0].mxu0
      %4894 = vmatprep.mubr.f32.mxu0 0.0
      %4895 = vmatmul.mubr.f32.gmra.mrb[0].mxu0 %v4817
      %v4896 = vpop.f32.mrb[0].mxu0
      %v4897 = vadd.f32 0.0, %v4896
      %v4898 = vpop.f32.mrb[0].mxu0
      %4899 = vmatprep.mubr.f32.mxu0 0.0
      %4900 = vmatmul.mubr.f32.gmra.mrb[0].mxu0 %v4820
      %v4901 = vpop.f32.mrb[0].mxu0
      %v4902 = vadd.f32 0.0, %v4901
      %v4903 = vpop.f32.mrb[0].mxu0
      %4904 = vmatprep.mubr.f32.mxu0 0.0
      %4905 = vmatmul.mubr.f32.gmra.mrb[0].mxu0 %v4823
      %v4906 = vpop.f32.mrb[0].mxu0
      %v4907 = vadd.f32 0.0, %v4906
      %v4908 = vpop.f32.mrb[0].mxu0
      %4909 = vdwg.mxu0
      %v4910 = vadd.f32 %v4798, %v4892
      %v4911 = vadd.f32 %v4799, %v4897
      %v4912 = vadd.f32 %v4800, %v4902
      %v4913 = vadd.f32 %v4801, %v4907
      %s4914 = scalar_lea.vmem %s7, 192
      %v4915 = vld [vmem:[%s4914] sm:$0xff]
      %v4916 = vld [vmem:[%s4914 + $0x8] sm:$0xff]
      %v4917 = vld [vmem:[%s4914 + $0x10] sm:$0xff]
      %v4918 = vld [vmem:[%s4914 + $0x18] sm:$0xff]
      %4919 = vrot.lane.b32.xlu0 %v4256, 112
      %v4920 = vpop.permute.xlu0 %4919
      %4921 = vrot.lane.b32.xlu0 %v4257, 112
      %v4922 = vpop.permute.xlu0 %4921
      %v4926 = vsel %vm4271, %v4915, 0
      %v4929 = vsel %vm4271, %v4916, 0
      %v4932 = vsel %vm4271, %v4917, 0
      %v4935 = vsel %vm4271, %v4918, 0
      %4937 = vmatprep.subr.mxu0 0.0
      %4938 = vmatpush1.msra.mxu0 %v4920
      %4939 = vmatprep.subr.mxu0 0.0
      %4940 = vmatpush1.msra.mxu0 %v4922
      %4941 = vmatprep.subr.mxu0 0.0
      %4942 = vmatpush1.msra.mxu0 0.0
      %4943 = vmatprep.subr.mxu0 0.0
      %4944 = vmatpush1.msra.mxu0 0.0
      %4945 = vmatprep.subr.mxu0 0.0
      %4946 = vmatpush1.msra.mxu0 0.0
      %4947 = vmatprep.subr.mxu0 0.0
      %4948 = vmatpush1.msra.mxu0 0.0
      %4949 = vmatprep.subr.mxu0 0.0
      %4950 = vmatpush1.msra.mxu0 0.0
      %4951 = vmatprep.subr.mxu0 0.0
      %4952 = vmatpush1.msra.mxu0 0.0
      %4953 = vmatprep.subr.mxu0 0.0
      %4954 = vmatpush1.msra.mxu0 0.0
      %4955 = vmatprep.subr.mxu0 0.0
      %4956 = vmatpush1.msra.mxu0 0.0
      %4957 = vmatprep.subr.mxu0 0.0
      %4958 = vmatpush1.msra.mxu0 0.0
      %4959 = vmatprep.subr.mxu0 0.0
      %4960 = vmatpush1.msra.mxu0 0.0
      %4961 = vmatprep.subr.mxu0 0.0
      %4962 = vmatpush1.msra.mxu0 0.0
      %4963 = vmatprep.subr.mxu0 0.0
      %4964 = vmatpush1.msra.mxu0 0.0
      %4965 = vmatprep.subr.mxu0 0.0
      %4966 = vmatpush1.msra.mxu0 0.0
      %4967 = vmatprep.subr.mxu0 0.0
      %4968 = vmatpush1.msra.mxu0 0.0
      %4969 = vmatprep.subr.mxu0 0.0
      %4970 = vmatpush1.msra.mxu0 0.0
      %4971 = vmatprep.subr.mxu0 0.0
      %4972 = vmatpush1.msra.mxu0 0.0
      %4973 = vmatprep.subr.mxu0 0.0
      %4974 = vmatpush1.msra.mxu0 0.0
      %4975 = vmatprep.subr.mxu0 0.0
      %4976 = vmatpush1.msra.mxu0 0.0
      %4977 = vmatprep.subr.mxu0 0.0
      %4978 = vmatpush1.msra.mxu0 0.0
      %4979 = vmatprep.subr.mxu0 0.0
      %4980 = vmatpush1.msra.mxu0 0.0
      %4981 = vmatprep.subr.mxu0 0.0
      %4982 = vmatpush1.msra.mxu0 0.0
      %4983 = vmatprep.subr.mxu0 0.0
      %4984 = vmatpush1.msra.mxu0 0.0
      %4985 = vmatprep.subr.mxu0 0.0
      %4986 = vmatpush1.msra.mxu0 0.0
      %4987 = vmatprep.subr.mxu0 0.0
      %4988 = vmatpush1.msra.mxu0 0.0
      %4989 = vmatprep.subr.mxu0 0.0
      %4990 = vmatpush1.msra.mxu0 0.0
      %4991 = vmatprep.subr.mxu0 0.0
      %4992 = vmatpush1.msra.mxu0 0.0
      %4993 = vmatprep.subr.mxu0 0.0
      %4994 = vmatpush1.msra.mxu0 0.0
      %4995 = vmatprep.subr.mxu0 0.0
      %4996 = vmatpush1.msra.mxu0 0.0
      %4997 = vmatprep.subr.mxu0 0.0
      %4998 = vmatpush1.msra.mxu0 0.0
      %4999 = vmatprep.subr.mxu0 0.0
      %5000 = vmatpush1.msra.mxu0 0.0
      %5001 = vmatprep.mubr.f32.mxu0 0.0
      %5002 = vmatmul.mubr.f32.gmra.mrb[0].mxu0 %v4926
      %v5003 = vpop.f32.mrb[0].mxu0
      %v5004 = vadd.f32 0.0, %v5003
      %v5005 = vpop.f32.mrb[0].mxu0
      %5006 = vmatprep.mubr.f32.mxu0 0.0
      %5007 = vmatmul.mubr.f32.gmra.mrb[0].mxu0 %v4929
      %v5008 = vpop.f32.mrb[0].mxu0
      %v5009 = vadd.f32 0.0, %v5008
      %v5010 = vpop.f32.mrb[0].mxu0
      %5011 = vmatprep.mubr.f32.mxu0 0.0
      %5012 = vmatmul.mubr.f32.gmra.mrb[0].mxu0 %v4932
      %v5013 = vpop.f32.mrb[0].mxu0
      %v5014 = vadd.f32 0.0, %v5013
      %v5015 = vpop.f32.mrb[0].mxu0
      %5016 = vmatprep.mubr.f32.mxu0 0.0
      %5017 = vmatmul.mubr.f32.gmra.mrb[0].mxu0 %v4935
      %v5018 = vpop.f32.mrb[0].mxu0
      %v5019 = vadd.f32 0.0, %v5018
      %v5020 = vpop.f32.mrb[0].mxu0
      %5021 = vdwg.mxu0
      %v5022 = vadd.f32 %v4910, %v5004
      %v5023 = vadd.f32 %v4911, %v5009
      %v5024 = vadd.f32 %v4912, %v5014
      %v5025 = vadd.f32 %v4913, %v5019
      %s5026 = scalar_lea.vmem %s7, 224
      %v5027 = vld [vmem:[%s5026] sm:$0xff]
      %v5028 = vld [vmem:[%s5026 + $0x8] sm:$0xff]
      %v5029 = vld [vmem:[%s5026 + $0x10] sm:$0xff]
      %v5030 = vld [vmem:[%s5026 + $0x18] sm:$0xff]
      %5031 = vrot.lane.b32.xlu0 %v4256, 111
      %v5032 = vpop.permute.xlu0 %5031
      %5033 = vrot.lane.b32.xlu0 %v4257, 111
      %v5034 = vpop.permute.xlu0 %5033
      %v5038 = vsel %vm4271, %v5027, 0
      %v5041 = vsel %vm4271, %v5028, 0
      %v5044 = vsel %vm4271, %v5029, 0
      %v5047 = vsel %vm4271, %v5030, 0
      %5049 = vmatprep.subr.mxu0 0.0
      %5050 = vmatpush1.msra.mxu0 %v5032
      %5051 = vmatprep.subr.mxu0 0.0
      %5052 = vmatpush1.msra.mxu0 %v5034
      %5053 = vmatprep.subr.mxu0 0.0
      %5054 = vmatpush1.msra.mxu0 0.0
      %5055 = vmatprep.subr.mxu0 0.0
      %5056 = vmatpush1.msra.mxu0 0.0
      %5057 = vmatprep.subr.mxu0 0.0
      %5058 = vmatpush1.msra.mxu0 0.0
      %5059 = vmatprep.subr.mxu0 0.0
      %5060 = vmatpush1.msra.mxu0 0.0
      %5061 = vmatprep.subr.mxu0 0.0
      %5062 = vmatpush1.msra.mxu0 0.0
      %5063 = vmatprep.subr.mxu0 0.0
      %5064 = vmatpush1.msra.mxu0 0.0
      %5065 = vmatprep.subr.mxu0 0.0
      %5066 = vmatpush1.msra.mxu0 0.0
      %5067 = vmatprep.subr.mxu0 0.0
      %5068 = vmatpush1.msra.mxu0 0.0
      %5069 = vmatprep.subr.mxu0 0.0
      %5070 = vmatpush1.msra.mxu0 0.0
      %5071 = vmatprep.subr.mxu0 0.0
      %5072 = vmatpush1.msra.mxu0 0.0
      %5073 = vmatprep.subr.mxu0 0.0
      %5074 = vmatpush1.msra.mxu0 0.0
      %5075 = vmatprep.subr.mxu0 0.0
      %5076 = vmatpush1.msra.mxu0 0.0
      %5077 = vmatprep.subr.mxu0 0.0
      %5078 = vmatpush1.msra.mxu0 0.0
      %5079 = vmatprep.subr.mxu0 0.0
      %5080 = vmatpush1.msra.mxu0 0.0
      %5081 = vmatprep.subr.mxu0 0.0
      %5082 = vmatpush1.msra.mxu0 0.0
      %5083 = vmatprep.subr.mxu0 0.0
      %5084 = vmatpush1.msra.mxu0 0.0
      %5085 = vmatprep.subr.mxu0 0.0
      %5086 = vmatpush1.msra.mxu0 0.0
      %5087 = vmatprep.subr.mxu0 0.0
      %5088 = vmatpush1.msra.mxu0 0.0
      %5089 = vmatprep.subr.mxu0 0.0
      %5090 = vmatpush1.msra.mxu0 0.0
      %5091 = vmatprep.subr.mxu0 0.0
      %5092 = vmatpush1.msra.mxu0 0.0
      %5093 = vmatprep.subr.mxu0 0.0
      %5094 = vmatpush1.msra.mxu0 0.0
      %5095 = vmatprep.subr.mxu0 0.0
      %5096 = vmatpush1.msra.mxu0 0.0
      %5097 = vmatprep.subr.mxu0 0.0
      %5098 = vmatpush1.msra.mxu0 0.0
      %5099 = vmatprep.subr.mxu0 0.0
      %5100 = vmatpush1.msra.mxu0 0.0
      %5101 = vmatprep.subr.mxu0 0.0
      %5102 = vmatpush1.msra.mxu0 0.0
      %5103 = vmatprep.subr.mxu0 0.0
      %5104 = vmatpush1.msra.mxu0 0.0
      %5105 = vmatprep.subr.mxu0 0.0
      %5106 = vmatpush1.msra.mxu0 0.0
      %5107 = vmatprep.subr.mxu0 0.0
      %5108 = vmatpush1.msra.mxu0 0.0
      %5109 = vmatprep.subr.mxu0 0.0
      %5110 = vmatpush1.msra.mxu0 0.0
      %5111 = vmatprep.subr.mxu0 0.0
      %5112 = vmatpush1.msra.mxu0 0.0
      %5113 = vmatprep.mubr.f32.mxu0 0.0
      %5114 = vmatmul.mubr.f32.gmra.mrb[0].mxu0 %v5038
      %v5115 = vpop.f32.mrb[0].mxu0
      %v5116 = vadd.f32 0.0, %v5115
      %v5117 = vpop.f32.mrb[0].mxu0
      %5118 = vmatprep.mubr.f32.mxu0 0.0
      %5119 = vmatmul.mubr.f32.gmra.mrb[0].mxu0 %v5041
      %v5120 = vpop.f32.mrb[0].mxu0
      %v5121 = vadd.f32 0.0, %v5120
      %v5122 = vpop.f32.mrb[0].mxu0
      %5123 = vmatprep.mubr.f32.mxu0 0.0
      %5124 = vmatmul.mubr.f32.gmra.mrb[0].mxu0 %v5044
      %v5125 = vpop.f32.mrb[0].mxu0
      %v5126 = vadd.f32 0.0, %v5125
      %v5127 = vpop.f32.mrb[0].mxu0
      %5128 = vmatprep.mubr.f32.mxu0 0.0
      %5129 = vmatmul.mubr.f32.gmra.mrb[0].mxu0 %v5047
      %v5130 = vpop.f32.mrb[0].mxu0
      %v5131 = vadd.f32 0.0, %v5130
      %v5132 = vpop.f32.mrb[0].mxu0
      %5133 = vdwg.mxu0
      %v5134 = vadd.f32 %v5022, %v5116
      %v5135 = vadd.f32 %v5023, %v5121
      %v5136 = vadd.f32 %v5024, %v5126
      %v5137 = vadd.f32 %v5025, %v5131
      %s5138 = scalar_lea.vmem %s7, 256
      %v5139 = vld [vmem:[%s5138] sm:$0xff]
      %v5140 = vld [vmem:[%s5138 + $0x8] sm:$0xff]
      %v5141 = vld [vmem:[%s5138 + $0x10] sm:$0xff]
      %v5142 = vld [vmem:[%s5138 + $0x18] sm:$0xff]
      %5143 = vrot.lane.b32.xlu0 %v4256, 110
      %v5144 = vpop.permute.xlu0 %5143
      %5145 = vrot.lane.b32.xlu0 %v4257, 110
      %v5146 = vpop.permute.xlu0 %5145
      %v5150 = vsel %vm4271, %v5139, 0
      %v5153 = vsel %vm4271, %v5140, 0
      %v5156 = vsel %vm4271, %v5141, 0
      %v5159 = vsel %vm4271, %v5142, 0
      %5161 = vmatprep.subr.mxu0 0.0
      %5162 = vmatpush1.msra.mxu0 %v5144
      %5163 = vmatprep.subr.mxu0 0.0
      %5164 = vmatpush1.msra.mxu0 %v5146
      %5165 = vmatprep.subr.mxu0 0.0
      %5166 = vmatpush1.msra.mxu0 0.0
      %5167 = vmatprep.subr.mxu0 0.0
      %5168 = vmatpush1.msra.mxu0 0.0
      %5169 = vmatprep.subr.mxu0 0.0
      %5170 = vmatpush1.msra.mxu0 0.0
      %5171 = vmatprep.subr.mxu0 0.0
      %5172 = vmatpush1.msra.mxu0 0.0
      %5173 = vmatprep.subr.mxu0 0.0
      %5174 = vmatpush1.msra.mxu0 0.0
      %5175 = vmatprep.subr.mxu0 0.0
      %5176 = vmatpush1.msra.mxu0 0.0
      %5177 = vmatprep.subr.mxu0 0.0
      %5178 = vmatpush1.msra.mxu0 0.0
      %5179 = vmatprep.subr.mxu0 0.0
      %5180 = vmatpush1.msra.mxu0 0.0
      %5181 = vmatprep.subr.mxu0 0.0
      %5182 = vmatpush1.msra.mxu0 0.0
      %5183 = vmatprep.subr.mxu0 0.0
      %5184 = vmatpush1.msra.mxu0 0.0
      %5185 = vmatprep.subr.mxu0 0.0
      %5186 = vmatpush1.msra.mxu0 0.0
      %5187 = vmatprep.subr.mxu0 0.0
      %5188 = vmatpush1.msra.mxu0 0.0
      %5189 = vmatprep.subr.mxu0 0.0
      %5190 = vmatpush1.msra.mxu0 0.0
      %5191 = vmatprep.subr.mxu0 0.0
      %5192 = vmatpush1.msra.mxu0 0.0
      %5193 = vmatprep.subr.mxu0 0.0
      %5194 = vmatpush1.msra.mxu0 0.0
      %5195 = vmatprep.subr.mxu0 0.0
      %5196 = vmatpush1.msra.mxu0 0.0
      %5197 = vmatprep.subr.mxu0 0.0
      %5198 = vmatpush1.msra.mxu0 0.0
      %5199 = vmatprep.subr.mxu0 0.0
      %5200 = vmatpush1.msra.mxu0 0.0
      %5201 = vmatprep.subr.mxu0 0.0
      %5202 = vmatpush1.msra.mxu0 0.0
      %5203 = vmatprep.subr.mxu0 0.0
      %5204 = vmatpush1.msra.mxu0 0.0
      %5205 = vmatprep.subr.mxu0 0.0
      %5206 = vmatpush1.msra.mxu0 0.0
      %5207 = vmatprep.subr.mxu0 0.0
      %5208 = vmatpush1.msra.mxu0 0.0
      %5209 = vmatprep.subr.mxu0 0.0
      %5210 = vmatpush1.msra.mxu0 0.0
      %5211 = vmatprep.subr.mxu0 0.0
      %5212 = vmatpush1.msra.mxu0 0.0
      %5213 = vmatprep.subr.mxu0 0.0
      %5214 = vmatpush1.msra.mxu0 0.0
      %5215 = vmatprep.subr.mxu0 0.0
      %5216 = vmatpush1.msra.mxu0 0.0
      %5217 = vmatprep.subr.mxu0 0.0
      %5218 = vmatpush1.msra.mxu0 0.0
      %5219 = vmatprep.subr.mxu0 0.0
      %5220 = vmatpush1.msra.mxu0 0.0
      %5221 = vmatprep.subr.mxu0 0.0
      %5222 = vmatpush1.msra.mxu0 0.0
      %5223 = vmatprep.subr.mxu0 0.0
      %5224 = vmatpush1.msra.mxu0 0.0
      %5225 = vmatprep.mubr.f32.mxu0 0.0
      %5226 = vmatmul.mubr.f32.gmra.mrb[0].mxu0 %v5150
      %v5227 = vpop.f32.mrb[0].mxu0
      %v5228 = vadd.f32 0.0, %v5227
      %v5229 = vpop.f32.mrb[0].mxu0
      %5230 = vmatprep.mubr.f32.mxu0 0.0
      %5231 = vmatmul.mubr.f32.gmra.mrb[0].mxu0 %v5153
      %v5232 = vpop.f32.mrb[0].mxu0
      %v5233 = vadd.f32 0.0, %v5232
      %v5234 = vpop.f32.mrb[0].mxu0
      %5235 = vmatprep.mubr.f32.mxu0 0.0
      %5236 = vmatmul.mubr.f32.gmra.mrb[0].mxu0 %v5156
      %v5237 = vpop.f32.mrb[0].mxu0
      %v5238 = vadd.f32 0.0, %v5237
      %v5239 = vpop.f32.mrb[0].mxu0
      %5240 = vmatprep.mubr.f32.mxu0 0.0
      %5241 = vmatmul.mubr.f32.gmra.mrb[0].mxu0 %v5159
      %v5242 = vpop.f32.mrb[0].mxu0
      %v5243 = vadd.f32 0.0, %v5242
      %v5244 = vpop.f32.mrb[0].mxu0
      %5245 = vdwg.mxu0
      %v5246 = vadd.f32 %v5134, %v5228
      %v5247 = vadd.f32 %v5135, %v5233
      %v5248 = vadd.f32 %v5136, %v5238
      %v5249 = vadd.f32 %v5137, %v5243
      %v5250 = vld [vmem:[%s8] sm:$0xff]
      %v5251 = vld [vmem:[%s8 + $0x8] sm:$0xff]
      %v5252 = vld [vmem:[%s8 + $0x10] sm:$0xff]
      %v5253 = vld [vmem:[%s8 + $0x18] sm:$0xff]
      %5255 = vset.pattern.permute.xlu0 0
      %5256 = vperm.xlu0 %5255, %v5250
      %v5257 = vpop.permute.xlu0 %5256
      %5260 = vset.pattern.permute.xlu0 0
      %5261 = vperm.xlu0 %5260, %v5251
      %v5262 = vpop.permute.xlu0 %5261
      %5265 = vset.pattern.permute.xlu0 0
      %5266 = vperm.xlu0 %5265, %v5252
      %v5267 = vpop.permute.xlu0 %5266
      %5270 = vset.pattern.permute.xlu0 0
      %5271 = vperm.xlu0 %5270, %v5253
      %v5272 = vpop.permute.xlu0 %5271
      %v5274 = vadd.f32 %v5246, %v5257
      %v5275 = vadd.f32 %v5247, %v5262
      %v5276 = vadd.f32 %v5248, %v5267
      %v5277 = vadd.f32 %v5249, %v5272
      %vm5278 = vcmp.ge.f32.partialorder %v5274, 0.0
      %vm5279 = vcmp.ge.f32.partialorder %v5275, 0.0
      %vm5280 = vcmp.ge.f32.partialorder %v5276, 0.0
      %vm5281 = vcmp.ge.f32.partialorder %v5277, 0.0
      %v5282 = vld [vmem:[#allocation6] sm:$0x1]
      %v5284 = vlaneseq
      %v5285 = vshrl.u32 %v5284, 7
      %v5286 = vsub.s32 0, %v5285
      %v5287 = vrot.slane %v5282, %v5286
      %5288 = vset.pattern.permute.xlu0 0
      %5289 = vperm.xlu0 %5288, %v5287
      %v5290 = vpop.permute.xlu0 %5289
      %v5292 = vmul.f32 %v5290, %v5274
      %v5293 = vmul.f32 %v5290, %v5275
      %v5294 = vmul.f32 %v5290, %v5276
      %v5295 = vmul.f32 %v5290, %v5277
      %v5296 = vsel %vm5278, %v5274, %v5292
      %v5297 = vsel %vm5279, %v5275, %v5293
      %v5298 = vsel %vm5280, %v5276, %v5294
      %v5299 = vsel %vm5281, %v5277, %v5295
      %v5300 = vld [vmem:[%s10] sm:$0xff]
      %v5301 = vld [vmem:[%s10 + $0x8] sm:$0x7f]
      %v5302 = vld [vmem:[%s11] sm:$0xff]
      %v5303 = vld [vmem:[%s11 + $0x8] sm:$0x7f]
      %5305 = vset.pattern.permute.xlu0 0
      %5306 = vperm.xlu0 %5305, %v5302
      %v5307 = vpop.permute.xlu0 %5306
      %5310 = vset.pattern.permute.xlu0 0
      %5311 = vperm.xlu0 %5310, %v5303
      %v5312 = vpop.permute.xlu0 %5311
      %vm5314 = vcmask 261120
      %v5316 = vsel %vm5314, %v5300, 0
      %v5319 = vsel %vm5314, %v5301, 0
      %5321 = vmatprep.subr.mxu0 0.0
      %5322 = vmatpush1.msra.mxu0 %v5296
      %5323 = vmatprep.subr.mxu0 0.0
      %5324 = vmatpush1.msra.mxu0 %v5297
      %5325 = vmatprep.subr.mxu0 0.0
      %5326 = vmatpush1.msra.mxu0 %v5298
      %5327 = vmatprep.subr.mxu0 0.0
      %5328 = vmatpush1.msra.mxu0 %v5299
      %5329 = vmatprep.subr.mxu0 0.0
      %5330 = vmatpush1.msra.mxu0 0.0
      %5331 = vmatprep.subr.mxu0 0.0
      %5332 = vmatpush1.msra.mxu0 0.0
      %5333 = vmatprep.subr.mxu0 0.0
      %5334 = vmatpush1.msra.mxu0 0.0
      %5335 = vmatprep.subr.mxu0 0.0
      %5336 = vmatpush1.msra.mxu0 0.0
      %5337 = vmatprep.subr.mxu0 0.0
      %5338 = vmatpush1.msra.mxu0 0.0
      %5339 = vmatprep.subr.mxu0 0.0
      %5340 = vmatpush1.msra.mxu0 0.0
      %5341 = vmatprep.subr.mxu0 0.0
      %5342 = vmatpush1.msra.mxu0 0.0
      %5343 = vmatprep.subr.mxu0 0.0
      %5344 = vmatpush1.msra.mxu0 0.0
      %5345 = vmatprep.subr.mxu0 0.0
      %5346 = vmatpush1.msra.mxu0 0.0
      %5347 = vmatprep.subr.mxu0 0.0
      %5348 = vmatpush1.msra.mxu0 0.0
      %5349 = vmatprep.subr.mxu0 0.0
      %5350 = vmatpush1.msra.mxu0 0.0
      %5351 = vmatprep.subr.mxu0 0.0
      %5352 = vmatpush1.msra.mxu0 0.0
      %5353 = vmatprep.subr.mxu0 0.0
      %5354 = vmatpush1.msra.mxu0 0.0
      %5355 = vmatprep.subr.mxu0 0.0
      %5356 = vmatpush1.msra.mxu0 0.0
      %5357 = vmatprep.subr.mxu0 0.0
      %5358 = vmatpush1.msra.mxu0 0.0
      %5359 = vmatprep.subr.mxu0 0.0
      %5360 = vmatpush1.msra.mxu0 0.0
      %5361 = vmatprep.subr.mxu0 0.0
      %5362 = vmatpush1.msra.mxu0 0.0
      %5363 = vmatprep.subr.mxu0 0.0
      %5364 = vmatpush1.msra.mxu0 0.0
      %5365 = vmatprep.subr.mxu0 0.0
      %5366 = vmatpush1.msra.mxu0 0.0
      %5367 = vmatprep.subr.mxu0 0.0
      %5368 = vmatpush1.msra.mxu0 0.0
      %5369 = vmatprep.subr.mxu0 0.0
      %5370 = vmatpush1.msra.mxu0 0.0
      %5371 = vmatprep.subr.mxu0 0.0
      %5372 = vmatpush1.msra.mxu0 0.0
      %5373 = vmatprep.subr.mxu0 0.0
      %5374 = vmatpush1.msra.mxu0 0.0
      %5375 = vmatprep.subr.mxu0 0.0
      %5376 = vmatpush1.msra.mxu0 0.0
      %5377 = vmatprep.subr.mxu0 0.0
      %5378 = vmatpush1.msra.mxu0 0.0
      %5379 = vmatprep.subr.mxu0 0.0
      %5380 = vmatpush1.msra.mxu0 0.0
      %5381 = vmatprep.subr.mxu0 0.0
      %5382 = vmatpush1.msra.mxu0 0.0
      %5383 = vmatprep.subr.mxu0 0.0
      %5384 = vmatpush1.msra.mxu0 0.0
      %5385 = vmatprep.mubr.f32.mxu0 0.0
      %5386 = vmatmul.mubr.f32.gmra.mrb[0].mxu0 %v5316
      %v5387 = vpop.f32.mrb[0].mxu0
      %v5388 = vadd.f32 %v5307, %v5387
      %v5389 = vpop.f32.mrb[0].mxu0
      %5390 = vmatprep.mubr.f32.mxu0 0.0
      %5391 = vmatmul.mubr.f32.gmra.mrb[0].mxu0 %v5319
      %v5392 = vpop.f32.mrb[0].mxu0
      %v5393 = vadd.f32 %v5312, %v5392
      %v5394 = vpop.f32.mrb[0].mxu0
      %5395 = vdwg.mxu0
      %vm5396 = vcmask 195585
      %5397 = vst.msk [vmem:[%s419] sm:$0xfe] %vm5396, %v5388
      %vm5398 = vcmask 194560
      %5399 = vst.msk [vmem:[%s419 + $0x8] sm:$0x7f] %vm5398, %v5393
      %v5400 = vsub.f32 0.0, %v5388
      %v5401 = vmul.f32 %v5400, 1.442695
      %v5402 = vpow.pop %v5401
      %v5403 = vadd.f32 %v5402, 1.0
      %v5404 = vrcp.pop %v5403
      %v5405 = vmul.f32 1.0, %v5404
      %vm5406 = vcmask 188416
      %5407 = vst.msk [vmem:[%s419] sm:$0x1] %vm5406, %v5405
      %p5408 = scmp.lt.s32.totalorder %s29, 1
      %s5409 = scalar_select %p5408, %s29, 1
      %s5410 = smul.addr %s5409, 2
      %s5411 = smul.addr %s5410, 8
      %s5412 = scalar_lea.vmem %s12, %s5411
      // Predicated region
      $region69: #{pnet_forward.1} parent=67 // pred_check
        %p5413 = pneg %p304
      $region70: #{pnet_forward.1} parent=67 // pred_check_branch
        %5415 = sbr.rel (%p5413) target = $region72
      $region71: #{pnet_forward.1} parent=67 // pred_region
        _
      $region72: #{pnet_forward.1} parent=67 // pred_fallthru
        _
    $region68: #{pnet_forward.1} parent=5 // pred_fallthru
      _
    %p5416 = scmp.le.s32.totalorder 2, %s24
    // Predicated region
    $region73: #{pnet_forward.1} parent=5 // pred_check
      %p5417 = pneg %p5416
    $region74: #{pnet_forward.1} parent=5 // pred_check_branch
      %5419 = sbr.rel (%p5417) target = $region76
    $region75: #{pnet_forward.1} parent=5 // pred_region
      %s5420 = ssub.s32 %s24, 2
      // Predicated region
      $region77: #{pnet_forward.1} parent=75 // pred_check
        %p5421 = pneg %p310
      $region78: #{pnet_forward.1} parent=75 // pred_check_branch
        %5423 = sbr.rel (%p5421) target = $region80
      $region79: #{pnet_forward.1} parent=75 // pred_region
        %p5424 = scmp.lt.s32.totalorder %s30, 1
        %s5425 = scalar_select %p5424, %s30, 1
        %s5426 = smul.addr %s5425, 2
        %s5427 = smul.addr %s5426, 8
        %s5428 = scalar_lea.vmem %s12, %s5427
      $region80: #{pnet_forward.1} parent=75 // pred_fallthru
        _
    $region76: #{pnet_forward.1} parent=5 // pred_fallthru
      _
  $region6: #{pnet_forward.1} parent=0 // loop_footer
    %s28 = sadd.s32 1, %s24
  $region7: #{pnet_forward.1} parent=0 // loop_footer_branch
    %23 = sbr.rel target = $region3
  $region8: #{pnet_forward.1} parent=0 // loop_exit
    _

</llo_original>
